<compile_context>
chip_gen: v5e
topology: v5e:2x2
jax: 0.10.0
libtpu: 0.0.40
codegen_flags: <defaults>
</compile_context>

<pallas_src>
import numpy as np
import jax
import jax.numpy as jnp
from jax.experimental import pallas as pl
from jax.experimental.pallas import tpu as pltpu

# ---- model dims (all hidden dims equal, as the reference cat sizes require) ----
D_m, D_q, D_g, D_r, D_e, D_h, N_CLASSES = 16, 16, 16, 16, 16, 32, 7


# ---------------------------------------------------------------------------
# Fused recurrence kernel: both directions, all 6 GRUCells + SimpleAttention,
# full T-step recurrence unrolled inside the kernel (grid = (2,) over direction)
# ---------------------------------------------------------------------------
def _emotion_rnn_kernel(u_ref, qm_ref, sel_ref,
                        wg_ref, bg_ref, wrq_ref, brq_ref, wrl_ref, brl_ref,
                        we_ref, be_ref, attw_ref,
                        e_out_ref, alpha_out_ref):
    T, B = u_ref.shape[1], u_ref.shape[2]
    P = qm_ref.shape[3]
    H = attw_ref.shape[2]                       # common hidden size (16)

    # weights stay VMEM/vreg resident for the whole direction
    Wg, bg = wg_ref[0], bg_ref[0]               # (64,64), (1,64)   g_cell
    Wrq, brq = wrq_ref[0], brq_ref[0]           # (96,128), (1,128) r_cell | p_cell
    Wrl, brl = wrl_ref[0], brl_ref[0]           # (96,128), (1,128) rl_cell | pl_cell
    We, be = we_ref[0], be_ref[0]               # (64,64), (1,64)   e_cell
    w_att = attw_ref[0]                         # (1, H)

    def gru_out(gates, h):
        # gates = [x|h] @ W_packed + b_packed, columns [rz(2H) | xn(H) | hn(H)]
        r = jax.nn.sigmoid(gates[:, :H])
        z = jax.nn.sigmoid(gates[:, H:2 * H])
        n = jnp.tanh(gates[:, 2 * H:3 * H] + r * gates[:, 3 * H:4 * H])
        return (1.0 - z) * n + z * h

    q = jnp.zeros((B, P, H), jnp.float32)       # party q state
    r = jnp.zeros((B, P, H), jnp.float32)       # party r state
    e = jnp.zeros((B, H), jnp.float32)          # emotion state
    g_hist, e_list, alpha_list = [], [], []

    for t in range(T):                          # fully unrolled, static indices
        U = u_ref[0, t]                         # (B, D_m)
        qmask = qm_ref[0, t]                    # (B, P)
        sel = sel_ref[0, t]                     # (B, P) one-hot speaker selector

        def select(X):                          # (B,P,H) -> (B,H)
            return jnp.sum(sel[:, :, None] * X, axis=1)

        def expand(v):                          # (B,X) -> (B*P,X)
            return jnp.broadcast_to(v[:, None, :], (B, P, v.shape[1])).reshape(B * P, v.shape[1])

        # ---- global-state GRU (inputs [q0_sel, r0_sel, U], hidden g_prev) ----
        g_prev = g_hist[-1] if t > 0 else jnp.zeros((B, H), jnp.float32)
        xg = jnp.concatenate([select(q), select(r), U, g_prev], axis=1)         # (B, 64)
        g_ = gru_out(jnp.dot(xg, Wg, preferred_element_type=jnp.float32) + bg, g_prev)

        # ---- SimpleAttention over g_0..g_{t-1} (excludes current step) ----
        if t == 0:
            c_ = jnp.zeros((B, H), jnp.float32)
            alpha_list.append(jnp.zeros((B, T), jnp.float32))
        else:
            M = jnp.stack(g_hist, axis=1)                                        # (B, t, H)
            score = jnp.sum(M * w_att[:, None, :], axis=-1)                      # (B, t)
            score = score - jnp.max(score, axis=1, keepdims=True)
            ex = jnp.exp(score)
            alpha = ex / jnp.sum(ex, axis=1, keepdims=True)                      # (B, t)
            c_ = jnp.sum(alpha[:, :, None] * M, axis=1)                          # (B, H)
            alpha_list.append(jnp.concatenate(
                [alpha, jnp.zeros((B, T - t), jnp.float32)], axis=1))            # (B, T)
        g_hist.append(g_)

        # ---- party GRUs: r/p fused into one matmul, rl/pl fused into one ----
        q_flat = q.reshape(B * P, H)
        r_flat = r.reshape(B * P, H)
        Ue, ge, ce = expand(U), expand(g_), expand(c_)

        # r_cell input [c_, U] + hidden r0 | p_cell input [U, g_] + hidden q0
        x_rq = jnp.concatenate([ce, Ue, r_flat, Ue, ge, q_flat], axis=1)         # (B*P, 96)
        gates = jnp.dot(x_rq, Wrq, preferred_element_type=jnp.float32) + brq     # (B*P, 128)
        rs3 = gru_out(gates[:, :4 * H], r_flat).reshape(B, P, H)
        qs3 = gru_out(gates[:, 4 * H:], q_flat).reshape(B, P, H)

        # rl_cell input [rss_, U] + hidden r0 | pl_cell input [U, ss_] + hidden q0
        x_rl = jnp.concatenate([expand(select(rs3)), Ue, r_flat,
                                Ue, expand(select(qs3)), q_flat], axis=1)        # (B*P, 96)
        gates = jnp.dot(x_rl, Wrl, preferred_element_type=jnp.float32) + brl
        rl3 = gru_out(gates[:, :4 * H], r_flat).reshape(B, P, H)
        ql3 = gru_out(gates[:, 4 * H:], q_flat).reshape(B, P, H)

        qm3 = qmask[:, :, None]
        q = ql3 * qm3 + qs3 * (1.0 - qm3)
        r = rs3 * qm3 + rl3 * (1.0 - qm3)

        # ---- emotion GRU (inputs [U, q_sel, g_], hidden e_prev) ----
        xe = jnp.concatenate([U, select(q), g_, e], axis=1)                      # (B, 64)
        e = gru_out(jnp.dot(xe, We, preferred_element_type=jnp.float32) + be, e)
        e_list.append(e)

    # single lane-dense writebacks per direction
    e_out_ref[0] = jnp.concatenate(e_list, axis=1)        # (B, T*D_e) = (2, 128)
    alpha_out_ref[0] = jnp.stack(alpha_list, axis=0)      # (T, B, T)


def emotion_rnn_both(U2, qmask2, sel2, rnn):
    """Run forward + backward recurrences in one pallas_call (grid over direction)."""
    _, T, B, _ = U2.shape
    H = D_e

    def full_spec(shape):
        nd = len(shape)
        return pl.BlockSpec((1,) + tuple(shape[1:]), lambda d, _nd=nd: (d,) + (0,) * (_nd - 1))

    in_arrays = [U2, qmask2, sel2,
                 rnn["wg"], rnn["bg"], rnn["wrq"], rnn["brq"],
                 rnn["wrl"], rnn["brl"], rnn["we"], rnn["be"], rnn["attw"]]
    in_specs = [full_spec(a.shape) for a in in_arrays]

    e_out, alpha_out = pl.pallas_call(
        _emotion_rnn_kernel,
        out_shape=(jax.ShapeDtypeStruct((2, B, T * H), jnp.float32),
                   jax.ShapeDtypeStruct((2, T, B, T), jnp.float32)),
        grid_spec=pltpu.PrefetchScalarGridSpec(
            num_scalar_prefetch=0,
            grid=(2,),
            in_specs=in_specs,
            out_specs=(pl.BlockSpec((1, B, T * H), lambda d: (d, 0, 0)),
                       pl.BlockSpec((1, T, B, T), lambda d: (d, 0, 0, 0)))),
        compiler_params=pltpu.CompilerParams(
            dimension_semantics=("parallel",)),
    )(*in_arrays)
    return e_out, alpha_out


# ---------------------------------------------------------------------------
# Classifier: linear -> (dropout: eval identity) -> linear -> log_softmax
# (the reference has NO ReLU between the two linears)
# ---------------------------------------------------------------------------
def _mlp_kernel(x_ref, w1_ref, b1_ref, w2_ref, b2_ref, out_ref):
    hid = jnp.dot(x_ref[...], w1_ref[...], preferred_element_type=jnp.float32) + b1_ref[...]
    logits = jnp.dot(hid, w2_ref[...], preferred_element_type=jnp.float32) + b2_ref[...]
    shifted = logits - jnp.max(logits, axis=-1, keepdims=True)
    out_ref[...] = shifted - jnp.log(jnp.sum(jnp.exp(shifted), axis=-1, keepdims=True))


def mlp_logsoftmax(x, params):
    N = x.shape[0]
    C = params["smax_b"].shape[1]
    vm = [pl.BlockSpec(memory_space=pltpu.MemorySpace.VMEM) for _ in range(5)]
    return pl.pallas_call(
        _mlp_kernel,
        out_shape=jax.ShapeDtypeStruct((N, C), jnp.float32),
        in_specs=vm,
        out_specs=pl.BlockSpec(memory_space=pltpu.MemorySpace.VMEM),
    )(x, params["lin_w"], params["lin_b"], params["smax_w"], params["smax_b"])


# ---------------------------------------------------------------------------
# JAX glue (all on-device, fully jit-able)
# ---------------------------------------------------------------------------
def reverse_sequence(X, umask):
    # Matches torch pad_sequence([flip(x[:len_b])]) when max(len) == T (the
    # reference's concat implicitly requires this).  Padded rows -> zeros.
    T, B = X.shape[0], X.shape[1]
    lens = jnp.sum(umask, axis=1).astype(jnp.int32)                  # (B,)
    t_idx = jnp.arange(T, dtype=jnp.int32)[:, None]                  # (T, 1)
    valid = t_idx < lens[None, :]                                    # (T, B)
    src = jnp.where(valid, lens[None, :] - 1 - t_idx, 0)             # (T, B)
    tail = (1,) * (X.ndim - 2)
    src_full = jnp.broadcast_to(src.reshape((T, B) + tail), X.shape)
    gathered = jnp.take_along_axis(X, src_full, axis=0)
    return gathered * valid.reshape((T, B) + tail).astype(X.dtype)


def emotion_net(U, qmask, umask, params):
    T, B, _ = U.shape
    rev_U = reverse_sequence(U, umask)
    rev_qmask = reverse_sequence(qmask, umask)
    U2 = jnp.stack([U, rev_U], axis=0)                               # (2, T, B, D_m)
    qmask2 = jnp.stack([qmask, rev_qmask], axis=0)                   # (2, T, B, P)
    # speaker one-hot selector precomputed outside the recurrence
    sel2 = jax.nn.one_hot(jnp.argmax(qmask2, axis=-1), qmask2.shape[-1], dtype=jnp.float32)

    e_out, alpha_out = emotion_rnn_both(U2, qmask2, sel2, params["rnn"])
    e_dir = jnp.transpose(e_out.reshape(2, B, T, D_e), (0, 2, 1, 3))  # (2, T, B, D_e)
    emotions_f = e_dir[0]
    emotions_b = reverse_sequence(e_dir[1], umask)
    emotions = jnp.concatenate([emotions_f, emotions_b], axis=-1)     # (T, B, 2*D_e)

    log_prob = mlp_logsoftmax(emotions.reshape(T * B, 2 * D_e), params)
    # NOTE: e for padded timesteps is nonzero (all GRUs run) exactly as in the
    # reference; downstream loss masking with umask is assumed.
    return log_prob.reshape(T, B, N_CLASSES), alpha_out[0], alpha_out[1]


def alpha_to_list(alpha_dense):
    """Reference-style alpha list: step t (t >= 1) -> (B, 1, t).  Built lazily."""
    T = alpha_dense.shape[0]
    return [alpha_dense[t, :, None, :t] for t in range(1, T)]


# ---------------------------------------------------------------------------
# Parameter init (nn.GRUCell-style uniform), packed into fused layouts
# ---------------------------------------------------------------------------
def _fuse_gru(key, in_dim, H):
    """Single-matmul GRU layout: W (in_dim+H, 4H) cols [rz | xn | hn], b (1, 4H)."""
    k = 1.0 / np.sqrt(H)
    k1, k2, k3, k4 = jax.random.split(key, 4)
    wih = jax.random.uniform(k1, (in_dim, 3 * H), jnp.float32, -k, k)   # cols [r|z|n]
    whh = jax.random.uniform(k2, (H, 3 * H), jnp.float32, -k, k)
    bih = jax.random.uniform(k3, (3 * H,), jnp.float32, -k, k)
    bhh = jax.random.uniform(k4, (3 * H,), jnp.float32, -k, k)
    W = jnp.zeros((in_dim + H, 4 * H), jnp.float32)
    W = W.at[:in_dim, :2 * H].set(wih[:, :2 * H])
    W = W.at[in_dim:, :2 * H].set(whh[:, :2 * H])
    W = W.at[:in_dim, 2 * H:3 * H].set(wih[:, 2 * H:])
    W = W.at[in_dim:, 3 * H:].set(whh[:, 2 * H:])
    b = jnp.concatenate([bih[:2 * H] + bhh[:2 * H], bih[2 * H:], bhh[2 * H:]])[None, :]
    return W, b


def _pack_pair(Wa, ba, Wb, bb):
    """Block-diagonal packing of two independent fused GRU cells."""
    Ka, Na = Wa.shape
    Kb, Nb = Wb.shape
    W = jnp.zeros((Ka + Kb, Na + Nb), jnp.float32)
    W = W.at[:Ka, :Na].set(Wa)
    W = W.at[Ka:, Na:].set(Wb)
    return W, jnp.concatenate([ba, bb], axis=1)


def init_params(key):
    kf, kb, kl, ksm = jax.random.split(key, 4)

    def direction(k):
        ks = jax.random.split(k, 7)
        Wg, bg = _fuse_gru(ks[0], D_q + D_r + D_m, D_g)        # g_cell   [q_sel, r_sel, U]
        Wr, br = _fuse_gru(ks[1], D_g + D_m, D_r)              # r_cell   [c_, U]
        Wp, bp = _fuse_gru(ks[2], D_m + D_g, D_q)              # p_cell   [U, g_]
        Wrl, brl = _fuse_gru(ks[3], D_r + D_m, D_r)            # rl_cell  [rss_, U]
        Wpl, bpl = _fuse_gru(ks[4], D_m + D_q, D_q)            # pl_cell  [U, ss_]
        We, be = _fuse_gru(ks[5], D_m + D_q + D_g, D_e)        # e_cell   [U, q_sel, g_]
        Wrq, brq = _pack_pair(Wr, br, Wp, bp)                  # (96, 128)
        Wrlpl, brlpl = _pack_pair(Wrl, brl, Wpl, bpl)          # (96, 128)
        attw = 0.1 * jax.random.normal(ks[6], (1, D_g), jnp.float32)
        return dict(wg=Wg, bg=bg, wrq=Wrq, brq=brq, wrl=Wrlpl, brl=brlpl,
                    we=We, be=be, attw=attw)

    f, b = direction(kf), direction(kb)
    rnn = {k: jnp.stack([f[k], b[k]], axis=0) for k in f}      # dir-stacked weights
    return dict(
        rnn=rnn,
        lin_w=jax.random.normal(kl, (2 * D_e, D_h), jnp.float32) * np.sqrt(2.0 / (2 * D_e)),
        lin_b=jnp.zeros((1, D_h), jnp.float32),
        smax_w=jax.random.normal(ksm, (D_h, N_CLASSES), jnp.float32) * np.sqrt(2.0 / D_h),
        smax_b=jnp.zeros((1, N_CLASSES), jnp.float32),
    )


# ---------------------------------------------------------------------------
# demo
# ---------------------------------------------------------------------------
if __name__ == "__main__":
    key = jax.random.PRNGKey(0)
    T, B, P = 8, 2, 2
    k1, k2, k3 = jax.random.split(key, 3)
    params = init_params(k1)

    U = jax.random.normal(k2, (T, B, D_m), jnp.float32)
    speakers = jax.random.randint(k3, (T, B), 0, P)
    qmask = jax.nn.one_hot(speakers, P, dtype=jnp.float32)            # (T, B, P)

    lens = jnp.array([T, T - 2], dtype=jnp.int32)                     # longest seq == T
    umask = (jnp.arange(T)[None, :] < lens[:, None]).astype(jnp.float32)   # (B, T)
    valid = (jnp.arange(T)[:, None] < lens[None, :]).astype(jnp.float32)   # (T, B)
    U = U * valid[:, :, None]
    qmask = qmask * valid[:, :, None]

    fwd = jax.jit(emotion_net)
    log_prob, alpha_f_dense, alpha_b_dense = fwd(U, qmask, umask, params)
    log_prob = jax.block_until_ready(log_prob)

    assert log_prob.shape == (T, B, N_CLASSES)
    assert bool(jnp.all(jnp.isfinite(log_prob)))
    # reference-style per-step alpha lists, built lazily outside jit
    alpha_f = alpha_to_list(alpha_f_dense)
    alpha_b = alpha_to_list(alpha_b_dense)
    assert len(alpha_f) == T - 1 and alpha_f[-1].shape == (B, 1, T - 1)
    assert len(alpha_b) == T - 1
    print("KERNEL_OK")
</pallas_src>

<mosaic_0001>
module attributes {stable_mosaic.version = 11 : i64} {
  func.func @_mlp_kernel(%arg0: memref<16x32xf32, #tpu.memory_space<vmem>>, %arg1: memref<32x32xf32, #tpu.memory_space<vmem>>, %arg2: memref<1x32xf32, #tpu.memory_space<vmem>>, %arg3: memref<32x7xf32, #tpu.memory_space<vmem>>, %arg4: memref<1x7xf32, #tpu.memory_space<vmem>>, %arg5: memref<16x7xf32, #tpu.memory_space<vmem>>) attributes {dimension_semantics = [], scalar_prefetch = 0 : i64, scratch_operands = 0 : i64, tpu.core_type = #tpu.core_type<tc>} {
    %c0 = arith.constant 0 : index
    %c0_0 = arith.constant 0 : index
    %0 = vector.load %arg0[%c0, %c0_0] : memref<16x32xf32, #tpu.memory_space<vmem>>, vector<16x32xf32>
    %c0_1 = arith.constant 0 : index
    %c0_2 = arith.constant 0 : index
    %1 = vector.load %arg1[%c0_1, %c0_2] : memref<32x32xf32, #tpu.memory_space<vmem>>, vector<32x32xf32>
    %cst = arith.constant dense<0.000000e+00> : vector<16x32xf32>
    %2 = tpu.matmul %0, %1, %cst {dimension_numbers = #tpu.dot_dimension_numbers<[1], [0], [0], [1], [0, 0, 1, 1], [], []>} : vector<16x32xf32>, vector<32x32xf32>, vector<16x32xf32> -> vector<16x32xf32>
    %c0_3 = arith.constant 0 : index
    %c0_4 = arith.constant 0 : index
    %3 = vector.load %arg2[%c0_3, %c0_4] : memref<1x32xf32, #tpu.memory_space<vmem>>, vector<1x32xf32>
    %4 = vector.broadcast %3 : vector<1x32xf32> to vector<16x32xf32>
    %5 = arith.addf %2, %4 : vector<16x32xf32>
    %c0_5 = arith.constant 0 : index
    %c0_6 = arith.constant 0 : index
    %6 = vector.load %arg3[%c0_5, %c0_6] : memref<32x7xf32, #tpu.memory_space<vmem>>, vector<32x7xf32>
    %cst_7 = arith.constant dense<0.000000e+00> : vector<16x7xf32>
    %7 = tpu.matmul %5, %6, %cst_7 {dimension_numbers = #tpu.dot_dimension_numbers<[1], [0], [0], [1], [0, 0, 1, 1], [], []>} : vector<16x32xf32>, vector<32x7xf32>, vector<16x7xf32> -> vector<16x7xf32>
    %c0_8 = arith.constant 0 : index
    %c0_9 = arith.constant 0 : index
    %8 = vector.load %arg4[%c0_8, %c0_9] : memref<1x7xf32, #tpu.memory_space<vmem>>, vector<1x7xf32>
    %9 = vector.broadcast %8 : vector<1x7xf32> to vector<16x7xf32>
    %10 = arith.addf %7, %9 : vector<16x7xf32>
    %cst_10 = arith.constant dense<0xFF800000> : vector<16xf32>
    %11 = vector.multi_reduction <maximumf>, %10, %cst_10 [1] : vector<16x7xf32> to vector<16xf32>
    %12 = vector.shape_cast %11 : vector<16xf32> to vector<16x1xf32>
    %13 = vector.broadcast %12 : vector<16x1xf32> to vector<16x7xf32>
    %14 = arith.subf %10, %13 : vector<16x7xf32>
    %15 = math.exp %14 : vector<16x7xf32>
    %cst_11 = arith.constant dense<0.000000e+00> : vector<16xf32>
    %16 = vector.multi_reduction <add>, %15, %cst_11 [1] : vector<16x7xf32> to vector<16xf32>
    %17 = vector.shape_cast %16 : vector<16xf32> to vector<16x1xf32>
    %18 = math.log %17 : vector<16x1xf32>
    %19 = vector.broadcast %18 : vector<16x1xf32> to vector<16x7xf32>
    %20 = arith.subf %14, %19 : vector<16x7xf32>
    %c0_12 = arith.constant 0 : index
    %c0_13 = arith.constant 0 : index
    %21 = vector.load %arg5[%c0_12, %c0_13] : memref<16x7xf32, #tpu.memory_space<vmem>>, vector<16x7xf32>
    tpu.vector_store %arg5[%c0_12, %c0_13], %20 {strides = array<i32>} : memref<16x7xf32, #tpu.memory_space<vmem>>, vector<16x7xf32>,
    return
  }
}

module attributes {stable_mosaic.version = 11 : i64} {
  func.func @_emotion_rnn_kernel(%arg0: i32, %arg1: memref<1x8x2x16xf32, #tpu.memory_space<vmem>>, %arg2: memref<1x8x2x2xf32, #tpu.memory_space<vmem>>, %arg3: memref<1x8x2x2xf32, #tpu.memory_space<vmem>>, %arg4: memref<1x64x64xf32, #tpu.memory_space<vmem>>, %arg5: memref<1x1x64xf32, #tpu.memory_space<vmem>>, %arg6: memref<1x96x128xf32, #tpu.memory_space<vmem>>, %arg7: memref<1x1x128xf32, #tpu.memory_space<vmem>>, %arg8: memref<1x96x128xf32, #tpu.memory_space<vmem>>, %arg9: memref<1x1x128xf32, #tpu.memory_space<vmem>>, %arg10: memref<1x64x64xf32, #tpu.memory_space<vmem>>, %arg11: memref<1x1x64xf32, #tpu.memory_space<vmem>>, %arg12: memref<1x1x16xf32, #tpu.memory_space<vmem>>, %arg13: memref<1x2x128xf32, #tpu.memory_space<vmem>>, %arg14: memref<1x8x2x8xf32, #tpu.memory_space<vmem>>) attributes {dimension_semantics = [#tpu.dimension_semantics<parallel>], iteration_bounds = array<i64: 2>, scalar_prefetch = 0 : i64, scratch_operands = 0 : i64, tpu.core_type = #tpu.core_type<tc>, window_params = [{transform_indices = @transform_0, window_bounds = array<i64: 1, 8, 2, 16>}, {transform_indices = @transform_1, window_bounds = array<i64: 1, 8, 2, 2>}, {transform_indices = @transform_2, window_bounds = array<i64: 1, 8, 2, 2>}, {transform_indices = @transform_3, window_bounds = array<i64: 1, 64, 64>}, {transform_indices = @transform_4, window_bounds = array<i64: 1, 1, 64>}, {transform_indices = @transform_5, window_bounds = array<i64: 1, 96, 128>}, {transform_indices = @transform_6, window_bounds = array<i64: 1, 1, 128>}, {transform_indices = @transform_7, window_bounds = array<i64: 1, 96, 128>}, {transform_indices = @transform_8, window_bounds = array<i64: 1, 1, 128>}, {transform_indices = @transform_9, window_bounds = array<i64: 1, 64, 64>}, {transform_indices = @transform_10, window_bounds = array<i64: 1, 1, 64>}, {transform_indices = @transform_11, window_bounds = array<i64: 1, 1, 16>}, {transform_indices = @transform_12, window_bounds = array<i64: 1, 2, 128>}, {transform_indices = @transform_13, window_bounds = array<i64: 1, 8, 2, 8>}]} {
    %c0 = arith.constant 0 : index
    %c0_0 = arith.constant 0 : index
    %c0_1 = arith.constant 0 : index
    %0 = vector.load %arg4[%c0, %c0_0, %c0_1] : memref<1x64x64xf32, #tpu.memory_space<vmem>>, vector<1x64x64xf32>
    %1 = vector.shape_cast %0 : vector<1x64x64xf32> to vector<64x64xf32>
    %c0_2 = arith.constant 0 : index
    %c0_3 = arith.constant 0 : index
    %c0_4 = arith.constant 0 : index
    %2 = vector.load %arg5[%c0_2, %c0_3, %c0_4] : memref<1x1x64xf32, #tpu.memory_space<vmem>>, vector<1x1x64xf32>
    %3 = vector.shape_cast %2 : vector<1x1x64xf32> to vector<1x64xf32>
    %c0_5 = arith.constant 0 : index
    %c0_6 = arith.constant 0 : index
    %c0_7 = arith.constant 0 : index
    %4 = vector.load %arg6[%c0_5, %c0_6, %c0_7] : memref<1x96x128xf32, #tpu.memory_space<vmem>>, vector<1x96x128xf32>
    %5 = vector.shape_cast %4 : vector<1x96x128xf32> to vector<96x128xf32>
    %c0_8 = arith.constant 0 : index
    %c0_9 = arith.constant 0 : index
    %c0_10 = arith.constant 0 : index
    %6 = vector.load %arg7[%c0_8, %c0_9, %c0_10] : memref<1x1x128xf32, #tpu.memory_space<vmem>>, vector<1x1x128xf32>
    %7 = vector.shape_cast %6 : vector<1x1x128xf32> to vector<1x128xf32>
    %c0_11 = arith.constant 0 : index
    %c0_12 = arith.constant 0 : index
    %c0_13 = arith.constant 0 : index
    %8 = vector.load %arg8[%c0_11, %c0_12, %c0_13] : memref<1x96x128xf32, #tpu.memory_space<vmem>>, vector<1x96x128xf32>
    %9 = vector.shape_cast %8 : vector<1x96x128xf32> to vector<96x128xf32>
    %c0_14 = arith.constant 0 : index
    %c0_15 = arith.constant 0 : index
    %c0_16 = arith.constant 0 : index
    %10 = vector.load %arg9[%c0_14, %c0_15, %c0_16] : memref<1x1x128xf32, #tpu.memory_space<vmem>>, vector<1x1x128xf32>
    %11 = vector.shape_cast %10 : vector<1x1x128xf32> to vector<1x128xf32>
    %c0_17 = arith.constant 0 : index
    %c0_18 = arith.constant 0 : index
    %c0_19 = arith.constant 0 : index
    %12 = vector.load %arg10[%c0_17, %c0_18, %c0_19] : memref<1x64x64xf32, #tpu.memory_space<vmem>>, vector<1x64x64xf32>
    %13 = vector.shape_cast %12 : vector<1x64x64xf32> to vector<64x64xf32>
    %c0_20 = arith.constant 0 : index
    %c0_21 = arith.constant 0 : index
    %c0_22 = arith.constant 0 : index
    %14 = vector.load %arg11[%c0_20, %c0_21, %c0_22] : memref<1x1x64xf32, #tpu.memory_space<vmem>>, vector<1x1x64xf32>
    %15 = vector.shape_cast %14 : vector<1x1x64xf32> to vector<1x64xf32>
    %c0_23 = arith.constant 0 : index
    %c0_24 = arith.constant 0 : index
    %c0_25 = arith.constant 0 : index
    %16 = vector.load %arg12[%c0_23, %c0_24, %c0_25] : memref<1x1x16xf32, #tpu.memory_space<vmem>>, vector<1x1x16xf32>
    %17 = vector.shape_cast %16 : vector<1x1x16xf32> to vector<1x16xf32>
    %cst = arith.constant 0.000000e+00 : f32
    %18 = vector.broadcast %cst : f32 to vector<2x2x16xf32>
    %cst_26 = arith.constant 0.000000e+00 : f32
    %19 = vector.broadcast %cst_26 : f32 to vector<2x2x16xf32>
    %cst_27 = arith.constant 0.000000e+00 : f32
    %20 = vector.broadcast %cst_27 : f32 to vector<2x16xf32>
    %c0_28 = arith.constant 0 : index
    %c0_29 = arith.constant 0 : index
    %c0_30 = arith.constant 0 : index
    %c0_31 = arith.constant 0 : index
    %21 = vector.load %arg1[%c0_28, %c0_29, %c0_30, %c0_31] : memref<1x8x2x16xf32, #tpu.memory_space<vmem>>, vector<1x1x2x16xf32>
    %22 = vector.shape_cast %21 : vector<1x1x2x16xf32> to vector<2x16xf32>
    %c0_32 = arith.constant 0 : index
    %c0_33 = arith.constant 0 : index
    %c0_34 = arith.constant 0 : index
    %c0_35 = arith.constant 0 : index
    %23 = vector.load %arg2[%c0_32, %c0_33, %c0_34, %c0_35] : memref<1x8x2x2xf32, #tpu.memory_space<vmem>>, vector<1x1x2x2xf32>
    %24 = vector.shape_cast %23 : vector<1x1x2x2xf32> to vector<2x2xf32>
    %c0_36 = arith.constant 0 : index
    %c0_37 = arith.constant 0 : index
    %c0_38 = arith.constant 0 : index
    %c0_39 = arith.constant 0 : index
    %25 = vector.load %arg3[%c0_36, %c0_37, %c0_38, %c0_39] : memref<1x8x2x2xf32, #tpu.memory_space<vmem>>, vector<1x1x2x2xf32>
    %26 = vector.shape_cast %25 : vector<1x1x2x2xf32> to vector<2x2xf32>
    %cst_40 = arith.constant 0.000000e+00 : f32
    %27 = vector.broadcast %cst_40 : f32 to vector<2x16xf32>
    %28 = vector.shape_cast %26 : vector<2x2xf32> to vector<2x2x1xf32>
    %29 = vector.broadcast %28 : vector<2x2x1xf32> to vector<2x2x16xf32>
    %30 = arith.mulf %29, %18 : vector<2x2x16xf32>
    %cst_41 = arith.constant dense<0.000000e+00> : vector<2x16xf32>
    %31 = vector.multi_reduction <add>, %30, %cst_41 [1] : vector<2x2x16xf32> to vector<2x16xf32>
    %32 = vector.shape_cast %26 : vector<2x2xf32> to vector<2x2x1xf32>
    %33 = vector.broadcast %32 : vector<2x2x1xf32> to vector<2x2x16xf32>
    %34 = arith.mulf %33, %19 : vector<2x2x16xf32>
    %cst_42 = arith.constant dense<0.000000e+00> : vector<2x16xf32>
    %35 = vector.multi_reduction <add>, %34, %cst_42 [1] : vector<2x2x16xf32> to vector<2x16xf32>
    %36 = tpu.concatenate %31, %35, %22, %27 in 1 : vector<2x16xf32>, vector<2x16xf32>, vector<2x16xf32>, vector<2x16xf32> -> vector<2x64xf32>
    %cst_43 = arith.constant dense<0.000000e+00> : vector<2x64xf32>
    %37 = tpu.matmul %36, %1, %cst_43 {dimension_numbers = #tpu.dot_dimension_numbers<[1], [0], [0], [1], [0, 0, 1, 1], [], []>} : vector<2x64xf32>, vector<64x64xf32>, vector<2x64xf32> -> vector<2x64xf32>
    %38 = vector.broadcast %3 : vector<1x64xf32> to vector<2x64xf32>
    %39 = arith.addf %37, %38 : vector<2x64xf32>
    %40 = vector.extract_strided_slice %39 {offsets = [0, 0], sizes = [2, 16], strides = [1, 1]} : vector<2x64xf32> to vector<2x16xf32>
    %41 = arith.negf %40 : vector<2x16xf32>
    %42 = math.exp %41 : vector<2x16xf32>
    %cst_44 = arith.constant 1.000000e+00 : f32
    %43 = vector.broadcast %cst_44 : f32 to vector<2x16xf32>
    %44 = arith.addf %43, %42 : vector<2x16xf32>
    %45 = arith.divf %43, %44 : vector<2x16xf32>
    %46 = vector.extract_strided_slice %39 {offsets = [0, 16], sizes = [2, 16], strides = [1, 1]} : vector<2x64xf32> to vector<2x16xf32>
    %47 = arith.negf %46 : vector<2x16xf32>
    %48 = math.exp %47 : vector<2x16xf32>
    %cst_45 = arith.constant 1.000000e+00 : f32
    %49 = vector.broadcast %cst_45 : f32 to vector<2x16xf32>
    %50 = arith.addf %49, %48 : vector<2x16xf32>
    %51 = arith.divf %49, %50 : vector<2x16xf32>
    %52 = vector.extract_strided_slice %39 {offsets = [0, 32], sizes = [2, 16], strides = [1, 1]} : vector<2x64xf32> to vector<2x16xf32>
    %53 = vector.extract_strided_slice %39 {offsets = [0, 48], sizes = [2, 16], strides = [1, 1]} : vector<2x64xf32> to vector<2x16xf32>
    %54 = arith.mulf %45, %53 : vector<2x16xf32>
    %55 = arith.addf %52, %54 : vector<2x16xf32>
    %56 = math.tanh %55 : vector<2x16xf32>
    %cst_46 = arith.constant 1.000000e+00 : f32
    %57 = vector.broadcast %cst_46 : f32 to vector<2x16xf32>
    %58 = arith.subf %57, %51 : vector<2x16xf32>
    %59 = arith.mulf %58, %56 : vector<2x16xf32>
    %60 = arith.mulf %51, %27 : vector<2x16xf32>
    %61 = arith.addf %59, %60 : vector<2x16xf32>
    %cst_47 = arith.constant 0.000000e+00 : f32
    %62 = vector.broadcast %cst_47 : f32 to vector<2x16xf32>
    %cst_48 = arith.constant 0.000000e+00 : f32
    %63 = vector.broadcast %cst_48 : f32 to vector<2x8xf32>
    %64 = vector.shape_cast %18 : vector<2x2x16xf32> to vector<4x16xf32>
    %65 = vector.shape_cast %19 : vector<2x2x16xf32> to vector<4x16xf32>
    %66 = vector.shape_cast %22 : vector<2x16xf32> to vector<2x1x16xf32>
    %67 = vector.shape_cast %66 : vector<2x1x16xf32> to vector<2x1x16xf32>
    %68 = vector.broadcast %67 : vector<2x1x16xf32> to vector<2x2x16xf32>
    %69 = vector.shape_cast %68 : vector<2x2x16xf32> to vector<4x16xf32>
    %70 = vector.shape_cast %61 : vector<2x16xf32> to vector<2x1x16xf32>
    %71 = vector.shape_cast %70 : vector<2x1x16xf32> to vector<2x1x16xf32>
    %72 = vector.broadcast %71 : vector<2x1x16xf32> to vector<2x2x16xf32>
    %73 = vector.shape_cast %72 : vector<2x2x16xf32> to vector<4x16xf32>
    %74 = vector.shape_cast %62 : vector<2x16xf32> to vector<2x1x16xf32>
    %75 = vector.shape_cast %74 : vector<2x1x16xf32> to vector<2x1x16xf32>
    %76 = vector.broadcast %75 : vector<2x1x16xf32> to vector<2x2x16xf32>
    %77 = vector.shape_cast %76 : vector<2x2x16xf32> to vector<4x16xf32>
    %78 = tpu.concatenate %77, %69, %65, %69, %73, %64 in 1 : vector<4x16xf32>, vector<4x16xf32>, vector<4x16xf32>, vector<4x16xf32>, vector<4x16xf32>, vector<4x16xf32> -> vector<4x96xf32>
    %cst_49 = arith.constant dense<0.000000e+00> : vector<4x128xf32>
    %79 = tpu.matmul %78, %5, %cst_49 {dimension_numbers = #tpu.dot_dimension_numbers<[1], [0], [0], [1], [0, 0, 1, 1], [], []>} : vector<4x96xf32>, vector<96x128xf32>, vector<4x128xf32> -> vector<4x128xf32>
    %80 = vector.broadcast %7 : vector<1x128xf32> to vector<4x128xf32>
    %81 = arith.addf %79, %80 : vector<4x128xf32>
    %82 = vector.extract_strided_slice %81 {offsets = [0, 0], sizes = [4, 64], strides = [1, 1]} : vector<4x128xf32> to vector<4x64xf32>
    %83 = vector.extract_strided_slice %82 {offsets = [0, 0], sizes = [4, 16], strides = [1, 1]} : vector<4x64xf32> to vector<4x16xf32>
    %84 = arith.negf %83 : vector<4x16xf32>
    %85 = math.exp %84 : vector<4x16xf32>
    %cst_50 = arith.constant 1.000000e+00 : f32
    %86 = vector.broadcast %cst_50 : f32 to vector<4x16xf32>
    %87 = arith.addf %86, %85 : vector<4x16xf32>
    %88 = arith.divf %86, %87 : vector<4x16xf32>
    %89 = vector.extract_strided_slice %82 {offsets = [0, 16], sizes = [4, 16], strides = [1, 1]} : vector<4x64xf32> to vector<4x16xf32>
    %90 = arith.negf %89 : vector<4x16xf32>
    %91 = math.exp %90 : vector<4x16xf32>
    %cst_51 = arith.constant 1.000000e+00 : f32
    %92 = vector.broadcast %cst_51 : f32 to vector<4x16xf32>
    %93 = arith.addf %92, %91 : vector<4x16xf32>
    %94 = arith.divf %92, %93 : vector<4x16xf32>
    %95 = vector.extract_strided_slice %82 {offsets = [0, 32], sizes = [4, 16], strides = [1, 1]} : vector<4x64xf32> to vector<4x16xf32>
    %96 = vector.extract_strided_slice %82 {offsets = [0, 48], sizes = [4, 16], strides = [1, 1]} : vector<4x64xf32> to vector<4x16xf32>
    %97 = arith.mulf %88, %96 : vector<4x16xf32>
    %98 = arith.addf %95, %97 : vector<4x16xf32>
    %99 = math.tanh %98 : vector<4x16xf32>
    %cst_52 = arith.constant 1.000000e+00 : f32
    %100 = vector.broadcast %cst_52 : f32 to vector<4x16xf32>
    %101 = arith.subf %100, %94 : vector<4x16xf32>
    %102 = arith.mulf %101, %99 : vector<4x16xf32>
    %103 = arith.mulf %94, %65 : vector<4x16xf32>
    %104 = arith.addf %102, %103 : vector<4x16xf32>
    %105 = vector.shape_cast %104 : vector<4x16xf32> to vector<2x2x16xf32>
    %106 = vector.extract_strided_slice %81 {offsets = [0, 64], sizes = [4, 64], strides = [1, 1]} : vector<4x128xf32> to vector<4x64xf32>
    %107 = vector.extract_strided_slice %106 {offsets = [0, 0], sizes = [4, 16], strides = [1, 1]} : vector<4x64xf32> to vector<4x16xf32>
    %108 = arith.negf %107 : vector<4x16xf32>
    %109 = math.exp %108 : vector<4x16xf32>
    %cst_53 = arith.constant 1.000000e+00 : f32
    %110 = vector.broadcast %cst_53 : f32 to vector<4x16xf32>
    %111 = arith.addf %110, %109 : vector<4x16xf32>
    %112 = arith.divf %110, %111 : vector<4x16xf32>
    %113 = vector.extract_strided_slice %106 {offsets = [0, 16], sizes = [4, 16], strides = [1, 1]} : vector<4x64xf32> to vector<4x16xf32>
    %114 = arith.negf %113 : vector<4x16xf32>
    %115 = math.exp %114 : vector<4x16xf32>
    %cst_54 = arith.constant 1.000000e+00 : f32
    %116 = vector.broadcast %cst_54 : f32 to vector<4x16xf32>
    %117 = arith.addf %116, %115 : vector<4x16xf32>
    %118 = arith.divf %116, %117 : vector<4x16xf32>
    %119 = vector.extract_strided_slice %106 {offsets = [0, 32], sizes = [4, 16], strides = [1, 1]} : vector<4x64xf32> to vector<4x16xf32>
    %120 = vector.extract_strided_slice %106 {offsets = [0, 48], sizes = [4, 16], strides = [1, 1]} : vector<4x64xf32> to vector<4x16xf32>
    %121 = arith.mulf %112, %120 : vector<4x16xf32>
    %122 = arith.addf %119, %121 : vector<4x16xf32>
    %123 = math.tanh %122 : vector<4x16xf32>
    %cst_55 = arith.constant 1.000000e+00 : f32
    %124 = vector.broadcast %cst_55 : f32 to vector<4x16xf32>
    %125 = arith.subf %124, %118 : vector<4x16xf32>
    %126 = arith.mulf %125, %123 : vector<4x16xf32>
    %127 = arith.mulf %118, %64 : vector<4x16xf32>
    %128 = arith.addf %126, %127 : vector<4x16xf32>
    %129 = vector.shape_cast %128 : vector<4x16xf32> to vector<2x2x16xf32>
    %130 = vector.shape_cast %26 : vector<2x2xf32> to vector<2x2x1xf32>
    %131 = vector.broadcast %130 : vector<2x2x1xf32> to vector<2x2x16xf32>
    %132 = arith.mulf %131, %105 : vector<2x2x16xf32>
    %cst_56 = arith.constant dense<0.000000e+00> : vector<2x16xf32>
    %133 = vector.multi_reduction <add>, %132, %cst_56 [1] : vector<2x2x16xf32> to vector<2x16xf32>
    %134 = vector.shape_cast %133 : vector<2x16xf32> to vector<2x1x16xf32>
    %135 = vector.shape_cast %134 : vector<2x1x16xf32> to vector<2x1x16xf32>
    %136 = vector.broadcast %135 : vector<2x1x16xf32> to vector<2x2x16xf32>
    %137 = vector.shape_cast %136 : vector<2x2x16xf32> to vector<4x16xf32>
    %138 = vector.shape_cast %26 : vector<2x2xf32> to vector<2x2x1xf32>
    %139 = vector.broadcast %138 : vector<2x2x1xf32> to vector<2x2x16xf32>
    %140 = arith.mulf %139, %129 : vector<2x2x16xf32>
    %cst_57 = arith.constant dense<0.000000e+00> : vector<2x16xf32>
    %141 = vector.multi_reduction <add>, %140, %cst_57 [1] : vector<2x2x16xf32> to vector<2x16xf32>
    %142 = vector.shape_cast %141 : vector<2x16xf32> to vector<2x1x16xf32>
    %143 = vector.shape_cast %142 : vector<2x1x16xf32> to vector<2x1x16xf32>
    %144 = vector.broadcast %143 : vector<2x1x16xf32> to vector<2x2x16xf32>
    %145 = vector.shape_cast %144 : vector<2x2x16xf32> to vector<4x16xf32>
    %146 = tpu.concatenate %137, %69, %65, %69, %145, %64 in 1 : vector<4x16xf32>, vector<4x16xf32>, vector<4x16xf32>, vector<4x16xf32>, vector<4x16xf32>, vector<4x16xf32> -> vector<4x96xf32>
    %cst_58 = arith.constant dense<0.000000e+00> : vector<4x128xf32>
    %147 = tpu.matmul %146, %9, %cst_58 {dimension_numbers = #tpu.dot_dimension_numbers<[1], [0], [0], [1], [0, 0, 1, 1], [], []>} : vector<4x96xf32>, vector<96x128xf32>, vector<4x128xf32> -> vector<4x128xf32>
    %148 = vector.broadcast %11 : vector<1x128xf32> to vector<4x128xf32>
    %149 = arith.addf %147, %148 : vector<4x128xf32>
    %150 = vector.extract_strided_slice %149 {offsets = [0, 0], sizes = [4, 64], strides = [1, 1]} : vector<4x128xf32> to vector<4x64xf32>
    %151 = vector.extract_strided_slice %150 {offsets = [0, 0], sizes = [4, 16], strides = [1, 1]} : vector<4x64xf32> to vector<4x16xf32>
    %152 = arith.negf %151 : vector<4x16xf32>
    %153 = math.exp %152 : vector<4x16xf32>
    %cst_59 = arith.constant 1.000000e+00 : f32
    %154 = vector.broadcast %cst_59 : f32 to vector<4x16xf32>
    %155 = arith.addf %154, %153 : vector<4x16xf32>
    %156 = arith.divf %154, %155 : vector<4x16xf32>
    %157 = vector.extract_strided_slice %150 {offsets = [0, 16], sizes = [4, 16], strides = [1, 1]} : vector<4x64xf32> to vector<4x16xf32>
    %158 = arith.negf %157 : vector<4x16xf32>
    %159 = math.exp %158 : vector<4x16xf32>
    %cst_60 = arith.constant 1.000000e+00 : f32
    %160 = vector.broadcast %cst_60 : f32 to vector<4x16xf32>
    %161 = arith.addf %160, %159 : vector<4x16xf32>
    %162 = arith.divf %160, %161 : vector<4x16xf32>
    %163 = vector.extract_strided_slice %150 {offsets = [0, 32], sizes = [4, 16], strides = [1, 1]} : vector<4x64xf32> to vector<4x16xf32>
    %164 = vector.extract_strided_slice %150 {offsets = [0, 48], sizes = [4, 16], strides = [1, 1]} : vector<4x64xf32> to vector<4x16xf32>
    %165 = arith.mulf %156, %164 : vector<4x16xf32>
    %166 = arith.addf %163, %165 : vector<4x16xf32>
    %167 = math.tanh %166 : vector<4x16xf32>
    %cst_61 = arith.constant 1.000000e+00 : f32
    %168 = vector.broadcast %cst_61 : f32 to vector<4x16xf32>
    %169 = arith.subf %168, %162 : vector<4x16xf32>
    %170 = arith.mulf %169, %167 : vector<4x16xf32>
    %171 = arith.mulf %162, %65 : vector<4x16xf32>
    %172 = arith.addf %170, %171 : vector<4x16xf32>
    %173 = vector.shape_cast %172 : vector<4x16xf32> to vector<2x2x16xf32>
    %174 = vector.extract_strided_slice %149 {offsets = [0, 64], sizes = [4, 64], strides = [1, 1]} : vector<4x128xf32> to vector<4x64xf32>
    %175 = vector.extract_strided_slice %174 {offsets = [0, 0], sizes = [4, 16], strides = [1, 1]} : vector<4x64xf32> to vector<4x16xf32>
    %176 = arith.negf %175 : vector<4x16xf32>
    %177 = math.exp %176 : vector<4x16xf32>
    %cst_62 = arith.constant 1.000000e+00 : f32
    %178 = vector.broadcast %cst_62 : f32 to vector<4x16xf32>
    %179 = arith.addf %178, %177 : vector<4x16xf32>
    %180 = arith.divf %178, %179 : vector<4x16xf32>
    %181 = vector.extract_strided_slice %174 {offsets = [0, 16], sizes = [4, 16], strides = [1, 1]} : vector<4x64xf32> to vector<4x16xf32>
    %182 = arith.negf %181 : vector<4x16xf32>
    %183 = math.exp %182 : vector<4x16xf32>
    %cst_63 = arith.constant 1.000000e+00 : f32
    %184 = vector.broadcast %cst_63 : f32 to vector<4x16xf32>
    %185 = arith.addf %184, %183 : vector<4x16xf32>
    %186 = arith.divf %184, %185 : vector<4x16xf32>
    %187 = vector.extract_strided_slice %174 {offsets = [0, 32], sizes = [4, 16], strides = [1, 1]} : vector<4x64xf32> to vector<4x16xf32>
    %188 = vector.extract_strided_slice %174 {offsets = [0, 48], sizes = [4, 16], strides = [1, 1]} : vector<4x64xf32> to vector<4x16xf32>
    %189 = arith.mulf %180, %188 : vector<4x16xf32>
    %190 = arith.addf %187, %189 : vector<4x16xf32>
    %191 = math.tanh %190 : vector<4x16xf32>
    %cst_64 = arith.constant 1.000000e+00 : f32
    %192 = vector.broadcast %cst_64 : f32 to vector<4x16xf32>
    %193 = arith.subf %192, %186 : vector<4x16xf32>
    %194 = arith.mulf %193, %191 : vector<4x16xf32>
    %195 = arith.mulf %186, %64 : vector<4x16xf32>
    %196 = arith.addf %194, %195 : vector<4x16xf32>
    %197 = vector.shape_cast %196 : vector<4x16xf32> to vector<2x2x16xf32>
    %198 = vector.shape_cast %24 : vector<2x2xf32> to vector<2x2x1xf32>
    %199 = vector.broadcast %198 : vector<2x2x1xf32> to vector<2x2x16xf32>
    %200 = arith.mulf %197, %199 : vector<2x2x16xf32>
    %cst_65 = arith.constant 1.000000e+00 : f32
    %201 = vector.broadcast %cst_65 : f32 to vector<2x2x1xf32>
    %202 = arith.subf %201, %198 : vector<2x2x1xf32>
    %203 = vector.broadcast %202 : vector<2x2x1xf32> to vector<2x2x16xf32>
    %204 = arith.mulf %129, %203 : vector<2x2x16xf32>
    %205 = arith.addf %200, %204 : vector<2x2x16xf32>
    %206 = vector.broadcast %198 : vector<2x2x1xf32> to vector<2x2x16xf32>
    %207 = arith.mulf %105, %206 : vector<2x2x16xf32>
    %cst_66 = arith.constant 1.000000e+00 : f32
    %208 = vector.broadcast %cst_66 : f32 to vector<2x2x1xf32>
    %209 = arith.subf %208, %198 : vector<2x2x1xf32>
    %210 = vector.broadcast %209 : vector<2x2x1xf32> to vector<2x2x16xf32>
    %211 = arith.mulf %173, %210 : vector<2x2x16xf32>
    %212 = arith.addf %207, %211 : vector<2x2x16xf32>
    %213 = vector.shape_cast %26 : vector<2x2xf32> to vector<2x2x1xf32>
    %214 = vector.broadcast %213 : vector<2x2x1xf32> to vector<2x2x16xf32>
    %215 = arith.mulf %214, %205 : vector<2x2x16xf32>
    %cst_67 = arith.constant dense<0.000000e+00> : vector<2x16xf32>
    %216 = vector.multi_reduction <add>, %215, %cst_67 [1] : vector<2x2x16xf32> to vector<2x16xf32>
    %217 = tpu.concatenate %22, %216, %61, %20 in 1 : vector<2x16xf32>, vector<2x16xf32>, vector<2x16xf32>, vector<2x16xf32> -> vector<2x64xf32>
    %cst_68 = arith.constant dense<0.000000e+00> : vector<2x64xf32>
    %218 = tpu.matmul %217, %13, %cst_68 {dimension_numbers = #tpu.dot_dimension_numbers<[1], [0], [0], [1], [0, 0, 1, 1], [], []>} : vector<2x64xf32>, vector<64x64xf32>, vector<2x64xf32> -> vector<2x64xf32>
    %219 = vector.broadcast %15 : vector<1x64xf32> to vector<2x64xf32>
    %220 = arith.addf %218, %219 : vector<2x64xf32>
    %221 = vector.extract_strided_slice %220 {offsets = [0, 0], sizes = [2, 16], strides = [1, 1]} : vector<2x64xf32> to vector<2x16xf32>
    %222 = arith.negf %221 : vector<2x16xf32>
    %223 = math.exp %222 : vector<2x16xf32>
    %cst_69 = arith.constant 1.000000e+00 : f32
    %224 = vector.broadcast %cst_69 : f32 to vector<2x16xf32>
    %225 = arith.addf %224, %223 : vector<2x16xf32>
    %226 = arith.divf %224, %225 : vector<2x16xf32>
    %227 = vector.extract_strided_slice %220 {offsets = [0, 16], sizes = [2, 16], strides = [1, 1]} : vector<2x64xf32> to vector<2x16xf32>
    %228 = arith.negf %227 : vector<2x16xf32>
    %229 = math.exp %228 : vector<2x16xf32>
    %cst_70 = arith.constant 1.000000e+00 : f32
    %230 = vector.broadcast %cst_70 : f32 to vector<2x16xf32>
    %231 = arith.addf %230, %229 : vector<2x16xf32>
    %232 = arith.divf %230, %231 : vector<2x16xf32>
    %233 = vector.extract_strided_slice %220 {offsets = [0, 32], sizes = [2, 16], strides = [1, 1]} : vector<2x64xf32> to vector<2x16xf32>
    %234 = vector.extract_strided_slice %220 {offsets = [0, 48], sizes = [2, 16], strides = [1, 1]} : vector<2x64xf32> to vector<2x16xf32>
    %235 = arith.mulf %226, %234 : vector<2x16xf32>
    %236 = arith.addf %233, %235 : vector<2x16xf32>
    %237 = math.tanh %236 : vector<2x16xf32>
    %cst_71 = arith.constant 1.000000e+00 : f32
    %238 = vector.broadcast %cst_71 : f32 to vector<2x16xf32>
    %239 = arith.subf %238, %232 : vector<2x16xf32>
    %240 = arith.mulf %239, %237 : vector<2x16xf32>
    %241 = arith.mulf %232, %20 : vector<2x16xf32>
    %242 = arith.addf %240, %241 : vector<2x16xf32>
    %c0_72 = arith.constant 0 : index
    %c1 = arith.constant 1 : index
    %c0_73 = arith.constant 0 : index
    %c0_74 = arith.constant 0 : index
    %243 = vector.load %arg1[%c0_72, %c1, %c0_73, %c0_74] : memref<1x8x2x16xf32, #tpu.memory_space<vmem>>, vector<1x1x2x16xf32>
    %244 = vector.shape_cast %243 : vector<1x1x2x16xf32> to vector<2x16xf32>
    %c0_75 = arith.constant 0 : index
    %c1_76 = arith.constant 1 : index
    %c0_77 = arith.constant 0 : index
    %c0_78 = arith.constant 0 : index
    %245 = vector.load %arg2[%c0_75, %c1_76, %c0_77, %c0_78] : memref<1x8x2x2xf32, #tpu.memory_space<vmem>>, vector<1x1x2x2xf32>
    %246 = vector.shape_cast %245 : vector<1x1x2x2xf32> to vector<2x2xf32>
    %c0_79 = arith.constant 0 : index
    %c1_80 = arith.constant 1 : index
    %c0_81 = arith.constant 0 : index
    %c0_82 = arith.constant 0 : index
    %247 = vector.load %arg3[%c0_79, %c1_80, %c0_81, %c0_82] : memref<1x8x2x2xf32, #tpu.memory_space<vmem>>, vector<1x1x2x2xf32>
    %248 = vector.shape_cast %247 : vector<1x1x2x2xf32> to vector<2x2xf32>
    %249 = vector.shape_cast %248 : vector<2x2xf32> to vector<2x2x1xf32>
    %250 = vector.broadcast %249 : vector<2x2x1xf32> to vector<2x2x16xf32>
    %251 = arith.mulf %250, %205 : vector<2x2x16xf32>
    %cst_83 = arith.constant dense<0.000000e+00> : vector<2x16xf32>
    %252 = vector.multi_reduction <add>, %251, %cst_83 [1] : vector<2x2x16xf32> to vector<2x16xf32>
    %253 = vector.shape_cast %248 : vector<2x2xf32> to vector<2x2x1xf32>
    %254 = vector.broadcast %253 : vector<2x2x1xf32> to vector<2x2x16xf32>
    %255 = arith.mulf %254, %212 : vector<2x2x16xf32>
    %cst_84 = arith.constant dense<0.000000e+00> : vector<2x16xf32>
    %256 = vector.multi_reduction <add>, %255, %cst_84 [1] : vector<2x2x16xf32> to vector<2x16xf32>
    %257 = tpu.concatenate %252, %256, %244, %61 in 1 : vector<2x16xf32>, vector<2x16xf32>, vector<2x16xf32>, vector<2x16xf32> -> vector<2x64xf32>
    %cst_85 = arith.constant dense<0.000000e+00> : vector<2x64xf32>
    %258 = tpu.matmul %257, %1, %cst_85 {dimension_numbers = #tpu.dot_dimension_numbers<[1], [0], [0], [1], [0, 0, 1, 1], [], []>} : vector<2x64xf32>, vector<64x64xf32>, vector<2x64xf32> -> vector<2x64xf32>
    %259 = vector.broadcast %3 : vector<1x64xf32> to vector<2x64xf32>
    %260 = arith.addf %258, %259 : vector<2x64xf32>
    %261 = vector.extract_strided_slice %260 {offsets = [0, 0], sizes = [2, 16], strides = [1, 1]} : vector<2x64xf32> to vector<2x16xf32>
    %262 = arith.negf %261 : vector<2x16xf32>
    %263 = math.exp %262 : vector<2x16xf32>
    %cst_86 = arith.constant 1.000000e+00 : f32
    %264 = vector.broadcast %cst_86 : f32 to vector<2x16xf32>
    %265 = arith.addf %264, %263 : vector<2x16xf32>
    %266 = arith.divf %264, %265 : vector<2x16xf32>
    %267 = vector.extract_strided_slice %260 {offsets = [0, 16], sizes = [2, 16], strides = [1, 1]} : vector<2x64xf32> to vector<2x16xf32>
    %268 = arith.negf %267 : vector<2x16xf32>
    %269 = math.exp %268 : vector<2x16xf32>
    %cst_87 = arith.constant 1.000000e+00 : f32
    %270 = vector.broadcast %cst_87 : f32 to vector<2x16xf32>
    %271 = arith.addf %270, %269 : vector<2x16xf32>
    %272 = arith.divf %270, %271 : vector<2x16xf32>
    %273 = vector.extract_strided_slice %260 {offsets = [0, 32], sizes = [2, 16], strides = [1, 1]} : vector<2x64xf32> to vector<2x16xf32>
    %274 = vector.extract_strided_slice %260 {offsets = [0, 48], sizes = [2, 16], strides = [1, 1]} : vector<2x64xf32> to vector<2x16xf32>
    %275 = arith.mulf %266, %274 : vector<2x16xf32>
    %276 = arith.addf %273, %275 : vector<2x16xf32>
    %277 = math.tanh %276 : vector<2x16xf32>
    %cst_88 = arith.constant 1.000000e+00 : f32
    %278 = vector.broadcast %cst_88 : f32 to vector<2x16xf32>
    %279 = arith.subf %278, %272 : vector<2x16xf32>
    %280 = arith.mulf %279, %277 : vector<2x16xf32>
    %281 = arith.mulf %272, %61 : vector<2x16xf32>
    %282 = arith.addf %280, %281 : vector<2x16xf32>
    %283 = vector.shape_cast %61 : vector<2x16xf32> to vector<2x1x16xf32>
    %284 = vector.shape_cast %17 : vector<1x16xf32> to vector<1x1x16xf32>
    %285 = vector.broadcast %284 : vector<1x1x16xf32> to vector<2x1x16xf32>
    %286 = arith.mulf %283, %285 : vector<2x1x16xf32>
    %cst_89 = arith.constant dense<0.000000e+00> : vector<2x1xf32>
    %287 = vector.multi_reduction <add>, %286, %cst_89 [2] : vector<2x1x16xf32> to vector<2x1xf32>
    %cst_90 = arith.constant dense<0xFF800000> : vector<2xf32>
    %288 = vector.multi_reduction <maximumf>, %287, %cst_90 [1] : vector<2x1xf32> to vector<2xf32>
    %289 = vector.shape_cast %288 : vector<2xf32> to vector<2x1xf32>
    %290 = arith.subf %287, %289 : vector<2x1xf32>
    %291 = math.exp %290 : vector<2x1xf32>
    %cst_91 = arith.constant dense<0.000000e+00> : vector<2xf32>
    %292 = vector.multi_reduction <add>, %291, %cst_91 [1] : vector<2x1xf32> to vector<2xf32>
    %293 = vector.shape_cast %292 : vector<2xf32> to vector<2x1xf32>
    %294 = arith.divf %291, %293 : vector<2x1xf32>
    %295 = vector.shape_cast %294 : vector<2x1xf32> to vector<2x1x1xf32>
    %296 = vector.broadcast %295 : vector<2x1x1xf32> to vector<2x1x16xf32>
    %297 = arith.mulf %296, %283 : vector<2x1x16xf32>
    %cst_92 = arith.constant dense<0.000000e+00> : vector<2x16xf32>
    %298 = vector.multi_reduction <add>, %297, %cst_92 [1] : vector<2x1x16xf32> to vector<2x16xf32>
    %cst_93 = arith.constant 0.000000e+00 : f32
    %299 = vector.broadcast %cst_93 : f32 to vector<2x7xf32>
    %300 = tpu.concatenate %294, %299 in 1 : vector<2x1xf32>, vector<2x7xf32> -> vector<2x8xf32>
    %301 = vector.shape_cast %205 : vector<2x2x16xf32> to vector<4x16xf32>
    %302 = vector.shape_cast %212 : vector<2x2x16xf32> to vector<4x16xf32>
    %303 = vector.shape_cast %244 : vector<2x16xf32> to vector<2x1x16xf32>
    %304 = vector.shape_cast %303 : vector<2x1x16xf32> to vector<2x1x16xf32>
    %305 = vector.broadcast %304 : vector<2x1x16xf32> to vector<2x2x16xf32>
    %306 = vector.shape_cast %305 : vector<2x2x16xf32> to vector<4x16xf32>
    %307 = vector.shape_cast %282 : vector<2x16xf32> to vector<2x1x16xf32>
    %308 = vector.shape_cast %307 : vector<2x1x16xf32> to vector<2x1x16xf32>
    %309 = vector.broadcast %308 : vector<2x1x16xf32> to vector<2x2x16xf32>
    %310 = vector.shape_cast %309 : vector<2x2x16xf32> to vector<4x16xf32>
    %311 = vector.shape_cast %298 : vector<2x16xf32> to vector<2x1x16xf32>
    %312 = vector.shape_cast %311 : vector<2x1x16xf32> to vector<2x1x16xf32>
    %313 = vector.broadcast %312 : vector<2x1x16xf32> to vector<2x2x16xf32>
    %314 = vector.shape_cast %313 : vector<2x2x16xf32> to vector<4x16xf32>
    %315 = tpu.concatenate %314, %306, %302, %306, %310, %301 in 1 : vector<4x16xf32>, vector<4x16xf32>, vector<4x16xf32>, vector<4x16xf32>, vector<4x16xf32>, vector<4x16xf32> -> vector<4x96xf32>
    %cst_94 = arith.constant dense<0.000000e+00> : vector<4x128xf32>
    %316 = tpu.matmul %315, %5, %cst_94 {dimension_numbers = #tpu.dot_dimension_numbers<[1], [0], [0], [1], [0, 0, 1, 1], [], []>} : vector<4x96xf32>, vector<96x128xf32>, vector<4x128xf32> -> vector<4x128xf32>
    %317 = vector.broadcast %7 : vector<1x128xf32> to vector<4x128xf32>
    %318 = arith.addf %316, %317 : vector<4x128xf32>
    %319 = vector.extract_strided_slice %318 {offsets = [0, 0], sizes = [4, 64], strides = [1, 1]} : vector<4x128xf32> to vector<4x64xf32>
    %320 = vector.extract_strided_slice %319 {offsets = [0, 0], sizes = [4, 16], strides = [1, 1]} : vector<4x64xf32> to vector<4x16xf32>
    %321 = arith.negf %320 : vector<4x16xf32>
    %322 = math.exp %321 : vector<4x16xf32>
    %cst_95 = arith.constant 1.000000e+00 : f32
    %323 = vector.broadcast %cst_95 : f32 to vector<4x16xf32>
    %324 = arith.addf %323, %322 : vector<4x16xf32>
    %325 = arith.divf %323, %324 : vector<4x16xf32>
    %326 = vector.extract_strided_slice %319 {offsets = [0, 16], sizes = [4, 16], strides = [1, 1]} : vector<4x64xf32> to vector<4x16xf32>
    %327 = arith.negf %326 : vector<4x16xf32>
    %328 = math.exp %327 : vector<4x16xf32>
    %cst_96 = arith.constant 1.000000e+00 : f32
    %329 = vector.broadcast %cst_96 : f32 to vector<4x16xf32>
    %330 = arith.addf %329, %328 : vector<4x16xf32>
    %331 = arith.divf %329, %330 : vector<4x16xf32>
    %332 = vector.extract_strided_slice %319 {offsets = [0, 32], sizes = [4, 16], strides = [1, 1]} : vector<4x64xf32> to vector<4x16xf32>
    %333 = vector.extract_strided_slice %319 {offsets = [0, 48], sizes = [4, 16], strides = [1, 1]} : vector<4x64xf32> to vector<4x16xf32>
    %334 = arith.mulf %325, %333 : vector<4x16xf32>
    %335 = arith.addf %332, %334 : vector<4x16xf32>
    %336 = math.tanh %335 : vector<4x16xf32>
    %cst_97 = arith.constant 1.000000e+00 : f32
    %337 = vector.broadcast %cst_97 : f32 to vector<4x16xf32>
    %338 = arith.subf %337, %331 : vector<4x16xf32>
    %339 = arith.mulf %338, %336 : vector<4x16xf32>
    %340 = arith.mulf %331, %302 : vector<4x16xf32>
    %341 = arith.addf %339, %340 : vector<4x16xf32>
    %342 = vector.shape_cast %341 : vector<4x16xf32> to vector<2x2x16xf32>
    %343 = vector.extract_strided_slice %318 {offsets = [0, 64], sizes = [4, 64], strides = [1, 1]} : vector<4x128xf32> to vector<4x64xf32>
    %344 = vector.extract_strided_slice %343 {offsets = [0, 0], sizes = [4, 16], strides = [1, 1]} : vector<4x64xf32> to vector<4x16xf32>
    %345 = arith.negf %344 : vector<4x16xf32>
    %346 = math.exp %345 : vector<4x16xf32>
    %cst_98 = arith.constant 1.000000e+00 : f32
    %347 = vector.broadcast %cst_98 : f32 to vector<4x16xf32>
    %348 = arith.addf %347, %346 : vector<4x16xf32>
    %349 = arith.divf %347, %348 : vector<4x16xf32>
    %350 = vector.extract_strided_slice %343 {offsets = [0, 16], sizes = [4, 16], strides = [1, 1]} : vector<4x64xf32> to vector<4x16xf32>
    %351 = arith.negf %350 : vector<4x16xf32>
    %352 = math.exp %351 : vector<4x16xf32>
    %cst_99 = arith.constant 1.000000e+00 : f32
    %353 = vector.broadcast %cst_99 : f32 to vector<4x16xf32>
    %354 = arith.addf %353, %352 : vector<4x16xf32>
    %355 = arith.divf %353, %354 : vector<4x16xf32>
    %356 = vector.extract_strided_slice %343 {offsets = [0, 32], sizes = [4, 16], strides = [1, 1]} : vector<4x64xf32> to vector<4x16xf32>
    %357 = vector.extract_strided_slice %343 {offsets = [0, 48], sizes = [4, 16], strides = [1, 1]} : vector<4x64xf32> to vector<4x16xf32>
    %358 = arith.mulf %349, %357 : vector<4x16xf32>
    %359 = arith.addf %356, %358 : vector<4x16xf32>
    %360 = math.tanh %359 : vector<4x16xf32>
    %cst_100 = arith.constant 1.000000e+00 : f32
    %361 = vector.broadcast %cst_100 : f32 to vector<4x16xf32>
    %362 = arith.subf %361, %355 : vector<4x16xf32>
    %363 = arith.mulf %362, %360 : vector<4x16xf32>
    %364 = arith.mulf %355, %301 : vector<4x16xf32>
    %365 = arith.addf %363, %364 : vector<4x16xf32>
    %366 = vector.shape_cast %365 : vector<4x16xf32> to vector<2x2x16xf32>
    %367 = vector.shape_cast %248 : vector<2x2xf32> to vector<2x2x1xf32>
    %368 = vector.broadcast %367 : vector<2x2x1xf32> to vector<2x2x16xf32>
    %369 = arith.mulf %368, %342 : vector<2x2x16xf32>
    %cst_101 = arith.constant dense<0.000000e+00> : vector<2x16xf32>
    %370 = vector.multi_reduction <add>, %369, %cst_101 [1] : vector<2x2x16xf32> to vector<2x16xf32>
    %371 = vector.shape_cast %370 : vector<2x16xf32> to vector<2x1x16xf32>
    %372 = vector.shape_cast %371 : vector<2x1x16xf32> to vector<2x1x16xf32>
    %373 = vector.broadcast %372 : vector<2x1x16xf32> to vector<2x2x16xf32>
    %374 = vector.shape_cast %373 : vector<2x2x16xf32> to vector<4x16xf32>
    %375 = vector.shape_cast %248 : vector<2x2xf32> to vector<2x2x1xf32>
    %376 = vector.broadcast %375 : vector<2x2x1xf32> to vector<2x2x16xf32>
    %377 = arith.mulf %376, %366 : vector<2x2x16xf32>
    %cst_102 = arith.constant dense<0.000000e+00> : vector<2x16xf32>
    %378 = vector.multi_reduction <add>, %377, %cst_102 [1] : vector<2x2x16xf32> to vector<2x16xf32>
    %379 = vector.shape_cast %378 : vector<2x16xf32> to vector<2x1x16xf32>
    %380 = vector.shape_cast %379 : vector<2x1x16xf32> to vector<2x1x16xf32>
    %381 = vector.broadcast %380 : vector<2x1x16xf32> to vector<2x2x16xf32>
    %382 = vector.shape_cast %381 : vector<2x2x16xf32> to vector<4x16xf32>
    %383 = tpu.concatenate %374, %306, %302, %306, %382, %301 in 1 : vector<4x16xf32>, vector<4x16xf32>, vector<4x16xf32>, vector<4x16xf32>, vector<4x16xf32>, vector<4x16xf32> -> vector<4x96xf32>
    %cst_103 = arith.constant dense<0.000000e+00> : vector<4x128xf32>
    %384 = tpu.matmul %383, %9, %cst_103 {dimension_numbers = #tpu.dot_dimension_numbers<[1], [0], [0], [1], [0, 0, 1, 1], [], []>} : vector<4x96xf32>, vector<96x128xf32>, vector<4x128xf32> -> vector<4x128xf32>
    %385 = vector.broadcast %11 : vector<1x128xf32> to vector<4x128xf32>
    %386 = arith.addf %384, %385 : vector<4x128xf32>
    %387 = vector.extract_strided_slice %386 {offsets = [0, 0], sizes = [4, 64], strides = [1, 1]} : vector<4x128xf32> to vector<4x64xf32>
    %388 = vector.extract_strided_slice %387 {offsets = [0, 0], sizes = [4, 16], strides = [1, 1]} : vector<4x64xf32> to vector<4x16xf32>
    %389 = arith.negf %388 : vector<4x16xf32>
    %390 = math.exp %389 : vector<4x16xf32>
    %cst_104 = arith.constant 1.000000e+00 : f32
    %391 = vector.broadcast %cst_104 : f32 to vector<4x16xf32>
    %392 = arith.addf %391, %390 : vector<4x16xf32>
    %393 = arith.divf %391, %392 : vector<4x16xf32>
    %394 = vector.extract_strided_slice %387 {offsets = [0, 16], sizes = [4, 16], strides = [1, 1]} : vector<4x64xf32> to vector<4x16xf32>
    %395 = arith.negf %394 : vector<4x16xf32>
    %396 = math.exp %395 : vector<4x16xf32>
    %cst_105 = arith.constant 1.000000e+00 : f32
    %397 = vector.broadcast %cst_105 : f32 to vector<4x16xf32>
    %398 = arith.addf %397, %396 : vector<4x16xf32>
    %399 = arith.divf %397, %398 : vector<4x16xf32>
    %400 = vector.extract_strided_slice %387 {offsets = [0, 32], sizes = [4, 16], strides = [1, 1]} : vector<4x64xf32> to vector<4x16xf32>
    %401 = vector.extract_strided_slice %387 {offsets = [0, 48], sizes = [4, 16], strides = [1, 1]} : vector<4x64xf32> to vector<4x16xf32>
    %402 = arith.mulf %393, %401 : vector<4x16xf32>
    %403 = arith.addf %400, %402 : vector<4x16xf32>
    %404 = math.tanh %403 : vector<4x16xf32>
    %cst_106 = arith.constant 1.000000e+00 : f32
    %405 = vector.broadcast %cst_106 : f32 to vector<4x16xf32>
    %406 = arith.subf %405, %399 : vector<4x16xf32>
    %407 = arith.mulf %406, %404 : vector<4x16xf32>
    %408 = arith.mulf %399, %302 : vector<4x16xf32>
    %409 = arith.addf %407, %408 : vector<4x16xf32>
    %410 = vector.shape_cast %409 : vector<4x16xf32> to vector<2x2x16xf32>
    %411 = vector.extract_strided_slice %386 {offsets = [0, 64], sizes = [4, 64], strides = [1, 1]} : vector<4x128xf32> to vector<4x64xf32>
    %412 = vector.extract_strided_slice %411 {offsets = [0, 0], sizes = [4, 16], strides = [1, 1]} : vector<4x64xf32> to vector<4x16xf32>
    %413 = arith.negf %412 : vector<4x16xf32>
    %414 = math.exp %413 : vector<4x16xf32>
    %cst_107 = arith.constant 1.000000e+00 : f32
    %415 = vector.broadcast %cst_107 : f32 to vector<4x16xf32>
    %416 = arith.addf %415, %414 : vector<4x16xf32>
    %417 = arith.divf %415, %416 : vector<4x16xf32>
    %418 = vector.extract_strided_slice %411 {offsets = [0, 16], sizes = [4, 16], strides = [1, 1]} : vector<4x64xf32> to vector<4x16xf32>
    %419 = arith.negf %418 : vector<4x16xf32>
    %420 = math.exp %419 : vector<4x16xf32>
    %cst_108 = arith.constant 1.000000e+00 : f32
    %421 = vector.broadcast %cst_108 : f32 to vector<4x16xf32>
    %422 = arith.addf %421, %420 : vector<4x16xf32>
    %423 = arith.divf %421, %422 : vector<4x16xf32>
    %424 = vector.extract_strided_slice %411 {offsets = [0, 32], sizes = [4, 16], strides = [1, 1]} : vector<4x64xf32> to vector<4x16xf32>
    %425 = vector.extract_strided_slice %411 {offsets = [0, 48], sizes = [4, 16], strides = [1, 1]} : vector<4x64xf32> to vector<4x16xf32>
    %426 = arith.mulf %417, %425 : vector<4x16xf32>
    %427 = arith.addf %424, %426 : vector<4x16xf32>
    %428 = math.tanh %427 : vector<4x16xf32>
    %cst_109 = arith.constant 1.000000e+00 : f32
    %429 = vector.broadcast %cst_109 : f32 to vector<4x16xf32>
    %430 = arith.subf %429, %423 : vector<4x16xf32>
    %431 = arith.mulf %430, %428 : vector<4x16xf32>
    %432 = arith.mulf %423, %301 : vector<4x16xf32>
    %433 = arith.addf %431, %432 : vector<4x16xf32>
    %434 = vector.shape_cast %433 : vector<4x16xf32> to vector<2x2x16xf32>
    %435 = vector.shape_cast %246 : vector<2x2xf32> to vector<2x2x1xf32>
    %436 = vector.broadcast %435 : vector<2x2x1xf32> to vector<2x2x16xf32>
    %437 = arith.mulf %434, %436 : vector<2x2x16xf32>
    %cst_110 = arith.constant 1.000000e+00 : f32
    %438 = vector.broadcast %cst_110 : f32 to vector<2x2x1xf32>
    %439 = arith.subf %438, %435 : vector<2x2x1xf32>
    %440 = vector.broadcast %439 : vector<2x2x1xf32> to vector<2x2x16xf32>
    %441 = arith.mulf %366, %440 : vector<2x2x16xf32>
    %442 = arith.addf %437, %441 : vector<2x2x16xf32>
    %443 = vector.broadcast %435 : vector<2x2x1xf32> to vector<2x2x16xf32>
    %444 = arith.mulf %342, %443 : vector<2x2x16xf32>
    %cst_111 = arith.constant 1.000000e+00 : f32
    %445 = vector.broadcast %cst_111 : f32 to vector<2x2x1xf32>
    %446 = arith.subf %445, %435 : vector<2x2x1xf32>
    %447 = vector.broadcast %446 : vector<2x2x1xf32> to vector<2x2x16xf32>
    %448 = arith.mulf %410, %447 : vector<2x2x16xf32>
    %449 = arith.addf %444, %448 : vector<2x2x16xf32>
    %450 = vector.shape_cast %248 : vector<2x2xf32> to vector<2x2x1xf32>
    %451 = vector.broadcast %450 : vector<2x2x1xf32> to vector<2x2x16xf32>
    %452 = arith.mulf %451, %442 : vector<2x2x16xf32>
    %cst_112 = arith.constant dense<0.000000e+00> : vector<2x16xf32>
    %453 = vector.multi_reduction <add>, %452, %cst_112 [1] : vector<2x2x16xf32> to vector<2x16xf32>
    %454 = tpu.concatenate %244, %453, %282, %242 in 1 : vector<2x16xf32>, vector<2x16xf32>, vector<2x16xf32>, vector<2x16xf32> -> vector<2x64xf32>
    %cst_113 = arith.constant dense<0.000000e+00> : vector<2x64xf32>
    %455 = tpu.matmul %454, %13, %cst_113 {dimension_numbers = #tpu.dot_dimension_numbers<[1], [0], [0], [1], [0, 0, 1, 1], [], []>} : vector<2x64xf32>, vector<64x64xf32>, vector<2x64xf32> -> vector<2x64xf32>
    %456 = vector.broadcast %15 : vector<1x64xf32> to vector<2x64xf32>
    %457 = arith.addf %455, %456 : vector<2x64xf32>
    %458 = vector.extract_strided_slice %457 {offsets = [0, 0], sizes = [2, 16], strides = [1, 1]} : vector<2x64xf32> to vector<2x16xf32>
    %459 = arith.negf %458 : vector<2x16xf32>
    %460 = math.exp %459 : vector<2x16xf32>
    %cst_114 = arith.constant 1.000000e+00 : f32
    %461 = vector.broadcast %cst_114 : f32 to vector<2x16xf32>
    %462 = arith.addf %461, %460 : vector<2x16xf32>
    %463 = arith.divf %461, %462 : vector<2x16xf32>
    %464 = vector.extract_strided_slice %457 {offsets = [0, 16], sizes = [2, 16], strides = [1, 1]} : vector<2x64xf32> to vector<2x16xf32>
    %465 = arith.negf %464 : vector<2x16xf32>
    %466 = math.exp %465 : vector<2x16xf32>
    %cst_115 = arith.constant 1.000000e+00 : f32
    %467 = vector.broadcast %cst_115 : f32 to vector<2x16xf32>
    %468 = arith.addf %467, %466 : vector<2x16xf32>
    %469 = arith.divf %467, %468 : vector<2x16xf32>
    %470 = vector.extract_strided_slice %457 {offsets = [0, 32], sizes = [2, 16], strides = [1, 1]} : vector<2x64xf32> to vector<2x16xf32>
    %471 = vector.extract_strided_slice %457 {offsets = [0, 48], sizes = [2, 16], strides = [1, 1]} : vector<2x64xf32> to vector<2x16xf32>
    %472 = arith.mulf %463, %471 : vector<2x16xf32>
    %473 = arith.addf %470, %472 : vector<2x16xf32>
    %474 = math.tanh %473 : vector<2x16xf32>
    %cst_116 = arith.constant 1.000000e+00 : f32
    %475 = vector.broadcast %cst_116 : f32 to vector<2x16xf32>
    %476 = arith.subf %475, %469 : vector<2x16xf32>
    %477 = arith.mulf %476, %474 : vector<2x16xf32>
    %478 = arith.mulf %469, %242 : vector<2x16xf32>
    %479 = arith.addf %477, %478 : vector<2x16xf32>
    %c0_117 = arith.constant 0 : index
    %c2 = arith.constant 2 : index
    %c0_118 = arith.constant 0 : index
    %c0_119 = arith.constant 0 : index
    %480 = vector.load %arg1[%c0_117, %c2, %c0_118, %c0_119] : memref<1x8x2x16xf32, #tpu.memory_space<vmem>>, vector<1x1x2x16xf32>
    %481 = vector.shape_cast %480 : vector<1x1x2x16xf32> to vector<2x16xf32>
    %c0_120 = arith.constant 0 : index
    %c2_121 = arith.constant 2 : index
    %c0_122 = arith.constant 0 : index
    %c0_123 = arith.constant 0 : index
    %482 = vector.load %arg2[%c0_120, %c2_121, %c0_122, %c0_123] : memref<1x8x2x2xf32, #tpu.memory_space<vmem>>, vector<1x1x2x2xf32>
    %483 = vector.shape_cast %482 : vector<1x1x2x2xf32> to vector<2x2xf32>
    %c0_124 = arith.constant 0 : index
    %c2_125 = arith.constant 2 : index
    %c0_126 = arith.constant 0 : index
    %c0_127 = arith.constant 0 : index
    %484 = vector.load %arg3[%c0_124, %c2_125, %c0_126, %c0_127] : memref<1x8x2x2xf32, #tpu.memory_space<vmem>>, vector<1x1x2x2xf32>
    %485 = vector.shape_cast %484 : vector<1x1x2x2xf32> to vector<2x2xf32>
    %486 = vector.shape_cast %485 : vector<2x2xf32> to vector<2x2x1xf32>
    %487 = vector.broadcast %486 : vector<2x2x1xf32> to vector<2x2x16xf32>
    %488 = arith.mulf %487, %442 : vector<2x2x16xf32>
    %cst_128 = arith.constant dense<0.000000e+00> : vector<2x16xf32>
    %489 = vector.multi_reduction <add>, %488, %cst_128 [1] : vector<2x2x16xf32> to vector<2x16xf32>
    %490 = vector.shape_cast %485 : vector<2x2xf32> to vector<2x2x1xf32>
    %491 = vector.broadcast %490 : vector<2x2x1xf32> to vector<2x2x16xf32>
    %492 = arith.mulf %491, %449 : vector<2x2x16xf32>
    %cst_129 = arith.constant dense<0.000000e+00> : vector<2x16xf32>
    %493 = vector.multi_reduction <add>, %492, %cst_129 [1] : vector<2x2x16xf32> to vector<2x16xf32>
    %494 = tpu.concatenate %489, %493, %481, %282 in 1 : vector<2x16xf32>, vector<2x16xf32>, vector<2x16xf32>, vector<2x16xf32> -> vector<2x64xf32>
    %cst_130 = arith.constant dense<0.000000e+00> : vector<2x64xf32>
    %495 = tpu.matmul %494, %1, %cst_130 {dimension_numbers = #tpu.dot_dimension_numbers<[1], [0], [0], [1], [0, 0, 1, 1], [], []>} : vector<2x64xf32>, vector<64x64xf32>, vector<2x64xf32> -> vector<2x64xf32>
    %496 = vector.broadcast %3 : vector<1x64xf32> to vector<2x64xf32>
    %497 = arith.addf %495, %496 : vector<2x64xf32>
    %498 = vector.extract_strided_slice %497 {offsets = [0, 0], sizes = [2, 16], strides = [1, 1]} : vector<2x64xf32> to vector<2x16xf32>
    %499 = arith.negf %498 : vector<2x16xf32>
    %500 = math.exp %499 : vector<2x16xf32>
    %cst_131 = arith.constant 1.000000e+00 : f32
    %501 = vector.broadcast %cst_131 : f32 to vector<2x16xf32>
    %502 = arith.addf %501, %500 : vector<2x16xf32>
    %503 = arith.divf %501, %502 : vector<2x16xf32>
    %504 = vector.extract_strided_slice %497 {offsets = [0, 16], sizes = [2, 16], strides = [1, 1]} : vector<2x64xf32> to vector<2x16xf32>
    %505 = arith.negf %504 : vector<2x16xf32>
    %506 = math.exp %505 : vector<2x16xf32>
    %cst_132 = arith.constant 1.000000e+00 : f32
    %507 = vector.broadcast %cst_132 : f32 to vector<2x16xf32>
    %508 = arith.addf %507, %506 : vector<2x16xf32>
    %509 = arith.divf %507, %508 : vector<2x16xf32>
    %510 = vector.extract_strided_slice %497 {offsets = [0, 32], sizes = [2, 16], strides = [1, 1]} : vector<2x64xf32> to vector<2x16xf32>
    %511 = vector.extract_strided_slice %497 {offsets = [0, 48], sizes = [2, 16], strides = [1, 1]} : vector<2x64xf32> to vector<2x16xf32>
    %512 = arith.mulf %503, %511 : vector<2x16xf32>
    %513 = arith.addf %510, %512 : vector<2x16xf32>
    %514 = math.tanh %513 : vector<2x16xf32>
    %cst_133 = arith.constant 1.000000e+00 : f32
    %515 = vector.broadcast %cst_133 : f32 to vector<2x16xf32>
    %516 = arith.subf %515, %509 : vector<2x16xf32>
    %517 = arith.mulf %516, %514 : vector<2x16xf32>
    %518 = arith.mulf %509, %282 : vector<2x16xf32>
    %519 = arith.addf %517, %518 : vector<2x16xf32>
    %520 = vector.shape_cast %61 : vector<2x16xf32> to vector<2x1x16xf32>
    %521 = vector.shape_cast %282 : vector<2x16xf32> to vector<2x1x16xf32>
    %522 = tpu.concatenate %520, %521 in 1 : vector<2x1x16xf32>, vector<2x1x16xf32> -> vector<2x2x16xf32>
    %523 = vector.shape_cast %17 : vector<1x16xf32> to vector<1x1x16xf32>
    %524 = vector.broadcast %523 : vector<1x1x16xf32> to vector<2x2x16xf32>
    %525 = arith.mulf %522, %524 : vector<2x2x16xf32>
    %cst_134 = arith.constant dense<0.000000e+00> : vector<2x2xf32>
    %526 = vector.multi_reduction <add>, %525, %cst_134 [2] : vector<2x2x16xf32> to vector<2x2xf32>
    %cst_135 = arith.constant dense<0xFF800000> : vector<2xf32>
    %527 = vector.multi_reduction <maximumf>, %526, %cst_135 [1] : vector<2x2xf32> to vector<2xf32>
    %528 = vector.shape_cast %527 : vector<2xf32> to vector<2x1xf32>
    %529 = vector.broadcast %528 : vector<2x1xf32> to vector<2x2xf32>
    %530 = arith.subf %526, %529 : vector<2x2xf32>
    %531 = math.exp %530 : vector<2x2xf32>
    %cst_136 = arith.constant dense<0.000000e+00> : vector<2xf32>
    %532 = vector.multi_reduction <add>, %531, %cst_136 [1] : vector<2x2xf32> to vector<2xf32>
    %533 = vector.shape_cast %532 : vector<2xf32> to vector<2x1xf32>
    %534 = vector.broadcast %533 : vector<2x1xf32> to vector<2x2xf32>
    %535 = arith.divf %531, %534 : vector<2x2xf32>
    %536 = vector.shape_cast %535 : vector<2x2xf32> to vector<2x2x1xf32>
    %537 = vector.broadcast %536 : vector<2x2x1xf32> to vector<2x2x16xf32>
    %538 = arith.mulf %537, %522 : vector<2x2x16xf32>
    %cst_137 = arith.constant dense<0.000000e+00> : vector<2x16xf32>
    %539 = vector.multi_reduction <add>, %538, %cst_137 [1] : vector<2x2x16xf32> to vector<2x16xf32>
    %cst_138 = arith.constant 0.000000e+00 : f32
    %540 = vector.broadcast %cst_138 : f32 to vector<2x6xf32>
    %541 = tpu.concatenate %535, %540 in 1 : vector<2x2xf32>, vector<2x6xf32> -> vector<2x8xf32>
    %542 = vector.shape_cast %442 : vector<2x2x16xf32> to vector<4x16xf32>
    %543 = vector.shape_cast %449 : vector<2x2x16xf32> to vector<4x16xf32>
    %544 = vector.shape_cast %481 : vector<2x16xf32> to vector<2x1x16xf32>
    %545 = vector.shape_cast %544 : vector<2x1x16xf32> to vector<2x1x16xf32>
    %546 = vector.broadcast %545 : vector<2x1x16xf32> to vector<2x2x16xf32>
    %547 = vector.shape_cast %546 : vector<2x2x16xf32> to vector<4x16xf32>
    %548 = vector.shape_cast %519 : vector<2x16xf32> to vector<2x1x16xf32>
    %549 = vector.shape_cast %548 : vector<2x1x16xf32> to vector<2x1x16xf32>
    %550 = vector.broadcast %549 : vector<2x1x16xf32> to vector<2x2x16xf32>
    %551 = vector.shape_cast %550 : vector<2x2x16xf32> to vector<4x16xf32>
    %552 = vector.shape_cast %539 : vector<2x16xf32> to vector<2x1x16xf32>
    %553 = vector.shape_cast %552 : vector<2x1x16xf32> to vector<2x1x16xf32>
    %554 = vector.broadcast %553 : vector<2x1x16xf32> to vector<2x2x16xf32>
    %555 = vector.shape_cast %554 : vector<2x2x16xf32> to vector<4x16xf32>
    %556 = tpu.concatenate %555, %547, %543, %547, %551, %542 in 1 : vector<4x16xf32>, vector<4x16xf32>, vector<4x16xf32>, vector<4x16xf32>, vector<4x16xf32>, vector<4x16xf32> -> vector<4x96xf32>
    %cst_139 = arith.constant dense<0.000000e+00> : vector<4x128xf32>
    %557 = tpu.matmul %556, %5, %cst_139 {dimension_numbers = #tpu.dot_dimension_numbers<[1], [0], [0], [1], [0, 0, 1, 1], [], []>} : vector<4x96xf32>, vector<96x128xf32>, vector<4x128xf32> -> vector<4x128xf32>
    %558 = vector.broadcast %7 : vector<1x128xf32> to vector<4x128xf32>
    %559 = arith.addf %557, %558 : vector<4x128xf32>
    %560 = vector.extract_strided_slice %559 {offsets = [0, 0], sizes = [4, 64], strides = [1, 1]} : vector<4x128xf32> to vector<4x64xf32>
    %561 = vector.extract_strided_slice %560 {offsets = [0, 0], sizes = [4, 16], strides = [1, 1]} : vector<4x64xf32> to vector<4x16xf32>
    %562 = arith.negf %561 : vector<4x16xf32>
    %563 = math.exp %562 : vector<4x16xf32>
    %cst_140 = arith.constant 1.000000e+00 : f32
    %564 = vector.broadcast %cst_140 : f32 to vector<4x16xf32>
    %565 = arith.addf %564, %563 : vector<4x16xf32>
    %566 = arith.divf %564, %565 : vector<4x16xf32>
    %567 = vector.extract_strided_slice %560 {offsets = [0, 16], sizes = [4, 16], strides = [1, 1]} : vector<4x64xf32> to vector<4x16xf32>
    %568 = arith.negf %567 : vector<4x16xf32>
    %569 = math.exp %568 : vector<4x16xf32>
    %cst_141 = arith.constant 1.000000e+00 : f32
    %570 = vector.broadcast %cst_141 : f32 to vector<4x16xf32>
    %571 = arith.addf %570, %569 : vector<4x16xf32>
    %572 = arith.divf %570, %571 : vector<4x16xf32>
    %573 = vector.extract_strided_slice %560 {offsets = [0, 32], sizes = [4, 16], strides = [1, 1]} : vector<4x64xf32> to vector<4x16xf32>
    %574 = vector.extract_strided_slice %560 {offsets = [0, 48], sizes = [4, 16], strides = [1, 1]} : vector<4x64xf32> to vector<4x16xf32>
    %575 = arith.mulf %566, %574 : vector<4x16xf32>
    %576 = arith.addf %573, %575 : vector<4x16xf32>
    %577 = math.tanh %576 : vector<4x16xf32>
    %cst_142 = arith.constant 1.000000e+00 : f32
    %578 = vector.broadcast %cst_142 : f32 to vector<4x16xf32>
    %579 = arith.subf %578, %572 : vector<4x16xf32>
    %580 = arith.mulf %579, %577 : vector<4x16xf32>
    %581 = arith.mulf %572, %543 : vector<4x16xf32>
    %582 = arith.addf %580, %581 : vector<4x16xf32>
    %583 = vector.shape_cast %582 : vector<4x16xf32> to vector<2x2x16xf32>
    %584 = vector.extract_strided_slice %559 {offsets = [0, 64], sizes = [4, 64], strides = [1, 1]} : vector<4x128xf32> to vector<4x64xf32>
    %585 = vector.extract_strided_slice %584 {offsets = [0, 0], sizes = [4, 16], strides = [1, 1]} : vector<4x64xf32> to vector<4x16xf32>
    %586 = arith.negf %585 : vector<4x16xf32>
    %587 = math.exp %586 : vector<4x16xf32>
    %cst_143 = arith.constant 1.000000e+00 : f32
    %588 = vector.broadcast %cst_143 : f32 to vector<4x16xf32>
    %589 = arith.addf %588, %587 : vector<4x16xf32>
    %590 = arith.divf %588, %589 : vector<4x16xf32>
    %591 = vector.extract_strided_slice %584 {offsets = [0, 16], sizes = [4, 16], strides = [1, 1]} : vector<4x64xf32> to vector<4x16xf32>
    %592 = arith.negf %591 : vector<4x16xf32>
    %593 = math.exp %592 : vector<4x16xf32>
    %cst_144 = arith.constant 1.000000e+00 : f32
    %594 = vector.broadcast %cst_144 : f32 to vector<4x16xf32>
    %595 = arith.addf %594, %593 : vector<4x16xf32>
    %596 = arith.divf %594, %595 : vector<4x16xf32>
    %597 = vector.extract_strided_slice %584 {offsets = [0, 32], sizes = [4, 16], strides = [1, 1]} : vector<4x64xf32> to vector<4x16xf32>
    %598 = vector.extract_strided_slice %584 {offsets = [0, 48], sizes = [4, 16], strides = [1, 1]} : vector<4x64xf32> to vector<4x16xf32>
    %599 = arith.mulf %590, %598 : vector<4x16xf32>
    %600 = arith.addf %597, %599 : vector<4x16xf32>
    %601 = math.tanh %600 : vector<4x16xf32>
    %cst_145 = arith.constant 1.000000e+00 : f32
    %602 = vector.broadcast %cst_145 : f32 to vector<4x16xf32>
    %603 = arith.subf %602, %596 : vector<4x16xf32>
    %604 = arith.mulf %603, %601 : vector<4x16xf32>
    %605 = arith.mulf %596, %542 : vector<4x16xf32>
    %606 = arith.addf %604, %605 : vector<4x16xf32>
    %607 = vector.shape_cast %606 : vector<4x16xf32> to vector<2x2x16xf32>
    %608 = vector.shape_cast %485 : vector<2x2xf32> to vector<2x2x1xf32>
    %609 = vector.broadcast %608 : vector<2x2x1xf32> to vector<2x2x16xf32>
    %610 = arith.mulf %609, %583 : vector<2x2x16xf32>
    %cst_146 = arith.constant dense<0.000000e+00> : vector<2x16xf32>
    %611 = vector.multi_reduction <add>, %610, %cst_146 [1] : vector<2x2x16xf32> to vector<2x16xf32>
    %612 = vector.shape_cast %611 : vector<2x16xf32> to vector<2x1x16xf32>
    %613 = vector.shape_cast %612 : vector<2x1x16xf32> to vector<2x1x16xf32>
    %614 = vector.broadcast %613 : vector<2x1x16xf32> to vector<2x2x16xf32>
    %615 = vector.shape_cast %614 : vector<2x2x16xf32> to vector<4x16xf32>
    %616 = vector.shape_cast %485 : vector<2x2xf32> to vector<2x2x1xf32>
    %617 = vector.broadcast %616 : vector<2x2x1xf32> to vector<2x2x16xf32>
    %618 = arith.mulf %617, %607 : vector<2x2x16xf32>
    %cst_147 = arith.constant dense<0.000000e+00> : vector<2x16xf32>
    %619 = vector.multi_reduction <add>, %618, %cst_147 [1] : vector<2x2x16xf32> to vector<2x16xf32>
    %620 = vector.shape_cast %619 : vector<2x16xf32> to vector<2x1x16xf32>
    %621 = vector.shape_cast %620 : vector<2x1x16xf32> to vector<2x1x16xf32>
    %622 = vector.broadcast %621 : vector<2x1x16xf32> to vector<2x2x16xf32>
    %623 = vector.shape_cast %622 : vector<2x2x16xf32> to vector<4x16xf32>
    %624 = tpu.concatenate %615, %547, %543, %547, %623, %542 in 1 : vector<4x16xf32>, vector<4x16xf32>, vector<4x16xf32>, vector<4x16xf32>, vector<4x16xf32>, vector<4x16xf32> -> vector<4x96xf32>
    %cst_148 = arith.constant dense<0.000000e+00> : vector<4x128xf32>
    %625 = tpu.matmul %624, %9, %cst_148 {dimension_numbers = #tpu.dot_dimension_numbers<[1], [0], [0], [1], [0, 0, 1, 1], [], []>} : vector<4x96xf32>, vector<96x128xf32>, vector<4x128xf32> -> vector<4x128xf32>
    %626 = vector.broadcast %11 : vector<1x128xf32> to vector<4x128xf32>
    %627 = arith.addf %625, %626 : vector<4x128xf32>
    %628 = vector.extract_strided_slice %627 {offsets = [0, 0], sizes = [4, 64], strides = [1, 1]} : vector<4x128xf32> to vector<4x64xf32>
    %629 = vector.extract_strided_slice %628 {offsets = [0, 0], sizes = [4, 16], strides = [1, 1]} : vector<4x64xf32> to vector<4x16xf32>
    %630 = arith.negf %629 : vector<4x16xf32>
    %631 = math.exp %630 : vector<4x16xf32>
    %cst_149 = arith.constant 1.000000e+00 : f32
    %632 = vector.broadcast %cst_149 : f32 to vector<4x16xf32>
    %633 = arith.addf %632, %631 : vector<4x16xf32>
    %634 = arith.divf %632, %633 : vector<4x16xf32>
    %635 = vector.extract_strided_slice %628 {offsets = [0, 16], sizes = [4, 16], strides = [1, 1]} : vector<4x64xf32> to vector<4x16xf32>
    %636 = arith.negf %635 : vector<4x16xf32>
    %637 = math.exp %636 : vector<4x16xf32>
    %cst_150 = arith.constant 1.000000e+00 : f32
    %638 = vector.broadcast %cst_150 : f32 to vector<4x16xf32>
    %639 = arith.addf %638, %637 : vector<4x16xf32>
    %640 = arith.divf %638, %639 : vector<4x16xf32>
    %641 = vector.extract_strided_slice %628 {offsets = [0, 32], sizes = [4, 16], strides = [1, 1]} : vector<4x64xf32> to vector<4x16xf32>
    %642 = vector.extract_strided_slice %628 {offsets = [0, 48], sizes = [4, 16], strides = [1, 1]} : vector<4x64xf32> to vector<4x16xf32>
    %643 = arith.mulf %634, %642 : vector<4x16xf32>
    %644 = arith.addf %641, %643 : vector<4x16xf32>
    %645 = math.tanh %644 : vector<4x16xf32>
    %cst_151 = arith.constant 1.000000e+00 : f32
    %646 = vector.broadcast %cst_151 : f32 to vector<4x16xf32>
    %647 = arith.subf %646, %640 : vector<4x16xf32>
    %648 = arith.mulf %647, %645 : vector<4x16xf32>
    %649 = arith.mulf %640, %543 : vector<4x16xf32>
    %650 = arith.addf %648, %649 : vector<4x16xf32>
    %651 = vector.shape_cast %650 : vector<4x16xf32> to vector<2x2x16xf32>
    %652 = vector.extract_strided_slice %627 {offsets = [0, 64], sizes = [4, 64], strides = [1, 1]} : vector<4x128xf32> to vector<4x64xf32>
    %653 = vector.extract_strided_slice %652 {offsets = [0, 0], sizes = [4, 16], strides = [1, 1]} : vector<4x64xf32> to vector<4x16xf32>
    %654 = arith.negf %653 : vector<4x16xf32>
    %655 = math.exp %654 : vector<4x16xf32>
    %cst_152 = arith.constant 1.000000e+00 : f32
    %656 = vector.broadcast %cst_152 : f32 to vector<4x16xf32>
    %657 = arith.addf %656, %655 : vector<4x16xf32>
    %658 = arith.divf %656, %657 : vector<4x16xf32>
    %659 = vector.extract_strided_slice %652 {offsets = [0, 16], sizes = [4, 16], strides = [1, 1]} : vector<4x64xf32> to vector<4x16xf32>
    %660 = arith.negf %659 : vector<4x16xf32>
    %661 = math.exp %660 : vector<4x16xf32>
    %cst_153 = arith.constant 1.000000e+00 : f32
    %662 = vector.broadcast %cst_153 : f32 to vector<4x16xf32>
    %663 = arith.addf %662, %661 : vector<4x16xf32>
    %664 = arith.divf %662, %663 : vector<4x16xf32>
    %665 = vector.extract_strided_slice %652 {offsets = [0, 32], sizes = [4, 16], strides = [1, 1]} : vector<4x64xf32> to vector<4x16xf32>
    %666 = vector.extract_strided_slice %652 {offsets = [0, 48], sizes = [4, 16], strides = [1, 1]} : vector<4x64xf32> to vector<4x16xf32>
    %667 = arith.mulf %658, %666 : vector<4x16xf32>
    %668 = arith.addf %665, %667 : vector<4x16xf32>
    %669 = math.tanh %668 : vector<4x16xf32>
    %cst_154 = arith.constant 1.000000e+00 : f32
    %670 = vector.broadcast %cst_154 : f32 to vector<4x16xf32>
    %671 = arith.subf %670, %664 : vector<4x16xf32>
    %672 = arith.mulf %671, %669 : vector<4x16xf32>
    %673 = arith.mulf %664, %542 : vector<4x16xf32>
    %674 = arith.addf %672, %673 : vector<4x16xf32>
    %675 = vector.shape_cast %674 : vector<4x16xf32> to vector<2x2x16xf32>
    %676 = vector.shape_cast %483 : vector<2x2xf32> to vector<2x2x1xf32>
    %677 = vector.broadcast %676 : vector<2x2x1xf32> to vector<2x2x16xf32>
    %678 = arith.mulf %675, %677 : vector<2x2x16xf32>
    %cst_155 = arith.constant 1.000000e+00 : f32
    %679 = vector.broadcast %cst_155 : f32 to vector<2x2x1xf32>
    %680 = arith.subf %679, %676 : vector<2x2x1xf32>
    %681 = vector.broadcast %680 : vector<2x2x1xf32> to vector<2x2x16xf32>
    %682 = arith.mulf %607, %681 : vector<2x2x16xf32>
    %683 = arith.addf %678, %682 : vector<2x2x16xf32>
    %684 = vector.broadcast %676 : vector<2x2x1xf32> to vector<2x2x16xf32>
    %685 = arith.mulf %583, %684 : vector<2x2x16xf32>
    %cst_156 = arith.constant 1.000000e+00 : f32
    %686 = vector.broadcast %cst_156 : f32 to vector<2x2x1xf32>
    %687 = arith.subf %686, %676 : vector<2x2x1xf32>
    %688 = vector.broadcast %687 : vector<2x2x1xf32> to vector<2x2x16xf32>
    %689 = arith.mulf %651, %688 : vector<2x2x16xf32>
    %690 = arith.addf %685, %689 : vector<2x2x16xf32>
    %691 = vector.shape_cast %485 : vector<2x2xf32> to vector<2x2x1xf32>
    %692 = vector.broadcast %691 : vector<2x2x1xf32> to vector<2x2x16xf32>
    %693 = arith.mulf %692, %683 : vector<2x2x16xf32>
    %cst_157 = arith.constant dense<0.000000e+00> : vector<2x16xf32>
    %694 = vector.multi_reduction <add>, %693, %cst_157 [1] : vector<2x2x16xf32> to vector<2x16xf32>
    %695 = tpu.concatenate %481, %694, %519, %479 in 1 : vector<2x16xf32>, vector<2x16xf32>, vector<2x16xf32>, vector<2x16xf32> -> vector<2x64xf32>
    %cst_158 = arith.constant dense<0.000000e+00> : vector<2x64xf32>
    %696 = tpu.matmul %695, %13, %cst_158 {dimension_numbers = #tpu.dot_dimension_numbers<[1], [0], [0], [1], [0, 0, 1, 1], [], []>} : vector<2x64xf32>, vector<64x64xf32>, vector<2x64xf32> -> vector<2x64xf32>
    %697 = vector.broadcast %15 : vector<1x64xf32> to vector<2x64xf32>
    %698 = arith.addf %696, %697 : vector<2x64xf32>
    %699 = vector.extract_strided_slice %698 {offsets = [0, 0], sizes = [2, 16], strides = [1, 1]} : vector<2x64xf32> to vector<2x16xf32>
    %700 = arith.negf %699 : vector<2x16xf32>
    %701 = math.exp %700 : vector<2x16xf32>
    %cst_159 = arith.constant 1.000000e+00 : f32
    %702 = vector.broadcast %cst_159 : f32 to vector<2x16xf32>
    %703 = arith.addf %702, %701 : vector<2x16xf32>
    %704 = arith.divf %702, %703 : vector<2x16xf32>
    %705 = vector.extract_strided_slice %698 {offsets = [0, 16], sizes = [2, 16], strides = [1, 1]} : vector<2x64xf32> to vector<2x16xf32>
    %706 = arith.negf %705 : vector<2x16xf32>
    %707 = math.exp %706 : vector<2x16xf32>
    %cst_160 = arith.constant 1.000000e+00 : f32
    %708 = vector.broadcast %cst_160 : f32 to vector<2x16xf32>
    %709 = arith.addf %708, %707 : vector<2x16xf32>
    %710 = arith.divf %708, %709 : vector<2x16xf32>
    %711 = vector.extract_strided_slice %698 {offsets = [0, 32], sizes = [2, 16], strides = [1, 1]} : vector<2x64xf32> to vector<2x16xf32>
    %712 = vector.extract_strided_slice %698 {offsets = [0, 48], sizes = [2, 16], strides = [1, 1]} : vector<2x64xf32> to vector<2x16xf32>
    %713 = arith.mulf %704, %712 : vector<2x16xf32>
    %714 = arith.addf %711, %713 : vector<2x16xf32>
    %715 = math.tanh %714 : vector<2x16xf32>
    %cst_161 = arith.constant 1.000000e+00 : f32
    %716 = vector.broadcast %cst_161 : f32 to vector<2x16xf32>
    %717 = arith.subf %716, %710 : vector<2x16xf32>
    %718 = arith.mulf %717, %715 : vector<2x16xf32>
    %719 = arith.mulf %710, %479 : vector<2x16xf32>
    %720 = arith.addf %718, %719 : vector<2x16xf32>
    %c0_162 = arith.constant 0 : index
    %c3 = arith.constant 3 : index
    %c0_163 = arith.constant 0 : index
    %c0_164 = arith.constant 0 : index
    %721 = vector.load %arg1[%c0_162, %c3, %c0_163, %c0_164] : memref<1x8x2x16xf32, #tpu.memory_space<vmem>>, vector<1x1x2x16xf32>
    %722 = vector.shape_cast %721 : vector<1x1x2x16xf32> to vector<2x16xf32>
    %c0_165 = arith.constant 0 : index
    %c3_166 = arith.constant 3 : index
    %c0_167 = arith.constant 0 : index
    %c0_168 = arith.constant 0 : index
    %723 = vector.load %arg2[%c0_165, %c3_166, %c0_167, %c0_168] : memref<1x8x2x2xf32, #tpu.memory_space<vmem>>, vector<1x1x2x2xf32>
    %724 = vector.shape_cast %723 : vector<1x1x2x2xf32> to vector<2x2xf32>
    %c0_169 = arith.constant 0 : index
    %c3_170 = arith.constant 3 : index
    %c0_171 = arith.constant 0 : index
    %c0_172 = arith.constant 0 : index
    %725 = vector.load %arg3[%c0_169, %c3_170, %c0_171, %c0_172] : memref<1x8x2x2xf32, #tpu.memory_space<vmem>>, vector<1x1x2x2xf32>
    %726 = vector.shape_cast %725 : vector<1x1x2x2xf32> to vector<2x2xf32>
    %727 = vector.shape_cast %726 : vector<2x2xf32> to vector<2x2x1xf32>
    %728 = vector.broadcast %727 : vector<2x2x1xf32> to vector<2x2x16xf32>
    %729 = arith.mulf %728, %683 : vector<2x2x16xf32>
    %cst_173 = arith.constant dense<0.000000e+00> : vector<2x16xf32>
    %730 = vector.multi_reduction <add>, %729, %cst_173 [1] : vector<2x2x16xf32> to vector<2x16xf32>
    %731 = vector.shape_cast %726 : vector<2x2xf32> to vector<2x2x1xf32>
    %732 = vector.broadcast %731 : vector<2x2x1xf32> to vector<2x2x16xf32>
    %733 = arith.mulf %732, %690 : vector<2x2x16xf32>
    %cst_174 = arith.constant dense<0.000000e+00> : vector<2x16xf32>
    %734 = vector.multi_reduction <add>, %733, %cst_174 [1] : vector<2x2x16xf32> to vector<2x16xf32>
    %735 = tpu.concatenate %730, %734, %722, %519 in 1 : vector<2x16xf32>, vector<2x16xf32>, vector<2x16xf32>, vector<2x16xf32> -> vector<2x64xf32>
    %cst_175 = arith.constant dense<0.000000e+00> : vector<2x64xf32>
    %736 = tpu.matmul %735, %1, %cst_175 {dimension_numbers = #tpu.dot_dimension_numbers<[1], [0], [0], [1], [0, 0, 1, 1], [], []>} : vector<2x64xf32>, vector<64x64xf32>, vector<2x64xf32> -> vector<2x64xf32>
    %737 = vector.broadcast %3 : vector<1x64xf32> to vector<2x64xf32>
    %738 = arith.addf %736, %737 : vector<2x64xf32>
    %739 = vector.extract_strided_slice %738 {offsets = [0, 0], sizes = [2, 16], strides = [1, 1]} : vector<2x64xf32> to vector<2x16xf32>
    %740 = arith.negf %739 : vector<2x16xf32>
    %741 = math.exp %740 : vector<2x16xf32>
    %cst_176 = arith.constant 1.000000e+00 : f32
    %742 = vector.broadcast %cst_176 : f32 to vector<2x16xf32>
    %743 = arith.addf %742, %741 : vector<2x16xf32>
    %744 = arith.divf %742, %743 : vector<2x16xf32>
    %745 = vector.extract_strided_slice %738 {offsets = [0, 16], sizes = [2, 16], strides = [1, 1]} : vector<2x64xf32> to vector<2x16xf32>
    %746 = arith.negf %745 : vector<2x16xf32>
    %747 = math.exp %746 : vector<2x16xf32>
    %cst_177 = arith.constant 1.000000e+00 : f32
    %748 = vector.broadcast %cst_177 : f32 to vector<2x16xf32>
    %749 = arith.addf %748, %747 : vector<2x16xf32>
    %750 = arith.divf %748, %749 : vector<2x16xf32>
    %751 = vector.extract_strided_slice %738 {offsets = [0, 32], sizes = [2, 16], strides = [1, 1]} : vector<2x64xf32> to vector<2x16xf32>
    %752 = vector.extract_strided_slice %738 {offsets = [0, 48], sizes = [2, 16], strides = [1, 1]} : vector<2x64xf32> to vector<2x16xf32>
    %753 = arith.mulf %744, %752 : vector<2x16xf32>
    %754 = arith.addf %751, %753 : vector<2x16xf32>
    %755 = math.tanh %754 : vector<2x16xf32>
    %cst_178 = arith.constant 1.000000e+00 : f32
    %756 = vector.broadcast %cst_178 : f32 to vector<2x16xf32>
    %757 = arith.subf %756, %750 : vector<2x16xf32>
    %758 = arith.mulf %757, %755 : vector<2x16xf32>
    %759 = arith.mulf %750, %519 : vector<2x16xf32>
    %760 = arith.addf %758, %759 : vector<2x16xf32>
    %761 = vector.shape_cast %61 : vector<2x16xf32> to vector<2x1x16xf32>
    %762 = vector.shape_cast %282 : vector<2x16xf32> to vector<2x1x16xf32>
    %763 = vector.shape_cast %519 : vector<2x16xf32> to vector<2x1x16xf32>
    %764 = tpu.concatenate %761, %762, %763 in 1 : vector<2x1x16xf32>, vector<2x1x16xf32>, vector<2x1x16xf32> -> vector<2x3x16xf32>
    %765 = vector.shape_cast %17 : vector<1x16xf32> to vector<1x1x16xf32>
    %766 = vector.broadcast %765 : vector<1x1x16xf32> to vector<2x3x16xf32>
    %767 = arith.mulf %764, %766 : vector<2x3x16xf32>
    %cst_179 = arith.constant dense<0.000000e+00> : vector<2x3xf32>
    %768 = vector.multi_reduction <add>, %767, %cst_179 [2] : vector<2x3x16xf32> to vector<2x3xf32>
    %cst_180 = arith.constant dense<0xFF800000> : vector<2xf32>
    %769 = vector.multi_reduction <maximumf>, %768, %cst_180 [1] : vector<2x3xf32> to vector<2xf32>
    %770 = vector.shape_cast %769 : vector<2xf32> to vector<2x1xf32>
    %771 = vector.broadcast %770 : vector<2x1xf32> to vector<2x3xf32>
    %772 = arith.subf %768, %771 : vector<2x3xf32>
    %773 = math.exp %772 : vector<2x3xf32>
    %cst_181 = arith.constant dense<0.000000e+00> : vector<2xf32>
    %774 = vector.multi_reduction <add>, %773, %cst_181 [1] : vector<2x3xf32> to vector<2xf32>
    %775 = vector.shape_cast %774 : vector<2xf32> to vector<2x1xf32>
    %776 = vector.broadcast %775 : vector<2x1xf32> to vector<2x3xf32>
    %777 = arith.divf %773, %776 : vector<2x3xf32>
    %778 = vector.shape_cast %777 : vector<2x3xf32> to vector<2x3x1xf32>
    %779 = vector.broadcast %778 : vector<2x3x1xf32> to vector<2x3x16xf32>
    %780 = arith.mulf %779, %764 : vector<2x3x16xf32>
    %cst_182 = arith.constant dense<0.000000e+00> : vector<2x16xf32>
    %781 = vector.multi_reduction <add>, %780, %cst_182 [1] : vector<2x3x16xf32> to vector<2x16xf32>
    %cst_183 = arith.constant 0.000000e+00 : f32
    %782 = vector.broadcast %cst_183 : f32 to vector<2x5xf32>
    %783 = tpu.concatenate %777, %782 in 1 : vector<2x3xf32>, vector<2x5xf32> -> vector<2x8xf32>
    %784 = vector.shape_cast %683 : vector<2x2x16xf32> to vector<4x16xf32>
    %785 = vector.shape_cast %690 : vector<2x2x16xf32> to vector<4x16xf32>
    %786 = vector.shape_cast %722 : vector<2x16xf32> to vector<2x1x16xf32>
    %787 = vector.shape_cast %786 : vector<2x1x16xf32> to vector<2x1x16xf32>
    %788 = vector.broadcast %787 : vector<2x1x16xf32> to vector<2x2x16xf32>
    %789 = vector.shape_cast %788 : vector<2x2x16xf32> to vector<4x16xf32>
    %790 = vector.shape_cast %760 : vector<2x16xf32> to vector<2x1x16xf32>
    %791 = vector.shape_cast %790 : vector<2x1x16xf32> to vector<2x1x16xf32>
    %792 = vector.broadcast %791 : vector<2x1x16xf32> to vector<2x2x16xf32>
    %793 = vector.shape_cast %792 : vector<2x2x16xf32> to vector<4x16xf32>
    %794 = vector.shape_cast %781 : vector<2x16xf32> to vector<2x1x16xf32>
    %795 = vector.shape_cast %794 : vector<2x1x16xf32> to vector<2x1x16xf32>
    %796 = vector.broadcast %795 : vector<2x1x16xf32> to vector<2x2x16xf32>
    %797 = vector.shape_cast %796 : vector<2x2x16xf32> to vector<4x16xf32>
    %798 = tpu.concatenate %797, %789, %785, %789, %793, %784 in 1 : vector<4x16xf32>, vector<4x16xf32>, vector<4x16xf32>, vector<4x16xf32>, vector<4x16xf32>, vector<4x16xf32> -> vector<4x96xf32>
    %cst_184 = arith.constant dense<0.000000e+00> : vector<4x128xf32>
    %799 = tpu.matmul %798, %5, %cst_184 {dimension_numbers = #tpu.dot_dimension_numbers<[1], [0], [0], [1], [0, 0, 1, 1], [], []>} : vector<4x96xf32>, vector<96x128xf32>, vector<4x128xf32> -> vector<4x128xf32>
    %800 = vector.broadcast %7 : vector<1x128xf32> to vector<4x128xf32>
    %801 = arith.addf %799, %800 : vector<4x128xf32>
    %802 = vector.extract_strided_slice %801 {offsets = [0, 0], sizes = [4, 64], strides = [1, 1]} : vector<4x128xf32> to vector<4x64xf32>
    %803 = vector.extract_strided_slice %802 {offsets = [0, 0], sizes = [4, 16], strides = [1, 1]} : vector<4x64xf32> to vector<4x16xf32>
    %804 = arith.negf %803 : vector<4x16xf32>
    %805 = math.exp %804 : vector<4x16xf32>
    %cst_185 = arith.constant 1.000000e+00 : f32
    %806 = vector.broadcast %cst_185 : f32 to vector<4x16xf32>
    %807 = arith.addf %806, %805 : vector<4x16xf32>
    %808 = arith.divf %806, %807 : vector<4x16xf32>
    %809 = vector.extract_strided_slice %802 {offsets = [0, 16], sizes = [4, 16], strides = [1, 1]} : vector<4x64xf32> to vector<4x16xf32>
    %810 = arith.negf %809 : vector<4x16xf32>
    %811 = math.exp %810 : vector<4x16xf32>
    %cst_186 = arith.constant 1.000000e+00 : f32
    %812 = vector.broadcast %cst_186 : f32 to vector<4x16xf32>
    %813 = arith.addf %812, %811 : vector<4x16xf32>
    %814 = arith.divf %812, %813 : vector<4x16xf32>
    %815 = vector.extract_strided_slice %802 {offsets = [0, 32], sizes = [4, 16], strides = [1, 1]} : vector<4x64xf32> to vector<4x16xf32>
    %816 = vector.extract_strided_slice %802 {offsets = [0, 48], sizes = [4, 16], strides = [1, 1]} : vector<4x64xf32> to vector<4x16xf32>
    %817 = arith.mulf %808, %816 : vector<4x16xf32>
    %818 = arith.addf %815, %817 : vector<4x16xf32>
    %819 = math.tanh %818 : vector<4x16xf32>
    %cst_187 = arith.constant 1.000000e+00 : f32
    %820 = vector.broadcast %cst_187 : f32 to vector<4x16xf32>
    %821 = arith.subf %820, %814 : vector<4x16xf32>
    %822 = arith.mulf %821, %819 : vector<4x16xf32>
    %823 = arith.mulf %814, %785 : vector<4x16xf32>
    %824 = arith.addf %822, %823 : vector<4x16xf32>
    %825 = vector.shape_cast %824 : vector<4x16xf32> to vector<2x2x16xf32>
    %826 = vector.extract_strided_slice %801 {offsets = [0, 64], sizes = [4, 64], strides = [1, 1]} : vector<4x128xf32> to vector<4x64xf32>
    %827 = vector.extract_strided_slice %826 {offsets = [0, 0], sizes = [4, 16], strides = [1, 1]} : vector<4x64xf32> to vector<4x16xf32>
    %828 = arith.negf %827 : vector<4x16xf32>
    %829 = math.exp %828 : vector<4x16xf32>
    %cst_188 = arith.constant 1.000000e+00 : f32
    %830 = vector.broadcast %cst_188 : f32 to vector<4x16xf32>
    %831 = arith.addf %830, %829 : vector<4x16xf32>
    %832 = arith.divf %830, %831 : vector<4x16xf32>
    %833 = vector.extract_strided_slice %826 {offsets = [0, 16], sizes = [4, 16], strides = [1, 1]} : vector<4x64xf32> to vector<4x16xf32>
    %834 = arith.negf %833 : vector<4x16xf32>
    %835 = math.exp %834 : vector<4x16xf32>
    %cst_189 = arith.constant 1.000000e+00 : f32
    %836 = vector.broadcast %cst_189 : f32 to vector<4x16xf32>
    %837 = arith.addf %836, %835 : vector<4x16xf32>
    %838 = arith.divf %836, %837 : vector<4x16xf32>
    %839 = vector.extract_strided_slice %826 {offsets = [0, 32], sizes = [4, 16], strides = [1, 1]} : vector<4x64xf32> to vector<4x16xf32>
    %840 = vector.extract_strided_slice %826 {offsets = [0, 48], sizes = [4, 16], strides = [1, 1]} : vector<4x64xf32> to vector<4x16xf32>
    %841 = arith.mulf %832, %840 : vector<4x16xf32>
    %842 = arith.addf %839, %841 : vector<4x16xf32>
    %843 = math.tanh %842 : vector<4x16xf32>
    %cst_190 = arith.constant 1.000000e+00 : f32
    %844 = vector.broadcast %cst_190 : f32 to vector<4x16xf32>
    %845 = arith.subf %844, %838 : vector<4x16xf32>
    %846 = arith.mulf %845, %843 : vector<4x16xf32>
    %847 = arith.mulf %838, %784 : vector<4x16xf32>
    %848 = arith.addf %846, %847 : vector<4x16xf32>
    %849 = vector.shape_cast %848 : vector<4x16xf32> to vector<2x2x16xf32>
    %850 = vector.shape_cast %726 : vector<2x2xf32> to vector<2x2x1xf32>
    %851 = vector.broadcast %850 : vector<2x2x1xf32> to vector<2x2x16xf32>
    %852 = arith.mulf %851, %825 : vector<2x2x16xf32>
    %cst_191 = arith.constant dense<0.000000e+00> : vector<2x16xf32>
    %853 = vector.multi_reduction <add>, %852, %cst_191 [1] : vector<2x2x16xf32> to vector<2x16xf32>
    %854 = vector.shape_cast %853 : vector<2x16xf32> to vector<2x1x16xf32>
    %855 = vector.shape_cast %854 : vector<2x1x16xf32> to vector<2x1x16xf32>
    %856 = vector.broadcast %855 : vector<2x1x16xf32> to vector<2x2x16xf32>
    %857 = vector.shape_cast %856 : vector<2x2x16xf32> to vector<4x16xf32>
    %858 = vector.shape_cast %726 : vector<2x2xf32> to vector<2x2x1xf32>
    %859 = vector.broadcast %858 : vector<2x2x1xf32> to vector<2x2x16xf32>
    %860 = arith.mulf %859, %849 : vector<2x2x16xf32>
    %cst_192 = arith.constant dense<0.000000e+00> : vector<2x16xf32>
    %861 = vector.multi_reduction <add>, %860, %cst_192 [1] : vector<2x2x16xf32> to vector<2x16xf32>
    %862 = vector.shape_cast %861 : vector<2x16xf32> to vector<2x1x16xf32>
    %863 = vector.shape_cast %862 : vector<2x1x16xf32> to vector<2x1x16xf32>
    %864 = vector.broadcast %863 : vector<2x1x16xf32> to vector<2x2x16xf32>
    %865 = vector.shape_cast %864 : vector<2x2x16xf32> to vector<4x16xf32>
    %866 = tpu.concatenate %857, %789, %785, %789, %865, %784 in 1 : vector<4x16xf32>, vector<4x16xf32>, vector<4x16xf32>, vector<4x16xf32>, vector<4x16xf32>, vector<4x16xf32> -> vector<4x96xf32>
    %cst_193 = arith.constant dense<0.000000e+00> : vector<4x128xf32>
    %867 = tpu.matmul %866, %9, %cst_193 {dimension_numbers = #tpu.dot_dimension_numbers<[1], [0], [0], [1], [0, 0, 1, 1], [], []>} : vector<4x96xf32>, vector<96x128xf32>, vector<4x128xf32> -> vector<4x128xf32>
    %868 = vector.broadcast %11 : vector<1x128xf32> to vector<4x128xf32>
    %869 = arith.addf %867, %868 : vector<4x128xf32>
    %870 = vector.extract_strided_slice %869 {offsets = [0, 0], sizes = [4, 64], strides = [1, 1]} : vector<4x128xf32> to vector<4x64xf32>
    %871 = vector.extract_strided_slice %870 {offsets = [0, 0], sizes = [4, 16], strides = [1, 1]} : vector<4x64xf32> to vector<4x16xf32>
    %872 = arith.negf %871 : vector<4x16xf32>
    %873 = math.exp %872 : vector<4x16xf32>
    %cst_194 = arith.constant 1.000000e+00 : f32
    %874 = vector.broadcast %cst_194 : f32 to vector<4x16xf32>
    %875 = arith.addf %874, %873 : vector<4x16xf32>
    %876 = arith.divf %874, %875 : vector<4x16xf32>
    %877 = vector.extract_strided_slice %870 {offsets = [0, 16], sizes = [4, 16], strides = [1, 1]} : vector<4x64xf32> to vector<4x16xf32>
    %878 = arith.negf %877 : vector<4x16xf32>
    %879 = math.exp %878 : vector<4x16xf32>
    %cst_195 = arith.constant 1.000000e+00 : f32
    %880 = vector.broadcast %cst_195 : f32 to vector<4x16xf32>
    %881 = arith.addf %880, %879 : vector<4x16xf32>
    %882 = arith.divf %880, %881 : vector<4x16xf32>
    %883 = vector.extract_strided_slice %870 {offsets = [0, 32], sizes = [4, 16], strides = [1, 1]} : vector<4x64xf32> to vector<4x16xf32>
    %884 = vector.extract_strided_slice %870 {offsets = [0, 48], sizes = [4, 16], strides = [1, 1]} : vector<4x64xf32> to vector<4x16xf32>
    %885 = arith.mulf %876, %884 : vector<4x16xf32>
    %886 = arith.addf %883, %885 : vector<4x16xf32>
    %887 = math.tanh %886 : vector<4x16xf32>
    %cst_196 = arith.constant 1.000000e+00 : f32
    %888 = vector.broadcast %cst_196 : f32 to vector<4x16xf32>
    %889 = arith.subf %888, %882 : vector<4x16xf32>
    %890 = arith.mulf %889, %887 : vector<4x16xf32>
    %891 = arith.mulf %882, %785 : vector<4x16xf32>
    %892 = arith.addf %890, %891 : vector<4x16xf32>
    %893 = vector.shape_cast %892 : vector<4x16xf32> to vector<2x2x16xf32>
    %894 = vector.extract_strided_slice %869 {offsets = [0, 64], sizes = [4, 64], strides = [1, 1]} : vector<4x128xf32> to vector<4x64xf32>
    %895 = vector.extract_strided_slice %894 {offsets = [0, 0], sizes = [4, 16], strides = [1, 1]} : vector<4x64xf32> to vector<4x16xf32>
    %896 = arith.negf %895 : vector<4x16xf32>
    %897 = math.exp %896 : vector<4x16xf32>
    %cst_197 = arith.constant 1.000000e+00 : f32
    %898 = vector.broadcast %cst_197 : f32 to vector<4x16xf32>
    %899 = arith.addf %898, %897 : vector<4x16xf32>
    %900 = arith.divf %898, %899 : vector<4x16xf32>
    %901 = vector.extract_strided_slice %894 {offsets = [0, 16], sizes = [4, 16], strides = [1, 1]} : vector<4x64xf32> to vector<4x16xf32>
    %902 = arith.negf %901 : vector<4x16xf32>
    %903 = math.exp %902 : vector<4x16xf32>
    %cst_198 = arith.constant 1.000000e+00 : f32
    %904 = vector.broadcast %cst_198 : f32 to vector<4x16xf32>
    %905 = arith.addf %904, %903 : vector<4x16xf32>
    %906 = arith.divf %904, %905 : vector<4x16xf32>
    %907 = vector.extract_strided_slice %894 {offsets = [0, 32], sizes = [4, 16], strides = [1, 1]} : vector<4x64xf32> to vector<4x16xf32>
    %908 = vector.extract_strided_slice %894 {offsets = [0, 48], sizes = [4, 16], strides = [1, 1]} : vector<4x64xf32> to vector<4x16xf32>
    %909 = arith.mulf %900, %908 : vector<4x16xf32>
    %910 = arith.addf %907, %909 : vector<4x16xf32>
    %911 = math.tanh %910 : vector<4x16xf32>
    %cst_199 = arith.constant 1.000000e+00 : f32
    %912 = vector.broadcast %cst_199 : f32 to vector<4x16xf32>
    %913 = arith.subf %912, %906 : vector<4x16xf32>
    %914 = arith.mulf %913, %911 : vector<4x16xf32>
    %915 = arith.mulf %906, %784 : vector<4x16xf32>
    %916 = arith.addf %914, %915 : vector<4x16xf32>
    %917 = vector.shape_cast %916 : vector<4x16xf32> to vector<2x2x16xf32>
    %918 = vector.shape_cast %724 : vector<2x2xf32> to vector<2x2x1xf32>
    %919 = vector.broadcast %918 : vector<2x2x1xf32> to vector<2x2x16xf32>
    %920 = arith.mulf %917, %919 : vector<2x2x16xf32>
    %cst_200 = arith.constant 1.000000e+00 : f32
    %921 = vector.broadcast %cst_200 : f32 to vector<2x2x1xf32>
    %922 = arith.subf %921, %918 : vector<2x2x1xf32>
    %923 = vector.broadcast %922 : vector<2x2x1xf32> to vector<2x2x16xf32>
    %924 = arith.mulf %849, %923 : vector<2x2x16xf32>
    %925 = arith.addf %920, %924 : vector<2x2x16xf32>
    %926 = vector.broadcast %918 : vector<2x2x1xf32> to vector<2x2x16xf32>
    %927 = arith.mulf %825, %926 : vector<2x2x16xf32>
    %cst_201 = arith.constant 1.000000e+00 : f32
    %928 = vector.broadcast %cst_201 : f32 to vector<2x2x1xf32>
    %929 = arith.subf %928, %918 : vector<2x2x1xf32>
    %930 = vector.broadcast %929 : vector<2x2x1xf32> to vector<2x2x16xf32>
    %931 = arith.mulf %893, %930 : vector<2x2x16xf32>
    %932 = arith.addf %927, %931 : vector<2x2x16xf32>
    %933 = vector.shape_cast %726 : vector<2x2xf32> to vector<2x2x1xf32>
    %934 = vector.broadcast %933 : vector<2x2x1xf32> to vector<2x2x16xf32>
    %935 = arith.mulf %934, %925 : vector<2x2x16xf32>
    %cst_202 = arith.constant dense<0.000000e+00> : vector<2x16xf32>
    %936 = vector.multi_reduction <add>, %935, %cst_202 [1] : vector<2x2x16xf32> to vector<2x16xf32>
    %937 = tpu.concatenate %722, %936, %760, %720 in 1 : vector<2x16xf32>, vector<2x16xf32>, vector<2x16xf32>, vector<2x16xf32> -> vector<2x64xf32>
    %cst_203 = arith.constant dense<0.000000e+00> : vector<2x64xf32>
    %938 = tpu.matmul %937, %13, %cst_203 {dimension_numbers = #tpu.dot_dimension_numbers<[1], [0], [0], [1], [0, 0, 1, 1], [], []>} : vector<2x64xf32>, vector<64x64xf32>, vector<2x64xf32> -> vector<2x64xf32>
    %939 = vector.broadcast %15 : vector<1x64xf32> to vector<2x64xf32>
    %940 = arith.addf %938, %939 : vector<2x64xf32>
    %941 = vector.extract_strided_slice %940 {offsets = [0, 0], sizes = [2, 16], strides = [1, 1]} : vector<2x64xf32> to vector<2x16xf32>
    %942 = arith.negf %941 : vector<2x16xf32>
    %943 = math.exp %942 : vector<2x16xf32>
    %cst_204 = arith.constant 1.000000e+00 : f32
    %944 = vector.broadcast %cst_204 : f32 to vector<2x16xf32>
    %945 = arith.addf %944, %943 : vector<2x16xf32>
    %946 = arith.divf %944, %945 : vector<2x16xf32>
    %947 = vector.extract_strided_slice %940 {offsets = [0, 16], sizes = [2, 16], strides = [1, 1]} : vector<2x64xf32> to vector<2x16xf32>
    %948 = arith.negf %947 : vector<2x16xf32>
    %949 = math.exp %948 : vector<2x16xf32>
    %cst_205 = arith.constant 1.000000e+00 : f32
    %950 = vector.broadcast %cst_205 : f32 to vector<2x16xf32>
    %951 = arith.addf %950, %949 : vector<2x16xf32>
    %952 = arith.divf %950, %951 : vector<2x16xf32>
    %953 = vector.extract_strided_slice %940 {offsets = [0, 32], sizes = [2, 16], strides = [1, 1]} : vector<2x64xf32> to vector<2x16xf32>
    %954 = vector.extract_strided_slice %940 {offsets = [0, 48], sizes = [2, 16], strides = [1, 1]} : vector<2x64xf32> to vector<2x16xf32>
    %955 = arith.mulf %946, %954 : vector<2x16xf32>
    %956 = arith.addf %953, %955 : vector<2x16xf32>
    %957 = math.tanh %956 : vector<2x16xf32>
    %cst_206 = arith.constant 1.000000e+00 : f32
    %958 = vector.broadcast %cst_206 : f32 to vector<2x16xf32>
    %959 = arith.subf %958, %952 : vector<2x16xf32>
    %960 = arith.mulf %959, %957 : vector<2x16xf32>
    %961 = arith.mulf %952, %720 : vector<2x16xf32>
    %962 = arith.addf %960, %961 : vector<2x16xf32>
    %c0_207 = arith.constant 0 : index
    %c4 = arith.constant 4 : index
    %c0_208 = arith.constant 0 : index
    %c0_209 = arith.constant 0 : index
    %963 = vector.load %arg1[%c0_207, %c4, %c0_208, %c0_209] : memref<1x8x2x16xf32, #tpu.memory_space<vmem>>, vector<1x1x2x16xf32>
    %964 = vector.shape_cast %963 : vector<1x1x2x16xf32> to vector<2x16xf32>
    %c0_210 = arith.constant 0 : index
    %c4_211 = arith.constant 4 : index
    %c0_212 = arith.constant 0 : index
    %c0_213 = arith.constant 0 : index
    %965 = vector.load %arg2[%c0_210, %c4_211, %c0_212, %c0_213] : memref<1x8x2x2xf32, #tpu.memory_space<vmem>>, vector<1x1x2x2xf32>
    %966 = vector.shape_cast %965 : vector<1x1x2x2xf32> to vector<2x2xf32>
    %c0_214 = arith.constant 0 : index
    %c4_215 = arith.constant 4 : index
    %c0_216 = arith.constant 0 : index
    %c0_217 = arith.constant 0 : index
    %967 = vector.load %arg3[%c0_214, %c4_215, %c0_216, %c0_217] : memref<1x8x2x2xf32, #tpu.memory_space<vmem>>, vector<1x1x2x2xf32>
    %968 = vector.shape_cast %967 : vector<1x1x2x2xf32> to vector<2x2xf32>
    %969 = vector.shape_cast %968 : vector<2x2xf32> to vector<2x2x1xf32>
    %970 = vector.broadcast %969 : vector<2x2x1xf32> to vector<2x2x16xf32>
    %971 = arith.mulf %970, %925 : vector<2x2x16xf32>
    %cst_218 = arith.constant dense<0.000000e+00> : vector<2x16xf32>
    %972 = vector.multi_reduction <add>, %971, %cst_218 [1] : vector<2x2x16xf32> to vector<2x16xf32>
    %973 = vector.shape_cast %968 : vector<2x2xf32> to vector<2x2x1xf32>
    %974 = vector.broadcast %973 : vector<2x2x1xf32> to vector<2x2x16xf32>
    %975 = arith.mulf %974, %932 : vector<2x2x16xf32>
    %cst_219 = arith.constant dense<0.000000e+00> : vector<2x16xf32>
    %976 = vector.multi_reduction <add>, %975, %cst_219 [1] : vector<2x2x16xf32> to vector<2x16xf32>
    %977 = tpu.concatenate %972, %976, %964, %760 in 1 : vector<2x16xf32>, vector<2x16xf32>, vector<2x16xf32>, vector<2x16xf32> -> vector<2x64xf32>
    %cst_220 = arith.constant dense<0.000000e+00> : vector<2x64xf32>
    %978 = tpu.matmul %977, %1, %cst_220 {dimension_numbers = #tpu.dot_dimension_numbers<[1], [0], [0], [1], [0, 0, 1, 1], [], []>} : vector<2x64xf32>, vector<64x64xf32>, vector<2x64xf32> -> vector<2x64xf32>
    %979 = vector.broadcast %3 : vector<1x64xf32> to vector<2x64xf32>
    %980 = arith.addf %978, %979 : vector<2x64xf32>
    %981 = vector.extract_strided_slice %980 {offsets = [0, 0], sizes = [2, 16], strides = [1, 1]} : vector<2x64xf32> to vector<2x16xf32>
    %982 = arith.negf %981 : vector<2x16xf32>
    %983 = math.exp %982 : vector<2x16xf32>
    %cst_221 = arith.constant 1.000000e+00 : f32
    %984 = vector.broadcast %cst_221 : f32 to vector<2x16xf32>
    %985 = arith.addf %984, %983 : vector<2x16xf32>
    %986 = arith.divf %984, %985 : vector<2x16xf32>
    %987 = vector.extract_strided_slice %980 {offsets = [0, 16], sizes = [2, 16], strides = [1, 1]} : vector<2x64xf32> to vector<2x16xf32>
    %988 = arith.negf %987 : vector<2x16xf32>
    %989 = math.exp %988 : vector<2x16xf32>
    %cst_222 = arith.constant 1.000000e+00 : f32
    %990 = vector.broadcast %cst_222 : f32 to vector<2x16xf32>
    %991 = arith.addf %990, %989 : vector<2x16xf32>
    %992 = arith.divf %990, %991 : vector<2x16xf32>
    %993 = vector.extract_strided_slice %980 {offsets = [0, 32], sizes = [2, 16], strides = [1, 1]} : vector<2x64xf32> to vector<2x16xf32>
    %994 = vector.extract_strided_slice %980 {offsets = [0, 48], sizes = [2, 16], strides = [1, 1]} : vector<2x64xf32> to vector<2x16xf32>
    %995 = arith.mulf %986, %994 : vector<2x16xf32>
    %996 = arith.addf %993, %995 : vector<2x16xf32>
    %997 = math.tanh %996 : vector<2x16xf32>
    %cst_223 = arith.constant 1.000000e+00 : f32
    %998 = vector.broadcast %cst_223 : f32 to vector<2x16xf32>
    %999 = arith.subf %998, %992 : vector<2x16xf32>
    %1000 = arith.mulf %999, %997 : vector<2x16xf32>
    %1001 = arith.mulf %992, %760 : vector<2x16xf32>
    %1002 = arith.addf %1000, %1001 : vector<2x16xf32>
    %1003 = vector.shape_cast %61 : vector<2x16xf32> to vector<2x1x16xf32>
    %1004 = vector.shape_cast %282 : vector<2x16xf32> to vector<2x1x16xf32>
    %1005 = vector.shape_cast %519 : vector<2x16xf32> to vector<2x1x16xf32>
    %1006 = vector.shape_cast %760 : vector<2x16xf32> to vector<2x1x16xf32>
    %1007 = tpu.concatenate %1003, %1004, %1005, %1006 in 1 : vector<2x1x16xf32>, vector<2x1x16xf32>, vector<2x1x16xf32>, vector<2x1x16xf32> -> vector<2x4x16xf32>
    %1008 = vector.shape_cast %17 : vector<1x16xf32> to vector<1x1x16xf32>
    %1009 = vector.broadcast %1008 : vector<1x1x16xf32> to vector<2x4x16xf32>
    %1010 = arith.mulf %1007, %1009 : vector<2x4x16xf32>
    %cst_224 = arith.constant dense<0.000000e+00> : vector<2x4xf32>
    %1011 = vector.multi_reduction <add>, %1010, %cst_224 [2] : vector<2x4x16xf32> to vector<2x4xf32>
    %cst_225 = arith.constant dense<0xFF800000> : vector<2xf32>
    %1012 = vector.multi_reduction <maximumf>, %1011, %cst_225 [1] : vector<2x4xf32> to vector<2xf32>
    %1013 = vector.shape_cast %1012 : vector<2xf32> to vector<2x1xf32>
    %1014 = vector.broadcast %1013 : vector<2x1xf32> to vector<2x4xf32>
    %1015 = arith.subf %1011, %1014 : vector<2x4xf32>
    %1016 = math.exp %1015 : vector<2x4xf32>
    %cst_226 = arith.constant dense<0.000000e+00> : vector<2xf32>
    %1017 = vector.multi_reduction <add>, %1016, %cst_226 [1] : vector<2x4xf32> to vector<2xf32>
    %1018 = vector.shape_cast %1017 : vector<2xf32> to vector<2x1xf32>
    %1019 = vector.broadcast %1018 : vector<2x1xf32> to vector<2x4xf32>
    %1020 = arith.divf %1016, %1019 : vector<2x4xf32>
    %1021 = vector.shape_cast %1020 : vector<2x4xf32> to vector<2x4x1xf32>
    %1022 = vector.broadcast %1021 : vector<2x4x1xf32> to vector<2x4x16xf32>
    %1023 = arith.mulf %1022, %1007 : vector<2x4x16xf32>
    %cst_227 = arith.constant dense<0.000000e+00> : vector<2x16xf32>
    %1024 = vector.multi_reduction <add>, %1023, %cst_227 [1] : vector<2x4x16xf32> to vector<2x16xf32>
    %cst_228 = arith.constant 0.000000e+00 : f32
    %1025 = vector.broadcast %cst_228 : f32 to vector<2x4xf32>
    %1026 = tpu.concatenate %1020, %1025 in 1 : vector<2x4xf32>, vector<2x4xf32> -> vector<2x8xf32>
    %1027 = vector.shape_cast %925 : vector<2x2x16xf32> to vector<4x16xf32>
    %1028 = vector.shape_cast %932 : vector<2x2x16xf32> to vector<4x16xf32>
    %1029 = vector.shape_cast %964 : vector<2x16xf32> to vector<2x1x16xf32>
    %1030 = vector.shape_cast %1029 : vector<2x1x16xf32> to vector<2x1x16xf32>
    %1031 = vector.broadcast %1030 : vector<2x1x16xf32> to vector<2x2x16xf32>
    %1032 = vector.shape_cast %1031 : vector<2x2x16xf32> to vector<4x16xf32>
    %1033 = vector.shape_cast %1002 : vector<2x16xf32> to vector<2x1x16xf32>
    %1034 = vector.shape_cast %1033 : vector<2x1x16xf32> to vector<2x1x16xf32>
    %1035 = vector.broadcast %1034 : vector<2x1x16xf32> to vector<2x2x16xf32>
    %1036 = vector.shape_cast %1035 : vector<2x2x16xf32> to vector<4x16xf32>
    %1037 = vector.shape_cast %1024 : vector<2x16xf32> to vector<2x1x16xf32>
    %1038 = vector.shape_cast %1037 : vector<2x1x16xf32> to vector<2x1x16xf32>
    %1039 = vector.broadcast %1038 : vector<2x1x16xf32> to vector<2x2x16xf32>
    %1040 = vector.shape_cast %1039 : vector<2x2x16xf32> to vector<4x16xf32>
    %1041 = tpu.concatenate %1040, %1032, %1028, %1032, %1036, %1027 in 1 : vector<4x16xf32>, vector<4x16xf32>, vector<4x16xf32>, vector<4x16xf32>, vector<4x16xf32>, vector<4x16xf32> -> vector<4x96xf32>
    %cst_229 = arith.constant dense<0.000000e+00> : vector<4x128xf32>
    %1042 = tpu.matmul %1041, %5, %cst_229 {dimension_numbers = #tpu.dot_dimension_numbers<[1], [0], [0], [1], [0, 0, 1, 1], [], []>} : vector<4x96xf32>, vector<96x128xf32>, vector<4x128xf32> -> vector<4x128xf32>
    %1043 = vector.broadcast %7 : vector<1x128xf32> to vector<4x128xf32>
    %1044 = arith.addf %1042, %1043 : vector<4x128xf32>
    %1045 = vector.extract_strided_slice %1044 {offsets = [0, 0], sizes = [4, 64], strides = [1, 1]} : vector<4x128xf32> to vector<4x64xf32>
    %1046 = vector.extract_strided_slice %1045 {offsets = [0, 0], sizes = [4, 16], strides = [1, 1]} : vector<4x64xf32> to vector<4x16xf32>
    %1047 = arith.negf %1046 : vector<4x16xf32>
    %1048 = math.exp %1047 : vector<4x16xf32>
    %cst_230 = arith.constant 1.000000e+00 : f32
    %1049 = vector.broadcast %cst_230 : f32 to vector<4x16xf32>
    %1050 = arith.addf %1049, %1048 : vector<4x16xf32>
    %1051 = arith.divf %1049, %1050 : vector<4x16xf32>
    %1052 = vector.extract_strided_slice %1045 {offsets = [0, 16], sizes = [4, 16], strides = [1, 1]} : vector<4x64xf32> to vector<4x16xf32>
    %1053 = arith.negf %1052 : vector<4x16xf32>
    %1054 = math.exp %1053 : vector<4x16xf32>
    %cst_231 = arith.constant 1.000000e+00 : f32
    %1055 = vector.broadcast %cst_231 : f32 to vector<4x16xf32>
    %1056 = arith.addf %1055, %1054 : vector<4x16xf32>
    %1057 = arith.divf %1055, %1056 : vector<4x16xf32>
    %1058 = vector.extract_strided_slice %1045 {offsets = [0, 32], sizes = [4, 16], strides = [1, 1]} : vector<4x64xf32> to vector<4x16xf32>
    %1059 = vector.extract_strided_slice %1045 {offsets = [0, 48], sizes = [4, 16], strides = [1, 1]} : vector<4x64xf32> to vector<4x16xf32>
    %1060 = arith.mulf %1051, %1059 : vector<4x16xf32>
    %1061 = arith.addf %1058, %1060 : vector<4x16xf32>
    %1062 = math.tanh %1061 : vector<4x16xf32>
    %cst_232 = arith.constant 1.000000e+00 : f32
    %1063 = vector.broadcast %cst_232 : f32 to vector<4x16xf32>
    %1064 = arith.subf %1063, %1057 : vector<4x16xf32>
    %1065 = arith.mulf %1064, %1062 : vector<4x16xf32>
    %1066 = arith.mulf %1057, %1028 : vector<4x16xf32>
    %1067 = arith.addf %1065, %1066 : vector<4x16xf32>
    %1068 = vector.shape_cast %1067 : vector<4x16xf32> to vector<2x2x16xf32>
    %1069 = vector.extract_strided_slice %1044 {offsets = [0, 64], sizes = [4, 64], strides = [1, 1]} : vector<4x128xf32> to vector<4x64xf32>
    %1070 = vector.extract_strided_slice %1069 {offsets = [0, 0], sizes = [4, 16], strides = [1, 1]} : vector<4x64xf32> to vector<4x16xf32>
    %1071 = arith.negf %1070 : vector<4x16xf32>
    %1072 = math.exp %1071 : vector<4x16xf32>
    %cst_233 = arith.constant 1.000000e+00 : f32
    %1073 = vector.broadcast %cst_233 : f32 to vector<4x16xf32>
    %1074 = arith.addf %1073, %1072 : vector<4x16xf32>
    %1075 = arith.divf %1073, %1074 : vector<4x16xf32>
    %1076 = vector.extract_strided_slice %1069 {offsets = [0, 16], sizes = [4, 16], strides = [1, 1]} : vector<4x64xf32> to vector<4x16xf32>
    %1077 = arith.negf %1076 : vector<4x16xf32>
    %1078 = math.exp %1077 : vector<4x16xf32>
    %cst_234 = arith.constant 1.000000e+00 : f32
    %1079 = vector.broadcast %cst_234 : f32 to vector<4x16xf32>
    %1080 = arith.addf %1079, %1078 : vector<4x16xf32>
    %1081 = arith.divf %1079, %1080 : vector<4x16xf32>
    %1082 = vector.extract_strided_slice %1069 {offsets = [0, 32], sizes = [4, 16], strides = [1, 1]} : vector<4x64xf32> to vector<4x16xf32>
    %1083 = vector.extract_strided_slice %1069 {offsets = [0, 48], sizes = [4, 16], strides = [1, 1]} : vector<4x64xf32> to vector<4x16xf32>
    %1084 = arith.mulf %1075, %1083 : vector<4x16xf32>
    %1085 = arith.addf %1082, %1084 : vector<4x16xf32>
    %1086 = math.tanh %1085 : vector<4x16xf32>
    %cst_235 = arith.constant 1.000000e+00 : f32
    %1087 = vector.broadcast %cst_235 : f32 to vector<4x16xf32>
    %1088 = arith.subf %1087, %1081 : vector<4x16xf32>
    %1089 = arith.mulf %1088, %1086 : vector<4x16xf32>
    %1090 = arith.mulf %1081, %1027 : vector<4x16xf32>
    %1091 = arith.addf %1089, %1090 : vector<4x16xf32>
    %1092 = vector.shape_cast %1091 : vector<4x16xf32> to vector<2x2x16xf32>
    %1093 = vector.shape_cast %968 : vector<2x2xf32> to vector<2x2x1xf32>
    %1094 = vector.broadcast %1093 : vector<2x2x1xf32> to vector<2x2x16xf32>
    %1095 = arith.mulf %1094, %1068 : vector<2x2x16xf32>
    %cst_236 = arith.constant dense<0.000000e+00> : vector<2x16xf32>
    %1096 = vector.multi_reduction <add>, %1095, %cst_236 [1] : vector<2x2x16xf32> to vector<2x16xf32>
    %1097 = vector.shape_cast %1096 : vector<2x16xf32> to vector<2x1x16xf32>
    %1098 = vector.shape_cast %1097 : vector<2x1x16xf32> to vector<2x1x16xf32>
    %1099 = vector.broadcast %1098 : vector<2x1x16xf32> to vector<2x2x16xf32>
    %1100 = vector.shape_cast %1099 : vector<2x2x16xf32> to vector<4x16xf32>
    %1101 = vector.shape_cast %968 : vector<2x2xf32> to vector<2x2x1xf32>
    %1102 = vector.broadcast %1101 : vector<2x2x1xf32> to vector<2x2x16xf32>
    %1103 = arith.mulf %1102, %1092 : vector<2x2x16xf32>
    %cst_237 = arith.constant dense<0.000000e+00> : vector<2x16xf32>
    %1104 = vector.multi_reduction <add>, %1103, %cst_237 [1] : vector<2x2x16xf32> to vector<2x16xf32>
    %1105 = vector.shape_cast %1104 : vector<2x16xf32> to vector<2x1x16xf32>
    %1106 = vector.shape_cast %1105 : vector<2x1x16xf32> to vector<2x1x16xf32>
    %1107 = vector.broadcast %1106 : vector<2x1x16xf32> to vector<2x2x16xf32>
    %1108 = vector.shape_cast %1107 : vector<2x2x16xf32> to vector<4x16xf32>
    %1109 = tpu.concatenate %1100, %1032, %1028, %1032, %1108, %1027 in 1 : vector<4x16xf32>, vector<4x16xf32>, vector<4x16xf32>, vector<4x16xf32>, vector<4x16xf32>, vector<4x16xf32> -> vector<4x96xf32>
    %cst_238 = arith.constant dense<0.000000e+00> : vector<4x128xf32>
    %1110 = tpu.matmul %1109, %9, %cst_238 {dimension_numbers = #tpu.dot_dimension_numbers<[1], [0], [0], [1], [0, 0, 1, 1], [], []>} : vector<4x96xf32>, vector<96x128xf32>, vector<4x128xf32> -> vector<4x128xf32>
    %1111 = vector.broadcast %11 : vector<1x128xf32> to vector<4x128xf32>
    %1112 = arith.addf %1110, %1111 : vector<4x128xf32>
    %1113 = vector.extract_strided_slice %1112 {offsets = [0, 0], sizes = [4, 64], strides = [1, 1]} : vector<4x128xf32> to vector<4x64xf32>
    %1114 = vector.extract_strided_slice %1113 {offsets = [0, 0], sizes = [4, 16], strides = [1, 1]} : vector<4x64xf32> to vector<4x16xf32>
    %1115 = arith.negf %1114 : vector<4x16xf32>
    %1116 = math.exp %1115 : vector<4x16xf32>
    %cst_239 = arith.constant 1.000000e+00 : f32
    %1117 = vector.broadcast %cst_239 : f32 to vector<4x16xf32>
    %1118 = arith.addf %1117, %1116 : vector<4x16xf32>
    %1119 = arith.divf %1117, %1118 : vector<4x16xf32>
    %1120 = vector.extract_strided_slice %1113 {offsets = [0, 16], sizes = [4, 16], strides = [1, 1]} : vector<4x64xf32> to vector<4x16xf32>
    %1121 = arith.negf %1120 : vector<4x16xf32>
    %1122 = math.exp %1121 : vector<4x16xf32>
    %cst_240 = arith.constant 1.000000e+00 : f32
    %1123 = vector.broadcast %cst_240 : f32 to vector<4x16xf32>
    %1124 = arith.addf %1123, %1122 : vector<4x16xf32>
    %1125 = arith.divf %1123, %1124 : vector<4x16xf32>
    %1126 = vector.extract_strided_slice %1113 {offsets = [0, 32], sizes = [4, 16], strides = [1, 1]} : vector<4x64xf32> to vector<4x16xf32>
    %1127 = vector.extract_strided_slice %1113 {offsets = [0, 48], sizes = [4, 16], strides = [1, 1]} : vector<4x64xf32> to vector<4x16xf32>
    %1128 = arith.mulf %1119, %1127 : vector<4x16xf32>
    %1129 = arith.addf %1126, %1128 : vector<4x16xf32>
    %1130 = math.tanh %1129 : vector<4x16xf32>
    %cst_241 = arith.constant 1.000000e+00 : f32
    %1131 = vector.broadcast %cst_241 : f32 to vector<4x16xf32>
    %1132 = arith.subf %1131, %1125 : vector<4x16xf32>
    %1133 = arith.mulf %1132, %1130 : vector<4x16xf32>
    %1134 = arith.mulf %1125, %1028 : vector<4x16xf32>
    %1135 = arith.addf %1133, %1134 : vector<4x16xf32>
    %1136 = vector.shape_cast %1135 : vector<4x16xf32> to vector<2x2x16xf32>
    %1137 = vector.extract_strided_slice %1112 {offsets = [0, 64], sizes = [4, 64], strides = [1, 1]} : vector<4x128xf32> to vector<4x64xf32>
    %1138 = vector.extract_strided_slice %1137 {offsets = [0, 0], sizes = [4, 16], strides = [1, 1]} : vector<4x64xf32> to vector<4x16xf32>
    %1139 = arith.negf %1138 : vector<4x16xf32>
    %1140 = math.exp %1139 : vector<4x16xf32>
    %cst_242 = arith.constant 1.000000e+00 : f32
    %1141 = vector.broadcast %cst_242 : f32 to vector<4x16xf32>
    %1142 = arith.addf %1141, %1140 : vector<4x16xf32>
    %1143 = arith.divf %1141, %1142 : vector<4x16xf32>
    %1144 = vector.extract_strided_slice %1137 {offsets = [0, 16], sizes = [4, 16], strides = [1, 1]} : vector<4x64xf32> to vector<4x16xf32>
    %1145 = arith.negf %1144 : vector<4x16xf32>
    %1146 = math.exp %1145 : vector<4x16xf32>
    %cst_243 = arith.constant 1.000000e+00 : f32
    %1147 = vector.broadcast %cst_243 : f32 to vector<4x16xf32>
    %1148 = arith.addf %1147, %1146 : vector<4x16xf32>
    %1149 = arith.divf %1147, %1148 : vector<4x16xf32>
    %1150 = vector.extract_strided_slice %1137 {offsets = [0, 32], sizes = [4, 16], strides = [1, 1]} : vector<4x64xf32> to vector<4x16xf32>
    %1151 = vector.extract_strided_slice %1137 {offsets = [0, 48], sizes = [4, 16], strides = [1, 1]} : vector<4x64xf32> to vector<4x16xf32>
    %1152 = arith.mulf %1143, %1151 : vector<4x16xf32>
    %1153 = arith.addf %1150, %1152 : vector<4x16xf32>
    %1154 = math.tanh %1153 : vector<4x16xf32>
    %cst_244 = arith.constant 1.000000e+00 : f32
    %1155 = vector.broadcast %cst_244 : f32 to vector<4x16xf32>
    %1156 = arith.subf %1155, %1149 : vector<4x16xf32>
    %1157 = arith.mulf %1156, %1154 : vector<4x16xf32>
    %1158 = arith.mulf %1149, %1027 : vector<4x16xf32>
    %1159 = arith.addf %1157, %1158 : vector<4x16xf32>
    %1160 = vector.shape_cast %1159 : vector<4x16xf32> to vector<2x2x16xf32>
    %1161 = vector.shape_cast %966 : vector<2x2xf32> to vector<2x2x1xf32>
    %1162 = vector.broadcast %1161 : vector<2x2x1xf32> to vector<2x2x16xf32>
    %1163 = arith.mulf %1160, %1162 : vector<2x2x16xf32>
    %cst_245 = arith.constant 1.000000e+00 : f32
    %1164 = vector.broadcast %cst_245 : f32 to vector<2x2x1xf32>
    %1165 = arith.subf %1164, %1161 : vector<2x2x1xf32>
    %1166 = vector.broadcast %1165 : vector<2x2x1xf32> to vector<2x2x16xf32>
    %1167 = arith.mulf %1092, %1166 : vector<2x2x16xf32>
    %1168 = arith.addf %1163, %1167 : vector<2x2x16xf32>
    %1169 = vector.broadcast %1161 : vector<2x2x1xf32> to vector<2x2x16xf32>
    %1170 = arith.mulf %1068, %1169 : vector<2x2x16xf32>
    %cst_246 = arith.constant 1.000000e+00 : f32
    %1171 = vector.broadcast %cst_246 : f32 to vector<2x2x1xf32>
    %1172 = arith.subf %1171, %1161 : vector<2x2x1xf32>
    %1173 = vector.broadcast %1172 : vector<2x2x1xf32> to vector<2x2x16xf32>
    %1174 = arith.mulf %1136, %1173 : vector<2x2x16xf32>
    %1175 = arith.addf %1170, %1174 : vector<2x2x16xf32>
    %1176 = vector.shape_cast %968 : vector<2x2xf32> to vector<2x2x1xf32>
    %1177 = vector.broadcast %1176 : vector<2x2x1xf32> to vector<2x2x16xf32>
    %1178 = arith.mulf %1177, %1168 : vector<2x2x16xf32>
    %cst_247 = arith.constant dense<0.000000e+00> : vector<2x16xf32>
    %1179 = vector.multi_reduction <add>, %1178, %cst_247 [1] : vector<2x2x16xf32> to vector<2x16xf32>
    %1180 = tpu.concatenate %964, %1179, %1002, %962 in 1 : vector<2x16xf32>, vector<2x16xf32>, vector<2x16xf32>, vector<2x16xf32> -> vector<2x64xf32>
    %cst_248 = arith.constant dense<0.000000e+00> : vector<2x64xf32>
    %1181 = tpu.matmul %1180, %13, %cst_248 {dimension_numbers = #tpu.dot_dimension_numbers<[1], [0], [0], [1], [0, 0, 1, 1], [], []>} : vector<2x64xf32>, vector<64x64xf32>, vector<2x64xf32> -> vector<2x64xf32>
    %1182 = vector.broadcast %15 : vector<1x64xf32> to vector<2x64xf32>
    %1183 = arith.addf %1181, %1182 : vector<2x64xf32>
    %1184 = vector.extract_strided_slice %1183 {offsets = [0, 0], sizes = [2, 16], strides = [1, 1]} : vector<2x64xf32> to vector<2x16xf32>
    %1185 = arith.negf %1184 : vector<2x16xf32>
    %1186 = math.exp %1185 : vector<2x16xf32>
    %cst_249 = arith.constant 1.000000e+00 : f32
    %1187 = vector.broadcast %cst_249 : f32 to vector<2x16xf32>
    %1188 = arith.addf %1187, %1186 : vector<2x16xf32>
    %1189 = arith.divf %1187, %1188 : vector<2x16xf32>
    %1190 = vector.extract_strided_slice %1183 {offsets = [0, 16], sizes = [2, 16], strides = [1, 1]} : vector<2x64xf32> to vector<2x16xf32>
    %1191 = arith.negf %1190 : vector<2x16xf32>
    %1192 = math.exp %1191 : vector<2x16xf32>
    %cst_250 = arith.constant 1.000000e+00 : f32
    %1193 = vector.broadcast %cst_250 : f32 to vector<2x16xf32>
    %1194 = arith.addf %1193, %1192 : vector<2x16xf32>
    %1195 = arith.divf %1193, %1194 : vector<2x16xf32>
    %1196 = vector.extract_strided_slice %1183 {offsets = [0, 32], sizes = [2, 16], strides = [1, 1]} : vector<2x64xf32> to vector<2x16xf32>
    %1197 = vector.extract_strided_slice %1183 {offsets = [0, 48], sizes = [2, 16], strides = [1, 1]} : vector<2x64xf32> to vector<2x16xf32>
    %1198 = arith.mulf %1189, %1197 : vector<2x16xf32>
    %1199 = arith.addf %1196, %1198 : vector<2x16xf32>
    %1200 = math.tanh %1199 : vector<2x16xf32>
    %cst_251 = arith.constant 1.000000e+00 : f32
    %1201 = vector.broadcast %cst_251 : f32 to vector<2x16xf32>
    %1202 = arith.subf %1201, %1195 : vector<2x16xf32>
    %1203 = arith.mulf %1202, %1200 : vector<2x16xf32>
    %1204 = arith.mulf %1195, %962 : vector<2x16xf32>
    %1205 = arith.addf %1203, %1204 : vector<2x16xf32>
    %c0_252 = arith.constant 0 : index
    %c5 = arith.constant 5 : index
    %c0_253 = arith.constant 0 : index
    %c0_254 = arith.constant 0 : index
    %1206 = vector.load %arg1[%c0_252, %c5, %c0_253, %c0_254] : memref<1x8x2x16xf32, #tpu.memory_space<vmem>>, vector<1x1x2x16xf32>
    %1207 = vector.shape_cast %1206 : vector<1x1x2x16xf32> to vector<2x16xf32>
    %c0_255 = arith.constant 0 : index
    %c5_256 = arith.constant 5 : index
    %c0_257 = arith.constant 0 : index
    %c0_258 = arith.constant 0 : index
    %1208 = vector.load %arg2[%c0_255, %c5_256, %c0_257, %c0_258] : memref<1x8x2x2xf32, #tpu.memory_space<vmem>>, vector<1x1x2x2xf32>
    %1209 = vector.shape_cast %1208 : vector<1x1x2x2xf32> to vector<2x2xf32>
    %c0_259 = arith.constant 0 : index
    %c5_260 = arith.constant 5 : index
    %c0_261 = arith.constant 0 : index
    %c0_262 = arith.constant 0 : index
    %1210 = vector.load %arg3[%c0_259, %c5_260, %c0_261, %c0_262] : memref<1x8x2x2xf32, #tpu.memory_space<vmem>>, vector<1x1x2x2xf32>
    %1211 = vector.shape_cast %1210 : vector<1x1x2x2xf32> to vector<2x2xf32>
    %1212 = vector.shape_cast %1211 : vector<2x2xf32> to vector<2x2x1xf32>
    %1213 = vector.broadcast %1212 : vector<2x2x1xf32> to vector<2x2x16xf32>
    %1214 = arith.mulf %1213, %1168 : vector<2x2x16xf32>
    %cst_263 = arith.constant dense<0.000000e+00> : vector<2x16xf32>
    %1215 = vector.multi_reduction <add>, %1214, %cst_263 [1] : vector<2x2x16xf32> to vector<2x16xf32>
    %1216 = vector.shape_cast %1211 : vector<2x2xf32> to vector<2x2x1xf32>
    %1217 = vector.broadcast %1216 : vector<2x2x1xf32> to vector<2x2x16xf32>
    %1218 = arith.mulf %1217, %1175 : vector<2x2x16xf32>
    %cst_264 = arith.constant dense<0.000000e+00> : vector<2x16xf32>
    %1219 = vector.multi_reduction <add>, %1218, %cst_264 [1] : vector<2x2x16xf32> to vector<2x16xf32>
    %1220 = tpu.concatenate %1215, %1219, %1207, %1002 in 1 : vector<2x16xf32>, vector<2x16xf32>, vector<2x16xf32>, vector<2x16xf32> -> vector<2x64xf32>
    %cst_265 = arith.constant dense<0.000000e+00> : vector<2x64xf32>
    %1221 = tpu.matmul %1220, %1, %cst_265 {dimension_numbers = #tpu.dot_dimension_numbers<[1], [0], [0], [1], [0, 0, 1, 1], [], []>} : vector<2x64xf32>, vector<64x64xf32>, vector<2x64xf32> -> vector<2x64xf32>
    %1222 = vector.broadcast %3 : vector<1x64xf32> to vector<2x64xf32>
    %1223 = arith.addf %1221, %1222 : vector<2x64xf32>
    %1224 = vector.extract_strided_slice %1223 {offsets = [0, 0], sizes = [2, 16], strides = [1, 1]} : vector<2x64xf32> to vector<2x16xf32>
    %1225 = arith.negf %1224 : vector<2x16xf32>
    %1226 = math.exp %1225 : vector<2x16xf32>
    %cst_266 = arith.constant 1.000000e+00 : f32
    %1227 = vector.broadcast %cst_266 : f32 to vector<2x16xf32>
    %1228 = arith.addf %1227, %1226 : vector<2x16xf32>
    %1229 = arith.divf %1227, %1228 : vector<2x16xf32>
    %1230 = vector.extract_strided_slice %1223 {offsets = [0, 16], sizes = [2, 16], strides = [1, 1]} : vector<2x64xf32> to vector<2x16xf32>
    %1231 = arith.negf %1230 : vector<2x16xf32>
    %1232 = math.exp %1231 : vector<2x16xf32>
    %cst_267 = arith.constant 1.000000e+00 : f32
    %1233 = vector.broadcast %cst_267 : f32 to vector<2x16xf32>
    %1234 = arith.addf %1233, %1232 : vector<2x16xf32>
    %1235 = arith.divf %1233, %1234 : vector<2x16xf32>
    %1236 = vector.extract_strided_slice %1223 {offsets = [0, 32], sizes = [2, 16], strides = [1, 1]} : vector<2x64xf32> to vector<2x16xf32>
    %1237 = vector.extract_strided_slice %1223 {offsets = [0, 48], sizes = [2, 16], strides = [1, 1]} : vector<2x64xf32> to vector<2x16xf32>
    %1238 = arith.mulf %1229, %1237 : vector<2x16xf32>
    %1239 = arith.addf %1236, %1238 : vector<2x16xf32>
    %1240 = math.tanh %1239 : vector<2x16xf32>
    %cst_268 = arith.constant 1.000000e+00 : f32
    %1241 = vector.broadcast %cst_268 : f32 to vector<2x16xf32>
    %1242 = arith.subf %1241, %1235 : vector<2x16xf32>
    %1243 = arith.mulf %1242, %1240 : vector<2x16xf32>
    %1244 = arith.mulf %1235, %1002 : vector<2x16xf32>
    %1245 = arith.addf %1243, %1244 : vector<2x16xf32>
    %1246 = vector.shape_cast %61 : vector<2x16xf32> to vector<2x1x16xf32>
    %1247 = vector.shape_cast %282 : vector<2x16xf32> to vector<2x1x16xf32>
    %1248 = vector.shape_cast %519 : vector<2x16xf32> to vector<2x1x16xf32>
    %1249 = vector.shape_cast %760 : vector<2x16xf32> to vector<2x1x16xf32>
    %1250 = vector.shape_cast %1002 : vector<2x16xf32> to vector<2x1x16xf32>
    %1251 = tpu.concatenate %1246, %1247, %1248, %1249, %1250 in 1 : vector<2x1x16xf32>, vector<2x1x16xf32>, vector<2x1x16xf32>, vector<2x1x16xf32>, vector<2x1x16xf32> -> vector<2x5x16xf32>
    %1252 = vector.shape_cast %17 : vector<1x16xf32> to vector<1x1x16xf32>
    %1253 = vector.broadcast %1252 : vector<1x1x16xf32> to vector<2x5x16xf32>
    %1254 = arith.mulf %1251, %1253 : vector<2x5x16xf32>
    %cst_269 = arith.constant dense<0.000000e+00> : vector<2x5xf32>
    %1255 = vector.multi_reduction <add>, %1254, %cst_269 [2] : vector<2x5x16xf32> to vector<2x5xf32>
    %cst_270 = arith.constant dense<0xFF800000> : vector<2xf32>
    %1256 = vector.multi_reduction <maximumf>, %1255, %cst_270 [1] : vector<2x5xf32> to vector<2xf32>
    %1257 = vector.shape_cast %1256 : vector<2xf32> to vector<2x1xf32>
    %1258 = vector.broadcast %1257 : vector<2x1xf32> to vector<2x5xf32>
    %1259 = arith.subf %1255, %1258 : vector<2x5xf32>
    %1260 = math.exp %1259 : vector<2x5xf32>
    %cst_271 = arith.constant dense<0.000000e+00> : vector<2xf32>
    %1261 = vector.multi_reduction <add>, %1260, %cst_271 [1] : vector<2x5xf32> to vector<2xf32>
    %1262 = vector.shape_cast %1261 : vector<2xf32> to vector<2x1xf32>
    %1263 = vector.broadcast %1262 : vector<2x1xf32> to vector<2x5xf32>
    %1264 = arith.divf %1260, %1263 : vector<2x5xf32>
    %1265 = vector.shape_cast %1264 : vector<2x5xf32> to vector<2x5x1xf32>
    %1266 = vector.broadcast %1265 : vector<2x5x1xf32> to vector<2x5x16xf32>
    %1267 = arith.mulf %1266, %1251 : vector<2x5x16xf32>
    %cst_272 = arith.constant dense<0.000000e+00> : vector<2x16xf32>
    %1268 = vector.multi_reduction <add>, %1267, %cst_272 [1] : vector<2x5x16xf32> to vector<2x16xf32>
    %cst_273 = arith.constant 0.000000e+00 : f32
    %1269 = vector.broadcast %cst_273 : f32 to vector<2x3xf32>
    %1270 = tpu.concatenate %1264, %1269 in 1 : vector<2x5xf32>, vector<2x3xf32> -> vector<2x8xf32>
    %1271 = vector.shape_cast %1168 : vector<2x2x16xf32> to vector<4x16xf32>
    %1272 = vector.shape_cast %1175 : vector<2x2x16xf32> to vector<4x16xf32>
    %1273 = vector.shape_cast %1207 : vector<2x16xf32> to vector<2x1x16xf32>
    %1274 = vector.shape_cast %1273 : vector<2x1x16xf32> to vector<2x1x16xf32>
    %1275 = vector.broadcast %1274 : vector<2x1x16xf32> to vector<2x2x16xf32>
    %1276 = vector.shape_cast %1275 : vector<2x2x16xf32> to vector<4x16xf32>
    %1277 = vector.shape_cast %1245 : vector<2x16xf32> to vector<2x1x16xf32>
    %1278 = vector.shape_cast %1277 : vector<2x1x16xf32> to vector<2x1x16xf32>
    %1279 = vector.broadcast %1278 : vector<2x1x16xf32> to vector<2x2x16xf32>
    %1280 = vector.shape_cast %1279 : vector<2x2x16xf32> to vector<4x16xf32>
    %1281 = vector.shape_cast %1268 : vector<2x16xf32> to vector<2x1x16xf32>
    %1282 = vector.shape_cast %1281 : vector<2x1x16xf32> to vector<2x1x16xf32>
    %1283 = vector.broadcast %1282 : vector<2x1x16xf32> to vector<2x2x16xf32>
    %1284 = vector.shape_cast %1283 : vector<2x2x16xf32> to vector<4x16xf32>
    %1285 = tpu.concatenate %1284, %1276, %1272, %1276, %1280, %1271 in 1 : vector<4x16xf32>, vector<4x16xf32>, vector<4x16xf32>, vector<4x16xf32>, vector<4x16xf32>, vector<4x16xf32> -> vector<4x96xf32>
    %cst_274 = arith.constant dense<0.000000e+00> : vector<4x128xf32>
    %1286 = tpu.matmul %1285, %5, %cst_274 {dimension_numbers = #tpu.dot_dimension_numbers<[1], [0], [0], [1], [0, 0, 1, 1], [], []>} : vector<4x96xf32>, vector<96x128xf32>, vector<4x128xf32> -> vector<4x128xf32>
    %1287 = vector.broadcast %7 : vector<1x128xf32> to vector<4x128xf32>
    %1288 = arith.addf %1286, %1287 : vector<4x128xf32>
    %1289 = vector.extract_strided_slice %1288 {offsets = [0, 0], sizes = [4, 64], strides = [1, 1]} : vector<4x128xf32> to vector<4x64xf32>
    %1290 = vector.extract_strided_slice %1289 {offsets = [0, 0], sizes = [4, 16], strides = [1, 1]} : vector<4x64xf32> to vector<4x16xf32>
    %1291 = arith.negf %1290 : vector<4x16xf32>
    %1292 = math.exp %1291 : vector<4x16xf32>
    %cst_275 = arith.constant 1.000000e+00 : f32
    %1293 = vector.broadcast %cst_275 : f32 to vector<4x16xf32>
    %1294 = arith.addf %1293, %1292 : vector<4x16xf32>
    %1295 = arith.divf %1293, %1294 : vector<4x16xf32>
    %1296 = vector.extract_strided_slice %1289 {offsets = [0, 16], sizes = [4, 16], strides = [1, 1]} : vector<4x64xf32> to vector<4x16xf32>
    %1297 = arith.negf %1296 : vector<4x16xf32>
    %1298 = math.exp %1297 : vector<4x16xf32>
    %cst_276 = arith.constant 1.000000e+00 : f32
    %1299 = vector.broadcast %cst_276 : f32 to vector<4x16xf32>
    %1300 = arith.addf %1299, %1298 : vector<4x16xf32>
    %1301 = arith.divf %1299, %1300 : vector<4x16xf32>
    %1302 = vector.extract_strided_slice %1289 {offsets = [0, 32], sizes = [4, 16], strides = [1, 1]} : vector<4x64xf32> to vector<4x16xf32>
    %1303 = vector.extract_strided_slice %1289 {offsets = [0, 48], sizes = [4, 16], strides = [1, 1]} : vector<4x64xf32> to vector<4x16xf32>
    %1304 = arith.mulf %1295, %1303 : vector<4x16xf32>
    %1305 = arith.addf %1302, %1304 : vector<4x16xf32>
    %1306 = math.tanh %1305 : vector<4x16xf32>
    %cst_277 = arith.constant 1.000000e+00 : f32
    %1307 = vector.broadcast %cst_277 : f32 to vector<4x16xf32>
    %1308 = arith.subf %1307, %1301 : vector<4x16xf32>
    %1309 = arith.mulf %1308, %1306 : vector<4x16xf32>
    %1310 = arith.mulf %1301, %1272 : vector<4x16xf32>
    %1311 = arith.addf %1309, %1310 : vector<4x16xf32>
    %1312 = vector.shape_cast %1311 : vector<4x16xf32> to vector<2x2x16xf32>
    %1313 = vector.extract_strided_slice %1288 {offsets = [0, 64], sizes = [4, 64], strides = [1, 1]} : vector<4x128xf32> to vector<4x64xf32>
    %1314 = vector.extract_strided_slice %1313 {offsets = [0, 0], sizes = [4, 16], strides = [1, 1]} : vector<4x64xf32> to vector<4x16xf32>
    %1315 = arith.negf %1314 : vector<4x16xf32>
    %1316 = math.exp %1315 : vector<4x16xf32>
    %cst_278 = arith.constant 1.000000e+00 : f32
    %1317 = vector.broadcast %cst_278 : f32 to vector<4x16xf32>
    %1318 = arith.addf %1317, %1316 : vector<4x16xf32>
    %1319 = arith.divf %1317, %1318 : vector<4x16xf32>
    %1320 = vector.extract_strided_slice %1313 {offsets = [0, 16], sizes = [4, 16], strides = [1, 1]} : vector<4x64xf32> to vector<4x16xf32>
    %1321 = arith.negf %1320 : vector<4x16xf32>
    %1322 = math.exp %1321 : vector<4x16xf32>
    %cst_279 = arith.constant 1.000000e+00 : f32
    %1323 = vector.broadcast %cst_279 : f32 to vector<4x16xf32>
    %1324 = arith.addf %1323, %1322 : vector<4x16xf32>
    %1325 = arith.divf %1323, %1324 : vector<4x16xf32>
    %1326 = vector.extract_strided_slice %1313 {offsets = [0, 32], sizes = [4, 16], strides = [1, 1]} : vector<4x64xf32> to vector<4x16xf32>
    %1327 = vector.extract_strided_slice %1313 {offsets = [0, 48], sizes = [4, 16], strides = [1, 1]} : vector<4x64xf32> to vector<4x16xf32>
    %1328 = arith.mulf %1319, %1327 : vector<4x16xf32>
    %1329 = arith.addf %1326, %1328 : vector<4x16xf32>
    %1330 = math.tanh %1329 : vector<4x16xf32>
    %cst_280 = arith.constant 1.000000e+00 : f32
    %1331 = vector.broadcast %cst_280 : f32 to vector<4x16xf32>
    %1332 = arith.subf %1331, %1325 : vector<4x16xf32>
    %1333 = arith.mulf %1332, %1330 : vector<4x16xf32>
    %1334 = arith.mulf %1325, %1271 : vector<4x16xf32>
    %1335 = arith.addf %1333, %1334 : vector<4x16xf32>
    %1336 = vector.shape_cast %1335 : vector<4x16xf32> to vector<2x2x16xf32>
    %1337 = vector.shape_cast %1211 : vector<2x2xf32> to vector<2x2x1xf32>
    %1338 = vector.broadcast %1337 : vector<2x2x1xf32> to vector<2x2x16xf32>
    %1339 = arith.mulf %1338, %1312 : vector<2x2x16xf32>
    %cst_281 = arith.constant dense<0.000000e+00> : vector<2x16xf32>
    %1340 = vector.multi_reduction <add>, %1339, %cst_281 [1] : vector<2x2x16xf32> to vector<2x16xf32>
    %1341 = vector.shape_cast %1340 : vector<2x16xf32> to vector<2x1x16xf32>
    %1342 = vector.shape_cast %1341 : vector<2x1x16xf32> to vector<2x1x16xf32>
    %1343 = vector.broadcast %1342 : vector<2x1x16xf32> to vector<2x2x16xf32>
    %1344 = vector.shape_cast %1343 : vector<2x2x16xf32> to vector<4x16xf32>
    %1345 = vector.shape_cast %1211 : vector<2x2xf32> to vector<2x2x1xf32>
    %1346 = vector.broadcast %1345 : vector<2x2x1xf32> to vector<2x2x16xf32>
    %1347 = arith.mulf %1346, %1336 : vector<2x2x16xf32>
    %cst_282 = arith.constant dense<0.000000e+00> : vector<2x16xf32>
    %1348 = vector.multi_reduction <add>, %1347, %cst_282 [1] : vector<2x2x16xf32> to vector<2x16xf32>
    %1349 = vector.shape_cast %1348 : vector<2x16xf32> to vector<2x1x16xf32>
    %1350 = vector.shape_cast %1349 : vector<2x1x16xf32> to vector<2x1x16xf32>
    %1351 = vector.broadcast %1350 : vector<2x1x16xf32> to vector<2x2x16xf32>
    %1352 = vector.shape_cast %1351 : vector<2x2x16xf32> to vector<4x16xf32>
    %1353 = tpu.concatenate %1344, %1276, %1272, %1276, %1352, %1271 in 1 : vector<4x16xf32>, vector<4x16xf32>, vector<4x16xf32>, vector<4x16xf32>, vector<4x16xf32>, vector<4x16xf32> -> vector<4x96xf32>
    %cst_283 = arith.constant dense<0.000000e+00> : vector<4x128xf32>
    %1354 = tpu.matmul %1353, %9, %cst_283 {dimension_numbers = #tpu.dot_dimension_numbers<[1], [0], [0], [1], [0, 0, 1, 1], [], []>} : vector<4x96xf32>, vector<96x128xf32>, vector<4x128xf32> -> vector<4x128xf32>
    %1355 = vector.broadcast %11 : vector<1x128xf32> to vector<4x128xf32>
    %1356 = arith.addf %1354, %1355 : vector<4x128xf32>
    %1357 = vector.extract_strided_slice %1356 {offsets = [0, 0], sizes = [4, 64], strides = [1, 1]} : vector<4x128xf32> to vector<4x64xf32>
    %1358 = vector.extract_strided_slice %1357 {offsets = [0, 0], sizes = [4, 16], strides = [1, 1]} : vector<4x64xf32> to vector<4x16xf32>
    %1359 = arith.negf %1358 : vector<4x16xf32>
    %1360 = math.exp %1359 : vector<4x16xf32>
    %cst_284 = arith.constant 1.000000e+00 : f32
    %1361 = vector.broadcast %cst_284 : f32 to vector<4x16xf32>
    %1362 = arith.addf %1361, %1360 : vector<4x16xf32>
    %1363 = arith.divf %1361, %1362 : vector<4x16xf32>
    %1364 = vector.extract_strided_slice %1357 {offsets = [0, 16], sizes = [4, 16], strides = [1, 1]} : vector<4x64xf32> to vector<4x16xf32>
    %1365 = arith.negf %1364 : vector<4x16xf32>
    %1366 = math.exp %1365 : vector<4x16xf32>
    %cst_285 = arith.constant 1.000000e+00 : f32
    %1367 = vector.broadcast %cst_285 : f32 to vector<4x16xf32>
    %1368 = arith.addf %1367, %1366 : vector<4x16xf32>
    %1369 = arith.divf %1367, %1368 : vector<4x16xf32>
    %1370 = vector.extract_strided_slice %1357 {offsets = [0, 32], sizes = [4, 16], strides = [1, 1]} : vector<4x64xf32> to vector<4x16xf32>
    %1371 = vector.extract_strided_slice %1357 {offsets = [0, 48], sizes = [4, 16], strides = [1, 1]} : vector<4x64xf32> to vector<4x16xf32>
    %1372 = arith.mulf %1363, %1371 : vector<4x16xf32>
    %1373 = arith.addf %1370, %1372 : vector<4x16xf32>
    %1374 = math.tanh %1373 : vector<4x16xf32>
    %cst_286 = arith.constant 1.000000e+00 : f32
    %1375 = vector.broadcast %cst_286 : f32 to vector<4x16xf32>
    %1376 = arith.subf %1375, %1369 : vector<4x16xf32>
    %1377 = arith.mulf %1376, %1374 : vector<4x16xf32>
    %1378 = arith.mulf %1369, %1272 : vector<4x16xf32>
    %1379 = arith.addf %1377, %1378 : vector<4x16xf32>
    %1380 = vector.shape_cast %1379 : vector<4x16xf32> to vector<2x2x16xf32>
    %1381 = vector.extract_strided_slice %1356 {offsets = [0, 64], sizes = [4, 64], strides = [1, 1]} : vector<4x128xf32> to vector<4x64xf32>
    %1382 = vector.extract_strided_slice %1381 {offsets = [0, 0], sizes = [4, 16], strides = [1, 1]} : vector<4x64xf32> to vector<4x16xf32>
    %1383 = arith.negf %1382 : vector<4x16xf32>
    %1384 = math.exp %1383 : vector<4x16xf32>
    %cst_287 = arith.constant 1.000000e+00 : f32
    %1385 = vector.broadcast %cst_287 : f32 to vector<4x16xf32>
    %1386 = arith.addf %1385, %1384 : vector<4x16xf32>
    %1387 = arith.divf %1385, %1386 : vector<4x16xf32>
    %1388 = vector.extract_strided_slice %1381 {offsets = [0, 16], sizes = [4, 16], strides = [1, 1]} : vector<4x64xf32> to vector<4x16xf32>
    %1389 = arith.negf %1388 : vector<4x16xf32>
    %1390 = math.exp %1389 : vector<4x16xf32>
    %cst_288 = arith.constant 1.000000e+00 : f32
    %1391 = vector.broadcast %cst_288 : f32 to vector<4x16xf32>
    %1392 = arith.addf %1391, %1390 : vector<4x16xf32>
    %1393 = arith.divf %1391, %1392 : vector<4x16xf32>
    %1394 = vector.extract_strided_slice %1381 {offsets = [0, 32], sizes = [4, 16], strides = [1, 1]} : vector<4x64xf32> to vector<4x16xf32>
    %1395 = vector.extract_strided_slice %1381 {offsets = [0, 48], sizes = [4, 16], strides = [1, 1]} : vector<4x64xf32> to vector<4x16xf32>
    %1396 = arith.mulf %1387, %1395 : vector<4x16xf32>
    %1397 = arith.addf %1394, %1396 : vector<4x16xf32>
    %1398 = math.tanh %1397 : vector<4x16xf32>
    %cst_289 = arith.constant 1.000000e+00 : f32
    %1399 = vector.broadcast %cst_289 : f32 to vector<4x16xf32>
    %1400 = arith.subf %1399, %1393 : vector<4x16xf32>
    %1401 = arith.mulf %1400, %1398 : vector<4x16xf32>
    %1402 = arith.mulf %1393, %1271 : vector<4x16xf32>
    %1403 = arith.addf %1401, %1402 : vector<4x16xf32>
    %1404 = vector.shape_cast %1403 : vector<4x16xf32> to vector<2x2x16xf32>
    %1405 = vector.shape_cast %1209 : vector<2x2xf32> to vector<2x2x1xf32>
    %1406 = vector.broadcast %1405 : vector<2x2x1xf32> to vector<2x2x16xf32>
    %1407 = arith.mulf %1404, %1406 : vector<2x2x16xf32>
    %cst_290 = arith.constant 1.000000e+00 : f32
    %1408 = vector.broadcast %cst_290 : f32 to vector<2x2x1xf32>
    %1409 = arith.subf %1408, %1405 : vector<2x2x1xf32>
    %1410 = vector.broadcast %1409 : vector<2x2x1xf32> to vector<2x2x16xf32>
    %1411 = arith.mulf %1336, %1410 : vector<2x2x16xf32>
    %1412 = arith.addf %1407, %1411 : vector<2x2x16xf32>
    %1413 = vector.broadcast %1405 : vector<2x2x1xf32> to vector<2x2x16xf32>
    %1414 = arith.mulf %1312, %1413 : vector<2x2x16xf32>
    %cst_291 = arith.constant 1.000000e+00 : f32
    %1415 = vector.broadcast %cst_291 : f32 to vector<2x2x1xf32>
    %1416 = arith.subf %1415, %1405 : vector<2x2x1xf32>
    %1417 = vector.broadcast %1416 : vector<2x2x1xf32> to vector<2x2x16xf32>
    %1418 = arith.mulf %1380, %1417 : vector<2x2x16xf32>
    %1419 = arith.addf %1414, %1418 : vector<2x2x16xf32>
    %1420 = vector.shape_cast %1211 : vector<2x2xf32> to vector<2x2x1xf32>
    %1421 = vector.broadcast %1420 : vector<2x2x1xf32> to vector<2x2x16xf32>
    %1422 = arith.mulf %1421, %1412 : vector<2x2x16xf32>
    %cst_292 = arith.constant dense<0.000000e+00> : vector<2x16xf32>
    %1423 = vector.multi_reduction <add>, %1422, %cst_292 [1] : vector<2x2x16xf32> to vector<2x16xf32>
    %1424 = tpu.concatenate %1207, %1423, %1245, %1205 in 1 : vector<2x16xf32>, vector<2x16xf32>, vector<2x16xf32>, vector<2x16xf32> -> vector<2x64xf32>
    %cst_293 = arith.constant dense<0.000000e+00> : vector<2x64xf32>
    %1425 = tpu.matmul %1424, %13, %cst_293 {dimension_numbers = #tpu.dot_dimension_numbers<[1], [0], [0], [1], [0, 0, 1, 1], [], []>} : vector<2x64xf32>, vector<64x64xf32>, vector<2x64xf32> -> vector<2x64xf32>
    %1426 = vector.broadcast %15 : vector<1x64xf32> to vector<2x64xf32>
    %1427 = arith.addf %1425, %1426 : vector<2x64xf32>
    %1428 = vector.extract_strided_slice %1427 {offsets = [0, 0], sizes = [2, 16], strides = [1, 1]} : vector<2x64xf32> to vector<2x16xf32>
    %1429 = arith.negf %1428 : vector<2x16xf32>
    %1430 = math.exp %1429 : vector<2x16xf32>
    %cst_294 = arith.constant 1.000000e+00 : f32
    %1431 = vector.broadcast %cst_294 : f32 to vector<2x16xf32>
    %1432 = arith.addf %1431, %1430 : vector<2x16xf32>
    %1433 = arith.divf %1431, %1432 : vector<2x16xf32>
    %1434 = vector.extract_strided_slice %1427 {offsets = [0, 16], sizes = [2, 16], strides = [1, 1]} : vector<2x64xf32> to vector<2x16xf32>
    %1435 = arith.negf %1434 : vector<2x16xf32>
    %1436 = math.exp %1435 : vector<2x16xf32>
    %cst_295 = arith.constant 1.000000e+00 : f32
    %1437 = vector.broadcast %cst_295 : f32 to vector<2x16xf32>
    %1438 = arith.addf %1437, %1436 : vector<2x16xf32>
    %1439 = arith.divf %1437, %1438 : vector<2x16xf32>
    %1440 = vector.extract_strided_slice %1427 {offsets = [0, 32], sizes = [2, 16], strides = [1, 1]} : vector<2x64xf32> to vector<2x16xf32>
    %1441 = vector.extract_strided_slice %1427 {offsets = [0, 48], sizes = [2, 16], strides = [1, 1]} : vector<2x64xf32> to vector<2x16xf32>
    %1442 = arith.mulf %1433, %1441 : vector<2x16xf32>
    %1443 = arith.addf %1440, %1442 : vector<2x16xf32>
    %1444 = math.tanh %1443 : vector<2x16xf32>
    %cst_296 = arith.constant 1.000000e+00 : f32
    %1445 = vector.broadcast %cst_296 : f32 to vector<2x16xf32>
    %1446 = arith.subf %1445, %1439 : vector<2x16xf32>
    %1447 = arith.mulf %1446, %1444 : vector<2x16xf32>
    %1448 = arith.mulf %1439, %1205 : vector<2x16xf32>
    %1449 = arith.addf %1447, %1448 : vector<2x16xf32>
    %c0_297 = arith.constant 0 : index
    %c6 = arith.constant 6 : index
    %c0_298 = arith.constant 0 : index
    %c0_299 = arith.constant 0 : index
    %1450 = vector.load %arg1[%c0_297, %c6, %c0_298, %c0_299] : memref<1x8x2x16xf32, #tpu.memory_space<vmem>>, vector<1x1x2x16xf32>
    %1451 = vector.shape_cast %1450 : vector<1x1x2x16xf32> to vector<2x16xf32>
    %c0_300 = arith.constant 0 : index
    %c6_301 = arith.constant 6 : index
    %c0_302 = arith.constant 0 : index
    %c0_303 = arith.constant 0 : index
    %1452 = vector.load %arg2[%c0_300, %c6_301, %c0_302, %c0_303] : memref<1x8x2x2xf32, #tpu.memory_space<vmem>>, vector<1x1x2x2xf32>
    %1453 = vector.shape_cast %1452 : vector<1x1x2x2xf32> to vector<2x2xf32>
    %c0_304 = arith.constant 0 : index
    %c6_305 = arith.constant 6 : index
    %c0_306 = arith.constant 0 : index
    %c0_307 = arith.constant 0 : index
    %1454 = vector.load %arg3[%c0_304, %c6_305, %c0_306, %c0_307] : memref<1x8x2x2xf32, #tpu.memory_space<vmem>>, vector<1x1x2x2xf32>
    %1455 = vector.shape_cast %1454 : vector<1x1x2x2xf32> to vector<2x2xf32>
    %1456 = vector.shape_cast %1455 : vector<2x2xf32> to vector<2x2x1xf32>
    %1457 = vector.broadcast %1456 : vector<2x2x1xf32> to vector<2x2x16xf32>
    %1458 = arith.mulf %1457, %1412 : vector<2x2x16xf32>
    %cst_308 = arith.constant dense<0.000000e+00> : vector<2x16xf32>
    %1459 = vector.multi_reduction <add>, %1458, %cst_308 [1] : vector<2x2x16xf32> to vector<2x16xf32>
    %1460 = vector.shape_cast %1455 : vector<2x2xf32> to vector<2x2x1xf32>
    %1461 = vector.broadcast %1460 : vector<2x2x1xf32> to vector<2x2x16xf32>
    %1462 = arith.mulf %1461, %1419 : vector<2x2x16xf32>
    %cst_309 = arith.constant dense<0.000000e+00> : vector<2x16xf32>
    %1463 = vector.multi_reduction <add>, %1462, %cst_309 [1] : vector<2x2x16xf32> to vector<2x16xf32>
    %1464 = tpu.concatenate %1459, %1463, %1451, %1245 in 1 : vector<2x16xf32>, vector<2x16xf32>, vector<2x16xf32>, vector<2x16xf32> -> vector<2x64xf32>
    %cst_310 = arith.constant dense<0.000000e+00> : vector<2x64xf32>
    %1465 = tpu.matmul %1464, %1, %cst_310 {dimension_numbers = #tpu.dot_dimension_numbers<[1], [0], [0], [1], [0, 0, 1, 1], [], []>} : vector<2x64xf32>, vector<64x64xf32>, vector<2x64xf32> -> vector<2x64xf32>
    %1466 = vector.broadcast %3 : vector<1x64xf32> to vector<2x64xf32>
    %1467 = arith.addf %1465, %1466 : vector<2x64xf32>
    %1468 = vector.extract_strided_slice %1467 {offsets = [0, 0], sizes = [2, 16], strides = [1, 1]} : vector<2x64xf32> to vector<2x16xf32>
    %1469 = arith.negf %1468 : vector<2x16xf32>
    %1470 = math.exp %1469 : vector<2x16xf32>
    %cst_311 = arith.constant 1.000000e+00 : f32
    %1471 = vector.broadcast %cst_311 : f32 to vector<2x16xf32>
    %1472 = arith.addf %1471, %1470 : vector<2x16xf32>
    %1473 = arith.divf %1471, %1472 : vector<2x16xf32>
    %1474 = vector.extract_strided_slice %1467 {offsets = [0, 16], sizes = [2, 16], strides = [1, 1]} : vector<2x64xf32> to vector<2x16xf32>
    %1475 = arith.negf %1474 : vector<2x16xf32>
    %1476 = math.exp %1475 : vector<2x16xf32>
    %cst_312 = arith.constant 1.000000e+00 : f32
    %1477 = vector.broadcast %cst_312 : f32 to vector<2x16xf32>
    %1478 = arith.addf %1477, %1476 : vector<2x16xf32>
    %1479 = arith.divf %1477, %1478 : vector<2x16xf32>
    %1480 = vector.extract_strided_slice %1467 {offsets = [0, 32], sizes = [2, 16], strides = [1, 1]} : vector<2x64xf32> to vector<2x16xf32>
    %1481 = vector.extract_strided_slice %1467 {offsets = [0, 48], sizes = [2, 16], strides = [1, 1]} : vector<2x64xf32> to vector<2x16xf32>
    %1482 = arith.mulf %1473, %1481 : vector<2x16xf32>
    %1483 = arith.addf %1480, %1482 : vector<2x16xf32>
    %1484 = math.tanh %1483 : vector<2x16xf32>
    %cst_313 = arith.constant 1.000000e+00 : f32
    %1485 = vector.broadcast %cst_313 : f32 to vector<2x16xf32>
    %1486 = arith.subf %1485, %1479 : vector<2x16xf32>
    %1487 = arith.mulf %1486, %1484 : vector<2x16xf32>
    %1488 = arith.mulf %1479, %1245 : vector<2x16xf32>
    %1489 = arith.addf %1487, %1488 : vector<2x16xf32>
    %1490 = vector.shape_cast %61 : vector<2x16xf32> to vector<2x1x16xf32>
    %1491 = vector.shape_cast %282 : vector<2x16xf32> to vector<2x1x16xf32>
    %1492 = vector.shape_cast %519 : vector<2x16xf32> to vector<2x1x16xf32>
    %1493 = vector.shape_cast %760 : vector<2x16xf32> to vector<2x1x16xf32>
    %1494 = vector.shape_cast %1002 : vector<2x16xf32> to vector<2x1x16xf32>
    %1495 = vector.shape_cast %1245 : vector<2x16xf32> to vector<2x1x16xf32>
    %1496 = tpu.concatenate %1490, %1491, %1492, %1493, %1494, %1495 in 1 : vector<2x1x16xf32>, vector<2x1x16xf32>, vector<2x1x16xf32>, vector<2x1x16xf32>, vector<2x1x16xf32>, vector<2x1x16xf32> -> vector<2x6x16xf32>
    %1497 = vector.shape_cast %17 : vector<1x16xf32> to vector<1x1x16xf32>
    %1498 = vector.broadcast %1497 : vector<1x1x16xf32> to vector<2x6x16xf32>
    %1499 = arith.mulf %1496, %1498 : vector<2x6x16xf32>
    %cst_314 = arith.constant dense<0.000000e+00> : vector<2x6xf32>
    %1500 = vector.multi_reduction <add>, %1499, %cst_314 [2] : vector<2x6x16xf32> to vector<2x6xf32>
    %cst_315 = arith.constant dense<0xFF800000> : vector<2xf32>
    %1501 = vector.multi_reduction <maximumf>, %1500, %cst_315 [1] : vector<2x6xf32> to vector<2xf32>
    %1502 = vector.shape_cast %1501 : vector<2xf32> to vector<2x1xf32>
    %1503 = vector.broadcast %1502 : vector<2x1xf32> to vector<2x6xf32>
    %1504 = arith.subf %1500, %1503 : vector<2x6xf32>
    %1505 = math.exp %1504 : vector<2x6xf32>
    %cst_316 = arith.constant dense<0.000000e+00> : vector<2xf32>
    %1506 = vector.multi_reduction <add>, %1505, %cst_316 [1] : vector<2x6xf32> to vector<2xf32>
    %1507 = vector.shape_cast %1506 : vector<2xf32> to vector<2x1xf32>
    %1508 = vector.broadcast %1507 : vector<2x1xf32> to vector<2x6xf32>
    %1509 = arith.divf %1505, %1508 : vector<2x6xf32>
    %1510 = vector.shape_cast %1509 : vector<2x6xf32> to vector<2x6x1xf32>
    %1511 = vector.broadcast %1510 : vector<2x6x1xf32> to vector<2x6x16xf32>
    %1512 = arith.mulf %1511, %1496 : vector<2x6x16xf32>
    %cst_317 = arith.constant dense<0.000000e+00> : vector<2x16xf32>
    %1513 = vector.multi_reduction <add>, %1512, %cst_317 [1] : vector<2x6x16xf32> to vector<2x16xf32>
    %cst_318 = arith.constant 0.000000e+00 : f32
    %1514 = vector.broadcast %cst_318 : f32 to vector<2x2xf32>
    %1515 = tpu.concatenate %1509, %1514 in 1 : vector<2x6xf32>, vector<2x2xf32> -> vector<2x8xf32>
    %1516 = vector.shape_cast %1412 : vector<2x2x16xf32> to vector<4x16xf32>
    %1517 = vector.shape_cast %1419 : vector<2x2x16xf32> to vector<4x16xf32>
    %1518 = vector.shape_cast %1451 : vector<2x16xf32> to vector<2x1x16xf32>
    %1519 = vector.shape_cast %1518 : vector<2x1x16xf32> to vector<2x1x16xf32>
    %1520 = vector.broadcast %1519 : vector<2x1x16xf32> to vector<2x2x16xf32>
    %1521 = vector.shape_cast %1520 : vector<2x2x16xf32> to vector<4x16xf32>
    %1522 = vector.shape_cast %1489 : vector<2x16xf32> to vector<2x1x16xf32>
    %1523 = vector.shape_cast %1522 : vector<2x1x16xf32> to vector<2x1x16xf32>
    %1524 = vector.broadcast %1523 : vector<2x1x16xf32> to vector<2x2x16xf32>
    %1525 = vector.shape_cast %1524 : vector<2x2x16xf32> to vector<4x16xf32>
    %1526 = vector.shape_cast %1513 : vector<2x16xf32> to vector<2x1x16xf32>
    %1527 = vector.shape_cast %1526 : vector<2x1x16xf32> to vector<2x1x16xf32>
    %1528 = vector.broadcast %1527 : vector<2x1x16xf32> to vector<2x2x16xf32>
    %1529 = vector.shape_cast %1528 : vector<2x2x16xf32> to vector<4x16xf32>
    %1530 = tpu.concatenate %1529, %1521, %1517, %1521, %1525, %1516 in 1 : vector<4x16xf32>, vector<4x16xf32>, vector<4x16xf32>, vector<4x16xf32>, vector<4x16xf32>, vector<4x16xf32> -> vector<4x96xf32>
    %cst_319 = arith.constant dense<0.000000e+00> : vector<4x128xf32>
    %1531 = tpu.matmul %1530, %5, %cst_319 {dimension_numbers = #tpu.dot_dimension_numbers<[1], [0], [0], [1], [0, 0, 1, 1], [], []>} : vector<4x96xf32>, vector<96x128xf32>, vector<4x128xf32> -> vector<4x128xf32>
    %1532 = vector.broadcast %7 : vector<1x128xf32> to vector<4x128xf32>
    %1533 = arith.addf %1531, %1532 : vector<4x128xf32>
    %1534 = vector.extract_strided_slice %1533 {offsets = [0, 0], sizes = [4, 64], strides = [1, 1]} : vector<4x128xf32> to vector<4x64xf32>
    %1535 = vector.extract_strided_slice %1534 {offsets = [0, 0], sizes = [4, 16], strides = [1, 1]} : vector<4x64xf32> to vector<4x16xf32>
    %1536 = arith.negf %1535 : vector<4x16xf32>
    %1537 = math.exp %1536 : vector<4x16xf32>
    %cst_320 = arith.constant 1.000000e+00 : f32
    %1538 = vector.broadcast %cst_320 : f32 to vector<4x16xf32>
    %1539 = arith.addf %1538, %1537 : vector<4x16xf32>
    %1540 = arith.divf %1538, %1539 : vector<4x16xf32>
    %1541 = vector.extract_strided_slice %1534 {offsets = [0, 16], sizes = [4, 16], strides = [1, 1]} : vector<4x64xf32> to vector<4x16xf32>
    %1542 = arith.negf %1541 : vector<4x16xf32>
    %1543 = math.exp %1542 : vector<4x16xf32>
    %cst_321 = arith.constant 1.000000e+00 : f32
    %1544 = vector.broadcast %cst_321 : f32 to vector<4x16xf32>
    %1545 = arith.addf %1544, %1543 : vector<4x16xf32>
    %1546 = arith.divf %1544, %1545 : vector<4x16xf32>
    %1547 = vector.extract_strided_slice %1534 {offsets = [0, 32], sizes = [4, 16], strides = [1, 1]} : vector<4x64xf32> to vector<4x16xf32>
    %1548 = vector.extract_strided_slice %1534 {offsets = [0, 48], sizes = [4, 16], strides = [1, 1]} : vector<4x64xf32> to vector<4x16xf32>
    %1549 = arith.mulf %1540, %1548 : vector<4x16xf32>
    %1550 = arith.addf %1547, %1549 : vector<4x16xf32>
    %1551 = math.tanh %1550 : vector<4x16xf32>
    %cst_322 = arith.constant 1.000000e+00 : f32
    %1552 = vector.broadcast %cst_322 : f32 to vector<4x16xf32>
    %1553 = arith.subf %1552, %1546 : vector<4x16xf32>
    %1554 = arith.mulf %1553, %1551 : vector<4x16xf32>
    %1555 = arith.mulf %1546, %1517 : vector<4x16xf32>
    %1556 = arith.addf %1554, %1555 : vector<4x16xf32>
    %1557 = vector.shape_cast %1556 : vector<4x16xf32> to vector<2x2x16xf32>
    %1558 = vector.extract_strided_slice %1533 {offsets = [0, 64], sizes = [4, 64], strides = [1, 1]} : vector<4x128xf32> to vector<4x64xf32>
    %1559 = vector.extract_strided_slice %1558 {offsets = [0, 0], sizes = [4, 16], strides = [1, 1]} : vector<4x64xf32> to vector<4x16xf32>
    %1560 = arith.negf %1559 : vector<4x16xf32>
    %1561 = math.exp %1560 : vector<4x16xf32>
    %cst_323 = arith.constant 1.000000e+00 : f32
    %1562 = vector.broadcast %cst_323 : f32 to vector<4x16xf32>
    %1563 = arith.addf %1562, %1561 : vector<4x16xf32>
    %1564 = arith.divf %1562, %1563 : vector<4x16xf32>
    %1565 = vector.extract_strided_slice %1558 {offsets = [0, 16], sizes = [4, 16], strides = [1, 1]} : vector<4x64xf32> to vector<4x16xf32>
    %1566 = arith.negf %1565 : vector<4x16xf32>
    %1567 = math.exp %1566 : vector<4x16xf32>
    %cst_324 = arith.constant 1.000000e+00 : f32
    %1568 = vector.broadcast %cst_324 : f32 to vector<4x16xf32>
    %1569 = arith.addf %1568, %1567 : vector<4x16xf32>
    %1570 = arith.divf %1568, %1569 : vector<4x16xf32>
    %1571 = vector.extract_strided_slice %1558 {offsets = [0, 32], sizes = [4, 16], strides = [1, 1]} : vector<4x64xf32> to vector<4x16xf32>
    %1572 = vector.extract_strided_slice %1558 {offsets = [0, 48], sizes = [4, 16], strides = [1, 1]} : vector<4x64xf32> to vector<4x16xf32>
    %1573 = arith.mulf %1564, %1572 : vector<4x16xf32>
    %1574 = arith.addf %1571, %1573 : vector<4x16xf32>
    %1575 = math.tanh %1574 : vector<4x16xf32>
    %cst_325 = arith.constant 1.000000e+00 : f32
    %1576 = vector.broadcast %cst_325 : f32 to vector<4x16xf32>
    %1577 = arith.subf %1576, %1570 : vector<4x16xf32>
    %1578 = arith.mulf %1577, %1575 : vector<4x16xf32>
    %1579 = arith.mulf %1570, %1516 : vector<4x16xf32>
    %1580 = arith.addf %1578, %1579 : vector<4x16xf32>
    %1581 = vector.shape_cast %1580 : vector<4x16xf32> to vector<2x2x16xf32>
    %1582 = vector.shape_cast %1455 : vector<2x2xf32> to vector<2x2x1xf32>
    %1583 = vector.broadcast %1582 : vector<2x2x1xf32> to vector<2x2x16xf32>
    %1584 = arith.mulf %1583, %1557 : vector<2x2x16xf32>
    %cst_326 = arith.constant dense<0.000000e+00> : vector<2x16xf32>
    %1585 = vector.multi_reduction <add>, %1584, %cst_326 [1] : vector<2x2x16xf32> to vector<2x16xf32>
    %1586 = vector.shape_cast %1585 : vector<2x16xf32> to vector<2x1x16xf32>
    %1587 = vector.shape_cast %1586 : vector<2x1x16xf32> to vector<2x1x16xf32>
    %1588 = vector.broadcast %1587 : vector<2x1x16xf32> to vector<2x2x16xf32>
    %1589 = vector.shape_cast %1588 : vector<2x2x16xf32> to vector<4x16xf32>
    %1590 = vector.shape_cast %1455 : vector<2x2xf32> to vector<2x2x1xf32>
    %1591 = vector.broadcast %1590 : vector<2x2x1xf32> to vector<2x2x16xf32>
    %1592 = arith.mulf %1591, %1581 : vector<2x2x16xf32>
    %cst_327 = arith.constant dense<0.000000e+00> : vector<2x16xf32>
    %1593 = vector.multi_reduction <add>, %1592, %cst_327 [1] : vector<2x2x16xf32> to vector<2x16xf32>
    %1594 = vector.shape_cast %1593 : vector<2x16xf32> to vector<2x1x16xf32>
    %1595 = vector.shape_cast %1594 : vector<2x1x16xf32> to vector<2x1x16xf32>
    %1596 = vector.broadcast %1595 : vector<2x1x16xf32> to vector<2x2x16xf32>
    %1597 = vector.shape_cast %1596 : vector<2x2x16xf32> to vector<4x16xf32>
    %1598 = tpu.concatenate %1589, %1521, %1517, %1521, %1597, %1516 in 1 : vector<4x16xf32>, vector<4x16xf32>, vector<4x16xf32>, vector<4x16xf32>, vector<4x16xf32>, vector<4x16xf32> -> vector<4x96xf32>
    %cst_328 = arith.constant dense<0.000000e+00> : vector<4x128xf32>
    %1599 = tpu.matmul %1598, %9, %cst_328 {dimension_numbers = #tpu.dot_dimension_numbers<[1], [0], [0], [1], [0, 0, 1, 1], [], []>} : vector<4x96xf32>, vector<96x128xf32>, vector<4x128xf32> -> vector<4x128xf32>
    %1600 = vector.broadcast %11 : vector<1x128xf32> to vector<4x128xf32>
    %1601 = arith.addf %1599, %1600 : vector<4x128xf32>
    %1602 = vector.extract_strided_slice %1601 {offsets = [0, 0], sizes = [4, 64], strides = [1, 1]} : vector<4x128xf32> to vector<4x64xf32>
    %1603 = vector.extract_strided_slice %1602 {offsets = [0, 0], sizes = [4, 16], strides = [1, 1]} : vector<4x64xf32> to vector<4x16xf32>
    %1604 = arith.negf %1603 : vector<4x16xf32>
    %1605 = math.exp %1604 : vector<4x16xf32>
    %cst_329 = arith.constant 1.000000e+00 : f32
    %1606 = vector.broadcast %cst_329 : f32 to vector<4x16xf32>
    %1607 = arith.addf %1606, %1605 : vector<4x16xf32>
    %1608 = arith.divf %1606, %1607 : vector<4x16xf32>
    %1609 = vector.extract_strided_slice %1602 {offsets = [0, 16], sizes = [4, 16], strides = [1, 1]} : vector<4x64xf32> to vector<4x16xf32>
    %1610 = arith.negf %1609 : vector<4x16xf32>
    %1611 = math.exp %1610 : vector<4x16xf32>
    %cst_330 = arith.constant 1.000000e+00 : f32
    %1612 = vector.broadcast %cst_330 : f32 to vector<4x16xf32>
    %1613 = arith.addf %1612, %1611 : vector<4x16xf32>
    %1614 = arith.divf %1612, %1613 : vector<4x16xf32>
    %1615 = vector.extract_strided_slice %1602 {offsets = [0, 32], sizes = [4, 16], strides = [1, 1]} : vector<4x64xf32> to vector<4x16xf32>
    %1616 = vector.extract_strided_slice %1602 {offsets = [0, 48], sizes = [4, 16], strides = [1, 1]} : vector<4x64xf32> to vector<4x16xf32>
    %1617 = arith.mulf %1608, %1616 : vector<4x16xf32>
    %1618 = arith.addf %1615, %1617 : vector<4x16xf32>
    %1619 = math.tanh %1618 : vector<4x16xf32>
    %cst_331 = arith.constant 1.000000e+00 : f32
    %1620 = vector.broadcast %cst_331 : f32 to vector<4x16xf32>
    %1621 = arith.subf %1620, %1614 : vector<4x16xf32>
    %1622 = arith.mulf %1621, %1619 : vector<4x16xf32>
    %1623 = arith.mulf %1614, %1517 : vector<4x16xf32>
    %1624 = arith.addf %1622, %1623 : vector<4x16xf32>
    %1625 = vector.shape_cast %1624 : vector<4x16xf32> to vector<2x2x16xf32>
    %1626 = vector.extract_strided_slice %1601 {offsets = [0, 64], sizes = [4, 64], strides = [1, 1]} : vector<4x128xf32> to vector<4x64xf32>
    %1627 = vector.extract_strided_slice %1626 {offsets = [0, 0], sizes = [4, 16], strides = [1, 1]} : vector<4x64xf32> to vector<4x16xf32>
    %1628 = arith.negf %1627 : vector<4x16xf32>
    %1629 = math.exp %1628 : vector<4x16xf32>
    %cst_332 = arith.constant 1.000000e+00 : f32
    %1630 = vector.broadcast %cst_332 : f32 to vector<4x16xf32>
    %1631 = arith.addf %1630, %1629 : vector<4x16xf32>
    %1632 = arith.divf %1630, %1631 : vector<4x16xf32>
    %1633 = vector.extract_strided_slice %1626 {offsets = [0, 16], sizes = [4, 16], strides = [1, 1]} : vector<4x64xf32> to vector<4x16xf32>
    %1634 = arith.negf %1633 : vector<4x16xf32>
    %1635 = math.exp %1634 : vector<4x16xf32>
    %cst_333 = arith.constant 1.000000e+00 : f32
    %1636 = vector.broadcast %cst_333 : f32 to vector<4x16xf32>
    %1637 = arith.addf %1636, %1635 : vector<4x16xf32>
    %1638 = arith.divf %1636, %1637 : vector<4x16xf32>
    %1639 = vector.extract_strided_slice %1626 {offsets = [0, 32], sizes = [4, 16], strides = [1, 1]} : vector<4x64xf32> to vector<4x16xf32>
    %1640 = vector.extract_strided_slice %1626 {offsets = [0, 48], sizes = [4, 16], strides = [1, 1]} : vector<4x64xf32> to vector<4x16xf32>
    %1641 = arith.mulf %1632, %1640 : vector<4x16xf32>
    %1642 = arith.addf %1639, %1641 : vector<4x16xf32>
    %1643 = math.tanh %1642 : vector<4x16xf32>
    %cst_334 = arith.constant 1.000000e+00 : f32
    %1644 = vector.broadcast %cst_334 : f32 to vector<4x16xf32>
    %1645 = arith.subf %1644, %1638 : vector<4x16xf32>
    %1646 = arith.mulf %1645, %1643 : vector<4x16xf32>
    %1647 = arith.mulf %1638, %1516 : vector<4x16xf32>
    %1648 = arith.addf %1646, %1647 : vector<4x16xf32>
    %1649 = vector.shape_cast %1648 : vector<4x16xf32> to vector<2x2x16xf32>
    %1650 = vector.shape_cast %1453 : vector<2x2xf32> to vector<2x2x1xf32>
    %1651 = vector.broadcast %1650 : vector<2x2x1xf32> to vector<2x2x16xf32>
    %1652 = arith.mulf %1649, %1651 : vector<2x2x16xf32>
    %cst_335 = arith.constant 1.000000e+00 : f32
    %1653 = vector.broadcast %cst_335 : f32 to vector<2x2x1xf32>
    %1654 = arith.subf %1653, %1650 : vector<2x2x1xf32>
    %1655 = vector.broadcast %1654 : vector<2x2x1xf32> to vector<2x2x16xf32>
    %1656 = arith.mulf %1581, %1655 : vector<2x2x16xf32>
    %1657 = arith.addf %1652, %1656 : vector<2x2x16xf32>
    %1658 = vector.broadcast %1650 : vector<2x2x1xf32> to vector<2x2x16xf32>
    %1659 = arith.mulf %1557, %1658 : vector<2x2x16xf32>
    %cst_336 = arith.constant 1.000000e+00 : f32
    %1660 = vector.broadcast %cst_336 : f32 to vector<2x2x1xf32>
    %1661 = arith.subf %1660, %1650 : vector<2x2x1xf32>
    %1662 = vector.broadcast %1661 : vector<2x2x1xf32> to vector<2x2x16xf32>
    %1663 = arith.mulf %1625, %1662 : vector<2x2x16xf32>
    %1664 = arith.addf %1659, %1663 : vector<2x2x16xf32>
    %1665 = vector.shape_cast %1455 : vector<2x2xf32> to vector<2x2x1xf32>
    %1666 = vector.broadcast %1665 : vector<2x2x1xf32> to vector<2x2x16xf32>
    %1667 = arith.mulf %1666, %1657 : vector<2x2x16xf32>
    %cst_337 = arith.constant dense<0.000000e+00> : vector<2x16xf32>
    %1668 = vector.multi_reduction <add>, %1667, %cst_337 [1] : vector<2x2x16xf32> to vector<2x16xf32>
    %1669 = tpu.concatenate %1451, %1668, %1489, %1449 in 1 : vector<2x16xf32>, vector<2x16xf32>, vector<2x16xf32>, vector<2x16xf32> -> vector<2x64xf32>
    %cst_338 = arith.constant dense<0.000000e+00> : vector<2x64xf32>
    %1670 = tpu.matmul %1669, %13, %cst_338 {dimension_numbers = #tpu.dot_dimension_numbers<[1], [0], [0], [1], [0, 0, 1, 1], [], []>} : vector<2x64xf32>, vector<64x64xf32>, vector<2x64xf32> -> vector<2x64xf32>
    %1671 = vector.broadcast %15 : vector<1x64xf32> to vector<2x64xf32>
    %1672 = arith.addf %1670, %1671 : vector<2x64xf32>
    %1673 = vector.extract_strided_slice %1672 {offsets = [0, 0], sizes = [2, 16], strides = [1, 1]} : vector<2x64xf32> to vector<2x16xf32>
    %1674 = arith.negf %1673 : vector<2x16xf32>
    %1675 = math.exp %1674 : vector<2x16xf32>
    %cst_339 = arith.constant 1.000000e+00 : f32
    %1676 = vector.broadcast %cst_339 : f32 to vector<2x16xf32>
    %1677 = arith.addf %1676, %1675 : vector<2x16xf32>
    %1678 = arith.divf %1676, %1677 : vector<2x16xf32>
    %1679 = vector.extract_strided_slice %1672 {offsets = [0, 16], sizes = [2, 16], strides = [1, 1]} : vector<2x64xf32> to vector<2x16xf32>
    %1680 = arith.negf %1679 : vector<2x16xf32>
    %1681 = math.exp %1680 : vector<2x16xf32>
    %cst_340 = arith.constant 1.000000e+00 : f32
    %1682 = vector.broadcast %cst_340 : f32 to vector<2x16xf32>
    %1683 = arith.addf %1682, %1681 : vector<2x16xf32>
    %1684 = arith.divf %1682, %1683 : vector<2x16xf32>
    %1685 = vector.extract_strided_slice %1672 {offsets = [0, 32], sizes = [2, 16], strides = [1, 1]} : vector<2x64xf32> to vector<2x16xf32>
    %1686 = vector.extract_strided_slice %1672 {offsets = [0, 48], sizes = [2, 16], strides = [1, 1]} : vector<2x64xf32> to vector<2x16xf32>
    %1687 = arith.mulf %1678, %1686 : vector<2x16xf32>
    %1688 = arith.addf %1685, %1687 : vector<2x16xf32>
    %1689 = math.tanh %1688 : vector<2x16xf32>
    %cst_341 = arith.constant 1.000000e+00 : f32
    %1690 = vector.broadcast %cst_341 : f32 to vector<2x16xf32>
    %1691 = arith.subf %1690, %1684 : vector<2x16xf32>
    %1692 = arith.mulf %1691, %1689 : vector<2x16xf32>
    %1693 = arith.mulf %1684, %1449 : vector<2x16xf32>
    %1694 = arith.addf %1692, %1693 : vector<2x16xf32>
    %c0_342 = arith.constant 0 : index
    %c7 = arith.constant 7 : index
    %c0_343 = arith.constant 0 : index
    %c0_344 = arith.constant 0 : index
    %1695 = vector.load %arg1[%c0_342, %c7, %c0_343, %c0_344] : memref<1x8x2x16xf32, #tpu.memory_space<vmem>>, vector<1x1x2x16xf32>
    %1696 = vector.shape_cast %1695 : vector<1x1x2x16xf32> to vector<2x16xf32>
    %c0_345 = arith.constant 0 : index
    %c7_346 = arith.constant 7 : index
    %c0_347 = arith.constant 0 : index
    %c0_348 = arith.constant 0 : index
    %1697 = vector.load %arg2[%c0_345, %c7_346, %c0_347, %c0_348] : memref<1x8x2x2xf32, #tpu.memory_space<vmem>>, vector<1x1x2x2xf32>
    %1698 = vector.shape_cast %1697 : vector<1x1x2x2xf32> to vector<2x2xf32>
    %c0_349 = arith.constant 0 : index
    %c7_350 = arith.constant 7 : index
    %c0_351 = arith.constant 0 : index
    %c0_352 = arith.constant 0 : index
    %1699 = vector.load %arg3[%c0_349, %c7_350, %c0_351, %c0_352] : memref<1x8x2x2xf32, #tpu.memory_space<vmem>>, vector<1x1x2x2xf32>
    %1700 = vector.shape_cast %1699 : vector<1x1x2x2xf32> to vector<2x2xf32>
    %1701 = vector.shape_cast %1700 : vector<2x2xf32> to vector<2x2x1xf32>
    %1702 = vector.broadcast %1701 : vector<2x2x1xf32> to vector<2x2x16xf32>
    %1703 = arith.mulf %1702, %1657 : vector<2x2x16xf32>
    %cst_353 = arith.constant dense<0.000000e+00> : vector<2x16xf32>
    %1704 = vector.multi_reduction <add>, %1703, %cst_353 [1] : vector<2x2x16xf32> to vector<2x16xf32>
    %1705 = vector.shape_cast %1700 : vector<2x2xf32> to vector<2x2x1xf32>
    %1706 = vector.broadcast %1705 : vector<2x2x1xf32> to vector<2x2x16xf32>
    %1707 = arith.mulf %1706, %1664 : vector<2x2x16xf32>
    %cst_354 = arith.constant dense<0.000000e+00> : vector<2x16xf32>
    %1708 = vector.multi_reduction <add>, %1707, %cst_354 [1] : vector<2x2x16xf32> to vector<2x16xf32>
    %1709 = tpu.concatenate %1704, %1708, %1696, %1489 in 1 : vector<2x16xf32>, vector<2x16xf32>, vector<2x16xf32>, vector<2x16xf32> -> vector<2x64xf32>
    %cst_355 = arith.constant dense<0.000000e+00> : vector<2x64xf32>
    %1710 = tpu.matmul %1709, %1, %cst_355 {dimension_numbers = #tpu.dot_dimension_numbers<[1], [0], [0], [1], [0, 0, 1, 1], [], []>} : vector<2x64xf32>, vector<64x64xf32>, vector<2x64xf32> -> vector<2x64xf32>
    %1711 = vector.broadcast %3 : vector<1x64xf32> to vector<2x64xf32>
    %1712 = arith.addf %1710, %1711 : vector<2x64xf32>
    %1713 = vector.extract_strided_slice %1712 {offsets = [0, 0], sizes = [2, 16], strides = [1, 1]} : vector<2x64xf32> to vector<2x16xf32>
    %1714 = arith.negf %1713 : vector<2x16xf32>
    %1715 = math.exp %1714 : vector<2x16xf32>
    %cst_356 = arith.constant 1.000000e+00 : f32
    %1716 = vector.broadcast %cst_356 : f32 to vector<2x16xf32>
    %1717 = arith.addf %1716, %1715 : vector<2x16xf32>
    %1718 = arith.divf %1716, %1717 : vector<2x16xf32>
    %1719 = vector.extract_strided_slice %1712 {offsets = [0, 16], sizes = [2, 16], strides = [1, 1]} : vector<2x64xf32> to vector<2x16xf32>
    %1720 = arith.negf %1719 : vector<2x16xf32>
    %1721 = math.exp %1720 : vector<2x16xf32>
    %cst_357 = arith.constant 1.000000e+00 : f32
    %1722 = vector.broadcast %cst_357 : f32 to vector<2x16xf32>
    %1723 = arith.addf %1722, %1721 : vector<2x16xf32>
    %1724 = arith.divf %1722, %1723 : vector<2x16xf32>
    %1725 = vector.extract_strided_slice %1712 {offsets = [0, 32], sizes = [2, 16], strides = [1, 1]} : vector<2x64xf32> to vector<2x16xf32>
    %1726 = vector.extract_strided_slice %1712 {offsets = [0, 48], sizes = [2, 16], strides = [1, 1]} : vector<2x64xf32> to vector<2x16xf32>
    %1727 = arith.mulf %1718, %1726 : vector<2x16xf32>
    %1728 = arith.addf %1725, %1727 : vector<2x16xf32>
    %1729 = math.tanh %1728 : vector<2x16xf32>
    %cst_358 = arith.constant 1.000000e+00 : f32
    %1730 = vector.broadcast %cst_358 : f32 to vector<2x16xf32>
    %1731 = arith.subf %1730, %1724 : vector<2x16xf32>
    %1732 = arith.mulf %1731, %1729 : vector<2x16xf32>
    %1733 = arith.mulf %1724, %1489 : vector<2x16xf32>
    %1734 = arith.addf %1732, %1733 : vector<2x16xf32>
    %1735 = vector.shape_cast %61 : vector<2x16xf32> to vector<2x1x16xf32>
    %1736 = vector.shape_cast %282 : vector<2x16xf32> to vector<2x1x16xf32>
    %1737 = vector.shape_cast %519 : vector<2x16xf32> to vector<2x1x16xf32>
    %1738 = vector.shape_cast %760 : vector<2x16xf32> to vector<2x1x16xf32>
    %1739 = vector.shape_cast %1002 : vector<2x16xf32> to vector<2x1x16xf32>
    %1740 = vector.shape_cast %1245 : vector<2x16xf32> to vector<2x1x16xf32>
    %1741 = vector.shape_cast %1489 : vector<2x16xf32> to vector<2x1x16xf32>
    %1742 = tpu.concatenate %1735, %1736, %1737, %1738, %1739, %1740, %1741 in 1 : vector<2x1x16xf32>, vector<2x1x16xf32>, vector<2x1x16xf32>, vector<2x1x16xf32>, vector<2x1x16xf32>, vector<2x1x16xf32>, vector<2x1x16xf32> -> vector<2x7x16xf32>
    %1743 = vector.shape_cast %17 : vector<1x16xf32> to vector<1x1x16xf32>
    %1744 = vector.broadcast %1743 : vector<1x1x16xf32> to vector<2x7x16xf32>
    %1745 = arith.mulf %1742, %1744 : vector<2x7x16xf32>
    %cst_359 = arith.constant dense<0.000000e+00> : vector<2x7xf32>
    %1746 = vector.multi_reduction <add>, %1745, %cst_359 [2] : vector<2x7x16xf32> to vector<2x7xf32>
    %cst_360 = arith.constant dense<0xFF800000> : vector<2xf32>
    %1747 = vector.multi_reduction <maximumf>, %1746, %cst_360 [1] : vector<2x7xf32> to vector<2xf32>
    %1748 = vector.shape_cast %1747 : vector<2xf32> to vector<2x1xf32>
    %1749 = vector.broadcast %1748 : vector<2x1xf32> to vector<2x7xf32>
    %1750 = arith.subf %1746, %1749 : vector<2x7xf32>
    %1751 = math.exp %1750 : vector<2x7xf32>
    %cst_361 = arith.constant dense<0.000000e+00> : vector<2xf32>
    %1752 = vector.multi_reduction <add>, %1751, %cst_361 [1] : vector<2x7xf32> to vector<2xf32>
    %1753 = vector.shape_cast %1752 : vector<2xf32> to vector<2x1xf32>
    %1754 = vector.broadcast %1753 : vector<2x1xf32> to vector<2x7xf32>
    %1755 = arith.divf %1751, %1754 : vector<2x7xf32>
    %1756 = vector.shape_cast %1755 : vector<2x7xf32> to vector<2x7x1xf32>
    %1757 = vector.broadcast %1756 : vector<2x7x1xf32> to vector<2x7x16xf32>
    %1758 = arith.mulf %1757, %1742 : vector<2x7x16xf32>
    %cst_362 = arith.constant dense<0.000000e+00> : vector<2x16xf32>
    %1759 = vector.multi_reduction <add>, %1758, %cst_362 [1] : vector<2x7x16xf32> to vector<2x16xf32>
    %cst_363 = arith.constant 0.000000e+00 : f32
    %1760 = vector.broadcast %cst_363 : f32 to vector<2x1xf32>
    %1761 = tpu.concatenate %1755, %1760 in 1 : vector<2x7xf32>, vector<2x1xf32> -> vector<2x8xf32>
    %1762 = vector.shape_cast %1657 : vector<2x2x16xf32> to vector<4x16xf32>
    %1763 = vector.shape_cast %1664 : vector<2x2x16xf32> to vector<4x16xf32>
    %1764 = vector.shape_cast %1696 : vector<2x16xf32> to vector<2x1x16xf32>
    %1765 = vector.shape_cast %1764 : vector<2x1x16xf32> to vector<2x1x16xf32>
    %1766 = vector.broadcast %1765 : vector<2x1x16xf32> to vector<2x2x16xf32>
    %1767 = vector.shape_cast %1766 : vector<2x2x16xf32> to vector<4x16xf32>
    %1768 = vector.shape_cast %1734 : vector<2x16xf32> to vector<2x1x16xf32>
    %1769 = vector.shape_cast %1768 : vector<2x1x16xf32> to vector<2x1x16xf32>
    %1770 = vector.broadcast %1769 : vector<2x1x16xf32> to vector<2x2x16xf32>
    %1771 = vector.shape_cast %1770 : vector<2x2x16xf32> to vector<4x16xf32>
    %1772 = vector.shape_cast %1759 : vector<2x16xf32> to vector<2x1x16xf32>
    %1773 = vector.shape_cast %1772 : vector<2x1x16xf32> to vector<2x1x16xf32>
    %1774 = vector.broadcast %1773 : vector<2x1x16xf32> to vector<2x2x16xf32>
    %1775 = vector.shape_cast %1774 : vector<2x2x16xf32> to vector<4x16xf32>
    %1776 = tpu.concatenate %1775, %1767, %1763, %1767, %1771, %1762 in 1 : vector<4x16xf32>, vector<4x16xf32>, vector<4x16xf32>, vector<4x16xf32>, vector<4x16xf32>, vector<4x16xf32> -> vector<4x96xf32>
    %cst_364 = arith.constant dense<0.000000e+00> : vector<4x128xf32>
    %1777 = tpu.matmul %1776, %5, %cst_364 {dimension_numbers = #tpu.dot_dimension_numbers<[1], [0], [0], [1], [0, 0, 1, 1], [], []>} : vector<4x96xf32>, vector<96x128xf32>, vector<4x128xf32> -> vector<4x128xf32>
    %1778 = vector.broadcast %7 : vector<1x128xf32> to vector<4x128xf32>
    %1779 = arith.addf %1777, %1778 : vector<4x128xf32>
    %1780 = vector.extract_strided_slice %1779 {offsets = [0, 0], sizes = [4, 64], strides = [1, 1]} : vector<4x128xf32> to vector<4x64xf32>
    %1781 = vector.extract_strided_slice %1780 {offsets = [0, 0], sizes = [4, 16], strides = [1, 1]} : vector<4x64xf32> to vector<4x16xf32>
    %1782 = arith.negf %1781 : vector<4x16xf32>
    %1783 = math.exp %1782 : vector<4x16xf32>
    %cst_365 = arith.constant 1.000000e+00 : f32
    %1784 = vector.broadcast %cst_365 : f32 to vector<4x16xf32>
    %1785 = arith.addf %1784, %1783 : vector<4x16xf32>
    %1786 = arith.divf %1784, %1785 : vector<4x16xf32>
    %1787 = vector.extract_strided_slice %1780 {offsets = [0, 16], sizes = [4, 16], strides = [1, 1]} : vector<4x64xf32> to vector<4x16xf32>
    %1788 = arith.negf %1787 : vector<4x16xf32>
    %1789 = math.exp %1788 : vector<4x16xf32>
    %cst_366 = arith.constant 1.000000e+00 : f32
    %1790 = vector.broadcast %cst_366 : f32 to vector<4x16xf32>
    %1791 = arith.addf %1790, %1789 : vector<4x16xf32>
    %1792 = arith.divf %1790, %1791 : vector<4x16xf32>
    %1793 = vector.extract_strided_slice %1780 {offsets = [0, 32], sizes = [4, 16], strides = [1, 1]} : vector<4x64xf32> to vector<4x16xf32>
    %1794 = vector.extract_strided_slice %1780 {offsets = [0, 48], sizes = [4, 16], strides = [1, 1]} : vector<4x64xf32> to vector<4x16xf32>
    %1795 = arith.mulf %1786, %1794 : vector<4x16xf32>
    %1796 = arith.addf %1793, %1795 : vector<4x16xf32>
    %1797 = math.tanh %1796 : vector<4x16xf32>
    %cst_367 = arith.constant 1.000000e+00 : f32
    %1798 = vector.broadcast %cst_367 : f32 to vector<4x16xf32>
    %1799 = arith.subf %1798, %1792 : vector<4x16xf32>
    %1800 = arith.mulf %1799, %1797 : vector<4x16xf32>
    %1801 = arith.mulf %1792, %1763 : vector<4x16xf32>
    %1802 = arith.addf %1800, %1801 : vector<4x16xf32>
    %1803 = vector.shape_cast %1802 : vector<4x16xf32> to vector<2x2x16xf32>
    %1804 = vector.extract_strided_slice %1779 {offsets = [0, 64], sizes = [4, 64], strides = [1, 1]} : vector<4x128xf32> to vector<4x64xf32>
    %1805 = vector.extract_strided_slice %1804 {offsets = [0, 0], sizes = [4, 16], strides = [1, 1]} : vector<4x64xf32> to vector<4x16xf32>
    %1806 = arith.negf %1805 : vector<4x16xf32>
    %1807 = math.exp %1806 : vector<4x16xf32>
    %cst_368 = arith.constant 1.000000e+00 : f32
    %1808 = vector.broadcast %cst_368 : f32 to vector<4x16xf32>
    %1809 = arith.addf %1808, %1807 : vector<4x16xf32>
    %1810 = arith.divf %1808, %1809 : vector<4x16xf32>
    %1811 = vector.extract_strided_slice %1804 {offsets = [0, 16], sizes = [4, 16], strides = [1, 1]} : vector<4x64xf32> to vector<4x16xf32>
    %1812 = arith.negf %1811 : vector<4x16xf32>
    %1813 = math.exp %1812 : vector<4x16xf32>
    %cst_369 = arith.constant 1.000000e+00 : f32
    %1814 = vector.broadcast %cst_369 : f32 to vector<4x16xf32>
    %1815 = arith.addf %1814, %1813 : vector<4x16xf32>
    %1816 = arith.divf %1814, %1815 : vector<4x16xf32>
    %1817 = vector.extract_strided_slice %1804 {offsets = [0, 32], sizes = [4, 16], strides = [1, 1]} : vector<4x64xf32> to vector<4x16xf32>
    %1818 = vector.extract_strided_slice %1804 {offsets = [0, 48], sizes = [4, 16], strides = [1, 1]} : vector<4x64xf32> to vector<4x16xf32>
    %1819 = arith.mulf %1810, %1818 : vector<4x16xf32>
    %1820 = arith.addf %1817, %1819 : vector<4x16xf32>
    %1821 = math.tanh %1820 : vector<4x16xf32>
    %cst_370 = arith.constant 1.000000e+00 : f32
    %1822 = vector.broadcast %cst_370 : f32 to vector<4x16xf32>
    %1823 = arith.subf %1822, %1816 : vector<4x16xf32>
    %1824 = arith.mulf %1823, %1821 : vector<4x16xf32>
    %1825 = arith.mulf %1816, %1762 : vector<4x16xf32>
    %1826 = arith.addf %1824, %1825 : vector<4x16xf32>
    %1827 = vector.shape_cast %1826 : vector<4x16xf32> to vector<2x2x16xf32>
    %1828 = vector.shape_cast %1700 : vector<2x2xf32> to vector<2x2x1xf32>
    %1829 = vector.broadcast %1828 : vector<2x2x1xf32> to vector<2x2x16xf32>
    %1830 = arith.mulf %1829, %1803 : vector<2x2x16xf32>
    %cst_371 = arith.constant dense<0.000000e+00> : vector<2x16xf32>
    %1831 = vector.multi_reduction <add>, %1830, %cst_371 [1] : vector<2x2x16xf32> to vector<2x16xf32>
    %1832 = vector.shape_cast %1831 : vector<2x16xf32> to vector<2x1x16xf32>
    %1833 = vector.shape_cast %1832 : vector<2x1x16xf32> to vector<2x1x16xf32>
    %1834 = vector.broadcast %1833 : vector<2x1x16xf32> to vector<2x2x16xf32>
    %1835 = vector.shape_cast %1834 : vector<2x2x16xf32> to vector<4x16xf32>
    %1836 = vector.shape_cast %1700 : vector<2x2xf32> to vector<2x2x1xf32>
    %1837 = vector.broadcast %1836 : vector<2x2x1xf32> to vector<2x2x16xf32>
    %1838 = arith.mulf %1837, %1827 : vector<2x2x16xf32>
    %cst_372 = arith.constant dense<0.000000e+00> : vector<2x16xf32>
    %1839 = vector.multi_reduction <add>, %1838, %cst_372 [1] : vector<2x2x16xf32> to vector<2x16xf32>
    %1840 = vector.shape_cast %1839 : vector<2x16xf32> to vector<2x1x16xf32>
    %1841 = vector.shape_cast %1840 : vector<2x1x16xf32> to vector<2x1x16xf32>
    %1842 = vector.broadcast %1841 : vector<2x1x16xf32> to vector<2x2x16xf32>
    %1843 = vector.shape_cast %1842 : vector<2x2x16xf32> to vector<4x16xf32>
    %1844 = tpu.concatenate %1835, %1767, %1763, %1767, %1843, %1762 in 1 : vector<4x16xf32>, vector<4x16xf32>, vector<4x16xf32>, vector<4x16xf32>, vector<4x16xf32>, vector<4x16xf32> -> vector<4x96xf32>
    %cst_373 = arith.constant dense<0.000000e+00> : vector<4x128xf32>
    %1845 = tpu.matmul %1844, %9, %cst_373 {dimension_numbers = #tpu.dot_dimension_numbers<[1], [0], [0], [1], [0, 0, 1, 1], [], []>} : vector<4x96xf32>, vector<96x128xf32>, vector<4x128xf32> -> vector<4x128xf32>
    %1846 = vector.broadcast %11 : vector<1x128xf32> to vector<4x128xf32>
    %1847 = arith.addf %1845, %1846 : vector<4x128xf32>
    %1848 = vector.extract_strided_slice %1847 {offsets = [0, 64], sizes = [4, 64], strides = [1, 1]} : vector<4x128xf32> to vector<4x64xf32>
    %1849 = vector.extract_strided_slice %1848 {offsets = [0, 0], sizes = [4, 16], strides = [1, 1]} : vector<4x64xf32> to vector<4x16xf32>
    %1850 = arith.negf %1849 : vector<4x16xf32>
    %1851 = math.exp %1850 : vector<4x16xf32>
    %cst_374 = arith.constant 1.000000e+00 : f32
    %1852 = vector.broadcast %cst_374 : f32 to vector<4x16xf32>
    %1853 = arith.addf %1852, %1851 : vector<4x16xf32>
    %1854 = arith.divf %1852, %1853 : vector<4x16xf32>
    %1855 = vector.extract_strided_slice %1848 {offsets = [0, 16], sizes = [4, 16], strides = [1, 1]} : vector<4x64xf32> to vector<4x16xf32>
    %1856 = arith.negf %1855 : vector<4x16xf32>
    %1857 = math.exp %1856 : vector<4x16xf32>
    %cst_375 = arith.constant 1.000000e+00 : f32
    %1858 = vector.broadcast %cst_375 : f32 to vector<4x16xf32>
    %1859 = arith.addf %1858, %1857 : vector<4x16xf32>
    %1860 = arith.divf %1858, %1859 : vector<4x16xf32>
    %1861 = vector.extract_strided_slice %1848 {offsets = [0, 32], sizes = [4, 16], strides = [1, 1]} : vector<4x64xf32> to vector<4x16xf32>
    %1862 = vector.extract_strided_slice %1848 {offsets = [0, 48], sizes = [4, 16], strides = [1, 1]} : vector<4x64xf32> to vector<4x16xf32>
    %1863 = arith.mulf %1854, %1862 : vector<4x16xf32>
    %1864 = arith.addf %1861, %1863 : vector<4x16xf32>
    %1865 = math.tanh %1864 : vector<4x16xf32>
    %cst_376 = arith.constant 1.000000e+00 : f32
    %1866 = vector.broadcast %cst_376 : f32 to vector<4x16xf32>
    %1867 = arith.subf %1866, %1860 : vector<4x16xf32>
    %1868 = arith.mulf %1867, %1865 : vector<4x16xf32>
    %1869 = arith.mulf %1860, %1762 : vector<4x16xf32>
    %1870 = arith.addf %1868, %1869 : vector<4x16xf32>
    %1871 = vector.shape_cast %1870 : vector<4x16xf32> to vector<2x2x16xf32>
    %1872 = vector.shape_cast %1698 : vector<2x2xf32> to vector<2x2x1xf32>
    %1873 = vector.broadcast %1872 : vector<2x2x1xf32> to vector<2x2x16xf32>
    %1874 = arith.mulf %1871, %1873 : vector<2x2x16xf32>
    %cst_377 = arith.constant 1.000000e+00 : f32
    %1875 = vector.broadcast %cst_377 : f32 to vector<2x2x1xf32>
    %1876 = arith.subf %1875, %1872 : vector<2x2x1xf32>
    %1877 = vector.broadcast %1876 : vector<2x2x1xf32> to vector<2x2x16xf32>
    %1878 = arith.mulf %1827, %1877 : vector<2x2x16xf32>
    %1879 = arith.addf %1874, %1878 : vector<2x2x16xf32>
    %1880 = vector.shape_cast %1700 : vector<2x2xf32> to vector<2x2x1xf32>
    %1881 = vector.broadcast %1880 : vector<2x2x1xf32> to vector<2x2x16xf32>
    %1882 = arith.mulf %1881, %1879 : vector<2x2x16xf32>
    %cst_378 = arith.constant dense<0.000000e+00> : vector<2x16xf32>
    %1883 = vector.multi_reduction <add>, %1882, %cst_378 [1] : vector<2x2x16xf32> to vector<2x16xf32>
    %1884 = tpu.concatenate %1696, %1883, %1734, %1694 in 1 : vector<2x16xf32>, vector<2x16xf32>, vector<2x16xf32>, vector<2x16xf32> -> vector<2x64xf32>
    %cst_379 = arith.constant dense<0.000000e+00> : vector<2x64xf32>
    %1885 = tpu.matmul %1884, %13, %cst_379 {dimension_numbers = #tpu.dot_dimension_numbers<[1], [0], [0], [1], [0, 0, 1, 1], [], []>} : vector<2x64xf32>, vector<64x64xf32>, vector<2x64xf32> -> vector<2x64xf32>
    %1886 = vector.broadcast %15 : vector<1x64xf32> to vector<2x64xf32>
    %1887 = arith.addf %1885, %1886 : vector<2x64xf32>
    %1888 = vector.extract_strided_slice %1887 {offsets = [0, 0], sizes = [2, 16], strides = [1, 1]} : vector<2x64xf32> to vector<2x16xf32>
    %1889 = arith.negf %1888 : vector<2x16xf32>
    %1890 = math.exp %1889 : vector<2x16xf32>
    %cst_380 = arith.constant 1.000000e+00 : f32
    %1891 = vector.broadcast %cst_380 : f32 to vector<2x16xf32>
    %1892 = arith.addf %1891, %1890 : vector<2x16xf32>
    %1893 = arith.divf %1891, %1892 : vector<2x16xf32>
    %1894 = vector.extract_strided_slice %1887 {offsets = [0, 16], sizes = [2, 16], strides = [1, 1]} : vector<2x64xf32> to vector<2x16xf32>
    %1895 = arith.negf %1894 : vector<2x16xf32>
    %1896 = math.exp %1895 : vector<2x16xf32>
    %cst_381 = arith.constant 1.000000e+00 : f32
    %1897 = vector.broadcast %cst_381 : f32 to vector<2x16xf32>
    %1898 = arith.addf %1897, %1896 : vector<2x16xf32>
    %1899 = arith.divf %1897, %1898 : vector<2x16xf32>
    %1900 = vector.extract_strided_slice %1887 {offsets = [0, 32], sizes = [2, 16], strides = [1, 1]} : vector<2x64xf32> to vector<2x16xf32>
    %1901 = vector.extract_strided_slice %1887 {offsets = [0, 48], sizes = [2, 16], strides = [1, 1]} : vector<2x64xf32> to vector<2x16xf32>
    %1902 = arith.mulf %1893, %1901 : vector<2x16xf32>
    %1903 = arith.addf %1900, %1902 : vector<2x16xf32>
    %1904 = math.tanh %1903 : vector<2x16xf32>
    %cst_382 = arith.constant 1.000000e+00 : f32
    %1905 = vector.broadcast %cst_382 : f32 to vector<2x16xf32>
    %1906 = arith.subf %1905, %1899 : vector<2x16xf32>
    %1907 = arith.mulf %1906, %1904 : vector<2x16xf32>
    %1908 = arith.mulf %1899, %1694 : vector<2x16xf32>
    %1909 = arith.addf %1907, %1908 : vector<2x16xf32>
    %1910 = tpu.concatenate %242, %479, %720, %962, %1205, %1449, %1694, %1909 in 1 : vector<2x16xf32>, vector<2x16xf32>, vector<2x16xf32>, vector<2x16xf32>, vector<2x16xf32>, vector<2x16xf32>, vector<2x16xf32>, vector<2x16xf32> -> vector<2x128xf32>
    %c0_383 = arith.constant 0 : index
    %c0_384 = arith.constant 0 : index
    %c0_385 = arith.constant 0 : index
    %1911 = vector.load %arg13[%c0_383, %c0_384, %c0_385] : memref<1x2x128xf32, #tpu.memory_space<vmem>>, vector<1x2x128xf32>
    %1912 = vector.shape_cast %1911 : vector<1x2x128xf32> to vector<2x128xf32>
    %1913 = vector.shape_cast %1910 : vector<2x128xf32> to vector<1x2x128xf32>
    tpu.vector_store %arg13[%c0_383, %c0_384, %c0_385], %1913 {strides = array<i32>} : memref<1x2x128xf32, #tpu.memory_space<vmem>>, vector<1x2x128xf32>,
    %1914 = vector.shape_cast %63 : vector<2x8xf32> to vector<1x2x8xf32>
    %1915 = vector.shape_cast %300 : vector<2x8xf32> to vector<1x2x8xf32>
    %1916 = vector.shape_cast %541 : vector<2x8xf32> to vector<1x2x8xf32>
    %1917 = vector.shape_cast %783 : vector<2x8xf32> to vector<1x2x8xf32>
    %1918 = vector.shape_cast %1026 : vector<2x8xf32> to vector<1x2x8xf32>
    %1919 = vector.shape_cast %1270 : vector<2x8xf32> to vector<1x2x8xf32>
    %1920 = vector.shape_cast %1515 : vector<2x8xf32> to vector<1x2x8xf32>
    %1921 = vector.shape_cast %1761 : vector<2x8xf32> to vector<1x2x8xf32>
    %1922 = tpu.concatenate %1914, %1915, %1916, %1917, %1918, %1919, %1920, %1921 in 0 : vector<1x2x8xf32>, vector<1x2x8xf32>, vector<1x2x8xf32>, vector<1x2x8xf32>, vector<1x2x8xf32>, vector<1x2x8xf32>, vector<1x2x8xf32>, vector<1x2x8xf32> -> vector<8x2x8xf32>
    %c0_386 = arith.constant 0 : index
    %c0_387 = arith.constant 0 : index
    %c0_388 = arith.constant 0 : index
    %c0_389 = arith.constant 0 : index
    %1923 = vector.load %arg14[%c0_386, %c0_387, %c0_388, %c0_389] : memref<1x8x2x8xf32, #tpu.memory_space<vmem>>, vector<1x8x2x8xf32>
    %1924 = vector.shape_cast %1923 : vector<1x8x2x8xf32> to vector<8x2x8xf32>
    %1925 = vector.shape_cast %1922 : vector<8x2x8xf32> to vector<1x8x2x8xf32>
    tpu.vector_store %arg14[%c0_386, %c0_387, %c0_388, %c0_389], %1925 {strides = array<i32>} : memref<1x8x2x8xf32, #tpu.memory_space<vmem>>, vector<1x8x2x8xf32>,
    return
  }
  func.func @transform_0(%arg0: i32) -> (i32, i32, i32, i32) {
    %c0_i32 = arith.constant 0 : i32
    %c0_i32_0 = arith.constant 0 : i32
    %c0_i32_1 = arith.constant 0 : i32
    %c0_i32_2 = arith.constant 0 : i32
    return %arg0, %c0_i32, %c0_i32_0, %c0_i32_1 : i32, i32, i32, i32
  }
  func.func @transform_1(%arg0: i32) -> (i32, i32, i32, i32) {
    %c0_i32 = arith.constant 0 : i32
    %c0_i32_0 = arith.constant 0 : i32
    %c0_i32_1 = arith.constant 0 : i32
    %c0_i32_2 = arith.constant 0 : i32
    return %arg0, %c0_i32, %c0_i32_0, %c0_i32_1 : i32, i32, i32, i32
  }
  func.func @transform_2(%arg0: i32) -> (i32, i32, i32, i32) {
    %c0_i32 = arith.constant 0 : i32
    %c0_i32_0 = arith.constant 0 : i32
    %c0_i32_1 = arith.constant 0 : i32
    %c0_i32_2 = arith.constant 0 : i32
    return %arg0, %c0_i32, %c0_i32_0, %c0_i32_1 : i32, i32, i32, i32
  }
  func.func @transform_3(%arg0: i32) -> (i32, i32, i32) {
    %c0_i32 = arith.constant 0 : i32
    %c0_i32_0 = arith.constant 0 : i32
    %c0_i32_1 = arith.constant 0 : i32
    return %arg0, %c0_i32, %c0_i32_0 : i32, i32, i32
  }
  func.func @transform_4(%arg0: i32) -> (i32, i32, i32) {
    %c0_i32 = arith.constant 0 : i32
    %c0_i32_0 = arith.constant 0 : i32
    %c0_i32_1 = arith.constant 0 : i32
    return %arg0, %c0_i32, %c0_i32_0 : i32, i32, i32
  }
  func.func @transform_5(%arg0: i32) -> (i32, i32, i32) {
    %c0_i32 = arith.constant 0 : i32
    %c0_i32_0 = arith.constant 0 : i32
    %c0_i32_1 = arith.constant 0 : i32
    return %arg0, %c0_i32, %c0_i32_0 : i32, i32, i32
  }
  func.func @transform_6(%arg0: i32) -> (i32, i32, i32) {
    %c0_i32 = arith.constant 0 : i32
    %c0_i32_0 = arith.constant 0 : i32
    %c0_i32_1 = arith.constant 0 : i32
    return %arg0, %c0_i32, %c0_i32_0 : i32, i32, i32
  }
  func.func @transform_7(%arg0: i32) -> (i32, i32, i32) {
    %c0_i32 = arith.constant 0 : i32
    %c0_i32_0 = arith.constant 0 : i32
    %c0_i32_1 = arith.constant 0 : i32
    return %arg0, %c0_i32, %c0_i32_0 : i32, i32, i32
  }
  func.func @transform_8(%arg0: i32) -> (i32, i32, i32) {
    %c0_i32 = arith.constant 0 : i32
    %c0_i32_0 = arith.constant 0 : i32
    %c0_i32_1 = arith.constant 0 : i32
    return %arg0, %c0_i32, %c0_i32_0 : i32, i32, i32
  }
  func.func @transform_9(%arg0: i32) -> (i32, i32, i32) {
    %c0_i32 = arith.constant 0 : i32
    %c0_i32_0 = arith.constant 0 : i32
    %c0_i32_1 = arith.constant 0 : i32
    return %arg0, %c0_i32, %c0_i32_0 : i32, i32, i32
  }
  func.func @transform_10(%arg0: i32) -> (i32, i32, i32) {
    %c0_i32 = arith.constant 0 : i32
    %c0_i32_0 = arith.constant 0 : i32
    %c0_i32_1 = arith.constant 0 : i32
    return %arg0, %c0_i32, %c0_i32_0 : i32, i32, i32
  }
  func.func @transform_11(%arg0: i32) -> (i32, i32, i32) {
    %c0_i32 = arith.constant 0 : i32
    %c0_i32_0 = arith.constant 0 : i32
    %c0_i32_1 = arith.constant 0 : i32
    return %arg0, %c0_i32, %c0_i32_0 : i32, i32, i32
  }
  func.func @transform_12(%arg0: i32) -> (i32, i32, i32) {
    %c0_i32 = arith.constant 0 : i32
    %c0_i32_0 = arith.constant 0 : i32
    %c0_i32_1 = arith.constant 0 : i32
    return %arg0, %c0_i32, %c0_i32_0 : i32, i32, i32
  }
  func.func @transform_13(%arg0: i32) -> (i32, i32, i32, i32) {
    %c0_i32 = arith.constant 0 : i32
    %c0_i32_0 = arith.constant 0 : i32
    %c0_i32_1 = arith.constant 0 : i32
    %c0_i32_2 = arith.constant 0 : i32
    return %arg0, %c0_i32, %c0_i32_0, %c0_i32_1 : i32, i32, i32, i32
  }
}

</mosaic_0001>

<llo_original>
// kernel: emotion_net.3
$region0: #{emotion_net.3}
  #allocation0 [shape = 'u32[]', space=smem, size = 0x4, offset = 0x4, fixed_abs, tag = 'smem constant byte address 0x4 - core index']
  #allocation1 [shape = 'u32[72,128]{1,0:T(1,128)}', space=vmem, size = 0x9000, scoped, tag = 'internal scratch']
  %s0 = inlined_call_operand.vmem [shape: f32[16,32], index: 0, kind: input, shape index: {}]
  %s1 = inlined_call_operand.vmem [shape: f32[32,32], index: 1, kind: input, shape index: {}]
  %s2 = inlined_call_operand.vmem [shape: f32[1,32], index: 2, kind: input, shape index: {}]
  %s3 = inlined_call_operand.vmem [shape: f32[32,7], index: 3, kind: input, shape index: {}]
  %s4 = inlined_call_operand.vmem [shape: f32[1,7], index: 4, kind: input, shape index: {}]
  %s5 = inlined_call_operand.vmem [shape: f32[16,7], index: 5, kind: output, shape index: {}]
  %s6 = sld [smem:[#allocation0]]
  $region30: #{emotion_net.3} parent=0
    _
  %s8 = ssub.s32 1, %s6
  %s9 = scalar_select 0, %s8, %s6
  // Predicated region
  $region2: #{emotion_net.3} parent=0 // pred_check
    _
  $region3: #{emotion_net.3} parent=0 // pred_check_branch
    %11 = sbr.rel (0) target = $region5
  $region4: #{emotion_net.3} parent=0 // pred_region
    _
  $region5: #{emotion_net.3} parent=0 // pred_fallthru
    _
  // Predicated region
  $region6: #{emotion_net.3} parent=0 // pred_check
    _
  $region7: #{emotion_net.3} parent=0 // pred_check_branch
    %13 = sbr.rel (0) target = $region9
  $region8: #{emotion_net.3} parent=0 // pred_region
    _
  $region9: #{emotion_net.3} parent=0 // pred_fallthru
    _
  // Predicated region
  $region10: #{emotion_net.3} parent=0 // pred_check
    _
  $region11: #{emotion_net.3} parent=0 // pred_check_branch
    %15 = sbr.rel (0) target = $region13
  $region12: #{emotion_net.3} parent=0 // pred_region
    _
  $region13: #{emotion_net.3} parent=0 // pred_fallthru
    _
  // Predicated region
  $region14: #{emotion_net.3} parent=0 // pred_check
    _
  $region15: #{emotion_net.3} parent=0 // pred_check_branch
    %17 = sbr.rel (0) target = $region17
  $region16: #{emotion_net.3} parent=0 // pred_region
    _
  $region17: #{emotion_net.3} parent=0 // pred_fallthru
    _
  // Predicated region
  $region18: #{emotion_net.3} parent=0 // pred_check
    _
  $region19: #{emotion_net.3} parent=0 // pred_check_branch
    %19 = sbr.rel (0) target = $region21
  $region20: #{emotion_net.3} parent=0 // pred_region
    _
  $region21: #{emotion_net.3} parent=0 // pred_fallthru
    _
  %v20 = vld [vmem:[%s0] sm:$0xff]
  %v21 = vld [vmem:[%s0 + $0x8] sm:$0xff]
  %v22 = vld [vmem:[%s1] sm:$0xff]
  %v23 = vld [vmem:[%s1 + $0x8] sm:$0xff]
  %v24 = vld [vmem:[%s1 + $0x10] sm:$0xff]
  %v25 = vld [vmem:[%s1 + $0x18] sm:$0xff]
  %v26 = vld [vmem:[%s2] sm:$0x1]
  %v28 = vperm.slane %v26, 0
  %vm30 = vcmask 261120
  %v32 = vsel %vm30, %v20, 0
  %v35 = vsel %vm30, %v21, 0
  %37 = vmatpush.msra.mxu0 0.0
  %38 = vmatpush.msra.mxu0 0.0
  %39 = vmatpush.msra.mxu0 0.0
  %40 = vmatpush.msra.mxu0 0.0
  %41 = vmatpush.msra.mxu0 0.0
  %42 = vmatpush.msra.mxu0 0.0
  %43 = vmatpush.msra.mxu0 0.0
  %44 = vmatpush.msra.mxu0 0.0
  %45 = vmatpush.msra.mxu0 0.0
  %46 = vmatpush.msra.mxu0 0.0
  %47 = vmatpush.msra.mxu0 0.0
  %48 = vmatpush.msra.mxu0 0.0
  %49 = vmatpush.msra.mxu0 %v25
  %50 = vmatpush.msra.mxu0 %v24
  %51 = vmatpush.msra.mxu0 %v23
  %52 = vmatpush.msra.mxu0 %v22
  %53 = vmatmul.f32.gmra.mxu0 %v32
  %v54 = vpop.f32.mrf.mxu0
  %v55 = vadd.f32 %v28, %v54
  %56 = vmatmul.f32.gmra.mxu0 %v35
  %v57 = vpop.f32.mrf.mxu0
  %v58 = vadd.f32 %v28, %v57
  %59 = vdwg.mxu0
  %v60 = vld [vmem:[%s3] sm:$0xff]
  %v61 = vld [vmem:[%s3 + $0x8] sm:$0xff]
  %v62 = vld [vmem:[%s3 + $0x10] sm:$0xff]
  %v63 = vld [vmem:[%s3 + $0x18] sm:$0xff]
  %v64 = vld [vmem:[%s4] sm:$0x1]
  %v66 = vperm.slane %v64, 0
  %v69 = vsel %vm30, %v55, 0
  %v72 = vsel %vm30, %v58, 0
  %74 = vmatpush.msra.mxu0 0.0
  %75 = vmatpush.msra.mxu0 0.0
  %76 = vmatpush.msra.mxu0 0.0
  %77 = vmatpush.msra.mxu0 0.0
  %78 = vmatpush.msra.mxu0 0.0
  %79 = vmatpush.msra.mxu0 0.0
  %80 = vmatpush.msra.mxu0 0.0
  %81 = vmatpush.msra.mxu0 0.0
  %82 = vmatpush.msra.mxu0 0.0
  %83 = vmatpush.msra.mxu0 0.0
  %84 = vmatpush.msra.mxu0 0.0
  %85 = vmatpush.msra.mxu0 0.0
  %86 = vmatpush.msra.mxu0 %v63
  %87 = vmatpush.msra.mxu0 %v62
  %88 = vmatpush.msra.mxu0 %v61
  %89 = vmatpush.msra.mxu0 %v60
  %90 = vmatmul.f32.gmra.mxu0 %v69
  %v91 = vpop.f32.mrf.mxu0
  %v92 = vadd.f32 %v66, %v91
  %93 = vmatmul.f32.gmra.mxu0 %v72
  %v94 = vpop.f32.mrf.mxu0
  %v95 = vadd.f32 %v66, %v94
  %96 = vdwg.mxu0
  %vm97 = vcmask 56320
  %v98 = vsel %vm97, %v92, -inf
  %99 = vmax.xlane.f32.xlu0 %v98
  %v100 = vpop.xlane.xlu0 %99
  %v101 = vsel %vm97, %v95, -inf
  %102 = vmax.xlane.f32.xlu0 %v101
  %v103 = vpop.xlane.xlu0 %102
  %v104 = vsub.f32 %v92, %v100
  %v105 = vsub.f32 %v95, %v103
  %v106 = vmul.f32 %v104, 1.442695
  %v107 = vpow.pop %v106
  %v108 = vmul.f32 %v105, 1.442695
  %v109 = vpow.pop %v108
  %v110 = vsel %vm97, %v107, 0.0
  %111 = vadd.xlane.f32.xlu0 %v110
  %v112 = vpop.xlane.xlu0 %111
  %v113 = vsel %vm97, %v109, 0.0
  %114 = vadd.xlane.f32.xlu0 %v113
  %v115 = vpop.xlane.xlu0 %114
  %v116 = vlog2.pop %v112
  %v117 = vmul.f32 %v116, 0.6931472
  %v118 = vlog2.pop %v115
  %v119 = vmul.f32 %v118, 0.6931472
  %v120 = vsub.f32 %v104, %v117
  %v121 = vsub.f32 %v105, %v119
  %122 = vst.msk [vmem:[%s5] sm:$0xff] %vm97, %v120
  %123 = vst.msk [vmem:[%s5 + $0x8] sm:$0xff] %vm97, %v121
  // Predicated region
  $region22: #{emotion_net.3} parent=0 // pred_check
    _
  $region23: #{emotion_net.3} parent=0 // pred_check_branch
    %125 = sbr.rel (0) target = $region25
  $region24: #{emotion_net.3} parent=0 // pred_region
    _
  $region25: #{emotion_net.3} parent=0 // pred_fallthru
    _
  // Predicated region
  $region26: #{emotion_net.3} parent=0 // pred_check
    _
  $region27: #{emotion_net.3} parent=0 // pred_check_branch
    %127 = sbr.rel (0) target = $region29
  $region28: #{emotion_net.3} parent=0 // pred_region
    _
  $region29: #{emotion_net.3} parent=0 // pred_fallthru
    _

// kernel: emotion_net.2
$region0: #{emotion_net.2}
  #allocation0 [shape = 'u32[]', space=smem, size = 0x4, offset = 0x4, fixed_abs, tag = 'smem constant byte address 0x4 - core index']
  #allocation1 [shape = 'u32[72,128]{1,0:T(1,128)}', space=vmem, size = 0x9000, scoped, tag = 'internal scratch']
  %s0 = inlined_call_operand.vmem [shape: f32[2,8,2,16], index: 0, kind: input, shape index: {}]
  %s1 = inlined_call_operand.vmem [shape: f32[2,8,2,2], index: 1, kind: input, shape index: {}]
  %s2 = inlined_call_operand.vmem [shape: f32[2,8,2,2], index: 2, kind: input, shape index: {}]
  %s3 = inlined_call_operand.vmem [shape: f32[2,64,64], index: 3, kind: input, shape index: {}]
  %s4 = inlined_call_operand.vmem [shape: f32[2,1,64], index: 4, kind: input, shape index: {}]
  %s5 = inlined_call_operand.vmem [shape: f32[2,96,128], index: 5, kind: input, shape index: {}]
  %s6 = inlined_call_operand.vmem [shape: f32[2,1,128], index: 6, kind: input, shape index: {}]
  %s7 = inlined_call_operand.vmem [shape: f32[2,96,128], index: 7, kind: input, shape index: {}]
  %s8 = inlined_call_operand.vmem [shape: f32[2,1,128], index: 8, kind: input, shape index: {}]
  %s9 = inlined_call_operand.vmem [shape: f32[2,64,64], index: 9, kind: input, shape index: {}]
  %s10 = inlined_call_operand.vmem [shape: f32[2,1,64], index: 10, kind: input, shape index: {}]
  %s11 = inlined_call_operand.vmem [shape: f32[2,1,16], index: 11, kind: input, shape index: {}]
  %s12 = inlined_call_operand.vmem [shape: f32[2,2,128], index: 12, kind: output, shape index: {0}]
  %s13 = inlined_call_operand.vmem [shape: f32[2,8,2,8], index: 13, kind: output, shape index: {1}]
  %14 = xla_tuple %s12, %s13
  %s15 = sld [smem:[#allocation0]]
  $region89: #{emotion_net.2} parent=0
    _
  %s17 = ssub.s32 1, %s15
  %s18 = scalar_select 0, %s17, %s15
  loop: start=0, step=1, limit=4
  $region2: #{emotion_net.2} parent=0 // loop_pre_header
    _
  $region3: #{emotion_net.2} parent=0 // loop_header
    %s20 = sphi 0, %s24
    %p21 = scmp.ge.s32.totalorder %s20, 4
    %s30 = sphi 0, %s32
    %s33 = sphi 0, %s30
    %s34 = sphi 0, %s33
    %s50 = sphi 0, %s34
    %s56 = sphi 0, %s58
    %s59 = sphi 0, %s56
    %s60 = sphi 0, %s59
    %s76 = sphi 0, %s60
    %s82 = sphi 0, %s84
    %s85 = sphi 0, %s82
    %s86 = sphi 0, %s85
    %s102 = sphi 0, %s86
    %s108 = sphi 0, %s110
    %s111 = sphi 0, %s108
    %s112 = sphi 0, %s111
    %s128 = sphi 0, %s112
    %s134 = sphi 0, %s136
    %s137 = sphi 0, %s134
    %s138 = sphi 0, %s137
    %s154 = sphi 0, %s138
    %s160 = sphi 0, %s162
    %s163 = sphi 0, %s160
    %s164 = sphi 0, %s163
    %s180 = sphi 0, %s164
    %s186 = sphi 0, %s188
    %s189 = sphi 0, %s186
    %s190 = sphi 0, %s189
    %s206 = sphi 0, %s190
    %s212 = sphi 0, %s214
    %s215 = sphi 0, %s212
    %s216 = sphi 0, %s215
    %s232 = sphi 0, %s216
    %s238 = sphi 0, %s240
    %s241 = sphi 0, %s238
    %s242 = sphi 0, %s241
    %s258 = sphi 0, %s242
    %s264 = sphi 0, %s266
    %s267 = sphi 0, %s264
    %s268 = sphi 0, %s267
    %s284 = sphi 0, %s268
    %s290 = sphi 0, %s292
    %s293 = sphi 0, %s290
    %s294 = sphi 0, %s293
    %s310 = sphi 0, %s294
    %s316 = sphi 0, %s318
    %s319 = sphi 0, %s316
    %s320 = sphi 0, %s319
    %s336 = sphi 0, %s320
    %s342 = sphi 0, %s344
    %s345 = sphi 0, %s342
    %s346 = sphi 0, %s345
    %s362 = sphi 0, %s346
    %s368 = sphi 0, %s370
    %s371 = sphi 0, %s368
    %s372 = sphi 0, %s371
    %s388 = sphi 0, %s372
  $region4: #{emotion_net.2} parent=0 // loop_header_branch
    %23 = sbr.rel (%p21) target = $region8
  $region5: #{emotion_net.2} parent=0 // loop_body
    %s25 = ssub.s32 %s20, 1
    %s26 = ssub.s32 %s20, 2
    %s27 = sadd.s32 %s20, 1
    %s28 = ssub.s32 %s20, %s27
    %p29 = scmp.eq.s32.totalorder %s28, 0
    %s31 = sadd.s32 %s30, 1
    %s32 = scalar_select %p29, %s30, %s31
    %p35 = pneg %p29
    %p36 = scmp.eq.s32.totalorder %s20, 1
    %p37 = por %p35, %p36
    %p38 = scmp.ne.s32.totalorder %s30, %s33
    %p39 = scmp.eq.s32.totalorder %s20, 0
    %p40 = por %p38, %p39
    %p41 = scmp.ne.s32.totalorder %s30, %s33
    %p42 = scmp.eq.s32.totalorder %s25, 1
    %p43 = por %p41, %p42
    %p44 = scmp.ne.s32.totalorder %s33, %s34
    %p45 = scmp.eq.s32.totalorder %s25, 0
    %p46 = por %p44, %p45
    %p47 = scmp.ne.s32.totalorder %s33, %s34
    %p48 = scmp.eq.s32.totalorder %s26, 1
    %p49 = por %p47, %p48
    %p51 = scmp.ne.s32.totalorder %s34, %s50
    %p52 = scmp.eq.s32.totalorder %s26, 0
    %p53 = por %p51, %p52
    %s54 = ssub.s32 %s20, %s27
    %p55 = scmp.eq.s32.totalorder %s54, 0
    %s57 = sadd.s32 %s56, 1
    %s58 = scalar_select %p55, %s56, %s57
    %p61 = pneg %p55
    %p62 = scmp.eq.s32.totalorder %s20, 1
    %p63 = por %p61, %p62
    %p64 = scmp.ne.s32.totalorder %s56, %s59
    %p65 = scmp.eq.s32.totalorder %s20, 0
    %p66 = por %p64, %p65
    %p67 = scmp.ne.s32.totalorder %s56, %s59
    %p68 = scmp.eq.s32.totalorder %s25, 1
    %p69 = por %p67, %p68
    %p70 = scmp.ne.s32.totalorder %s59, %s60
    %p71 = scmp.eq.s32.totalorder %s25, 0
    %p72 = por %p70, %p71
    %p73 = scmp.ne.s32.totalorder %s59, %s60
    %p74 = scmp.eq.s32.totalorder %s26, 1
    %p75 = por %p73, %p74
    %p77 = scmp.ne.s32.totalorder %s60, %s76
    %p78 = scmp.eq.s32.totalorder %s26, 0
    %p79 = por %p77, %p78
    %s80 = ssub.s32 %s20, %s27
    %p81 = scmp.eq.s32.totalorder %s80, 0
    %s83 = sadd.s32 %s82, 1
    %s84 = scalar_select %p81, %s82, %s83
    %p87 = pneg %p81
    %p88 = scmp.eq.s32.totalorder %s20, 1
    %p89 = por %p87, %p88
    %p90 = scmp.ne.s32.totalorder %s82, %s85
    %p91 = scmp.eq.s32.totalorder %s20, 0
    %p92 = por %p90, %p91
    %p93 = scmp.ne.s32.totalorder %s82, %s85
    %p94 = scmp.eq.s32.totalorder %s25, 1
    %p95 = por %p93, %p94
    %p96 = scmp.ne.s32.totalorder %s85, %s86
    %p97 = scmp.eq.s32.totalorder %s25, 0
    %p98 = por %p96, %p97
    %p99 = scmp.ne.s32.totalorder %s85, %s86
    %p100 = scmp.eq.s32.totalorder %s26, 1
    %p101 = por %p99, %p100
    %p103 = scmp.ne.s32.totalorder %s86, %s102
    %p104 = scmp.eq.s32.totalorder %s26, 0
    %p105 = por %p103, %p104
    %s106 = ssub.s32 %s20, %s27
    %p107 = scmp.eq.s32.totalorder %s106, 0
    %s109 = sadd.s32 %s108, 1
    %s110 = scalar_select %p107, %s108, %s109
    %p113 = pneg %p107
    %p114 = scmp.eq.s32.totalorder %s20, 1
    %p115 = por %p113, %p114
    %p116 = scmp.ne.s32.totalorder %s108, %s111
    %p117 = scmp.eq.s32.totalorder %s20, 0
    %p118 = por %p116, %p117
    %p119 = scmp.ne.s32.totalorder %s108, %s111
    %p120 = scmp.eq.s32.totalorder %s25, 1
    %p121 = por %p119, %p120
    %p122 = scmp.ne.s32.totalorder %s111, %s112
    %p123 = scmp.eq.s32.totalorder %s25, 0
    %p124 = por %p122, %p123
    %p125 = scmp.ne.s32.totalorder %s111, %s112
    %p126 = scmp.eq.s32.totalorder %s26, 1
    %p127 = por %p125, %p126
    %p129 = scmp.ne.s32.totalorder %s112, %s128
    %p130 = scmp.eq.s32.totalorder %s26, 0
    %p131 = por %p129, %p130
    %s132 = ssub.s32 %s20, %s27
    %p133 = scmp.eq.s32.totalorder %s132, 0
    %s135 = sadd.s32 %s134, 1
    %s136 = scalar_select %p133, %s134, %s135
    %p139 = pneg %p133
    %p140 = scmp.eq.s32.totalorder %s20, 1
    %p141 = por %p139, %p140
    %p142 = scmp.ne.s32.totalorder %s134, %s137
    %p143 = scmp.eq.s32.totalorder %s20, 0
    %p144 = por %p142, %p143
    %p145 = scmp.ne.s32.totalorder %s134, %s137
    %p146 = scmp.eq.s32.totalorder %s25, 1
    %p147 = por %p145, %p146
    %p148 = scmp.ne.s32.totalorder %s137, %s138
    %p149 = scmp.eq.s32.totalorder %s25, 0
    %p150 = por %p148, %p149
    %p151 = scmp.ne.s32.totalorder %s137, %s138
    %p152 = scmp.eq.s32.totalorder %s26, 1
    %p153 = por %p151, %p152
    %p155 = scmp.ne.s32.totalorder %s138, %s154
    %p156 = scmp.eq.s32.totalorder %s26, 0
    %p157 = por %p155, %p156
    %s158 = ssub.s32 %s20, %s27
    %p159 = scmp.eq.s32.totalorder %s158, 0
    %s161 = sadd.s32 %s160, 1
    %s162 = scalar_select %p159, %s160, %s161
    %p165 = pneg %p159
    %p166 = scmp.eq.s32.totalorder %s20, 1
    %p167 = por %p165, %p166
    %p168 = scmp.ne.s32.totalorder %s160, %s163
    %p169 = scmp.eq.s32.totalorder %s20, 0
    %p170 = por %p168, %p169
    %p171 = scmp.ne.s32.totalorder %s160, %s163
    %p172 = scmp.eq.s32.totalorder %s25, 1
    %p173 = por %p171, %p172
    %p174 = scmp.ne.s32.totalorder %s163, %s164
    %p175 = scmp.eq.s32.totalorder %s25, 0
    %p176 = por %p174, %p175
    %p177 = scmp.ne.s32.totalorder %s163, %s164
    %p178 = scmp.eq.s32.totalorder %s26, 1
    %p179 = por %p177, %p178
    %p181 = scmp.ne.s32.totalorder %s164, %s180
    %p182 = scmp.eq.s32.totalorder %s26, 0
    %p183 = por %p181, %p182
    %s184 = ssub.s32 %s20, %s27
    %p185 = scmp.eq.s32.totalorder %s184, 0
    %s187 = sadd.s32 %s186, 1
    %s188 = scalar_select %p185, %s186, %s187
    %p191 = pneg %p185
    %p192 = scmp.eq.s32.totalorder %s20, 1
    %p193 = por %p191, %p192
    %p194 = scmp.ne.s32.totalorder %s186, %s189
    %p195 = scmp.eq.s32.totalorder %s20, 0
    %p196 = por %p194, %p195
    %p197 = scmp.ne.s32.totalorder %s186, %s189
    %p198 = scmp.eq.s32.totalorder %s25, 1
    %p199 = por %p197, %p198
    %p200 = scmp.ne.s32.totalorder %s189, %s190
    %p201 = scmp.eq.s32.totalorder %s25, 0
    %p202 = por %p200, %p201
    %p203 = scmp.ne.s32.totalorder %s189, %s190
    %p204 = scmp.eq.s32.totalorder %s26, 1
    %p205 = por %p203, %p204
    %p207 = scmp.ne.s32.totalorder %s190, %s206
    %p208 = scmp.eq.s32.totalorder %s26, 0
    %p209 = por %p207, %p208
    %s210 = ssub.s32 %s20, %s27
    %p211 = scmp.eq.s32.totalorder %s210, 0
    %s213 = sadd.s32 %s212, 1
    %s214 = scalar_select %p211, %s212, %s213
    %p217 = pneg %p211
    %p218 = scmp.eq.s32.totalorder %s20, 1
    %p219 = por %p217, %p218
    %p220 = scmp.ne.s32.totalorder %s212, %s215
    %p221 = scmp.eq.s32.totalorder %s20, 0
    %p222 = por %p220, %p221
    %p223 = scmp.ne.s32.totalorder %s212, %s215
    %p224 = scmp.eq.s32.totalorder %s25, 1
    %p225 = por %p223, %p224
    %p226 = scmp.ne.s32.totalorder %s215, %s216
    %p227 = scmp.eq.s32.totalorder %s25, 0
    %p228 = por %p226, %p227
    %p229 = scmp.ne.s32.totalorder %s215, %s216
    %p230 = scmp.eq.s32.totalorder %s26, 1
    %p231 = por %p229, %p230
    %p233 = scmp.ne.s32.totalorder %s216, %s232
    %p234 = scmp.eq.s32.totalorder %s26, 0
    %p235 = por %p233, %p234
    %s236 = ssub.s32 %s20, %s27
    %p237 = scmp.eq.s32.totalorder %s236, 0
    %s239 = sadd.s32 %s238, 1
    %s240 = scalar_select %p237, %s238, %s239
    %p243 = pneg %p237
    %p244 = scmp.eq.s32.totalorder %s20, 1
    %p245 = por %p243, %p244
    %p246 = scmp.ne.s32.totalorder %s238, %s241
    %p247 = scmp.eq.s32.totalorder %s20, 0
    %p248 = por %p246, %p247
    %p249 = scmp.ne.s32.totalorder %s238, %s241
    %p250 = scmp.eq.s32.totalorder %s25, 1
    %p251 = por %p249, %p250
    %p252 = scmp.ne.s32.totalorder %s241, %s242
    %p253 = scmp.eq.s32.totalorder %s25, 0
    %p254 = por %p252, %p253
    %p255 = scmp.ne.s32.totalorder %s241, %s242
    %p256 = scmp.eq.s32.totalorder %s26, 1
    %p257 = por %p255, %p256
    %p259 = scmp.ne.s32.totalorder %s242, %s258
    %p260 = scmp.eq.s32.totalorder %s26, 0
    %p261 = por %p259, %p260
    %s262 = ssub.s32 %s20, %s27
    %p263 = scmp.eq.s32.totalorder %s262, 0
    %s265 = sadd.s32 %s264, 1
    %s266 = scalar_select %p263, %s264, %s265
    %p269 = pneg %p263
    %p270 = scmp.eq.s32.totalorder %s20, 1
    %p271 = por %p269, %p270
    %p272 = scmp.ne.s32.totalorder %s264, %s267
    %p273 = scmp.eq.s32.totalorder %s20, 0
    %p274 = por %p272, %p273
    %p275 = scmp.ne.s32.totalorder %s264, %s267
    %p276 = scmp.eq.s32.totalorder %s25, 1
    %p277 = por %p275, %p276
    %p278 = scmp.ne.s32.totalorder %s267, %s268
    %p279 = scmp.eq.s32.totalorder %s25, 0
    %p280 = por %p278, %p279
    %p281 = scmp.ne.s32.totalorder %s267, %s268
    %p282 = scmp.eq.s32.totalorder %s26, 1
    %p283 = por %p281, %p282
    %p285 = scmp.ne.s32.totalorder %s268, %s284
    %p286 = scmp.eq.s32.totalorder %s26, 0
    %p287 = por %p285, %p286
    %s288 = ssub.s32 %s20, %s27
    %p289 = scmp.eq.s32.totalorder %s288, 0
    %s291 = sadd.s32 %s290, 1
    %s292 = scalar_select %p289, %s290, %s291
    %p295 = pneg %p289
    %p296 = scmp.eq.s32.totalorder %s20, 1
    %p297 = por %p295, %p296
    %p298 = scmp.ne.s32.totalorder %s290, %s293
    %p299 = scmp.eq.s32.totalorder %s20, 0
    %p300 = por %p298, %p299
    %p301 = scmp.ne.s32.totalorder %s290, %s293
    %p302 = scmp.eq.s32.totalorder %s25, 1
    %p303 = por %p301, %p302
    %p304 = scmp.ne.s32.totalorder %s293, %s294
    %p305 = scmp.eq.s32.totalorder %s25, 0
    %p306 = por %p304, %p305
    %p307 = scmp.ne.s32.totalorder %s293, %s294
    %p308 = scmp.eq.s32.totalorder %s26, 1
    %p309 = por %p307, %p308
    %p311 = scmp.ne.s32.totalorder %s294, %s310
    %p312 = scmp.eq.s32.totalorder %s26, 0
    %p313 = por %p311, %p312
    %s314 = ssub.s32 %s20, %s27
    %p315 = scmp.eq.s32.totalorder %s314, 0
    %s317 = sadd.s32 %s316, 1
    %s318 = scalar_select %p315, %s316, %s317
    %p321 = pneg %p315
    %p322 = scmp.eq.s32.totalorder %s20, 1
    %p323 = por %p321, %p322
    %p324 = scmp.ne.s32.totalorder %s316, %s319
    %p325 = scmp.eq.s32.totalorder %s20, 0
    %p326 = por %p324, %p325
    %p327 = scmp.ne.s32.totalorder %s316, %s319
    %p328 = scmp.eq.s32.totalorder %s25, 1
    %p329 = por %p327, %p328
    %p330 = scmp.ne.s32.totalorder %s319, %s320
    %p331 = scmp.eq.s32.totalorder %s25, 0
    %p332 = por %p330, %p331
    %p333 = scmp.ne.s32.totalorder %s319, %s320
    %p334 = scmp.eq.s32.totalorder %s26, 1
    %p335 = por %p333, %p334
    %p337 = scmp.ne.s32.totalorder %s320, %s336
    %p338 = scmp.eq.s32.totalorder %s26, 0
    %p339 = por %p337, %p338
    %s340 = ssub.s32 %s20, %s27
    %p341 = scmp.eq.s32.totalorder %s340, 0
    %s343 = sadd.s32 %s342, 1
    %s344 = scalar_select %p341, %s342, %s343
    %p347 = pneg %p341
    %p348 = scmp.eq.s32.totalorder %s20, 1
    %p349 = por %p347, %p348
    %p350 = scmp.ne.s32.totalorder %s342, %s345
    %p351 = scmp.eq.s32.totalorder %s20, 0
    %p352 = por %p350, %p351
    %p353 = scmp.ne.s32.totalorder %s342, %s345
    %p354 = scmp.eq.s32.totalorder %s25, 1
    %p355 = por %p353, %p354
    %p356 = scmp.ne.s32.totalorder %s345, %s346
    %p357 = scmp.eq.s32.totalorder %s25, 0
    %p358 = por %p356, %p357
    %p359 = scmp.ne.s32.totalorder %s345, %s346
    %p360 = scmp.eq.s32.totalorder %s26, 1
    %p361 = por %p359, %p360
    %p363 = scmp.ne.s32.totalorder %s346, %s362
    %p364 = scmp.eq.s32.totalorder %s26, 0
    %p365 = por %p363, %p364
    %s366 = ssub.s32 %s20, %s27
    %p367 = scmp.eq.s32.totalorder %s366, 0
    %s369 = sadd.s32 %s368, 1
    %s370 = scalar_select %p367, %s368, %s369
    %p373 = pneg %p367
    %p374 = scmp.eq.s32.totalorder %s20, 1
    %p375 = por %p373, %p374
    %p376 = scmp.ne.s32.totalorder %s368, %s371
    %p377 = scmp.eq.s32.totalorder %s20, 0
    %p378 = por %p376, %p377
    %p379 = scmp.ne.s32.totalorder %s368, %s371
    %p380 = scmp.eq.s32.totalorder %s25, 1
    %p381 = por %p379, %p380
    %p382 = scmp.ne.s32.totalorder %s371, %s372
    %p383 = scmp.eq.s32.totalorder %s25, 0
    %p384 = por %p382, %p383
    %p385 = scmp.ne.s32.totalorder %s371, %s372
    %p386 = scmp.eq.s32.totalorder %s26, 1
    %p387 = por %p385, %p386
    %p389 = scmp.ne.s32.totalorder %s372, %s388
    %p390 = scmp.eq.s32.totalorder %s26, 0
    %p391 = por %p389, %p390
    %p392 = scmp.le.s32.totalorder 1, %s20
    %p393 = scmp.lt.s32.totalorder %s20, 3
    %p394 = pnand %p392, %p393
    %p395 = pneg %p394
    // Predicated region
    $region9: #{emotion_net.2} parent=5 // pred_check
      _
    $region10: #{emotion_net.2} parent=5 // pred_check_branch
      %397 = sbr.rel (%p394) target = $region12
    $region11: #{emotion_net.2} parent=5 // pred_region
      %s398 = ssub.s32 %s20, 1
    $region12: #{emotion_net.2} parent=5 // pred_fallthru
      _
    %p399 = scmp.lt.s32.totalorder %s20, 2
    // Predicated region
    $region13: #{emotion_net.2} parent=5 // pred_check
      %p400 = pneg %p399
    $region14: #{emotion_net.2} parent=5 // pred_check_branch
      %402 = sbr.rel (%p400) target = $region16
    $region15: #{emotion_net.2} parent=5 // pred_region
      // Predicated region
      $region17: #{emotion_net.2} parent=15 // pred_check
        %p403 = pneg %p40
      $region18: #{emotion_net.2} parent=15 // pred_check_branch
        %405 = sbr.rel (%p403) target = $region20
      $region19: #{emotion_net.2} parent=15 // pred_region
        %p406 = scmp.lt.s32.totalorder %s20, 1
        %s407 = scalar_select %p406, %s20, 1
        %s408 = smul.addr %s407, 8
        %s409 = smul.addr %s408, 2
        %s410 = scalar_lea.vmem %s0, %s409
      $region20: #{emotion_net.2} parent=15 // pred_fallthru
        _
      // Predicated region
      $region21: #{emotion_net.2} parent=15 // pred_check
        %p411 = pneg %p66
      $region22: #{emotion_net.2} parent=15 // pred_check_branch
        %413 = sbr.rel (%p411) target = $region24
      $region23: #{emotion_net.2} parent=15 // pred_region
        %p414 = scmp.lt.s32.totalorder %s20, 1
        %s415 = scalar_select %p414, %s20, 1
        %s416 = smul.addr %s415, 8
        %s417 = smul.addr %s416, 2
        %s418 = scalar_lea.vmem %s1, %s417
      $region24: #{emotion_net.2} parent=15 // pred_fallthru
        _
      // Predicated region
      $region25: #{emotion_net.2} parent=15 // pred_check
        %p419 = pneg %p92
      $region26: #{emotion_net.2} parent=15 // pred_check_branch
        %421 = sbr.rel (%p419) target = $region28
      $region27: #{emotion_net.2} parent=15 // pred_region
        %p422 = scmp.lt.s32.totalorder %s20, 1
        %s423 = scalar_select %p422, %s20, 1
        %s424 = smul.addr %s423, 8
        %s425 = smul.addr %s424, 2
        %s426 = scalar_lea.vmem %s2, %s425
      $region28: #{emotion_net.2} parent=15 // pred_fallthru
        _
      // Predicated region
      $region29: #{emotion_net.2} parent=15 // pred_check
        %p427 = pneg %p118
      $region30: #{emotion_net.2} parent=15 // pred_check_branch
        %429 = sbr.rel (%p427) target = $region32
      $region31: #{emotion_net.2} parent=15 // pred_region
        %p430 = scmp.lt.s32.totalorder %s20, 1
        %s431 = scalar_select %p430, %s20, 1
        %s432 = smul.addr %s431, 8
        %s433 = smul.addr %s432, 8
        %s434 = scalar_lea.vmem %s3, %s433
      $region32: #{emotion_net.2} parent=15 // pred_fallthru
        _
      // Predicated region
      $region33: #{emotion_net.2} parent=15 // pred_check
        %p435 = pneg %p144
      $region34: #{emotion_net.2} parent=15 // pred_check_branch
        %437 = sbr.rel (%p435) target = $region36
      $region35: #{emotion_net.2} parent=15 // pred_region
        %p438 = scmp.lt.s32.totalorder %s20, 1
        %s439 = scalar_select %p438, %s20, 1
        %s440 = scalar_lea.vmem %s4, %s439
      $region36: #{emotion_net.2} parent=15 // pred_fallthru
        _
      // Predicated region
      $region37: #{emotion_net.2} parent=15 // pred_check
        %p441 = pneg %p170
      $region38: #{emotion_net.2} parent=15 // pred_check_branch
        %443 = sbr.rel (%p441) target = $region40
      $region39: #{emotion_net.2} parent=15 // pred_region
        %p444 = scmp.lt.s32.totalorder %s20, 1
        %s445 = scalar_select %p444, %s20, 1
        %s446 = smul.addr %s445, 12
        %s447 = smul.addr %s446, 8
        %s448 = scalar_lea.vmem %s5, %s447
      $region40: #{emotion_net.2} parent=15 // pred_fallthru
        _
      // Predicated region
      $region41: #{emotion_net.2} parent=15 // pred_check
        %p449 = pneg %p196
      $region42: #{emotion_net.2} parent=15 // pred_check_branch
        %451 = sbr.rel (%p449) target = $region44
      $region43: #{emotion_net.2} parent=15 // pred_region
        %p452 = scmp.lt.s32.totalorder %s20, 1
        %s453 = scalar_select %p452, %s20, 1
        %s454 = scalar_lea.vmem %s6, %s453
      $region44: #{emotion_net.2} parent=15 // pred_fallthru
        _
      // Predicated region
      $region45: #{emotion_net.2} parent=15 // pred_check
        %p455 = pneg %p222
      $region46: #{emotion_net.2} parent=15 // pred_check_branch
        %457 = sbr.rel (%p455) target = $region48
      $region47: #{emotion_net.2} parent=15 // pred_region
        %p458 = scmp.lt.s32.totalorder %s20, 1
        %s459 = scalar_select %p458, %s20, 1
        %s460 = smul.addr %s459, 12
        %s461 = smul.addr %s460, 8
        %s462 = scalar_lea.vmem %s7, %s461
      $region48: #{emotion_net.2} parent=15 // pred_fallthru
        _
      // Predicated region
      $region49: #{emotion_net.2} parent=15 // pred_check
        %p463 = pneg %p248
      $region50: #{emotion_net.2} parent=15 // pred_check_branch
        %465 = sbr.rel (%p463) target = $region52
      $region51: #{emotion_net.2} parent=15 // pred_region
        %p466 = scmp.lt.s32.totalorder %s20, 1
        %s467 = scalar_select %p466, %s20, 1
        %s468 = scalar_lea.vmem %s8, %s467
      $region52: #{emotion_net.2} parent=15 // pred_fallthru
        _
      // Predicated region
      $region53: #{emotion_net.2} parent=15 // pred_check
        %p469 = pneg %p274
      $region54: #{emotion_net.2} parent=15 // pred_check_branch
        %471 = sbr.rel (%p469) target = $region56
      $region55: #{emotion_net.2} parent=15 // pred_region
        %p472 = scmp.lt.s32.totalorder %s20, 1
        %s473 = scalar_select %p472, %s20, 1
        %s474 = smul.addr %s473, 8
        %s475 = smul.addr %s474, 8
        %s476 = scalar_lea.vmem %s9, %s475
      $region56: #{emotion_net.2} parent=15 // pred_fallthru
        _
      // Predicated region
      $region57: #{emotion_net.2} parent=15 // pred_check
        %p477 = pneg %p300
      $region58: #{emotion_net.2} parent=15 // pred_check_branch
        %479 = sbr.rel (%p477) target = $region60
      $region59: #{emotion_net.2} parent=15 // pred_region
        %p480 = scmp.lt.s32.totalorder %s20, 1
        %s481 = scalar_select %p480, %s20, 1
        %s482 = scalar_lea.vmem %s10, %s481
      $region60: #{emotion_net.2} parent=15 // pred_fallthru
        _
      // Predicated region
      $region61: #{emotion_net.2} parent=15 // pred_check
        %p483 = pneg %p326
      $region62: #{emotion_net.2} parent=15 // pred_check_branch
        %485 = sbr.rel (%p483) target = $region64
      $region63: #{emotion_net.2} parent=15 // pred_region
        %p486 = scmp.lt.s32.totalorder %s20, 1
        %s487 = scalar_select %p486, %s20, 1
        %s488 = scalar_lea.vmem %s11, %s487
      $region64: #{emotion_net.2} parent=15 // pred_fallthru
        _
    $region16: #{emotion_net.2} parent=5 // pred_fallthru
      _
    %p489 = scmp.le.s32.totalorder 1, %s20
    %p490 = scmp.lt.s32.totalorder %s20, 3
    %p491 = pnand %p489, %p490
    %p492 = pneg %p491
    // Predicated region
    $region65: #{emotion_net.2} parent=5 // pred_check
      _
    $region66: #{emotion_net.2} parent=5 // pred_check_branch
      %494 = sbr.rel (%p491) target = $region68
    $region67: #{emotion_net.2} parent=5 // pred_region
      %s495 = ssub.s32 %s20, 1
      %p496 = scmp.lt.s32.totalorder %s25, 1
      %s497 = scalar_select %p496, %s25, 1
      %s498 = smul.addr %s497, 8
      %s499 = smul.addr %s498, 2
      %s500 = scalar_lea.vmem %s0, %s499
      %p501 = pneg %p46
      %p502 = pneg %p43
      %p503 = scmp.lt.s32.totalorder %s25, 1
      %s504 = scalar_select %p503, %s25, 1
      %s505 = smul.addr %s504, 8
      %s506 = smul.addr %s505, 2
      %s507 = scalar_lea.vmem %s1, %s506
      %p508 = pneg %p72
      %p509 = pneg %p69
      %p510 = scmp.lt.s32.totalorder %s25, 1
      %s511 = scalar_select %p510, %s25, 1
      %s512 = smul.addr %s511, 8
      %s513 = smul.addr %s512, 2
      %s514 = scalar_lea.vmem %s2, %s513
      %p515 = pneg %p98
      %p516 = pneg %p95
      %p517 = scmp.lt.s32.totalorder %s25, 1
      %s518 = scalar_select %p517, %s25, 1
      %s519 = smul.addr %s518, 8
      %s520 = smul.addr %s519, 8
      %s521 = scalar_lea.vmem %s3, %s520
      %p522 = pneg %p124
      %p523 = pneg %p121
      %p524 = scmp.lt.s32.totalorder %s25, 1
      %s525 = scalar_select %p524, %s25, 1
      %s526 = scalar_lea.vmem %s4, %s525
      %p527 = pneg %p150
      %p528 = pneg %p147
      %p529 = scmp.lt.s32.totalorder %s25, 1
      %s530 = scalar_select %p529, %s25, 1
      %s531 = smul.addr %s530, 12
      %s532 = smul.addr %s531, 8
      %s533 = scalar_lea.vmem %s5, %s532
      %p534 = pneg %p176
      %p535 = pneg %p173
      %p536 = scmp.lt.s32.totalorder %s25, 1
      %s537 = scalar_select %p536, %s25, 1
      %s538 = scalar_lea.vmem %s6, %s537
      %p539 = pneg %p202
      %p540 = pneg %p199
      %p541 = scmp.lt.s32.totalorder %s25, 1
      %s542 = scalar_select %p541, %s25, 1
      %s543 = smul.addr %s542, 12
      %s544 = smul.addr %s543, 8
      %s545 = scalar_lea.vmem %s7, %s544
      %p546 = pneg %p228
      %p547 = pneg %p225
      %p548 = scmp.lt.s32.totalorder %s25, 1
      %s549 = scalar_select %p548, %s25, 1
      %s550 = scalar_lea.vmem %s8, %s549
      %p551 = pneg %p254
      %p552 = pneg %p251
      %p553 = scmp.lt.s32.totalorder %s25, 1
      %s554 = scalar_select %p553, %s25, 1
      %s555 = smul.addr %s554, 8
      %s556 = smul.addr %s555, 8
      %s557 = scalar_lea.vmem %s9, %s556
      %p558 = pneg %p280
      %p559 = pneg %p277
      %p560 = scmp.lt.s32.totalorder %s25, 1
      %s561 = scalar_select %p560, %s25, 1
      %s562 = scalar_lea.vmem %s10, %s561
      %p563 = pneg %p306
      %p564 = pneg %p303
      %p565 = scmp.lt.s32.totalorder %s25, 1
      %s566 = scalar_select %p565, %s25, 1
      %s567 = scalar_lea.vmem %s11, %s566
      %p568 = pneg %p332
      %p569 = pneg %p329
      %p570 = pneg %p358
      %p571 = pneg %p355
      %p572 = scmp.lt.s32.totalorder %s25, 1
      %s573 = scalar_select %p572, %s25, 1
      %s574 = smul.addr %s573, 2
      %s575 = scalar_lea.vmem %s12, %s574
      %p576 = pneg %p384
      %p577 = pneg %p381
      %p578 = scmp.lt.s32.totalorder %s25, 1
      %s579 = scalar_select %p578, %s25, 1
      %s580 = smul.addr %s579, 8
      %s581 = smul.addr %s580, 2
      %s582 = scalar_lea.vmem %s13, %s581
      %p583 = scmp.lt.s32.totalorder %s25, 1
      %s584 = scalar_select %p583, %s25, 1
      %s585 = smul.addr %s584, 8
      %s586 = smul.addr %s585, 2
      %s587 = scalar_lea.vmem %s0, %s586
      %p588 = scmp.lt.s32.totalorder %s25, 1
      %s589 = scalar_select %p588, %s25, 1
      %s590 = smul.addr %s589, 8
      %s591 = smul.addr %s590, 2
      %s592 = scalar_lea.vmem %s1, %s591
      %p593 = scmp.lt.s32.totalorder %s25, 1
      %s594 = scalar_select %p593, %s25, 1
      %s595 = smul.addr %s594, 8
      %s596 = smul.addr %s595, 2
      %s597 = scalar_lea.vmem %s2, %s596
      %p598 = scmp.lt.s32.totalorder %s25, 1
      %s599 = scalar_select %p598, %s25, 1
      %s600 = smul.addr %s599, 8
      %s601 = smul.addr %s600, 8
      %s602 = scalar_lea.vmem %s3, %s601
      %p603 = scmp.lt.s32.totalorder %s25, 1
      %s604 = scalar_select %p603, %s25, 1
      %s605 = scalar_lea.vmem %s4, %s604
      %p606 = scmp.lt.s32.totalorder %s25, 1
      %s607 = scalar_select %p606, %s25, 1
      %s608 = smul.addr %s607, 12
      %s609 = smul.addr %s608, 8
      %s610 = scalar_lea.vmem %s5, %s609
      %p611 = scmp.lt.s32.totalorder %s25, 1
      %s612 = scalar_select %p611, %s25, 1
      %s613 = scalar_lea.vmem %s6, %s612
      %p614 = scmp.lt.s32.totalorder %s25, 1
      %s615 = scalar_select %p614, %s25, 1
      %s616 = smul.addr %s615, 12
      %s617 = smul.addr %s616, 8
      %s618 = scalar_lea.vmem %s7, %s617
      %p619 = scmp.lt.s32.totalorder %s25, 1
      %s620 = scalar_select %p619, %s25, 1
      %s621 = scalar_lea.vmem %s8, %s620
      %p622 = scmp.lt.s32.totalorder %s25, 1
      %s623 = scalar_select %p622, %s25, 1
      %s624 = smul.addr %s623, 8
      %s625 = smul.addr %s624, 8
      %s626 = scalar_lea.vmem %s9, %s625
      %p627 = scmp.lt.s32.totalorder %s25, 1
      %s628 = scalar_select %p627, %s25, 1
      %s629 = scalar_lea.vmem %s10, %s628
      %p630 = scmp.lt.s32.totalorder %s25, 1
      %s631 = scalar_select %p630, %s25, 1
      %s632 = scalar_lea.vmem %s11, %s631
      %p633 = scmp.lt.s32.totalorder %s25, 1
      %s634 = scalar_select %p633, %s25, 1
      %s635 = smul.addr %s634, 2
      %s636 = scalar_lea.vmem %s12, %s635
      %p637 = scmp.lt.s32.totalorder %s25, 1
      %s638 = scalar_select %p637, %s25, 1
      %s639 = smul.addr %s638, 8
      %s640 = smul.addr %s639, 2
      %s641 = scalar_lea.vmem %s13, %s640
      %v642 = vld [vmem:[%s602] sm:$0xff]
      %v643 = vld [vmem:[%s602 + $0x8] sm:$0xff]
      %v644 = vld [vmem:[%s602 + $0x10] sm:$0xff]
      %v645 = vld [vmem:[%s602 + $0x18] sm:$0xff]
      %v646 = vld [vmem:[%s602 + $0x20] sm:$0xff]
      %v647 = vld [vmem:[%s602 + $0x28] sm:$0xff]
      %v648 = vld [vmem:[%s602 + $0x30] sm:$0xff]
      %v649 = vld [vmem:[%s602 + $0x38] sm:$0xff]
      %v650 = vld [vmem:[%s605] sm:$0x1]
      %v651 = vld [vmem:[%s610] sm:$0xff]
      %v652 = vld [vmem:[%s610 + $0x8] sm:$0xff]
      %v653 = vld [vmem:[%s610 + $0x10] sm:$0xff]
      %v654 = vld [vmem:[%s610 + $0x18] sm:$0xff]
      %v655 = vld [vmem:[%s610 + $0x20] sm:$0xff]
      %v656 = vld [vmem:[%s610 + $0x28] sm:$0xff]
      %v657 = vld [vmem:[%s610 + $0x30] sm:$0xff]
      %v658 = vld [vmem:[%s610 + $0x38] sm:$0xff]
      %v659 = vld [vmem:[%s610 + $0x40] sm:$0xff]
      %v660 = vld [vmem:[%s610 + $0x48] sm:$0xff]
      %v661 = vld [vmem:[%s610 + $0x50] sm:$0xff]
      %v662 = vld [vmem:[%s610 + $0x58] sm:$0xff]
      %v663 = vld [vmem:[%s613] sm:$0x1]
      %v664 = vld [vmem:[%s618] sm:$0xff]
      %v665 = vld [vmem:[%s618 + $0x8] sm:$0xff]
      %v666 = vld [vmem:[%s618 + $0x10] sm:$0xff]
      %v667 = vld [vmem:[%s618 + $0x18] sm:$0xff]
      %v668 = vld [vmem:[%s618 + $0x20] sm:$0xff]
      %v669 = vld [vmem:[%s618 + $0x28] sm:$0xff]
      %v670 = vld [vmem:[%s618 + $0x30] sm:$0xff]
      %v671 = vld [vmem:[%s618 + $0x38] sm:$0xff]
      %v672 = vld [vmem:[%s618 + $0x40] sm:$0xff]
      %v673 = vld [vmem:[%s618 + $0x48] sm:$0xff]
      %v674 = vld [vmem:[%s618 + $0x50] sm:$0xff]
      %v675 = vld [vmem:[%s618 + $0x58] sm:$0xff]
      %v676 = vld [vmem:[%s621] sm:$0x1]
      %v677 = vld [vmem:[%s626] sm:$0xff]
      %v678 = vld [vmem:[%s626 + $0x8] sm:$0xff]
      %v679 = vld [vmem:[%s626 + $0x10] sm:$0xff]
      %v680 = vld [vmem:[%s626 + $0x18] sm:$0xff]
      %v681 = vld [vmem:[%s626 + $0x20] sm:$0xff]
      %v682 = vld [vmem:[%s626 + $0x28] sm:$0xff]
      %v683 = vld [vmem:[%s626 + $0x30] sm:$0xff]
      %v684 = vld [vmem:[%s626 + $0x38] sm:$0xff]
      %v685 = vld [vmem:[%s629] sm:$0x1]
      %v686 = vld [vmem:[%s632] sm:$0x1]
      %v687 = vld [vmem:[%s587] sm:$0x3]
      %v688 = vld [vmem:[%s592] sm:$0x3]
      %v689 = vld [vmem:[%s597] sm:$0x3]
      %v690 = vperm.slane %v689, 0
      %v691 = vlaneseq
      %v692 = vshrl.u32 %v691, 7
      %694 = vset.pattern.permute.xlu0 %v692
      %695 = vperm.xlu0 %694, %v690
      %v696 = vpop.permute.xlu0 %695
      %v697 = vperm.slane %v689, 1
      %v698 = vlaneseq
      %v699 = vshrl.u32 %v698, 7
      %701 = vset.pattern.permute.xlu0 %v699
      %702 = vperm.xlu0 %701, %v697
      %v703 = vpop.permute.xlu0 %702
      %v704 = vmul.f32 %v696, 0.0
      %v705 = vmul.f32 %v703, 0.0
      %vm706 = vcmask 1041408
      %v707 = vsel %vm706, %v704, 0.0
      %v708 = vrot.slane %v707, 4
      %v709 = vadd.f32 %v707, %v708
      %v710 = vrot.slane %v709, 2
      %v711 = vadd.f32 %v709, %v710
      %v712 = vrot.slane %v711, 1
      %v713 = vadd.f32 %v711, %v712
      %v714 = vsel %vm706, %v705, 0.0
      %v715 = vrot.slane %v714, 4
      %v716 = vadd.f32 %v714, %v715
      %v717 = vrot.slane %v716, 2
      %v718 = vadd.f32 %v716, %v717
      %v719 = vrot.slane %v718, 1
      %v720 = vadd.f32 %v718, %v719
      %vm723 = vcmask 1041409
      %v724 = vsel %vm723, %v720, %v713
      %727 = vrot.lane.b32.xlu0 %v687, 32
      %v728 = vpop.permute.xlu0 %727
      %vm730 = vcmask 130048
      %vm731 = vcmask 261120
      %v732 = vsel %vm731, %v724, %v728
      %vm733 = vcmask 392192
      %v734 = vsel %vm733, %v732, 0.0
      %v736 = vperm.slane %v650, 0
      %vm738 = vcmask 523264
      %v740 = vsel %vm738, %v734, 0
      %742 = vmatpush.msra.mxu0 0.0
      %743 = vmatpush.msra.mxu0 0.0
      %744 = vmatpush.msra.mxu0 0.0
      %745 = vmatpush.msra.mxu0 0.0
      %746 = vmatpush.msra.mxu0 0.0
      %747 = vmatpush.msra.mxu0 0.0
      %748 = vmatpush.msra.mxu0 0.0
      %749 = vmatpush.msra.mxu0 0.0
      %750 = vmatpush.msra.mxu0 %v649
      %751 = vmatpush.msra.mxu0 %v648
      %752 = vmatpush.msra.mxu0 %v647
      %753 = vmatpush.msra.mxu0 %v646
      %754 = vmatpush.msra.mxu0 %v645
      %755 = vmatpush.msra.mxu0 %v644
      %756 = vmatpush.msra.mxu0 %v643
      %757 = vmatpush.msra.mxu0 %v642
      %758 = vmatmul.f32.gmra.mxu0 %v740
      %v759 = vpop.f32.mrf.mxu0
      %v760 = vadd.f32 %v736, %v759
      %761 = vdwg.mxu0
      %v762 = vxor.u32 %v760, 2147483648
      %v763 = vmul.f32 %v762, 1.442695
      %v764 = vpow.pop %v763
      %v765 = vadd.f32 %v764, 1.0
      %v766 = vrcp.pop %v765
      %v767 = vmul.f32 %v765, %v766
      %v768 = vsub.f32 1.0, %v767
      %v769 = vmul.f32 %v766, %v768
      %v770 = vadd.f32 %v766, %v769
      %vm771 = vweird.f32 %v765
      %vm772 = vweird.f32 %v766
      %vm773 = vmor %vm771, %vm772
      %v774 = vsel %vm773, %v766, %v770
      %v775 = vand.u32 2147483647, %v765
      %vm776 = vcmp.eq.f32.partialorder %v775, 8.507059e+37
      %v777 = vand.u32 %v765, 2147483648
      %v778 = vor.u32 1.1754944e-38, %v777
      %v779 = vsel %vm776, %v778, %v774
      %v780 = vmul.f32 1.0, %v779
      %782 = vrot.lane.b32.xlu0 %v760, 80
      %v783 = vpop.permute.xlu0 %782
      %v785 = vmul.f32 %v780, %v783
      %787 = vrot.lane.b32.xlu0 %v785, 32
      %v788 = vpop.permute.xlu0 %787
      %v790 = vadd.f32 %v760, %v788
      %v791 = vtanh.pop %v790
      %v792 = vsub.f32 1.0, %v780
      %794 = vrot.lane.b32.xlu0 %v791, 112
      %v795 = vpop.permute.xlu0 %794
      %v797 = vmul.f32 %v792, %v795
      %v798 = vmul.f32 %v780, 0.0
      %v799 = vadd.f32 %v797, %v798
      %v800 = vrot.slane %v687, 1
      %v801 = vperm.slane %v687, 0
      %v802 = vperm.slane %v800, 0
      %v804 = vrot.slane %v799, 1
      %v806 = vperm.slane %v799, 0
      %v807 = vperm.slane %v804, 0
      %808 = vst [vmem:[#allocation1] ss:$4 sm:$0xff] %v801
      %s809 = scalar_lea.vmem [#allocation1], 1
      %810 = vst [vmem:[%s809] ss:$4 sm:$0xff] %v802
      %v811 = vld.sshfl [vmem:[#allocation1] sm:$0xff pattern:$0x73625140]
      %812 = vrot.lane.b32.xlu0 %v811, 16
      %v813 = vpop.permute.xlu0 %812
      %815 = vst [vmem:[#allocation1] ss:$4 sm:$0xff] %v801
      %s816 = scalar_lea.vmem [#allocation1], 1
      %817 = vst [vmem:[%s816] ss:$4 sm:$0xff] %v802
      %v818 = vld.sshfl [vmem:[#allocation1] sm:$0xff pattern:$0x73625140]
      %819 = vrot.lane.b32.xlu0 %v818, 48
      %v820 = vpop.permute.xlu0 %819
      %822 = vst [vmem:[#allocation1] ss:$4 sm:$0xff] %v806
      %s823 = scalar_lea.vmem [#allocation1], 1
      %824 = vst [vmem:[%s823] ss:$4 sm:$0xff] %v807
      %v825 = vld.sshfl [vmem:[#allocation1] sm:$0xff pattern:$0x73625140]
      %826 = vrot.lane.b32.xlu0 %v825, 48
      %v827 = vpop.permute.xlu0 %826
      %v829 = vsel %vm730, 0.0, %v813
      %v830 = vsel %vm731, %v829, 0.0
      %v831 = vsel %vm733, %v830, %v820
      %v832 = vsel %vm738, %v831, %v827
      %vm833 = vcmask 654336
      %v834 = vsel %vm833, %v832, 0.0
      %v836 = vperm.slane %v663, 0
      %vm838 = vcmask 785408
      %v840 = vsel %vm838, %v834, 0
      %842 = vmatpush.msra.mxu0 0.0
      %843 = vmatpush.msra.mxu0 0.0
      %844 = vmatpush.msra.mxu0 0.0
      %845 = vmatpush.msra.mxu0 0.0
      %846 = vmatpush.msra.mxu0 %v662
      %847 = vmatpush.msra.mxu0 %v661
      %848 = vmatpush.msra.mxu0 %v660
      %849 = vmatpush.msra.mxu0 %v659
      %850 = vmatpush.msra.mxu0 %v658
      %851 = vmatpush.msra.mxu0 %v657
      %852 = vmatpush.msra.mxu0 %v656
      %853 = vmatpush.msra.mxu0 %v655
      %854 = vmatpush.msra.mxu0 %v654
      %855 = vmatpush.msra.mxu0 %v653
      %856 = vmatpush.msra.mxu0 %v652
      %857 = vmatpush.msra.mxu0 %v651
      %858 = vmatmul.f32.gmra.mxu0 %v840
      %v859 = vpop.f32.mrf.mxu0
      %v860 = vadd.f32 %v836, %v859
      %861 = vdwg.mxu0
      %v862 = vxor.u32 %v860, 2147483648
      %v863 = vmul.f32 %v862, 1.442695
      %v864 = vpow.pop %v863
      %v865 = vadd.f32 %v864, 1.0
      %v866 = vrcp.pop %v865
      %v867 = vmul.f32 %v865, %v866
      %v868 = vsub.f32 1.0, %v867
      %v869 = vmul.f32 %v866, %v868
      %v870 = vadd.f32 %v866, %v869
      %vm871 = vweird.f32 %v865
      %vm872 = vweird.f32 %v866
      %vm873 = vmor %vm871, %vm872
      %v874 = vsel %vm873, %v866, %v870
      %v875 = vand.u32 2147483647, %v865
      %vm876 = vcmp.eq.f32.partialorder %v875, 8.507059e+37
      %v877 = vand.u32 %v865, 2147483648
      %v878 = vor.u32 1.1754944e-38, %v877
      %v879 = vsel %vm876, %v878, %v874
      %v880 = vmul.f32 1.0, %v879
      %882 = vrot.lane.b32.xlu0 %v860, 80
      %v883 = vpop.permute.xlu0 %882
      %v885 = vmul.f32 %v880, %v883
      %887 = vrot.lane.b32.xlu0 %v885, 32
      %v888 = vpop.permute.xlu0 %887
      %v890 = vadd.f32 %v860, %v888
      %v891 = vtanh.pop %v890
      %v892 = vsub.f32 1.0, %v880
      %894 = vrot.lane.b32.xlu0 %v891, 112
      %v895 = vpop.permute.xlu0 %894
      %v897 = vmul.f32 %v892, %v895
      %v898 = vmul.f32 %v880, 0.0
      %v899 = vadd.f32 %v897, %v898
      %v901 = vrot.slane %v899, 2
      %903 = vst [vmem:[#allocation1] ss:$4 sm:$0xff] %v899
      %v904 = vld.sshfl [vmem:[#allocation1] sm:$0xff pattern:$0x73625140]
      %s905 = scalar_lea.vmem [#allocation1], 32
      %906 = vst [vmem:[%s905] ss:$4 sm:$0xff] %v901
      %v907 = vld.sshfl [vmem:[#allocation1 + $0x20] sm:$0xff pattern:$0x73625140]
      %908 = vrot.lane.b32.xlu0 %v904, 112
      %v909 = vpop.permute.xlu0 %908
      %910 = vrot.lane.b32.xlu0 %v907, 112
      %v911 = vpop.permute.xlu0 %910
      %v914 = vmul.f32 %v696, %v909
      %v915 = vmul.f32 %v703, %v911
      %vm916 = vcmask 123904
      %v917 = vsel %vm916, %v914, 0.0
      %v918 = vrot.slane %v917, 4
      %v919 = vadd.f32 %v917, %v918
      %v920 = vrot.slane %v919, 2
      %v921 = vadd.f32 %v919, %v920
      %v922 = vrot.slane %v921, 1
      %v923 = vadd.f32 %v921, %v922
      %v924 = vsel %vm916, %v915, 0.0
      %v925 = vrot.slane %v924, 4
      %v926 = vadd.f32 %v924, %v925
      %v927 = vrot.slane %v926, 2
      %v928 = vadd.f32 %v926, %v927
      %v929 = vrot.slane %v928, 1
      %v930 = vadd.f32 %v928, %v929
      %931 = vst [vmem:[#allocation1] ss:$4 sm:$0xff] %v899
      %v932 = vld.sshfl [vmem:[#allocation1] sm:$0xff pattern:$0x73625140]
      %s933 = scalar_lea.vmem [#allocation1], 32
      %934 = vst [vmem:[%s933] ss:$4 sm:$0xff] %v901
      %v935 = vld.sshfl [vmem:[#allocation1 + $0x20] sm:$0xff pattern:$0x73625140]
      %936 = vrot.lane.b32.xlu0 %v932, 48
      %v937 = vpop.permute.xlu0 %936
      %938 = vrot.lane.b32.xlu0 %v935, 48
      %v939 = vpop.permute.xlu0 %938
      %v942 = vmul.f32 %v696, %v937
      %v943 = vmul.f32 %v703, %v939
      %v944 = vsel %vm916, %v942, 0.0
      %v945 = vrot.slane %v944, 4
      %v946 = vadd.f32 %v944, %v945
      %v947 = vrot.slane %v946, 2
      %v948 = vadd.f32 %v946, %v947
      %v949 = vrot.slane %v948, 1
      %v950 = vadd.f32 %v948, %v949
      %v951 = vsel %vm916, %v943, 0.0
      %v952 = vrot.slane %v951, 4
      %v953 = vadd.f32 %v951, %v952
      %v954 = vrot.slane %v953, 2
      %v955 = vadd.f32 %v953, %v954
      %v956 = vrot.slane %v955, 1
      %v957 = vadd.f32 %v955, %v956
      %960 = vst [vmem:[#allocation1] ss:$4 sm:$0xff] %v923
      %s961 = scalar_lea.vmem [#allocation1], 1
      %962 = vst [vmem:[%s961] ss:$4 sm:$0xff] %v930
      %v963 = vld.sshfl [vmem:[#allocation1] sm:$0xff pattern:$0x73625140]
      %965 = vst [vmem:[#allocation1] ss:$4 sm:$0xff] %v801
      %s966 = scalar_lea.vmem [#allocation1], 1
      %967 = vst [vmem:[%s966] ss:$4 sm:$0xff] %v802
      %v968 = vld.sshfl [vmem:[#allocation1] sm:$0xff pattern:$0x73625140]
      %969 = vrot.lane.b32.xlu0 %v968, 16
      %v970 = vpop.permute.xlu0 %969
      %972 = vst [vmem:[#allocation1] ss:$4 sm:$0xff] %v801
      %s973 = scalar_lea.vmem [#allocation1], 1
      %974 = vst [vmem:[%s973] ss:$4 sm:$0xff] %v802
      %v975 = vld.sshfl [vmem:[#allocation1] sm:$0xff pattern:$0x73625140]
      %976 = vrot.lane.b32.xlu0 %v975, 48
      %v977 = vpop.permute.xlu0 %976
      %981 = vst [vmem:[#allocation1] ss:$4 sm:$0xff] %v950
      %s982 = scalar_lea.vmem [#allocation1], 1
      %983 = vst [vmem:[%s982] ss:$4 sm:$0xff] %v957
      %v984 = vld.sshfl [vmem:[#allocation1] sm:$0xff pattern:$0x73625140]
      %985 = vrot.lane.b32.xlu0 %v984, 64
      %v986 = vpop.permute.xlu0 %985
      %v988 = vsel %vm730, %v963, %v970
      %v989 = vsel %vm731, %v988, 0.0
      %v990 = vsel %vm733, %v989, %v977
      %v991 = vsel %vm738, %v990, %v986
      %v992 = vsel %vm833, %v991, 0.0
      %v994 = vperm.slane %v676, 0
      %v997 = vsel %vm838, %v992, 0
      %999 = vmatpush.msra.mxu0 0.0
      %1000 = vmatpush.msra.mxu0 0.0
      %1001 = vmatpush.msra.mxu0 0.0
      %1002 = vmatpush.msra.mxu0 0.0
      %1003 = vmatpush.msra.mxu0 %v675
      %1004 = vmatpush.msra.mxu0 %v674
      %1005 = vmatpush.msra.mxu0 %v673
      %1006 = vmatpush.msra.mxu0 %v672
      %1007 = vmatpush.msra.mxu0 %v671
      %1008 = vmatpush.msra.mxu0 %v670
      %1009 = vmatpush.msra.mxu0 %v669
      %1010 = vmatpush.msra.mxu0 %v668
      %1011 = vmatpush.msra.mxu0 %v667
      %1012 = vmatpush.msra.mxu0 %v666
      %1013 = vmatpush.msra.mxu0 %v665
      %1014 = vmatpush.msra.mxu0 %v664
      %1015 = vmatmul.f32.gmra.mxu0 %v997
      %v1016 = vpop.f32.mrf.mxu0
      %v1017 = vadd.f32 %v994, %v1016
      %1018 = vdwg.mxu0
      %v1019 = vxor.u32 %v1017, 2147483648
      %v1020 = vmul.f32 %v1019, 1.442695
      %v1021 = vpow.pop %v1020
      %v1022 = vadd.f32 %v1021, 1.0
      %v1023 = vrcp.pop %v1022
      %v1024 = vmul.f32 %v1022, %v1023
      %v1025 = vsub.f32 1.0, %v1024
      %v1026 = vmul.f32 %v1023, %v1025
      %v1027 = vadd.f32 %v1023, %v1026
      %vm1028 = vweird.f32 %v1022
      %vm1029 = vweird.f32 %v1023
      %vm1030 = vmor %vm1028, %vm1029
      %v1031 = vsel %vm1030, %v1023, %v1027
      %v1032 = vand.u32 2147483647, %v1022
      %vm1033 = vcmp.eq.f32.partialorder %v1032, 8.507059e+37
      %v1034 = vand.u32 %v1022, 2147483648
      %v1035 = vor.u32 1.1754944e-38, %v1034
      %v1036 = vsel %vm1033, %v1035, %v1031
      %v1037 = vmul.f32 1.0, %v1036
      %1039 = vrot.lane.b32.xlu0 %v1017, 80
      %v1040 = vpop.permute.xlu0 %1039
      %v1042 = vmul.f32 %v1037, %v1040
      %1044 = vrot.lane.b32.xlu0 %v1042, 32
      %v1045 = vpop.permute.xlu0 %1044
      %v1047 = vadd.f32 %v1017, %v1045
      %v1048 = vtanh.pop %v1047
      %v1049 = vsub.f32 1.0, %v1037
      %1051 = vrot.lane.b32.xlu0 %v1048, 112
      %v1052 = vpop.permute.xlu0 %1051
      %v1054 = vmul.f32 %v1049, %v1052
      %v1055 = vmul.f32 %v1037, 0.0
      %v1056 = vadd.f32 %v1054, %v1055
      %v1058 = vrot.slane %v1056, 2
      %v1060 = vperm.slane %v688, 0
      %v1061 = vlaneseq
      %v1062 = vshrl.u32 %v1061, 7
      %1064 = vset.pattern.permute.xlu0 %v1062
      %1065 = vperm.xlu0 %1064, %v1060
      %v1066 = vpop.permute.xlu0 %1065
      %v1067 = vperm.slane %v688, 1
      %v1068 = vlaneseq
      %v1069 = vshrl.u32 %v1068, 7
      %1071 = vset.pattern.permute.xlu0 %v1069
      %1072 = vperm.xlu0 %1071, %v1067
      %v1073 = vpop.permute.xlu0 %1072
      %v1074 = vmul.f32 %v1056, %v1066
      %v1075 = vmul.f32 %v1058, %v1073
      %v1076 = vsub.f32 1.0, %v1066
      %v1077 = vsub.f32 1.0, %v1073
      %v1078 = vmul.f32 %v899, %v1076
      %v1079 = vmul.f32 %v901, %v1077
      %v1080 = vadd.f32 %v1074, %v1078
      %v1081 = vadd.f32 %v1075, %v1079
      %v1082 = vmul.f32 %v899, %v1066
      %v1083 = vmul.f32 %v901, %v1073
      %v1084 = vmul.f32 %v1056, %v1076
      %v1085 = vmul.f32 %v1058, %v1077
      %v1086 = vadd.f32 %v1082, %v1084
      %v1087 = vadd.f32 %v1083, %v1085
      %1090 = vst [vmem:[#allocation1] ss:$4 sm:$0xff] %v1080
      %v1091 = vld.sshfl [vmem:[#allocation1] sm:$0xff pattern:$0x73625140]
      %s1092 = scalar_lea.vmem [#allocation1], 32
      %1093 = vst [vmem:[%s1092] ss:$4 sm:$0xff] %v1081
      %v1094 = vld.sshfl [vmem:[#allocation1 + $0x20] sm:$0xff pattern:$0x73625140]
      %1095 = vrot.lane.b32.xlu0 %v1091, 48
      %v1096 = vpop.permute.xlu0 %1095
      %1097 = vrot.lane.b32.xlu0 %v1094, 48
      %v1098 = vpop.permute.xlu0 %1097
      %v1101 = vmul.f32 %v696, %v1096
      %v1102 = vmul.f32 %v703, %v1098
      %v1103 = vsel %vm916, %v1101, 0.0
      %v1104 = vrot.slane %v1103, 4
      %v1105 = vadd.f32 %v1103, %v1104
      %v1106 = vrot.slane %v1105, 2
      %v1107 = vadd.f32 %v1105, %v1106
      %v1108 = vrot.slane %v1107, 1
      %v1109 = vadd.f32 %v1107, %v1108
      %v1110 = vsel %vm916, %v1102, 0.0
      %v1111 = vrot.slane %v1110, 4
      %v1112 = vadd.f32 %v1110, %v1111
      %v1113 = vrot.slane %v1112, 2
      %v1114 = vadd.f32 %v1112, %v1113
      %v1115 = vrot.slane %v1114, 1
      %v1116 = vadd.f32 %v1114, %v1115
      %v1119 = vsel %vm723, %v1116, %v1109
      %1120 = vrot.lane.b32.xlu0 %v1119, 16
      %v1121 = vpop.permute.xlu0 %1120
      %1123 = vrot.lane.b32.xlu0 %v799, 16
      %v1124 = vpop.permute.xlu0 %1123
      %v1126 = vsel %vm730, %v687, %v1121
      %v1127 = vsel %vm731, %v1126, %v1124
      %v1128 = vsel %vm733, %v1127, 0.0
      %v1130 = vperm.slane %v685, 0
      %v1133 = vsel %vm738, %v1128, 0
      %1135 = vmatpush.msra.mxu0 0.0
      %1136 = vmatpush.msra.mxu0 0.0
      %1137 = vmatpush.msra.mxu0 0.0
      %1138 = vmatpush.msra.mxu0 0.0
      %1139 = vmatpush.msra.mxu0 0.0
      %1140 = vmatpush.msra.mxu0 0.0
      %1141 = vmatpush.msra.mxu0 0.0
      %1142 = vmatpush.msra.mxu0 0.0
      %1143 = vmatpush.msra.mxu0 %v684
      %1144 = vmatpush.msra.mxu0 %v683
      %1145 = vmatpush.msra.mxu0 %v682
      %1146 = vmatpush.msra.mxu0 %v681
      %1147 = vmatpush.msra.mxu0 %v680
      %1148 = vmatpush.msra.mxu0 %v679
      %1149 = vmatpush.msra.mxu0 %v678
      %1150 = vmatpush.msra.mxu0 %v677
      %1151 = vmatmul.f32.gmra.mxu0 %v1133
      %v1152 = vpop.f32.mrf.mxu0
      %v1153 = vadd.f32 %v1130, %v1152
      %1154 = vdwg.mxu0
      %v1155 = vxor.u32 %v1153, 2147483648
      %v1156 = vmul.f32 %v1155, 1.442695
      %v1157 = vpow.pop %v1156
      %v1158 = vadd.f32 %v1157, 1.0
      %v1159 = vrcp.pop %v1158
      %v1160 = vmul.f32 %v1158, %v1159
      %v1161 = vsub.f32 1.0, %v1160
      %v1162 = vmul.f32 %v1159, %v1161
      %v1163 = vadd.f32 %v1159, %v1162
      %vm1164 = vweird.f32 %v1158
      %vm1165 = vweird.f32 %v1159
      %vm1166 = vmor %vm1164, %vm1165
      %v1167 = vsel %vm1166, %v1159, %v1163
      %v1168 = vand.u32 2147483647, %v1158
      %vm1169 = vcmp.eq.f32.partialorder %v1168, 8.507059e+37
      %v1170 = vand.u32 %v1158, 2147483648
      %v1171 = vor.u32 1.1754944e-38, %v1170
      %v1172 = vsel %vm1169, %v1171, %v1167
      %v1173 = vmul.f32 1.0, %v1172
      %1175 = vrot.lane.b32.xlu0 %v1153, 80
      %v1176 = vpop.permute.xlu0 %1175
      %v1178 = vmul.f32 %v1173, %v1176
      %1180 = vrot.lane.b32.xlu0 %v1178, 32
      %v1181 = vpop.permute.xlu0 %1180
      %v1183 = vadd.f32 %v1153, %v1181
      %v1184 = vtanh.pop %v1183
      %v1185 = vsub.f32 1.0, %v1173
      %1187 = vrot.lane.b32.xlu0 %v1184, 112
      %v1188 = vpop.permute.xlu0 %1187
      %v1190 = vmul.f32 %v1185, %v1188
      %v1191 = vmul.f32 %v1173, 0.0
      %v1192 = vadd.f32 %v1190, %v1191
      %s1193 = scalar_lea.vmem %s587, 2
      %v1194 = vld [vmem:[%s1193] sm:$0x3]
      %s1195 = scalar_lea.vmem %s592, 2
      %v1196 = vld [vmem:[%s1195] sm:$0x3]
      %s1197 = scalar_lea.vmem %s597, 2
      %v1198 = vld [vmem:[%s1197] sm:$0x3]
      %v1199 = vperm.slane %v1198, 0
      %v1200 = vlaneseq
      %v1201 = vshrl.u32 %v1200, 7
      %1203 = vset.pattern.permute.xlu0 %v1201
      %1204 = vperm.xlu0 %1203, %v1199
      %v1205 = vpop.permute.xlu0 %1204
      %v1206 = vperm.slane %v1198, 1
      %v1207 = vlaneseq
      %v1208 = vshrl.u32 %v1207, 7
      %1210 = vset.pattern.permute.xlu0 %v1208
      %1211 = vperm.xlu0 %1210, %v1206
      %v1212 = vpop.permute.xlu0 %1211
      %1213 = vst [vmem:[#allocation1] ss:$4 sm:$0xff] %v1080
      %v1214 = vld.sshfl [vmem:[#allocation1] sm:$0xff pattern:$0x73625140]
      %s1215 = scalar_lea.vmem [#allocation1], 32
      %1216 = vst [vmem:[%s1215] ss:$4 sm:$0xff] %v1081
      %v1217 = vld.sshfl [vmem:[#allocation1 + $0x20] sm:$0xff pattern:$0x73625140]
      %1218 = vrot.lane.b32.xlu0 %v1214, 48
      %v1219 = vpop.permute.xlu0 %1218
      %1220 = vrot.lane.b32.xlu0 %v1217, 48
      %v1221 = vpop.permute.xlu0 %1220
      %v1224 = vmul.f32 %v1205, %v1219
      %v1225 = vmul.f32 %v1212, %v1221
      %v1226 = vsel %vm916, %v1224, 0.0
      %v1227 = vrot.slane %v1226, 4
      %v1228 = vadd.f32 %v1226, %v1227
      %v1229 = vrot.slane %v1228, 2
      %v1230 = vadd.f32 %v1228, %v1229
      %v1231 = vrot.slane %v1230, 1
      %v1232 = vadd.f32 %v1230, %v1231
      %v1233 = vsel %vm916, %v1225, 0.0
      %v1234 = vrot.slane %v1233, 4
      %v1235 = vadd.f32 %v1233, %v1234
      %v1236 = vrot.slane %v1235, 2
      %v1237 = vadd.f32 %v1235, %v1236
      %v1238 = vrot.slane %v1237, 1
      %v1239 = vadd.f32 %v1237, %v1238
      %1242 = vst [vmem:[#allocation1] ss:$4 sm:$0xff] %v1086
      %v1243 = vld.sshfl [vmem:[#allocation1] sm:$0xff pattern:$0x73625140]
      %s1244 = scalar_lea.vmem [#allocation1], 32
      %1245 = vst [vmem:[%s1244] ss:$4 sm:$0xff] %v1087
      %v1246 = vld.sshfl [vmem:[#allocation1 + $0x20] sm:$0xff pattern:$0x73625140]
      %1247 = vrot.lane.b32.xlu0 %v1243, 112
      %v1248 = vpop.permute.xlu0 %1247
      %1249 = vrot.lane.b32.xlu0 %v1246, 112
      %v1250 = vpop.permute.xlu0 %1249
      %v1253 = vmul.f32 %v1205, %v1248
      %v1254 = vmul.f32 %v1212, %v1250
      %v1255 = vsel %vm916, %v1253, 0.0
      %v1256 = vrot.slane %v1255, 4
      %v1257 = vadd.f32 %v1255, %v1256
      %v1258 = vrot.slane %v1257, 2
      %v1259 = vadd.f32 %v1257, %v1258
      %v1260 = vrot.slane %v1259, 1
      %v1261 = vadd.f32 %v1259, %v1260
      %v1262 = vsel %vm916, %v1254, 0.0
      %v1263 = vrot.slane %v1262, 4
      %v1264 = vadd.f32 %v1262, %v1263
      %v1265 = vrot.slane %v1264, 2
      %v1266 = vadd.f32 %v1264, %v1265
      %v1267 = vrot.slane %v1266, 1
      %v1268 = vadd.f32 %v1266, %v1267
      %v1271 = vsel %vm723, %v1239, %v1232
      %v1275 = vsel %vm723, %v1268, %v1261
      %1276 = vrot.lane.b32.xlu0 %v1275, 16
      %v1277 = vpop.permute.xlu0 %1276
      %1280 = vrot.lane.b32.xlu0 %v1194, 32
      %v1281 = vpop.permute.xlu0 %1280
      %1283 = vrot.lane.b32.xlu0 %v799, 32
      %v1284 = vpop.permute.xlu0 %1283
      %v1286 = vsel %vm730, %v1271, %v1277
      %v1287 = vsel %vm731, %v1286, %v1281
      %v1288 = vsel %vm733, %v1287, %v1284
      %v1290 = vsel %vm738, %v1288, 0
      %1292 = vmatpush.msra.mxu0 0.0
      %1293 = vmatpush.msra.mxu0 0.0
      %1294 = vmatpush.msra.mxu0 0.0
      %1295 = vmatpush.msra.mxu0 0.0
      %1296 = vmatpush.msra.mxu0 0.0
      %1297 = vmatpush.msra.mxu0 0.0
      %1298 = vmatpush.msra.mxu0 0.0
      %1299 = vmatpush.msra.mxu0 0.0
      %1300 = vmatpush.msra.mxu0 %v649
      %1301 = vmatpush.msra.mxu0 %v648
      %1302 = vmatpush.msra.mxu0 %v647
      %1303 = vmatpush.msra.mxu0 %v646
      %1304 = vmatpush.msra.mxu0 %v645
      %1305 = vmatpush.msra.mxu0 %v644
      %1306 = vmatpush.msra.mxu0 %v643
      %1307 = vmatpush.msra.mxu0 %v642
      %1308 = vmatmul.f32.gmra.mxu0 %v1290
      %v1309 = vpop.f32.mrf.mxu0
      %v1310 = vadd.f32 %v736, %v1309
      %1311 = vdwg.mxu0
      %v1312 = vxor.u32 %v1310, 2147483648
      %v1313 = vmul.f32 %v1312, 1.442695
      %v1314 = vpow.pop %v1313
      %v1315 = vadd.f32 %v1314, 1.0
      %v1316 = vrcp.pop %v1315
      %v1317 = vmul.f32 %v1315, %v1316
      %v1318 = vsub.f32 1.0, %v1317
      %v1319 = vmul.f32 %v1316, %v1318
      %v1320 = vadd.f32 %v1316, %v1319
      %vm1321 = vweird.f32 %v1315
      %vm1322 = vweird.f32 %v1316
      %vm1323 = vmor %vm1321, %vm1322
      %v1324 = vsel %vm1323, %v1316, %v1320
      %v1325 = vand.u32 2147483647, %v1315
      %vm1326 = vcmp.eq.f32.partialorder %v1325, 8.507059e+37
      %v1327 = vand.u32 %v1315, 2147483648
      %v1328 = vor.u32 1.1754944e-38, %v1327
      %v1329 = vsel %vm1326, %v1328, %v1324
      %v1330 = vmul.f32 1.0, %v1329
      %1332 = vrot.lane.b32.xlu0 %v1310, 80
      %v1333 = vpop.permute.xlu0 %1332
      %v1335 = vmul.f32 %v1330, %v1333
      %1337 = vrot.lane.b32.xlu0 %v1335, 32
      %v1338 = vpop.permute.xlu0 %1337
      %v1340 = vadd.f32 %v1310, %v1338
      %v1341 = vtanh.pop %v1340
      %v1342 = vsub.f32 1.0, %v1330
      %1344 = vrot.lane.b32.xlu0 %v1341, 112
      %v1345 = vpop.permute.xlu0 %1344
      %v1347 = vmul.f32 %v1342, %v1345
      %v1348 = vmul.f32 %v1330, %v799
      %v1349 = vadd.f32 %v1347, %v1348
      %1351 = vrot.lane.b32.xlu0 %v686, 16
      %v1352 = vpop.permute.xlu0 %1351
      %v1354 = vmul.f32 %v799, %v1352
      %v1355 = vmul.f32 %v804, %v1352
      %v1358 = vperm.slane %v1354, 0
      %v1359 = vperm.slane %v1355, 0
      %1360 = vrot.lane.b32.xlu0 %v1358, 112
      %v1361 = vpop.permute.xlu0 %1360
      %1362 = vrot.lane.b32.xlu0 %v1359, 112
      %v1363 = vpop.permute.xlu0 %1362
      %vm1366 = vcmask 122880
      %v1367 = vsel %vm1366, %v1361, 0.0
      %1368 = vadd.xlane.f32.xlu0 %v1367
      %v1369 = vpop.xlane.xlu0 %1368
      %v1370 = vsel %vm1366, %v1363, 0.0
      %1371 = vadd.xlane.f32.xlu0 %v1370
      %v1372 = vpop.xlane.xlu0 %1371
      %v1373 = vsub.f32 %v1369, %v1369
      %v1374 = vsub.f32 %v1372, %v1372
      %v1375 = vmul.f32 %v1373, 1.442695
      %v1376 = vpow.pop %v1375
      %v1377 = vmul.f32 %v1374, 1.442695
      %v1378 = vpow.pop %v1377
      %v1379 = vadd.f32 %v1376, 0.0
      %v1380 = vadd.f32 %v1378, 0.0
      %v1381 = vrcp.pop %v1379
      %v1382 = vmul.f32 %v1379, %v1381
      %v1383 = vsub.f32 1.0, %v1382
      %v1384 = vmul.f32 %v1381, %v1383
      %v1385 = vadd.f32 %v1381, %v1384
      %vm1386 = vweird.f32 %v1379
      %vm1387 = vweird.f32 %v1381
      %vm1388 = vmor %vm1386, %vm1387
      %v1389 = vsel %vm1388, %v1381, %v1385
      %v1390 = vand.u32 2147483647, %v1379
      %vm1391 = vcmp.eq.f32.partialorder %v1390, 8.507059e+37
      %v1392 = vand.u32 %v1379, 2147483648
      %v1393 = vor.u32 1.1754944e-38, %v1392
      %v1394 = vsel %vm1391, %v1393, %v1389
      %v1395 = vmul.f32 %v1376, %v1394
      %v1396 = vrcp.pop %v1380
      %v1397 = vmul.f32 %v1380, %v1396
      %v1398 = vsub.f32 1.0, %v1397
      %v1399 = vmul.f32 %v1396, %v1398
      %v1400 = vadd.f32 %v1396, %v1399
      %vm1401 = vweird.f32 %v1380
      %vm1402 = vweird.f32 %v1396
      %vm1403 = vmor %vm1401, %vm1402
      %v1404 = vsel %vm1403, %v1396, %v1400
      %v1405 = vand.u32 2147483647, %v1380
      %vm1406 = vcmp.eq.f32.partialorder %v1405, 8.507059e+37
      %v1407 = vand.u32 %v1380, 2147483648
      %v1408 = vor.u32 1.1754944e-38, %v1407
      %v1409 = vsel %vm1406, %v1408, %v1404
      %v1410 = vmul.f32 %v1378, %v1409
      %1411 = vrot.lane.b32.xlu0 %v806, 112
      %v1412 = vpop.permute.xlu0 %1411
      %1413 = vrot.lane.b32.xlu0 %v807, 112
      %v1414 = vpop.permute.xlu0 %1413
      %v1417 = vmul.f32 %v1395, %v1412
      %v1418 = vmul.f32 %v1410, %v1414
      %v1419 = vadd.f32 %v1417, 0.0
      %v1420 = vadd.f32 %v1418, 0.0
      %v1423 = vrot.slane %v1410, 7
      %v1424 = vsel %vm723, %v1423, %v1395
      %vm1426 = vcmask 7168
      %v1427 = vsel %vm1426, %v1424, 0.0
      %v1428 = vrot.slane %v1194, 1
      %v1429 = vperm.slane %v1194, 0
      %v1430 = vperm.slane %v1428, 0
      %v1432 = vrot.slane %v1349, 1
      %v1433 = vperm.slane %v1349, 0
      %v1434 = vperm.slane %v1432, 0
      %v1435 = vperm.slane %v1419, 0
      %v1436 = vperm.slane %v1420, 0
      %1439 = vst [vmem:[#allocation1] ss:$4 sm:$0xff] %v1435
      %s1440 = scalar_lea.vmem [#allocation1], 1
      %1441 = vst [vmem:[%s1440] ss:$4 sm:$0xff] %v1436
      %v1442 = vld.sshfl [vmem:[#allocation1] sm:$0xff pattern:$0x73625140]
      %1444 = vst [vmem:[#allocation1] ss:$4 sm:$0xff] %v1429
      %s1445 = scalar_lea.vmem [#allocation1], 1
      %1446 = vst [vmem:[%s1445] ss:$4 sm:$0xff] %v1430
      %v1447 = vld.sshfl [vmem:[#allocation1] sm:$0xff pattern:$0x73625140]
      %1448 = vrot.lane.b32.xlu0 %v1447, 16
      %v1449 = vpop.permute.xlu0 %1448
      %1451 = vst [vmem:[#allocation1] ss:$4 sm:$0xff] %v1086
      %s1452 = scalar_lea.vmem [#allocation1], 1
      %1453 = vst [vmem:[%s1452] ss:$4 sm:$0xff] %v1087
      %v1454 = vld.sshfl [vmem:[#allocation1] sm:$0xff pattern:$0x73625140]
      %1455 = vrot.lane.b32.xlu0 %v1454, 16
      %v1456 = vpop.permute.xlu0 %1455
      %1458 = vst [vmem:[#allocation1] ss:$4 sm:$0xff] %v1429
      %s1459 = scalar_lea.vmem [#allocation1], 1
      %1460 = vst [vmem:[%s1459] ss:$4 sm:$0xff] %v1430
      %v1461 = vld.sshfl [vmem:[#allocation1] sm:$0xff pattern:$0x73625140]
      %1462 = vrot.lane.b32.xlu0 %v1461, 48
      %v1463 = vpop.permute.xlu0 %1462
      %1465 = vst [vmem:[#allocation1] ss:$4 sm:$0xff] %v1433
      %s1466 = scalar_lea.vmem [#allocation1], 1
      %1467 = vst [vmem:[%s1466] ss:$4 sm:$0xff] %v1434
      %v1468 = vld.sshfl [vmem:[#allocation1] sm:$0xff pattern:$0x73625140]
      %1469 = vrot.lane.b32.xlu0 %v1468, 48
      %v1470 = vpop.permute.xlu0 %1469
      %1472 = vst [vmem:[#allocation1] ss:$4 sm:$0xff] %v1080
      %s1473 = scalar_lea.vmem [#allocation1], 1
      %1474 = vst [vmem:[%s1473] ss:$4 sm:$0xff] %v1081
      %v1475 = vld.sshfl [vmem:[#allocation1] sm:$0xff pattern:$0x73625140]
      %v1477 = vsel %vm730, %v1442, %v1449
      %v1478 = vsel %vm731, %v1477, %v1456
      %v1479 = vsel %vm733, %v1478, %v1463
      %v1480 = vsel %vm738, %v1479, %v1470
      %v1481 = vsel %vm833, %v1480, %v1475
      %v1483 = vsel %vm838, %v1481, 0
      %1485 = vmatpush.msra.mxu0 0.0
      %1486 = vmatpush.msra.mxu0 0.0
      %1487 = vmatpush.msra.mxu0 0.0
      %1488 = vmatpush.msra.mxu0 0.0
      %1489 = vmatpush.msra.mxu0 %v662
      %1490 = vmatpush.msra.mxu0 %v661
      %1491 = vmatpush.msra.mxu0 %v660
      %1492 = vmatpush.msra.mxu0 %v659
      %1493 = vmatpush.msra.mxu0 %v658
      %1494 = vmatpush.msra.mxu0 %v657
      %1495 = vmatpush.msra.mxu0 %v656
      %1496 = vmatpush.msra.mxu0 %v655
      %1497 = vmatpush.msra.mxu0 %v654
      %1498 = vmatpush.msra.mxu0 %v653
      %1499 = vmatpush.msra.mxu0 %v652
      %1500 = vmatpush.msra.mxu0 %v651
      %1501 = vmatmul.f32.gmra.mxu0 %v1483
      %v1502 = vpop.f32.mrf.mxu0
      %v1503 = vadd.f32 %v836, %v1502
      %1504 = vdwg.mxu0
      %v1505 = vxor.u32 %v1503, 2147483648
      %v1506 = vmul.f32 %v1505, 1.442695
      %v1507 = vpow.pop %v1506
      %v1508 = vadd.f32 %v1507, 1.0
      %v1509 = vrcp.pop %v1508
      %v1510 = vmul.f32 %v1508, %v1509
      %v1511 = vsub.f32 1.0, %v1510
      %v1512 = vmul.f32 %v1509, %v1511
      %v1513 = vadd.f32 %v1509, %v1512
      %vm1514 = vweird.f32 %v1508
      %vm1515 = vweird.f32 %v1509
      %vm1516 = vmor %vm1514, %vm1515
      %v1517 = vsel %vm1516, %v1509, %v1513
      %v1518 = vand.u32 2147483647, %v1508
      %vm1519 = vcmp.eq.f32.partialorder %v1518, 8.507059e+37
      %v1520 = vand.u32 %v1508, 2147483648
      %v1521 = vor.u32 1.1754944e-38, %v1520
      %v1522 = vsel %vm1519, %v1521, %v1517
      %v1523 = vmul.f32 1.0, %v1522
      %1525 = vrot.lane.b32.xlu0 %v1503, 80
      %v1526 = vpop.permute.xlu0 %1525
      %v1528 = vmul.f32 %v1523, %v1526
      %1530 = vrot.lane.b32.xlu0 %v1528, 32
      %v1531 = vpop.permute.xlu0 %1530
      %v1533 = vadd.f32 %v1503, %v1531
      %v1534 = vtanh.pop %v1533
      %v1535 = vsub.f32 1.0, %v1523
      %1537 = vrot.lane.b32.xlu0 %v1534, 112
      %v1538 = vpop.permute.xlu0 %1537
      %v1540 = vmul.f32 %v1535, %v1538
      %1541 = vst [vmem:[#allocation1] ss:$4 sm:$0xff] %v1086
      %s1542 = scalar_lea.vmem [#allocation1], 1
      %1543 = vst [vmem:[%s1542] ss:$4 sm:$0xff] %v1087
      %v1544 = vld.sshfl [vmem:[#allocation1] sm:$0xff pattern:$0x73625140]
      %v1546 = vmul.f32 %v1523, %v1544
      %v1547 = vadd.f32 %v1540, %v1546
      %v1549 = vrot.slane %v1547, 2
      %1551 = vst [vmem:[#allocation1] ss:$4 sm:$0xff] %v1080
      %s1552 = scalar_lea.vmem [#allocation1], 1
      %1553 = vst [vmem:[%s1552] ss:$4 sm:$0xff] %v1081
      %v1554 = vld.sshfl [vmem:[#allocation1] sm:$0xff pattern:$0x73625140]
      %v1556 = vmul.f32 %v1523, %v1554
      %v1557 = vadd.f32 %v1540, %v1556
      %v1559 = vrot.slane %v1557, 2
      %1561 = vst [vmem:[#allocation1] ss:$4 sm:$0xff] %v1547
      %v1562 = vld.sshfl [vmem:[#allocation1] sm:$0xff pattern:$0x73625140]
      %s1563 = scalar_lea.vmem [#allocation1], 32
      %1564 = vst [vmem:[%s1563] ss:$4 sm:$0xff] %v1549
      %v1565 = vld.sshfl [vmem:[#allocation1 + $0x20] sm:$0xff pattern:$0x73625140]
      %1566 = vrot.lane.b32.xlu0 %v1562, 112
      %v1567 = vpop.permute.xlu0 %1566
      %1568 = vrot.lane.b32.xlu0 %v1565, 112
      %v1569 = vpop.permute.xlu0 %1568
      %v1572 = vmul.f32 %v1205, %v1567
      %v1573 = vmul.f32 %v1212, %v1569
      %v1574 = vsel %vm916, %v1572, 0.0
      %v1575 = vrot.slane %v1574, 4
      %v1576 = vadd.f32 %v1574, %v1575
      %v1577 = vrot.slane %v1576, 2
      %v1578 = vadd.f32 %v1576, %v1577
      %v1579 = vrot.slane %v1578, 1
      %v1580 = vadd.f32 %v1578, %v1579
      %v1581 = vsel %vm916, %v1573, 0.0
      %v1582 = vrot.slane %v1581, 4
      %v1583 = vadd.f32 %v1581, %v1582
      %v1584 = vrot.slane %v1583, 2
      %v1585 = vadd.f32 %v1583, %v1584
      %v1586 = vrot.slane %v1585, 1
      %v1587 = vadd.f32 %v1585, %v1586
      %1588 = vst [vmem:[#allocation1] ss:$4 sm:$0xff] %v1557
      %v1589 = vld.sshfl [vmem:[#allocation1] sm:$0xff pattern:$0x73625140]
      %s1590 = scalar_lea.vmem [#allocation1], 32
      %1591 = vst [vmem:[%s1590] ss:$4 sm:$0xff] %v1559
      %v1592 = vld.sshfl [vmem:[#allocation1 + $0x20] sm:$0xff pattern:$0x73625140]
      %1593 = vrot.lane.b32.xlu0 %v1589, 48
      %v1594 = vpop.permute.xlu0 %1593
      %1595 = vrot.lane.b32.xlu0 %v1592, 48
      %v1596 = vpop.permute.xlu0 %1595
      %v1599 = vmul.f32 %v1205, %v1594
      %v1600 = vmul.f32 %v1212, %v1596
      %v1601 = vsel %vm916, %v1599, 0.0
      %v1602 = vrot.slane %v1601, 4
      %v1603 = vadd.f32 %v1601, %v1602
      %v1604 = vrot.slane %v1603, 2
      %v1605 = vadd.f32 %v1603, %v1604
      %v1606 = vrot.slane %v1605, 1
      %v1607 = vadd.f32 %v1605, %v1606
      %v1608 = vsel %vm916, %v1600, 0.0
      %v1609 = vrot.slane %v1608, 4
      %v1610 = vadd.f32 %v1608, %v1609
      %v1611 = vrot.slane %v1610, 2
      %v1612 = vadd.f32 %v1610, %v1611
      %v1613 = vrot.slane %v1612, 1
      %v1614 = vadd.f32 %v1612, %v1613
      %1617 = vst [vmem:[#allocation1] ss:$4 sm:$0xff] %v1580
      %s1618 = scalar_lea.vmem [#allocation1], 1
      %1619 = vst [vmem:[%s1618] ss:$4 sm:$0xff] %v1587
      %v1620 = vld.sshfl [vmem:[#allocation1] sm:$0xff pattern:$0x73625140]
      %1622 = vst [vmem:[#allocation1] ss:$4 sm:$0xff] %v1429
      %s1623 = scalar_lea.vmem [#allocation1], 1
      %1624 = vst [vmem:[%s1623] ss:$4 sm:$0xff] %v1430
      %v1625 = vld.sshfl [vmem:[#allocation1] sm:$0xff pattern:$0x73625140]
      %1626 = vrot.lane.b32.xlu0 %v1625, 16
      %v1627 = vpop.permute.xlu0 %1626
      %1629 = vst [vmem:[#allocation1] ss:$4 sm:$0xff] %v1086
      %s1630 = scalar_lea.vmem [#allocation1], 1
      %1631 = vst [vmem:[%s1630] ss:$4 sm:$0xff] %v1087
      %v1632 = vld.sshfl [vmem:[#allocation1] sm:$0xff pattern:$0x73625140]
      %1633 = vrot.lane.b32.xlu0 %v1632, 16
      %v1634 = vpop.permute.xlu0 %1633
      %1636 = vst [vmem:[#allocation1] ss:$4 sm:$0xff] %v1429
      %s1637 = scalar_lea.vmem [#allocation1], 1
      %1638 = vst [vmem:[%s1637] ss:$4 sm:$0xff] %v1430
      %v1639 = vld.sshfl [vmem:[#allocation1] sm:$0xff pattern:$0x73625140]
      %1640 = vrot.lane.b32.xlu0 %v1639, 48
      %v1641 = vpop.permute.xlu0 %1640
      %1645 = vst [vmem:[#allocation1] ss:$4 sm:$0xff] %v1607
      %s1646 = scalar_lea.vmem [#allocation1], 1
      %1647 = vst [vmem:[%s1646] ss:$4 sm:$0xff] %v1614
      %v1648 = vld.sshfl [vmem:[#allocation1] sm:$0xff pattern:$0x73625140]
      %1649 = vrot.lane.b32.xlu0 %v1648, 64
      %v1650 = vpop.permute.xlu0 %1649
      %1652 = vst [vmem:[#allocation1] ss:$4 sm:$0xff] %v1080
      %s1653 = scalar_lea.vmem [#allocation1], 1
      %1654 = vst [vmem:[%s1653] ss:$4 sm:$0xff] %v1081
      %v1655 = vld.sshfl [vmem:[#allocation1] sm:$0xff pattern:$0x73625140]
      %v1657 = vsel %vm730, %v1620, %v1627
      %v1658 = vsel %vm731, %v1657, %v1634
      %v1659 = vsel %vm733, %v1658, %v1641
      %v1660 = vsel %vm738, %v1659, %v1650
      %v1661 = vsel %vm833, %v1660, %v1655
      %v1663 = vsel %vm838, %v1661, 0
      %1665 = vmatpush.msra.mxu0 0.0
      %1666 = vmatpush.msra.mxu0 0.0
      %1667 = vmatpush.msra.mxu0 0.0
      %1668 = vmatpush.msra.mxu0 0.0
      %1669 = vmatpush.msra.mxu0 %v675
      %1670 = vmatpush.msra.mxu0 %v674
      %1671 = vmatpush.msra.mxu0 %v673
      %1672 = vmatpush.msra.mxu0 %v672
      %1673 = vmatpush.msra.mxu0 %v671
      %1674 = vmatpush.msra.mxu0 %v670
      %1675 = vmatpush.msra.mxu0 %v669
      %1676 = vmatpush.msra.mxu0 %v668
      %1677 = vmatpush.msra.mxu0 %v667
      %1678 = vmatpush.msra.mxu0 %v666
      %1679 = vmatpush.msra.mxu0 %v665
      %1680 = vmatpush.msra.mxu0 %v664
      %1681 = vmatmul.f32.gmra.mxu0 %v1663
      %v1682 = vpop.f32.mrf.mxu0
      %v1683 = vadd.f32 %v994, %v1682
      %1684 = vdwg.mxu0
      %v1685 = vxor.u32 %v1683, 2147483648
      %v1686 = vmul.f32 %v1685, 1.442695
      %v1687 = vpow.pop %v1686
      %v1688 = vadd.f32 %v1687, 1.0
      %v1689 = vrcp.pop %v1688
      %v1690 = vmul.f32 %v1688, %v1689
      %v1691 = vsub.f32 1.0, %v1690
      %v1692 = vmul.f32 %v1689, %v1691
      %v1693 = vadd.f32 %v1689, %v1692
      %vm1694 = vweird.f32 %v1688
      %vm1695 = vweird.f32 %v1689
      %vm1696 = vmor %vm1694, %vm1695
      %v1697 = vsel %vm1696, %v1689, %v1693
      %v1698 = vand.u32 2147483647, %v1688
      %vm1699 = vcmp.eq.f32.partialorder %v1698, 8.507059e+37
      %v1700 = vand.u32 %v1688, 2147483648
      %v1701 = vor.u32 1.1754944e-38, %v1700
      %v1702 = vsel %vm1699, %v1701, %v1697
      %v1703 = vmul.f32 1.0, %v1702
      %1705 = vrot.lane.b32.xlu0 %v1683, 80
      %v1706 = vpop.permute.xlu0 %1705
      %v1708 = vmul.f32 %v1703, %v1706
      %1710 = vrot.lane.b32.xlu0 %v1708, 32
      %v1711 = vpop.permute.xlu0 %1710
      %v1713 = vadd.f32 %v1683, %v1711
      %v1714 = vtanh.pop %v1713
      %v1715 = vsub.f32 1.0, %v1703
      %1717 = vrot.lane.b32.xlu0 %v1714, 112
      %v1718 = vpop.permute.xlu0 %1717
      %v1720 = vmul.f32 %v1715, %v1718
      %1721 = vst [vmem:[#allocation1] ss:$4 sm:$0xff] %v1086
      %s1722 = scalar_lea.vmem [#allocation1], 1
      %1723 = vst [vmem:[%s1722] ss:$4 sm:$0xff] %v1087
      %v1724 = vld.sshfl [vmem:[#allocation1] sm:$0xff pattern:$0x73625140]
      %v1726 = vmul.f32 %v1703, %v1724
      %v1727 = vadd.f32 %v1720, %v1726
      %v1729 = vrot.slane %v1727, 2
      %1731 = vst [vmem:[#allocation1] ss:$4 sm:$0xff] %v1080
      %s1732 = scalar_lea.vmem [#allocation1], 1
      %1733 = vst [vmem:[%s1732] ss:$4 sm:$0xff] %v1081
      %v1734 = vld.sshfl [vmem:[#allocation1] sm:$0xff pattern:$0x73625140]
      %v1736 = vmul.f32 %v1703, %v1734
      %v1737 = vadd.f32 %v1720, %v1736
      %v1739 = vrot.slane %v1737, 2
      %v1741 = vperm.slane %v1196, 0
      %v1742 = vlaneseq
      %v1743 = vshrl.u32 %v1742, 7
      %1745 = vset.pattern.permute.xlu0 %v1743
      %1746 = vperm.xlu0 %1745, %v1741
      %v1747 = vpop.permute.xlu0 %1746
      %v1748 = vperm.slane %v1196, 1
      %v1749 = vlaneseq
      %v1750 = vshrl.u32 %v1749, 7
      %1752 = vset.pattern.permute.xlu0 %v1750
      %1753 = vperm.xlu0 %1752, %v1748
      %v1754 = vpop.permute.xlu0 %1753
      %v1755 = vmul.f32 %v1737, %v1747
      %v1756 = vmul.f32 %v1739, %v1754
      %v1757 = vsub.f32 1.0, %v1747
      %v1758 = vsub.f32 1.0, %v1754
      %v1759 = vmul.f32 %v1557, %v1757
      %v1760 = vmul.f32 %v1559, %v1758
      %v1761 = vadd.f32 %v1755, %v1759
      %v1762 = vadd.f32 %v1756, %v1760
      %v1763 = vmul.f32 %v1547, %v1747
      %v1764 = vmul.f32 %v1549, %v1754
      %v1765 = vmul.f32 %v1727, %v1757
      %v1766 = vmul.f32 %v1729, %v1758
      %v1767 = vadd.f32 %v1763, %v1765
      %v1768 = vadd.f32 %v1764, %v1766
      %1771 = vst [vmem:[#allocation1] ss:$4 sm:$0xff] %v1761
      %v1772 = vld.sshfl [vmem:[#allocation1] sm:$0xff pattern:$0x73625140]
      %s1773 = scalar_lea.vmem [#allocation1], 32
      %1774 = vst [vmem:[%s1773] ss:$4 sm:$0xff] %v1762
      %v1775 = vld.sshfl [vmem:[#allocation1 + $0x20] sm:$0xff pattern:$0x73625140]
      %1776 = vrot.lane.b32.xlu0 %v1772, 48
      %v1777 = vpop.permute.xlu0 %1776
      %1778 = vrot.lane.b32.xlu0 %v1775, 48
      %v1779 = vpop.permute.xlu0 %1778
      %v1782 = vmul.f32 %v1205, %v1777
      %v1783 = vmul.f32 %v1212, %v1779
      %v1784 = vsel %vm916, %v1782, 0.0
      %v1785 = vrot.slane %v1784, 4
      %v1786 = vadd.f32 %v1784, %v1785
      %v1787 = vrot.slane %v1786, 2
      %v1788 = vadd.f32 %v1786, %v1787
      %v1789 = vrot.slane %v1788, 1
      %v1790 = vadd.f32 %v1788, %v1789
      %v1791 = vsel %vm916, %v1783, 0.0
      %v1792 = vrot.slane %v1791, 4
      %v1793 = vadd.f32 %v1791, %v1792
      %v1794 = vrot.slane %v1793, 2
      %v1795 = vadd.f32 %v1793, %v1794
      %v1796 = vrot.slane %v1795, 1
      %v1797 = vadd.f32 %v1795, %v1796
      %v1800 = vsel %vm723, %v1797, %v1790
      %1801 = vrot.lane.b32.xlu0 %v1800, 16
      %v1802 = vpop.permute.xlu0 %1801
      %1804 = vrot.lane.b32.xlu0 %v1349, 16
      %v1805 = vpop.permute.xlu0 %1804
      %1808 = vrot.lane.b32.xlu0 %v1192, 32
      %v1809 = vpop.permute.xlu0 %1808
      %v1811 = vsel %vm730, %v1194, %v1802
      %v1812 = vsel %vm731, %v1811, %v1805
      %v1813 = vsel %vm733, %v1812, %v1809
      %v1815 = vsel %vm738, %v1813, 0
      %1817 = vmatpush.msra.mxu0 0.0
      %1818 = vmatpush.msra.mxu0 0.0
      %1819 = vmatpush.msra.mxu0 0.0
      %1820 = vmatpush.msra.mxu0 0.0
      %1821 = vmatpush.msra.mxu0 0.0
      %1822 = vmatpush.msra.mxu0 0.0
      %1823 = vmatpush.msra.mxu0 0.0
      %1824 = vmatpush.msra.mxu0 0.0
      %1825 = vmatpush.msra.mxu0 %v684
      %1826 = vmatpush.msra.mxu0 %v683
      %1827 = vmatpush.msra.mxu0 %v682
      %1828 = vmatpush.msra.mxu0 %v681
      %1829 = vmatpush.msra.mxu0 %v680
      %1830 = vmatpush.msra.mxu0 %v679
      %1831 = vmatpush.msra.mxu0 %v678
      %1832 = vmatpush.msra.mxu0 %v677
      %1833 = vmatmul.f32.gmra.mxu0 %v1815
      %v1834 = vpop.f32.mrf.mxu0
      %v1835 = vadd.f32 %v1130, %v1834
      %1836 = vdwg.mxu0
      %v1837 = vxor.u32 %v1835, 2147483648
      %v1838 = vmul.f32 %v1837, 1.442695
      %v1839 = vpow.pop %v1838
      %v1840 = vadd.f32 %v1839, 1.0
      %v1841 = vrcp.pop %v1840
      %v1842 = vmul.f32 %v1840, %v1841
      %v1843 = vsub.f32 1.0, %v1842
      %v1844 = vmul.f32 %v1841, %v1843
      %v1845 = vadd.f32 %v1841, %v1844
      %vm1846 = vweird.f32 %v1840
      %vm1847 = vweird.f32 %v1841
      %vm1848 = vmor %vm1846, %vm1847
      %v1849 = vsel %vm1848, %v1841, %v1845
      %v1850 = vand.u32 2147483647, %v1840
      %vm1851 = vcmp.eq.f32.partialorder %v1850, 8.507059e+37
      %v1852 = vand.u32 %v1840, 2147483648
      %v1853 = vor.u32 1.1754944e-38, %v1852
      %v1854 = vsel %vm1851, %v1853, %v1849
      %v1855 = vmul.f32 1.0, %v1854
      %1857 = vrot.lane.b32.xlu0 %v1835, 80
      %v1858 = vpop.permute.xlu0 %1857
      %v1860 = vmul.f32 %v1855, %v1858
      %1862 = vrot.lane.b32.xlu0 %v1860, 32
      %v1863 = vpop.permute.xlu0 %1862
      %v1865 = vadd.f32 %v1835, %v1863
      %v1866 = vtanh.pop %v1865
      %v1867 = vsub.f32 1.0, %v1855
      %1869 = vrot.lane.b32.xlu0 %v1866, 112
      %v1870 = vpop.permute.xlu0 %1869
      %v1872 = vmul.f32 %v1867, %v1870
      %v1873 = vmul.f32 %v1855, %v1192
      %v1874 = vadd.f32 %v1872, %v1873
      %s1875 = scalar_lea.vmem %s587, 4
      %v1876 = vld [vmem:[%s1875] sm:$0x3]
      %s1877 = scalar_lea.vmem %s592, 4
      %v1878 = vld [vmem:[%s1877] sm:$0x3]
      %s1879 = scalar_lea.vmem %s597, 4
      %v1880 = vld [vmem:[%s1879] sm:$0x3]
      %v1881 = vperm.slane %v1880, 0
      %v1882 = vlaneseq
      %v1883 = vshrl.u32 %v1882, 7
      %1885 = vset.pattern.permute.xlu0 %v1883
      %1886 = vperm.xlu0 %1885, %v1881
      %v1887 = vpop.permute.xlu0 %1886
      %v1888 = vperm.slane %v1880, 1
      %v1889 = vlaneseq
      %v1890 = vshrl.u32 %v1889, 7
      %1892 = vset.pattern.permute.xlu0 %v1890
      %1893 = vperm.xlu0 %1892, %v1888
      %v1894 = vpop.permute.xlu0 %1893
      %1895 = vst [vmem:[#allocation1] ss:$4 sm:$0xff] %v1761
      %v1896 = vld.sshfl [vmem:[#allocation1] sm:$0xff pattern:$0x73625140]
      %s1897 = scalar_lea.vmem [#allocation1], 32
      %1898 = vst [vmem:[%s1897] ss:$4 sm:$0xff] %v1762
      %v1899 = vld.sshfl [vmem:[#allocation1 + $0x20] sm:$0xff pattern:$0x73625140]
      %1900 = vrot.lane.b32.xlu0 %v1896, 48
      %v1901 = vpop.permute.xlu0 %1900
      %1902 = vrot.lane.b32.xlu0 %v1899, 48
      %v1903 = vpop.permute.xlu0 %1902
      %v1906 = vmul.f32 %v1887, %v1901
      %v1907 = vmul.f32 %v1894, %v1903
      %v1908 = vsel %vm916, %v1906, 0.0
      %v1909 = vrot.slane %v1908, 4
      %v1910 = vadd.f32 %v1908, %v1909
      %v1911 = vrot.slane %v1910, 2
      %v1912 = vadd.f32 %v1910, %v1911
      %v1913 = vrot.slane %v1912, 1
      %v1914 = vadd.f32 %v1912, %v1913
      %v1915 = vsel %vm916, %v1907, 0.0
      %v1916 = vrot.slane %v1915, 4
      %v1917 = vadd.f32 %v1915, %v1916
      %v1918 = vrot.slane %v1917, 2
      %v1919 = vadd.f32 %v1917, %v1918
      %v1920 = vrot.slane %v1919, 1
      %v1921 = vadd.f32 %v1919, %v1920
      %1924 = vst [vmem:[#allocation1] ss:$4 sm:$0xff] %v1767
      %v1925 = vld.sshfl [vmem:[#allocation1] sm:$0xff pattern:$0x73625140]
      %s1926 = scalar_lea.vmem [#allocation1], 32
      %1927 = vst [vmem:[%s1926] ss:$4 sm:$0xff] %v1768
      %v1928 = vld.sshfl [vmem:[#allocation1 + $0x20] sm:$0xff pattern:$0x73625140]
      %1929 = vrot.lane.b32.xlu0 %v1925, 112
      %v1930 = vpop.permute.xlu0 %1929
      %1931 = vrot.lane.b32.xlu0 %v1928, 112
      %v1932 = vpop.permute.xlu0 %1931
      %v1935 = vmul.f32 %v1887, %v1930
      %v1936 = vmul.f32 %v1894, %v1932
      %v1937 = vsel %vm916, %v1935, 0.0
      %v1938 = vrot.slane %v1937, 4
      %v1939 = vadd.f32 %v1937, %v1938
      %v1940 = vrot.slane %v1939, 2
      %v1941 = vadd.f32 %v1939, %v1940
      %v1942 = vrot.slane %v1941, 1
      %v1943 = vadd.f32 %v1941, %v1942
      %v1944 = vsel %vm916, %v1936, 0.0
      %v1945 = vrot.slane %v1944, 4
      %v1946 = vadd.f32 %v1944, %v1945
      %v1947 = vrot.slane %v1946, 2
      %v1948 = vadd.f32 %v1946, %v1947
      %v1949 = vrot.slane %v1948, 1
      %v1950 = vadd.f32 %v1948, %v1949
      %v1953 = vsel %vm723, %v1921, %v1914
      %v1957 = vsel %vm723, %v1950, %v1943
      %1958 = vrot.lane.b32.xlu0 %v1957, 16
      %v1959 = vpop.permute.xlu0 %1958
      %1962 = vrot.lane.b32.xlu0 %v1876, 32
      %v1963 = vpop.permute.xlu0 %1962
      %1965 = vrot.lane.b32.xlu0 %v1349, 32
      %v1966 = vpop.permute.xlu0 %1965
      %v1968 = vsel %vm730, %v1953, %v1959
      %v1969 = vsel %vm731, %v1968, %v1963
      %v1970 = vsel %vm733, %v1969, %v1966
      %v1972 = vsel %vm738, %v1970, 0
      %1974 = vmatpush.msra.mxu0 0.0
      %1975 = vmatpush.msra.mxu0 0.0
      %1976 = vmatpush.msra.mxu0 0.0
      %1977 = vmatpush.msra.mxu0 0.0
      %1978 = vmatpush.msra.mxu0 0.0
      %1979 = vmatpush.msra.mxu0 0.0
      %1980 = vmatpush.msra.mxu0 0.0
      %1981 = vmatpush.msra.mxu0 0.0
      %1982 = vmatpush.msra.mxu0 %v649
      %1983 = vmatpush.msra.mxu0 %v648
      %1984 = vmatpush.msra.mxu0 %v647
      %1985 = vmatpush.msra.mxu0 %v646
      %1986 = vmatpush.msra.mxu0 %v645
      %1987 = vmatpush.msra.mxu0 %v644
      %1988 = vmatpush.msra.mxu0 %v643
      %1989 = vmatpush.msra.mxu0 %v642
      %1990 = vmatmul.f32.gmra.mxu0 %v1972
      %v1991 = vpop.f32.mrf.mxu0
      %v1992 = vadd.f32 %v736, %v1991
      %1993 = vdwg.mxu0
      %v1994 = vxor.u32 %v1992, 2147483648
      %v1995 = vmul.f32 %v1994, 1.442695
      %v1996 = vpow.pop %v1995
      %v1997 = vadd.f32 %v1996, 1.0
      %v1998 = vrcp.pop %v1997
      %v1999 = vmul.f32 %v1997, %v1998
      %v2000 = vsub.f32 1.0, %v1999
      %v2001 = vmul.f32 %v1998, %v2000
      %v2002 = vadd.f32 %v1998, %v2001
      %vm2003 = vweird.f32 %v1997
      %vm2004 = vweird.f32 %v1998
      %vm2005 = vmor %vm2003, %vm2004
      %v2006 = vsel %vm2005, %v1998, %v2002
      %v2007 = vand.u32 2147483647, %v1997
      %vm2008 = vcmp.eq.f32.partialorder %v2007, 8.507059e+37
      %v2009 = vand.u32 %v1997, 2147483648
      %v2010 = vor.u32 1.1754944e-38, %v2009
      %v2011 = vsel %vm2008, %v2010, %v2006
      %v2012 = vmul.f32 1.0, %v2011
      %2014 = vrot.lane.b32.xlu0 %v1992, 80
      %v2015 = vpop.permute.xlu0 %2014
      %v2017 = vmul.f32 %v2012, %v2015
      %2019 = vrot.lane.b32.xlu0 %v2017, 32
      %v2020 = vpop.permute.xlu0 %2019
      %v2022 = vadd.f32 %v1992, %v2020
      %v2023 = vtanh.pop %v2022
      %v2024 = vsub.f32 1.0, %v2012
      %2026 = vrot.lane.b32.xlu0 %v2023, 112
      %v2027 = vpop.permute.xlu0 %2026
      %v2029 = vmul.f32 %v2024, %v2027
      %v2030 = vmul.f32 %v2012, %v1349
      %v2031 = vadd.f32 %v2029, %v2030
      %vm2034 = vcmask 1040384
      %v2035 = vsel %vm2034, %v799, %v1433
      %v2036 = vsel %vm2034, %v804, %v1434
      %v2037 = vperm.slane %v686, 0
      %2038 = vrot.lane.b32.xlu0 %v2037, 16
      %v2039 = vpop.permute.xlu0 %2038
      %v2041 = vmul.f32 %v2035, %v2039
      %v2042 = vmul.f32 %v2036, %v2039
      %2045 = vrot.lane.b32.xlu0 %v2041, 112
      %v2046 = vpop.permute.xlu0 %2045
      %2047 = vrot.lane.b32.xlu0 %v2042, 112
      %v2048 = vpop.permute.xlu0 %2047
      %v2051 = vsel %vm916, %v2046, 0.0
      %2052 = vadd.xlane.f32.xlu0 %v2051
      %v2053 = vpop.xlane.xlu0 %2052
      %v2054 = vsel %vm916, %v2048, 0.0
      %2055 = vadd.xlane.f32.xlu0 %v2054
      %v2056 = vpop.xlane.xlu0 %2055
      %v2059 = vlaneseq
      %v2060 = vand.u32 %v2059, 127
      %v2061 = vperm.slane %v2053, %v2060
      %v2062 = vperm.slane %v2056, %v2060
      %v2063 = vsel %vm723, %v2062, %v2061
      %vm2065 = vcmask 9216
      %v2066 = vsel %vm2065, %v2063, -inf
      %2067 = vmax.xlane.f32.xlu0 %v2066
      %v2068 = vpop.xlane.xlu0 %2067
      %v2070 = vperm.slane %v2068, 0
      %v2071 = vperm.slane %v2068, 1
      %v2074 = vsub.f32 %v2053, %v2070
      %v2075 = vsub.f32 %v2056, %v2071
      %v2076 = vmul.f32 %v2074, 1.442695
      %v2077 = vpow.pop %v2076
      %v2078 = vmul.f32 %v2075, 1.442695
      %v2079 = vpow.pop %v2078
      %2082 = vset.pattern.permute.xlu0 0
      %2083 = vperm.xlu0 %2082, %v2077
      %v2084 = vpop.permute.xlu0 %2083
      %2085 = vset.pattern.permute.xlu0 0
      %2086 = vperm.xlu0 %2085, %v2079
      %v2087 = vpop.permute.xlu0 %2086
      %v2088 = vperm.slane %v2084, %v2060
      %v2089 = vperm.slane %v2087, %v2060
      %v2090 = vsel %vm723, %v2089, %v2088
      %v2092 = vsel %vm2065, %v2090, 0.0
      %2093 = vadd.xlane.f32.xlu0 %v2092
      %v2094 = vpop.xlane.xlu0 %2093
      %v2096 = vperm.slane %v2094, 0
      %v2097 = vperm.slane %v2094, 1
      %v2100 = vrcp.pop %v2096
      %v2101 = vmul.f32 %v2096, %v2100
      %v2102 = vsub.f32 1.0, %v2101
      %v2103 = vmul.f32 %v2100, %v2102
      %v2104 = vadd.f32 %v2100, %v2103
      %vm2105 = vweird.f32 %v2096
      %vm2106 = vweird.f32 %v2100
      %vm2107 = vmor %vm2105, %vm2106
      %v2108 = vsel %vm2107, %v2100, %v2104
      %v2109 = vand.u32 2147483647, %v2096
      %vm2110 = vcmp.eq.f32.partialorder %v2109, 8.507059e+37
      %v2111 = vand.u32 %v2096, 2147483648
      %v2112 = vor.u32 1.1754944e-38, %v2111
      %v2113 = vsel %vm2110, %v2112, %v2108
      %v2114 = vmul.f32 %v2077, %v2113
      %v2115 = vrcp.pop %v2097
      %v2116 = vmul.f32 %v2097, %v2115
      %v2117 = vsub.f32 1.0, %v2116
      %v2118 = vmul.f32 %v2115, %v2117
      %v2119 = vadd.f32 %v2115, %v2118
      %vm2120 = vweird.f32 %v2097
      %vm2121 = vweird.f32 %v2115
      %vm2122 = vmor %vm2120, %vm2121
      %v2123 = vsel %vm2122, %v2115, %v2119
      %v2124 = vand.u32 2147483647, %v2097
      %vm2125 = vcmp.eq.f32.partialorder %v2124, 8.507059e+37
      %v2126 = vand.u32 %v2097, 2147483648
      %v2127 = vor.u32 1.1754944e-38, %v2126
      %v2128 = vsel %vm2125, %v2127, %v2123
      %v2129 = vmul.f32 %v2079, %v2128
      %2131 = vset.pattern.permute.xlu0 0
      %2132 = vperm.xlu0 %2131, %v2114
      %v2133 = vpop.permute.xlu0 %2132
      %2136 = vset.pattern.permute.xlu0 0
      %2137 = vperm.xlu0 %2136, %v2129
      %v2138 = vpop.permute.xlu0 %2137
      %v2140 = vmul.f32 %v2133, %v2035
      %v2141 = vmul.f32 %v2138, %v2036
      %vm2142 = vcmask 255104
      %v2143 = vsel %vm2142, %v2140, 0.0
      %v2144 = vrot.slane %v2143, 4
      %v2145 = vadd.f32 %v2143, %v2144
      %v2146 = vrot.slane %v2145, 2
      %v2147 = vadd.f32 %v2145, %v2146
      %v2148 = vrot.slane %v2147, 1
      %v2149 = vadd.f32 %v2147, %v2148
      %v2150 = vsel %vm2142, %v2141, 0.0
      %v2151 = vrot.slane %v2150, 4
      %v2152 = vadd.f32 %v2150, %v2151
      %v2153 = vrot.slane %v2152, 2
      %v2154 = vadd.f32 %v2152, %v2153
      %v2155 = vrot.slane %v2154, 1
      %v2156 = vadd.f32 %v2154, %v2155
      %v2157 = vperm.slane %v2133, %v2060
      %v2158 = vperm.slane %v2138, %v2060
      %v2159 = vsel %vm723, %v2158, %v2157
      %vm2161 = vcmask 15360
      %v2162 = vsel %vm2161, %v2159, 0.0
      %v2163 = vrot.slane %v1876, 1
      %v2164 = vperm.slane %v1876, 0
      %v2165 = vperm.slane %v2163, 0
      %v2167 = vrot.slane %v2031, 1
      %v2168 = vperm.slane %v2031, 0
      %v2169 = vperm.slane %v2167, 0
      %2172 = vst [vmem:[#allocation1] ss:$4 sm:$0xff] %v2149
      %s2173 = scalar_lea.vmem [#allocation1], 1
      %2174 = vst [vmem:[%s2173] ss:$4 sm:$0xff] %v2156
      %v2175 = vld.sshfl [vmem:[#allocation1] sm:$0xff pattern:$0x73625140]
      %2176 = vrot.lane.b32.xlu0 %v2175, 112
      %v2177 = vpop.permute.xlu0 %2176
      %2179 = vst [vmem:[#allocation1] ss:$4 sm:$0xff] %v2164
      %s2180 = scalar_lea.vmem [#allocation1], 1
      %2181 = vst [vmem:[%s2180] ss:$4 sm:$0xff] %v2165
      %v2182 = vld.sshfl [vmem:[#allocation1] sm:$0xff pattern:$0x73625140]
      %2183 = vrot.lane.b32.xlu0 %v2182, 16
      %v2184 = vpop.permute.xlu0 %2183
      %2186 = vst [vmem:[#allocation1] ss:$4 sm:$0xff] %v1767
      %s2187 = scalar_lea.vmem [#allocation1], 1
      %2188 = vst [vmem:[%s2187] ss:$4 sm:$0xff] %v1768
      %v2189 = vld.sshfl [vmem:[#allocation1] sm:$0xff pattern:$0x73625140]
      %2190 = vrot.lane.b32.xlu0 %v2189, 16
      %v2191 = vpop.permute.xlu0 %2190
      %2193 = vst [vmem:[#allocation1] ss:$4 sm:$0xff] %v2164
      %s2194 = scalar_lea.vmem [#allocation1], 1
      %2195 = vst [vmem:[%s2194] ss:$4 sm:$0xff] %v2165
      %v2196 = vld.sshfl [vmem:[#allocation1] sm:$0xff pattern:$0x73625140]
      %2197 = vrot.lane.b32.xlu0 %v2196, 48
      %v2198 = vpop.permute.xlu0 %2197
      %2200 = vst [vmem:[#allocation1] ss:$4 sm:$0xff] %v2168
      %s2201 = scalar_lea.vmem [#allocation1], 1
      %2202 = vst [vmem:[%s2201] ss:$4 sm:$0xff] %v2169
      %v2203 = vld.sshfl [vmem:[#allocation1] sm:$0xff pattern:$0x73625140]
      %2204 = vrot.lane.b32.xlu0 %v2203, 48
      %v2205 = vpop.permute.xlu0 %2204
      %2207 = vst [vmem:[#allocation1] ss:$4 sm:$0xff] %v1761
      %s2208 = scalar_lea.vmem [#allocation1], 1
      %2209 = vst [vmem:[%s2208] ss:$4 sm:$0xff] %v1762
      %v2210 = vld.sshfl [vmem:[#allocation1] sm:$0xff pattern:$0x73625140]
      %v2212 = vsel %vm730, %v2177, %v2184
      %v2213 = vsel %vm731, %v2212, %v2191
      %v2214 = vsel %vm733, %v2213, %v2198
      %v2215 = vsel %vm738, %v2214, %v2205
      %v2216 = vsel %vm833, %v2215, %v2210
      %v2218 = vsel %vm838, %v2216, 0
      %2220 = vmatpush.msra.mxu0 0.0
      %2221 = vmatpush.msra.mxu0 0.0
      %2222 = vmatpush.msra.mxu0 0.0
      %2223 = vmatpush.msra.mxu0 0.0
      %2224 = vmatpush.msra.mxu0 %v662
      %2225 = vmatpush.msra.mxu0 %v661
      %2226 = vmatpush.msra.mxu0 %v660
      %2227 = vmatpush.msra.mxu0 %v659
      %2228 = vmatpush.msra.mxu0 %v658
      %2229 = vmatpush.msra.mxu0 %v657
      %2230 = vmatpush.msra.mxu0 %v656
      %2231 = vmatpush.msra.mxu0 %v655
      %2232 = vmatpush.msra.mxu0 %v654
      %2233 = vmatpush.msra.mxu0 %v653
      %2234 = vmatpush.msra.mxu0 %v652
      %2235 = vmatpush.msra.mxu0 %v651
      %2236 = vmatmul.f32.gmra.mxu0 %v2218
      %v2237 = vpop.f32.mrf.mxu0
      %v2238 = vadd.f32 %v836, %v2237
      %2239 = vdwg.mxu0
      %v2240 = vxor.u32 %v2238, 2147483648
      %v2241 = vmul.f32 %v2240, 1.442695
      %v2242 = vpow.pop %v2241
      %v2243 = vadd.f32 %v2242, 1.0
      %v2244 = vrcp.pop %v2243
      %v2245 = vmul.f32 %v2243, %v2244
      %v2246 = vsub.f32 1.0, %v2245
      %v2247 = vmul.f32 %v2244, %v2246
      %v2248 = vadd.f32 %v2244, %v2247
      %vm2249 = vweird.f32 %v2243
      %vm2250 = vweird.f32 %v2244
      %vm2251 = vmor %vm2249, %vm2250
      %v2252 = vsel %vm2251, %v2244, %v2248
      %v2253 = vand.u32 2147483647, %v2243
      %vm2254 = vcmp.eq.f32.partialorder %v2253, 8.507059e+37
      %v2255 = vand.u32 %v2243, 2147483648
      %v2256 = vor.u32 1.1754944e-38, %v2255
      %v2257 = vsel %vm2254, %v2256, %v2252
      %v2258 = vmul.f32 1.0, %v2257
      %2260 = vrot.lane.b32.xlu0 %v2238, 80
      %v2261 = vpop.permute.xlu0 %2260
      %v2263 = vmul.f32 %v2258, %v2261
      %2265 = vrot.lane.b32.xlu0 %v2263, 32
      %v2266 = vpop.permute.xlu0 %2265
      %v2268 = vadd.f32 %v2238, %v2266
      %v2269 = vtanh.pop %v2268
      %v2270 = vsub.f32 1.0, %v2258
      %2272 = vrot.lane.b32.xlu0 %v2269, 112
      %v2273 = vpop.permute.xlu0 %2272
      %v2275 = vmul.f32 %v2270, %v2273
      %2276 = vst [vmem:[#allocation1] ss:$4 sm:$0xff] %v1767
      %s2277 = scalar_lea.vmem [#allocation1], 1
      %2278 = vst [vmem:[%s2277] ss:$4 sm:$0xff] %v1768
      %v2279 = vld.sshfl [vmem:[#allocation1] sm:$0xff pattern:$0x73625140]
      %v2281 = vmul.f32 %v2258, %v2279
      %v2282 = vadd.f32 %v2275, %v2281
      %v2284 = vrot.slane %v2282, 2
      %2286 = vst [vmem:[#allocation1] ss:$4 sm:$0xff] %v1761
      %s2287 = scalar_lea.vmem [#allocation1], 1
      %2288 = vst [vmem:[%s2287] ss:$4 sm:$0xff] %v1762
      %v2289 = vld.sshfl [vmem:[#allocation1] sm:$0xff pattern:$0x73625140]
      %v2291 = vmul.f32 %v2258, %v2289
      %v2292 = vadd.f32 %v2275, %v2291
      %v2294 = vrot.slane %v2292, 2
      %2296 = vst [vmem:[#allocation1] ss:$4 sm:$0xff] %v2282
      %v2297 = vld.sshfl [vmem:[#allocation1] sm:$0xff pattern:$0x73625140]
      %s2298 = scalar_lea.vmem [#allocation1], 32
      %2299 = vst [vmem:[%s2298] ss:$4 sm:$0xff] %v2284
      %v2300 = vld.sshfl [vmem:[#allocation1 + $0x20] sm:$0xff pattern:$0x73625140]
      %2301 = vrot.lane.b32.xlu0 %v2297, 112
      %v2302 = vpop.permute.xlu0 %2301
      %2303 = vrot.lane.b32.xlu0 %v2300, 112
      %v2304 = vpop.permute.xlu0 %2303
      %v2307 = vmul.f32 %v1887, %v2302
      %v2308 = vmul.f32 %v1894, %v2304
      %v2309 = vsel %vm916, %v2307, 0.0
      %v2310 = vrot.slane %v2309, 4
      %v2311 = vadd.f32 %v2309, %v2310
      %v2312 = vrot.slane %v2311, 2
      %v2313 = vadd.f32 %v2311, %v2312
      %v2314 = vrot.slane %v2313, 1
      %v2315 = vadd.f32 %v2313, %v2314
      %v2316 = vsel %vm916, %v2308, 0.0
      %v2317 = vrot.slane %v2316, 4
      %v2318 = vadd.f32 %v2316, %v2317
      %v2319 = vrot.slane %v2318, 2
      %v2320 = vadd.f32 %v2318, %v2319
      %v2321 = vrot.slane %v2320, 1
      %v2322 = vadd.f32 %v2320, %v2321
      %2323 = vst [vmem:[#allocation1] ss:$4 sm:$0xff] %v2292
      %v2324 = vld.sshfl [vmem:[#allocation1] sm:$0xff pattern:$0x73625140]
      %s2325 = scalar_lea.vmem [#allocation1], 32
      %2326 = vst [vmem:[%s2325] ss:$4 sm:$0xff] %v2294
      %v2327 = vld.sshfl [vmem:[#allocation1 + $0x20] sm:$0xff pattern:$0x73625140]
      %2328 = vrot.lane.b32.xlu0 %v2324, 48
      %v2329 = vpop.permute.xlu0 %2328
      %2330 = vrot.lane.b32.xlu0 %v2327, 48
      %v2331 = vpop.permute.xlu0 %2330
      %v2334 = vmul.f32 %v1887, %v2329
      %v2335 = vmul.f32 %v1894, %v2331
      %v2336 = vsel %vm916, %v2334, 0.0
      %v2337 = vrot.slane %v2336, 4
      %v2338 = vadd.f32 %v2336, %v2337
      %v2339 = vrot.slane %v2338, 2
      %v2340 = vadd.f32 %v2338, %v2339
      %v2341 = vrot.slane %v2340, 1
      %v2342 = vadd.f32 %v2340, %v2341
      %v2343 = vsel %vm916, %v2335, 0.0
      %v2344 = vrot.slane %v2343, 4
      %v2345 = vadd.f32 %v2343, %v2344
      %v2346 = vrot.slane %v2345, 2
      %v2347 = vadd.f32 %v2345, %v2346
      %v2348 = vrot.slane %v2347, 1
      %v2349 = vadd.f32 %v2347, %v2348
      %2352 = vst [vmem:[#allocation1] ss:$4 sm:$0xff] %v2315
      %s2353 = scalar_lea.vmem [#allocation1], 1
      %2354 = vst [vmem:[%s2353] ss:$4 sm:$0xff] %v2322
      %v2355 = vld.sshfl [vmem:[#allocation1] sm:$0xff pattern:$0x73625140]
      %2357 = vst [vmem:[#allocation1] ss:$4 sm:$0xff] %v2164
      %s2358 = scalar_lea.vmem [#allocation1], 1
      %2359 = vst [vmem:[%s2358] ss:$4 sm:$0xff] %v2165
      %v2360 = vld.sshfl [vmem:[#allocation1] sm:$0xff pattern:$0x73625140]
      %2361 = vrot.lane.b32.xlu0 %v2360, 16
      %v2362 = vpop.permute.xlu0 %2361
      %2364 = vst [vmem:[#allocation1] ss:$4 sm:$0xff] %v1767
      %s2365 = scalar_lea.vmem [#allocation1], 1
      %2366 = vst [vmem:[%s2365] ss:$4 sm:$0xff] %v1768
      %v2367 = vld.sshfl [vmem:[#allocation1] sm:$0xff pattern:$0x73625140]
      %2368 = vrot.lane.b32.xlu0 %v2367, 16
      %v2369 = vpop.permute.xlu0 %2368
      %2371 = vst [vmem:[#allocation1] ss:$4 sm:$0xff] %v2164
      %s2372 = scalar_lea.vmem [#allocation1], 1
      %2373 = vst [vmem:[%s2372] ss:$4 sm:$0xff] %v2165
      %v2374 = vld.sshfl [vmem:[#allocation1] sm:$0xff pattern:$0x73625140]
      %2375 = vrot.lane.b32.xlu0 %v2374, 48
      %v2376 = vpop.permute.xlu0 %2375
      %2380 = vst [vmem:[#allocation1] ss:$4 sm:$0xff] %v2342
      %s2381 = scalar_lea.vmem [#allocation1], 1
      %2382 = vst [vmem:[%s2381] ss:$4 sm:$0xff] %v2349
      %v2383 = vld.sshfl [vmem:[#allocation1] sm:$0xff pattern:$0x73625140]
      %2384 = vrot.lane.b32.xlu0 %v2383, 64
      %v2385 = vpop.permute.xlu0 %2384
      %2387 = vst [vmem:[#allocation1] ss:$4 sm:$0xff] %v1761
      %s2388 = scalar_lea.vmem [#allocation1], 1
      %2389 = vst [vmem:[%s2388] ss:$4 sm:$0xff] %v1762
      %v2390 = vld.sshfl [vmem:[#allocation1] sm:$0xff pattern:$0x73625140]
      %v2392 = vsel %vm730, %v2355, %v2362
      %v2393 = vsel %vm731, %v2392, %v2369
      %v2394 = vsel %vm733, %v2393, %v2376
      %v2395 = vsel %vm738, %v2394, %v2385
      %v2396 = vsel %vm833, %v2395, %v2390
      %v2398 = vsel %vm838, %v2396, 0
      %2400 = vmatpush.msra.mxu0 0.0
      %2401 = vmatpush.msra.mxu0 0.0
      %2402 = vmatpush.msra.mxu0 0.0
      %2403 = vmatpush.msra.mxu0 0.0
      %2404 = vmatpush.msra.mxu0 %v675
      %2405 = vmatpush.msra.mxu0 %v674
      %2406 = vmatpush.msra.mxu0 %v673
      %2407 = vmatpush.msra.mxu0 %v672
      %2408 = vmatpush.msra.mxu0 %v671
      %2409 = vmatpush.msra.mxu0 %v670
      %2410 = vmatpush.msra.mxu0 %v669
      %2411 = vmatpush.msra.mxu0 %v668
      %2412 = vmatpush.msra.mxu0 %v667
      %2413 = vmatpush.msra.mxu0 %v666
      %2414 = vmatpush.msra.mxu0 %v665
      %2415 = vmatpush.msra.mxu0 %v664
      %2416 = vmatmul.f32.gmra.mxu0 %v2398
      %v2417 = vpop.f32.mrf.mxu0
      %v2418 = vadd.f32 %v994, %v2417
      %2419 = vdwg.mxu0
      %v2420 = vxor.u32 %v2418, 2147483648
      %v2421 = vmul.f32 %v2420, 1.442695
      %v2422 = vpow.pop %v2421
      %v2423 = vadd.f32 %v2422, 1.0
      %v2424 = vrcp.pop %v2423
      %v2425 = vmul.f32 %v2423, %v2424
      %v2426 = vsub.f32 1.0, %v2425
      %v2427 = vmul.f32 %v2424, %v2426
      %v2428 = vadd.f32 %v2424, %v2427
      %vm2429 = vweird.f32 %v2423
      %vm2430 = vweird.f32 %v2424
      %vm2431 = vmor %vm2429, %vm2430
      %v2432 = vsel %vm2431, %v2424, %v2428
      %v2433 = vand.u32 2147483647, %v2423
      %vm2434 = vcmp.eq.f32.partialorder %v2433, 8.507059e+37
      %v2435 = vand.u32 %v2423, 2147483648
      %v2436 = vor.u32 1.1754944e-38, %v2435
      %v2437 = vsel %vm2434, %v2436, %v2432
      %v2438 = vmul.f32 1.0, %v2437
      %2440 = vrot.lane.b32.xlu0 %v2418, 80
      %v2441 = vpop.permute.xlu0 %2440
      %v2443 = vmul.f32 %v2438, %v2441
      %2445 = vrot.lane.b32.xlu0 %v2443, 32
      %v2446 = vpop.permute.xlu0 %2445
      %v2448 = vadd.f32 %v2418, %v2446
      %v2449 = vtanh.pop %v2448
      %v2450 = vsub.f32 1.0, %v2438
      %2452 = vrot.lane.b32.xlu0 %v2449, 112
      %v2453 = vpop.permute.xlu0 %2452
      %v2455 = vmul.f32 %v2450, %v2453
      %2456 = vst [vmem:[#allocation1] ss:$4 sm:$0xff] %v1767
      %s2457 = scalar_lea.vmem [#allocation1], 1
      %2458 = vst [vmem:[%s2457] ss:$4 sm:$0xff] %v1768
      %v2459 = vld.sshfl [vmem:[#allocation1] sm:$0xff pattern:$0x73625140]
      %v2461 = vmul.f32 %v2438, %v2459
      %v2462 = vadd.f32 %v2455, %v2461
      %v2464 = vrot.slane %v2462, 2
      %2466 = vst [vmem:[#allocation1] ss:$4 sm:$0xff] %v1761
      %s2467 = scalar_lea.vmem [#allocation1], 1
      %2468 = vst [vmem:[%s2467] ss:$4 sm:$0xff] %v1762
      %v2469 = vld.sshfl [vmem:[#allocation1] sm:$0xff pattern:$0x73625140]
      %v2471 = vmul.f32 %v2438, %v2469
      %v2472 = vadd.f32 %v2455, %v2471
      %v2474 = vrot.slane %v2472, 2
      %v2476 = vperm.slane %v1878, 0
      %v2477 = vlaneseq
      %v2478 = vshrl.u32 %v2477, 7
      %2480 = vset.pattern.permute.xlu0 %v2478
      %2481 = vperm.xlu0 %2480, %v2476
      %v2482 = vpop.permute.xlu0 %2481
      %v2483 = vperm.slane %v1878, 1
      %v2484 = vlaneseq
      %v2485 = vshrl.u32 %v2484, 7
      %2487 = vset.pattern.permute.xlu0 %v2485
      %2488 = vperm.xlu0 %2487, %v2483
      %v2489 = vpop.permute.xlu0 %2488
      %v2490 = vmul.f32 %v2472, %v2482
      %v2491 = vmul.f32 %v2474, %v2489
      %v2492 = vsub.f32 1.0, %v2482
      %v2493 = vsub.f32 1.0, %v2489
      %v2494 = vmul.f32 %v2292, %v2492
      %v2495 = vmul.f32 %v2294, %v2493
      %v2496 = vadd.f32 %v2490, %v2494
      %v2497 = vadd.f32 %v2491, %v2495
      %v2498 = vmul.f32 %v2282, %v2482
      %v2499 = vmul.f32 %v2284, %v2489
      %v2500 = vmul.f32 %v2462, %v2492
      %v2501 = vmul.f32 %v2464, %v2493
      %v2502 = vadd.f32 %v2498, %v2500
      %v2503 = vadd.f32 %v2499, %v2501
      %2506 = vst [vmem:[#allocation1] ss:$4 sm:$0xff] %v2496
      %v2507 = vld.sshfl [vmem:[#allocation1] sm:$0xff pattern:$0x73625140]
      %s2508 = scalar_lea.vmem [#allocation1], 32
      %2509 = vst [vmem:[%s2508] ss:$4 sm:$0xff] %v2497
      %v2510 = vld.sshfl [vmem:[#allocation1 + $0x20] sm:$0xff pattern:$0x73625140]
      %2511 = vrot.lane.b32.xlu0 %v2507, 48
      %v2512 = vpop.permute.xlu0 %2511
      %2513 = vrot.lane.b32.xlu0 %v2510, 48
      %v2514 = vpop.permute.xlu0 %2513
      %v2517 = vmul.f32 %v1887, %v2512
      %v2518 = vmul.f32 %v1894, %v2514
      %v2519 = vsel %vm916, %v2517, 0.0
      %v2520 = vrot.slane %v2519, 4
      %v2521 = vadd.f32 %v2519, %v2520
      %v2522 = vrot.slane %v2521, 2
      %v2523 = vadd.f32 %v2521, %v2522
      %v2524 = vrot.slane %v2523, 1
      %v2525 = vadd.f32 %v2523, %v2524
      %v2526 = vsel %vm916, %v2518, 0.0
      %v2527 = vrot.slane %v2526, 4
      %v2528 = vadd.f32 %v2526, %v2527
      %v2529 = vrot.slane %v2528, 2
      %v2530 = vadd.f32 %v2528, %v2529
      %v2531 = vrot.slane %v2530, 1
      %v2532 = vadd.f32 %v2530, %v2531
      %v2535 = vsel %vm723, %v2532, %v2525
      %2536 = vrot.lane.b32.xlu0 %v2535, 16
      %v2537 = vpop.permute.xlu0 %2536
      %2539 = vrot.lane.b32.xlu0 %v2031, 16
      %v2540 = vpop.permute.xlu0 %2539
      %2543 = vrot.lane.b32.xlu0 %v1874, 32
      %v2544 = vpop.permute.xlu0 %2543
      %v2546 = vsel %vm730, %v1876, %v2537
      %v2547 = vsel %vm731, %v2546, %v2540
      %v2548 = vsel %vm733, %v2547, %v2544
      %v2550 = vsel %vm738, %v2548, 0
      %2552 = vmatpush.msra.mxu0 0.0
      %2553 = vmatpush.msra.mxu0 0.0
      %2554 = vmatpush.msra.mxu0 0.0
      %2555 = vmatpush.msra.mxu0 0.0
      %2556 = vmatpush.msra.mxu0 0.0
      %2557 = vmatpush.msra.mxu0 0.0
      %2558 = vmatpush.msra.mxu0 0.0
      %2559 = vmatpush.msra.mxu0 0.0
      %2560 = vmatpush.msra.mxu0 %v684
      %2561 = vmatpush.msra.mxu0 %v683
      %2562 = vmatpush.msra.mxu0 %v682
      %2563 = vmatpush.msra.mxu0 %v681
      %2564 = vmatpush.msra.mxu0 %v680
      %2565 = vmatpush.msra.mxu0 %v679
      %2566 = vmatpush.msra.mxu0 %v678
      %2567 = vmatpush.msra.mxu0 %v677
      %2568 = vmatmul.f32.gmra.mxu0 %v2550
      %v2569 = vpop.f32.mrf.mxu0
      %v2570 = vadd.f32 %v1130, %v2569
      %2571 = vdwg.mxu0
      %v2572 = vxor.u32 %v2570, 2147483648
      %v2573 = vmul.f32 %v2572, 1.442695
      %v2574 = vpow.pop %v2573
      %v2575 = vadd.f32 %v2574, 1.0
      %v2576 = vrcp.pop %v2575
      %v2577 = vmul.f32 %v2575, %v2576
      %v2578 = vsub.f32 1.0, %v2577
      %v2579 = vmul.f32 %v2576, %v2578
      %v2580 = vadd.f32 %v2576, %v2579
      %vm2581 = vweird.f32 %v2575
      %vm2582 = vweird.f32 %v2576
      %vm2583 = vmor %vm2581, %vm2582
      %v2584 = vsel %vm2583, %v2576, %v2580
      %v2585 = vand.u32 2147483647, %v2575
      %vm2586 = vcmp.eq.f32.partialorder %v2585, 8.507059e+37
      %v2587 = vand.u32 %v2575, 2147483648
      %v2588 = vor.u32 1.1754944e-38, %v2587
      %v2589 = vsel %vm2586, %v2588, %v2584
      %v2590 = vmul.f32 1.0, %v2589
      %2592 = vrot.lane.b32.xlu0 %v2570, 80
      %v2593 = vpop.permute.xlu0 %2592
      %v2595 = vmul.f32 %v2590, %v2593
      %2597 = vrot.lane.b32.xlu0 %v2595, 32
      %v2598 = vpop.permute.xlu0 %2597
      %v2600 = vadd.f32 %v2570, %v2598
      %v2601 = vtanh.pop %v2600
      %v2602 = vsub.f32 1.0, %v2590
      %2604 = vrot.lane.b32.xlu0 %v2601, 112
      %v2605 = vpop.permute.xlu0 %2604
      %v2607 = vmul.f32 %v2602, %v2605
      %v2608 = vmul.f32 %v2590, %v1874
      %v2609 = vadd.f32 %v2607, %v2608
      %s2610 = scalar_lea.vmem %s587, 6
      %v2611 = vld [vmem:[%s2610] sm:$0x3]
      %s2612 = scalar_lea.vmem %s592, 6
      %v2613 = vld [vmem:[%s2612] sm:$0x3]
      %s2614 = scalar_lea.vmem %s597, 6
      %v2615 = vld [vmem:[%s2614] sm:$0x3]
      %v2616 = vperm.slane %v2615, 0
      %v2617 = vlaneseq
      %v2618 = vshrl.u32 %v2617, 7
      %2620 = vset.pattern.permute.xlu0 %v2618
      %2621 = vperm.xlu0 %2620, %v2616
      %v2622 = vpop.permute.xlu0 %2621
      %v2623 = vperm.slane %v2615, 1
      %v2624 = vlaneseq
      %v2625 = vshrl.u32 %v2624, 7
      %2627 = vset.pattern.permute.xlu0 %v2625
      %2628 = vperm.xlu0 %2627, %v2623
      %v2629 = vpop.permute.xlu0 %2628
      %2630 = vst [vmem:[#allocation1] ss:$4 sm:$0xff] %v2496
      %v2631 = vld.sshfl [vmem:[#allocation1] sm:$0xff pattern:$0x73625140]
      %s2632 = scalar_lea.vmem [#allocation1], 32
      %2633 = vst [vmem:[%s2632] ss:$4 sm:$0xff] %v2497
      %v2634 = vld.sshfl [vmem:[#allocation1 + $0x20] sm:$0xff pattern:$0x73625140]
      %2635 = vrot.lane.b32.xlu0 %v2631, 48
      %v2636 = vpop.permute.xlu0 %2635
      %2637 = vrot.lane.b32.xlu0 %v2634, 48
      %v2638 = vpop.permute.xlu0 %2637
      %v2641 = vmul.f32 %v2622, %v2636
      %v2642 = vmul.f32 %v2629, %v2638
      %v2643 = vsel %vm916, %v2641, 0.0
      %v2644 = vrot.slane %v2643, 4
      %v2645 = vadd.f32 %v2643, %v2644
      %v2646 = vrot.slane %v2645, 2
      %v2647 = vadd.f32 %v2645, %v2646
      %v2648 = vrot.slane %v2647, 1
      %v2649 = vadd.f32 %v2647, %v2648
      %v2650 = vsel %vm916, %v2642, 0.0
      %v2651 = vrot.slane %v2650, 4
      %v2652 = vadd.f32 %v2650, %v2651
      %v2653 = vrot.slane %v2652, 2
      %v2654 = vadd.f32 %v2652, %v2653
      %v2655 = vrot.slane %v2654, 1
      %v2656 = vadd.f32 %v2654, %v2655
      %2659 = vst [vmem:[#allocation1] ss:$4 sm:$0xff] %v2502
      %v2660 = vld.sshfl [vmem:[#allocation1] sm:$0xff pattern:$0x73625140]
      %s2661 = scalar_lea.vmem [#allocation1], 32
      %2662 = vst [vmem:[%s2661] ss:$4 sm:$0xff] %v2503
      %v2663 = vld.sshfl [vmem:[#allocation1 + $0x20] sm:$0xff pattern:$0x73625140]
      %2664 = vrot.lane.b32.xlu0 %v2660, 112
      %v2665 = vpop.permute.xlu0 %2664
      %2666 = vrot.lane.b32.xlu0 %v2663, 112
      %v2667 = vpop.permute.xlu0 %2666
      %v2670 = vmul.f32 %v2622, %v2665
      %v2671 = vmul.f32 %v2629, %v2667
      %v2672 = vsel %vm916, %v2670, 0.0
      %v2673 = vrot.slane %v2672, 4
      %v2674 = vadd.f32 %v2672, %v2673
      %v2675 = vrot.slane %v2674, 2
      %v2676 = vadd.f32 %v2674, %v2675
      %v2677 = vrot.slane %v2676, 1
      %v2678 = vadd.f32 %v2676, %v2677
      %v2679 = vsel %vm916, %v2671, 0.0
      %v2680 = vrot.slane %v2679, 4
      %v2681 = vadd.f32 %v2679, %v2680
      %v2682 = vrot.slane %v2681, 2
      %v2683 = vadd.f32 %v2681, %v2682
      %v2684 = vrot.slane %v2683, 1
      %v2685 = vadd.f32 %v2683, %v2684
      %v2688 = vsel %vm723, %v2656, %v2649
      %v2692 = vsel %vm723, %v2685, %v2678
      %2693 = vrot.lane.b32.xlu0 %v2692, 16
      %v2694 = vpop.permute.xlu0 %2693
      %2697 = vrot.lane.b32.xlu0 %v2611, 32
      %v2698 = vpop.permute.xlu0 %2697
      %2700 = vrot.lane.b32.xlu0 %v2031, 32
      %v2701 = vpop.permute.xlu0 %2700
      %v2703 = vsel %vm730, %v2688, %v2694
      %v2704 = vsel %vm731, %v2703, %v2698
      %v2705 = vsel %vm733, %v2704, %v2701
      %v2707 = vsel %vm738, %v2705, 0
      %2709 = vmatpush.msra.mxu0 0.0
      %2710 = vmatpush.msra.mxu0 0.0
      %2711 = vmatpush.msra.mxu0 0.0
      %2712 = vmatpush.msra.mxu0 0.0
      %2713 = vmatpush.msra.mxu0 0.0
      %2714 = vmatpush.msra.mxu0 0.0
      %2715 = vmatpush.msra.mxu0 0.0
      %2716 = vmatpush.msra.mxu0 0.0
      %2717 = vmatpush.msra.mxu0 %v649
      %2718 = vmatpush.msra.mxu0 %v648
      %2719 = vmatpush.msra.mxu0 %v647
      %2720 = vmatpush.msra.mxu0 %v646
      %2721 = vmatpush.msra.mxu0 %v645
      %2722 = vmatpush.msra.mxu0 %v644
      %2723 = vmatpush.msra.mxu0 %v643
      %2724 = vmatpush.msra.mxu0 %v642
      %2725 = vmatmul.f32.gmra.mxu0 %v2707
      %v2726 = vpop.f32.mrf.mxu0
      %v2727 = vadd.f32 %v736, %v2726
      %2728 = vdwg.mxu0
      %v2729 = vxor.u32 %v2727, 2147483648
      %v2730 = vmul.f32 %v2729, 1.442695
      %v2731 = vpow.pop %v2730
      %v2732 = vadd.f32 %v2731, 1.0
      %v2733 = vrcp.pop %v2732
      %v2734 = vmul.f32 %v2732, %v2733
      %v2735 = vsub.f32 1.0, %v2734
      %v2736 = vmul.f32 %v2733, %v2735
      %v2737 = vadd.f32 %v2733, %v2736
      %vm2738 = vweird.f32 %v2732
      %vm2739 = vweird.f32 %v2733
      %vm2740 = vmor %vm2738, %vm2739
      %v2741 = vsel %vm2740, %v2733, %v2737
      %v2742 = vand.u32 2147483647, %v2732
      %vm2743 = vcmp.eq.f32.partialorder %v2742, 8.507059e+37
      %v2744 = vand.u32 %v2732, 2147483648
      %v2745 = vor.u32 1.1754944e-38, %v2744
      %v2746 = vsel %vm2743, %v2745, %v2741
      %v2747 = vmul.f32 1.0, %v2746
      %2749 = vrot.lane.b32.xlu0 %v2727, 80
      %v2750 = vpop.permute.xlu0 %2749
      %v2752 = vmul.f32 %v2747, %v2750
      %2754 = vrot.lane.b32.xlu0 %v2752, 32
      %v2755 = vpop.permute.xlu0 %2754
      %v2757 = vadd.f32 %v2727, %v2755
      %v2758 = vtanh.pop %v2757
      %v2759 = vsub.f32 1.0, %v2747
      %2761 = vrot.lane.b32.xlu0 %v2758, 112
      %v2762 = vpop.permute.xlu0 %2761
      %v2764 = vmul.f32 %v2759, %v2762
      %v2765 = vmul.f32 %v2747, %v2031
      %v2766 = vadd.f32 %v2764, %v2765
      %v2769 = vsel %vm706, %v2035, %v2168
      %v2770 = vsel %vm706, %v2036, %v2169
      %v2771 = vmul.f32 %v2769, %v2039
      %v2772 = vmul.f32 %v2770, %v2039
      %2775 = vrot.lane.b32.xlu0 %v2771, 112
      %v2776 = vpop.permute.xlu0 %2775
      %2777 = vrot.lane.b32.xlu0 %v2772, 112
      %v2778 = vpop.permute.xlu0 %2777
      %vm2781 = vcmask 124928
      %v2782 = vsel %vm2781, %v2776, 0.0
      %2783 = vadd.xlane.f32.xlu0 %v2782
      %v2784 = vpop.xlane.xlu0 %2783
      %v2785 = vsel %vm2781, %v2778, 0.0
      %2786 = vadd.xlane.f32.xlu0 %v2785
      %v2787 = vpop.xlane.xlu0 %2786
      %v2790 = vperm.slane %v2784, %v2060
      %v2791 = vperm.slane %v2787, %v2060
      %v2792 = vsel %vm723, %v2791, %v2790
      %vm2794 = vcmask 17408
      %v2795 = vsel %vm2794, %v2792, -inf
      %2796 = vmax.xlane.f32.xlu0 %v2795
      %v2797 = vpop.xlane.xlu0 %2796
      %v2799 = vperm.slane %v2797, 0
      %v2800 = vperm.slane %v2797, 1
      %v2803 = vsub.f32 %v2784, %v2799
      %v2804 = vsub.f32 %v2787, %v2800
      %v2805 = vmul.f32 %v2803, 1.442695
      %v2806 = vpow.pop %v2805
      %v2807 = vmul.f32 %v2804, 1.442695
      %v2808 = vpow.pop %v2807
      %2811 = vset.pattern.permute.xlu0 0
      %2812 = vperm.xlu0 %2811, %v2806
      %v2813 = vpop.permute.xlu0 %2812
      %2814 = vset.pattern.permute.xlu0 0
      %2815 = vperm.xlu0 %2814, %v2808
      %v2816 = vpop.permute.xlu0 %2815
      %v2817 = vperm.slane %v2813, %v2060
      %v2818 = vperm.slane %v2816, %v2060
      %v2819 = vsel %vm723, %v2818, %v2817
      %v2821 = vsel %vm2794, %v2819, 0.0
      %2822 = vadd.xlane.f32.xlu0 %v2821
      %v2823 = vpop.xlane.xlu0 %2822
      %v2825 = vperm.slane %v2823, 0
      %v2826 = vperm.slane %v2823, 1
      %v2829 = vrcp.pop %v2825
      %v2830 = vmul.f32 %v2825, %v2829
      %v2831 = vsub.f32 1.0, %v2830
      %v2832 = vmul.f32 %v2829, %v2831
      %v2833 = vadd.f32 %v2829, %v2832
      %vm2834 = vweird.f32 %v2825
      %vm2835 = vweird.f32 %v2829
      %vm2836 = vmor %vm2834, %vm2835
      %v2837 = vsel %vm2836, %v2829, %v2833
      %v2838 = vand.u32 2147483647, %v2825
      %vm2839 = vcmp.eq.f32.partialorder %v2838, 8.507059e+37
      %v2840 = vand.u32 %v2825, 2147483648
      %v2841 = vor.u32 1.1754944e-38, %v2840
      %v2842 = vsel %vm2839, %v2841, %v2837
      %v2843 = vmul.f32 %v2806, %v2842
      %v2844 = vrcp.pop %v2826
      %v2845 = vmul.f32 %v2826, %v2844
      %v2846 = vsub.f32 1.0, %v2845
      %v2847 = vmul.f32 %v2844, %v2846
      %v2848 = vadd.f32 %v2844, %v2847
      %vm2849 = vweird.f32 %v2826
      %vm2850 = vweird.f32 %v2844
      %vm2851 = vmor %vm2849, %vm2850
      %v2852 = vsel %vm2851, %v2844, %v2848
      %v2853 = vand.u32 2147483647, %v2826
      %vm2854 = vcmp.eq.f32.partialorder %v2853, 8.507059e+37
      %v2855 = vand.u32 %v2826, 2147483648
      %v2856 = vor.u32 1.1754944e-38, %v2855
      %v2857 = vsel %vm2854, %v2856, %v2852
      %v2858 = vmul.f32 %v2808, %v2857
      %2860 = vset.pattern.permute.xlu0 0
      %2861 = vperm.xlu0 %2860, %v2843
      %v2862 = vpop.permute.xlu0 %2861
      %2865 = vset.pattern.permute.xlu0 0
      %2866 = vperm.xlu0 %2865, %v2858
      %v2867 = vpop.permute.xlu0 %2866
      %v2869 = vmul.f32 %v2862, %v2769
      %v2870 = vmul.f32 %v2867, %v2770
      %vm2871 = vcmask 256128
      %v2872 = vsel %vm2871, %v2869, 0.0
      %v2873 = vrot.slane %v2872, 4
      %v2874 = vadd.f32 %v2872, %v2873
      %v2875 = vrot.slane %v2874, 2
      %v2876 = vadd.f32 %v2874, %v2875
      %v2877 = vrot.slane %v2876, 1
      %v2878 = vadd.f32 %v2876, %v2877
      %v2879 = vsel %vm2871, %v2870, 0.0
      %v2880 = vrot.slane %v2879, 4
      %v2881 = vadd.f32 %v2879, %v2880
      %v2882 = vrot.slane %v2881, 2
      %v2883 = vadd.f32 %v2881, %v2882
      %v2884 = vrot.slane %v2883, 1
      %v2885 = vadd.f32 %v2883, %v2884
      %v2886 = vperm.slane %v2862, %v2060
      %v2887 = vperm.slane %v2867, %v2060
      %v2888 = vsel %vm723, %v2887, %v2886
      %vm2890 = vcmask 23552
      %v2891 = vsel %vm2890, %v2888, 0.0
      %v2892 = vrot.slane %v2611, 1
      %v2893 = vperm.slane %v2611, 0
      %v2894 = vperm.slane %v2892, 0
      %v2896 = vrot.slane %v2766, 1
      %v2897 = vperm.slane %v2766, 0
      %v2898 = vperm.slane %v2896, 0
      %2901 = vst [vmem:[#allocation1] ss:$4 sm:$0xff] %v2878
      %s2902 = scalar_lea.vmem [#allocation1], 1
      %2903 = vst [vmem:[%s2902] ss:$4 sm:$0xff] %v2885
      %v2904 = vld.sshfl [vmem:[#allocation1] sm:$0xff pattern:$0x73625140]
      %2905 = vrot.lane.b32.xlu0 %v2904, 112
      %v2906 = vpop.permute.xlu0 %2905
      %2908 = vst [vmem:[#allocation1] ss:$4 sm:$0xff] %v2893
      %s2909 = scalar_lea.vmem [#allocation1], 1
      %2910 = vst [vmem:[%s2909] ss:$4 sm:$0xff] %v2894
      %v2911 = vld.sshfl [vmem:[#allocation1] sm:$0xff pattern:$0x73625140]
      %2912 = vrot.lane.b32.xlu0 %v2911, 16
      %v2913 = vpop.permute.xlu0 %2912
      %2915 = vst [vmem:[#allocation1] ss:$4 sm:$0xff] %v2502
      %s2916 = scalar_lea.vmem [#allocation1], 1
      %2917 = vst [vmem:[%s2916] ss:$4 sm:$0xff] %v2503
      %v2918 = vld.sshfl [vmem:[#allocation1] sm:$0xff pattern:$0x73625140]
      %2919 = vrot.lane.b32.xlu0 %v2918, 16
      %v2920 = vpop.permute.xlu0 %2919
      %2922 = vst [vmem:[#allocation1] ss:$4 sm:$0xff] %v2893
      %s2923 = scalar_lea.vmem [#allocation1], 1
      %2924 = vst [vmem:[%s2923] ss:$4 sm:$0xff] %v2894
      %v2925 = vld.sshfl [vmem:[#allocation1] sm:$0xff pattern:$0x73625140]
      %2926 = vrot.lane.b32.xlu0 %v2925, 48
      %v2927 = vpop.permute.xlu0 %2926
      %2929 = vst [vmem:[#allocation1] ss:$4 sm:$0xff] %v2897
      %s2930 = scalar_lea.vmem [#allocation1], 1
      %2931 = vst [vmem:[%s2930] ss:$4 sm:$0xff] %v2898
      %v2932 = vld.sshfl [vmem:[#allocation1] sm:$0xff pattern:$0x73625140]
      %2933 = vrot.lane.b32.xlu0 %v2932, 48
      %v2934 = vpop.permute.xlu0 %2933
      %2936 = vst [vmem:[#allocation1] ss:$4 sm:$0xff] %v2496
      %s2937 = scalar_lea.vmem [#allocation1], 1
      %2938 = vst [vmem:[%s2937] ss:$4 sm:$0xff] %v2497
      %v2939 = vld.sshfl [vmem:[#allocation1] sm:$0xff pattern:$0x73625140]
      %v2941 = vsel %vm730, %v2906, %v2913
      %v2942 = vsel %vm731, %v2941, %v2920
      %v2943 = vsel %vm733, %v2942, %v2927
      %v2944 = vsel %vm738, %v2943, %v2934
      %v2945 = vsel %vm833, %v2944, %v2939
      %v2947 = vsel %vm838, %v2945, 0
      %2949 = vmatpush.msra.mxu0 0.0
      %2950 = vmatpush.msra.mxu0 0.0
      %2951 = vmatpush.msra.mxu0 0.0
      %2952 = vmatpush.msra.mxu0 0.0
      %2953 = vmatpush.msra.mxu0 %v662
      %2954 = vmatpush.msra.mxu0 %v661
      %2955 = vmatpush.msra.mxu0 %v660
      %2956 = vmatpush.msra.mxu0 %v659
      %2957 = vmatpush.msra.mxu0 %v658
      %2958 = vmatpush.msra.mxu0 %v657
      %2959 = vmatpush.msra.mxu0 %v656
      %2960 = vmatpush.msra.mxu0 %v655
      %2961 = vmatpush.msra.mxu0 %v654
      %2962 = vmatpush.msra.mxu0 %v653
      %2963 = vmatpush.msra.mxu0 %v652
      %2964 = vmatpush.msra.mxu0 %v651
      %2965 = vmatmul.f32.gmra.mxu0 %v2947
      %v2966 = vpop.f32.mrf.mxu0
      %v2967 = vadd.f32 %v836, %v2966
      %2968 = vdwg.mxu0
      %v2969 = vxor.u32 %v2967, 2147483648
      %v2970 = vmul.f32 %v2969, 1.442695
      %v2971 = vpow.pop %v2970
      %v2972 = vadd.f32 %v2971, 1.0
      %v2973 = vrcp.pop %v2972
      %v2974 = vmul.f32 %v2972, %v2973
      %v2975 = vsub.f32 1.0, %v2974
      %v2976 = vmul.f32 %v2973, %v2975
      %v2977 = vadd.f32 %v2973, %v2976
      %vm2978 = vweird.f32 %v2972
      %vm2979 = vweird.f32 %v2973
      %vm2980 = vmor %vm2978, %vm2979
      %v2981 = vsel %vm2980, %v2973, %v2977
      %v2982 = vand.u32 2147483647, %v2972
      %vm2983 = vcmp.eq.f32.partialorder %v2982, 8.507059e+37
      %v2984 = vand.u32 %v2972, 2147483648
      %v2985 = vor.u32 1.1754944e-38, %v2984
      %v2986 = vsel %vm2983, %v2985, %v2981
      %v2987 = vmul.f32 1.0, %v2986
      %2989 = vrot.lane.b32.xlu0 %v2967, 80
      %v2990 = vpop.permute.xlu0 %2989
      %v2992 = vmul.f32 %v2987, %v2990
      %2994 = vrot.lane.b32.xlu0 %v2992, 32
      %v2995 = vpop.permute.xlu0 %2994
      %v2997 = vadd.f32 %v2967, %v2995
      %v2998 = vtanh.pop %v2997
      %v2999 = vsub.f32 1.0, %v2987
      %3001 = vrot.lane.b32.xlu0 %v2998, 112
      %v3002 = vpop.permute.xlu0 %3001
      %v3004 = vmul.f32 %v2999, %v3002
      %3005 = vst [vmem:[#allocation1] ss:$4 sm:$0xff] %v2502
      %s3006 = scalar_lea.vmem [#allocation1], 1
      %3007 = vst [vmem:[%s3006] ss:$4 sm:$0xff] %v2503
      %v3008 = vld.sshfl [vmem:[#allocation1] sm:$0xff pattern:$0x73625140]
      %v3010 = vmul.f32 %v2987, %v3008
      %v3011 = vadd.f32 %v3004, %v3010
      %v3013 = vrot.slane %v3011, 2
      %3015 = vst [vmem:[#allocation1] ss:$4 sm:$0xff] %v2496
      %s3016 = scalar_lea.vmem [#allocation1], 1
      %3017 = vst [vmem:[%s3016] ss:$4 sm:$0xff] %v2497
      %v3018 = vld.sshfl [vmem:[#allocation1] sm:$0xff pattern:$0x73625140]
      %v3020 = vmul.f32 %v2987, %v3018
      %v3021 = vadd.f32 %v3004, %v3020
      %v3023 = vrot.slane %v3021, 2
      %3025 = vst [vmem:[#allocation1] ss:$4 sm:$0xff] %v3011
      %v3026 = vld.sshfl [vmem:[#allocation1] sm:$0xff pattern:$0x73625140]
      %s3027 = scalar_lea.vmem [#allocation1], 32
      %3028 = vst [vmem:[%s3027] ss:$4 sm:$0xff] %v3013
      %v3029 = vld.sshfl [vmem:[#allocation1 + $0x20] sm:$0xff pattern:$0x73625140]
      %3030 = vrot.lane.b32.xlu0 %v3026, 112
      %v3031 = vpop.permute.xlu0 %3030
      %3032 = vrot.lane.b32.xlu0 %v3029, 112
      %v3033 = vpop.permute.xlu0 %3032
      %v3036 = vmul.f32 %v2622, %v3031
      %v3037 = vmul.f32 %v2629, %v3033
      %v3038 = vsel %vm916, %v3036, 0.0
      %v3039 = vrot.slane %v3038, 4
      %v3040 = vadd.f32 %v3038, %v3039
      %v3041 = vrot.slane %v3040, 2
      %v3042 = vadd.f32 %v3040, %v3041
      %v3043 = vrot.slane %v3042, 1
      %v3044 = vadd.f32 %v3042, %v3043
      %v3045 = vsel %vm916, %v3037, 0.0
      %v3046 = vrot.slane %v3045, 4
      %v3047 = vadd.f32 %v3045, %v3046
      %v3048 = vrot.slane %v3047, 2
      %v3049 = vadd.f32 %v3047, %v3048
      %v3050 = vrot.slane %v3049, 1
      %v3051 = vadd.f32 %v3049, %v3050
      %3052 = vst [vmem:[#allocation1] ss:$4 sm:$0xff] %v3021
      %v3053 = vld.sshfl [vmem:[#allocation1] sm:$0xff pattern:$0x73625140]
      %s3054 = scalar_lea.vmem [#allocation1], 32
      %3055 = vst [vmem:[%s3054] ss:$4 sm:$0xff] %v3023
      %v3056 = vld.sshfl [vmem:[#allocation1 + $0x20] sm:$0xff pattern:$0x73625140]
      %3057 = vrot.lane.b32.xlu0 %v3053, 48
      %v3058 = vpop.permute.xlu0 %3057
      %3059 = vrot.lane.b32.xlu0 %v3056, 48
      %v3060 = vpop.permute.xlu0 %3059
      %v3063 = vmul.f32 %v2622, %v3058
      %v3064 = vmul.f32 %v2629, %v3060
      %v3065 = vsel %vm916, %v3063, 0.0
      %v3066 = vrot.slane %v3065, 4
      %v3067 = vadd.f32 %v3065, %v3066
      %v3068 = vrot.slane %v3067, 2
      %v3069 = vadd.f32 %v3067, %v3068
      %v3070 = vrot.slane %v3069, 1
      %v3071 = vadd.f32 %v3069, %v3070
      %v3072 = vsel %vm916, %v3064, 0.0
      %v3073 = vrot.slane %v3072, 4
      %v3074 = vadd.f32 %v3072, %v3073
      %v3075 = vrot.slane %v3074, 2
      %v3076 = vadd.f32 %v3074, %v3075
      %v3077 = vrot.slane %v3076, 1
      %v3078 = vadd.f32 %v3076, %v3077
      %3081 = vst [vmem:[#allocation1] ss:$4 sm:$0xff] %v3044
      %s3082 = scalar_lea.vmem [#allocation1], 1
      %3083 = vst [vmem:[%s3082] ss:$4 sm:$0xff] %v3051
      %v3084 = vld.sshfl [vmem:[#allocation1] sm:$0xff pattern:$0x73625140]
      %3086 = vst [vmem:[#allocation1] ss:$4 sm:$0xff] %v2893
      %s3087 = scalar_lea.vmem [#allocation1], 1
      %3088 = vst [vmem:[%s3087] ss:$4 sm:$0xff] %v2894
      %v3089 = vld.sshfl [vmem:[#allocation1] sm:$0xff pattern:$0x73625140]
      %3090 = vrot.lane.b32.xlu0 %v3089, 16
      %v3091 = vpop.permute.xlu0 %3090
      %3093 = vst [vmem:[#allocation1] ss:$4 sm:$0xff] %v2502
      %s3094 = scalar_lea.vmem [#allocation1], 1
      %3095 = vst [vmem:[%s3094] ss:$4 sm:$0xff] %v2503
      %v3096 = vld.sshfl [vmem:[#allocation1] sm:$0xff pattern:$0x73625140]
      %3097 = vrot.lane.b32.xlu0 %v3096, 16
      %v3098 = vpop.permute.xlu0 %3097
      %3100 = vst [vmem:[#allocation1] ss:$4 sm:$0xff] %v2893
      %s3101 = scalar_lea.vmem [#allocation1], 1
      %3102 = vst [vmem:[%s3101] ss:$4 sm:$0xff] %v2894
      %v3103 = vld.sshfl [vmem:[#allocation1] sm:$0xff pattern:$0x73625140]
      %3104 = vrot.lane.b32.xlu0 %v3103, 48
      %v3105 = vpop.permute.xlu0 %3104
      %3109 = vst [vmem:[#allocation1] ss:$4 sm:$0xff] %v3071
      %s3110 = scalar_lea.vmem [#allocation1], 1
      %3111 = vst [vmem:[%s3110] ss:$4 sm:$0xff] %v3078
      %v3112 = vld.sshfl [vmem:[#allocation1] sm:$0xff pattern:$0x73625140]
      %3113 = vrot.lane.b32.xlu0 %v3112, 64
      %v3114 = vpop.permute.xlu0 %3113
      %3116 = vst [vmem:[#allocation1] ss:$4 sm:$0xff] %v2496
      %s3117 = scalar_lea.vmem [#allocation1], 1
      %3118 = vst [vmem:[%s3117] ss:$4 sm:$0xff] %v2497
      %v3119 = vld.sshfl [vmem:[#allocation1] sm:$0xff pattern:$0x73625140]
      %v3121 = vsel %vm730, %v3084, %v3091
      %v3122 = vsel %vm731, %v3121, %v3098
      %v3123 = vsel %vm733, %v3122, %v3105
      %v3124 = vsel %vm738, %v3123, %v3114
      %v3125 = vsel %vm833, %v3124, %v3119
      %v3127 = vsel %vm838, %v3125, 0
      %3129 = vmatpush.msra.mxu0 0.0
      %3130 = vmatpush.msra.mxu0 0.0
      %3131 = vmatpush.msra.mxu0 0.0
      %3132 = vmatpush.msra.mxu0 0.0
      %3133 = vmatpush.msra.mxu0 %v675
      %3134 = vmatpush.msra.mxu0 %v674
      %3135 = vmatpush.msra.mxu0 %v673
      %3136 = vmatpush.msra.mxu0 %v672
      %3137 = vmatpush.msra.mxu0 %v671
      %3138 = vmatpush.msra.mxu0 %v670
      %3139 = vmatpush.msra.mxu0 %v669
      %3140 = vmatpush.msra.mxu0 %v668
      %3141 = vmatpush.msra.mxu0 %v667
      %3142 = vmatpush.msra.mxu0 %v666
      %3143 = vmatpush.msra.mxu0 %v665
      %3144 = vmatpush.msra.mxu0 %v664
      %3145 = vmatmul.f32.gmra.mxu0 %v3127
      %v3146 = vpop.f32.mrf.mxu0
      %v3147 = vadd.f32 %v994, %v3146
      %3148 = vdwg.mxu0
      %v3149 = vxor.u32 %v3147, 2147483648
      %v3150 = vmul.f32 %v3149, 1.442695
      %v3151 = vpow.pop %v3150
      %v3152 = vadd.f32 %v3151, 1.0
      %v3153 = vrcp.pop %v3152
      %v3154 = vmul.f32 %v3152, %v3153
      %v3155 = vsub.f32 1.0, %v3154
      %v3156 = vmul.f32 %v3153, %v3155
      %v3157 = vadd.f32 %v3153, %v3156
      %vm3158 = vweird.f32 %v3152
      %vm3159 = vweird.f32 %v3153
      %vm3160 = vmor %vm3158, %vm3159
      %v3161 = vsel %vm3160, %v3153, %v3157
      %v3162 = vand.u32 2147483647, %v3152
      %vm3163 = vcmp.eq.f32.partialorder %v3162, 8.507059e+37
      %v3164 = vand.u32 %v3152, 2147483648
      %v3165 = vor.u32 1.1754944e-38, %v3164
      %v3166 = vsel %vm3163, %v3165, %v3161
      %v3167 = vmul.f32 1.0, %v3166
      %3169 = vrot.lane.b32.xlu0 %v3147, 80
      %v3170 = vpop.permute.xlu0 %3169
      %v3172 = vmul.f32 %v3167, %v3170
      %3174 = vrot.lane.b32.xlu0 %v3172, 32
      %v3175 = vpop.permute.xlu0 %3174
      %v3177 = vadd.f32 %v3147, %v3175
      %v3178 = vtanh.pop %v3177
      %v3179 = vsub.f32 1.0, %v3167
      %3181 = vrot.lane.b32.xlu0 %v3178, 112
      %v3182 = vpop.permute.xlu0 %3181
      %v3184 = vmul.f32 %v3179, %v3182
      %3185 = vst [vmem:[#allocation1] ss:$4 sm:$0xff] %v2502
      %s3186 = scalar_lea.vmem [#allocation1], 1
      %3187 = vst [vmem:[%s3186] ss:$4 sm:$0xff] %v2503
      %v3188 = vld.sshfl [vmem:[#allocation1] sm:$0xff pattern:$0x73625140]
      %v3190 = vmul.f32 %v3167, %v3188
      %v3191 = vadd.f32 %v3184, %v3190
      %v3193 = vrot.slane %v3191, 2
      %3195 = vst [vmem:[#allocation1] ss:$4 sm:$0xff] %v2496
      %s3196 = scalar_lea.vmem [#allocation1], 1
      %3197 = vst [vmem:[%s3196] ss:$4 sm:$0xff] %v2497
      %v3198 = vld.sshfl [vmem:[#allocation1] sm:$0xff pattern:$0x73625140]
      %v3200 = vmul.f32 %v3167, %v3198
      %v3201 = vadd.f32 %v3184, %v3200
      %v3203 = vrot.slane %v3201, 2
      %v3205 = vperm.slane %v2613, 0
      %v3206 = vlaneseq
      %v3207 = vshrl.u32 %v3206, 7
      %3209 = vset.pattern.permute.xlu0 %v3207
      %3210 = vperm.xlu0 %3209, %v3205
      %v3211 = vpop.permute.xlu0 %3210
      %v3212 = vperm.slane %v2613, 1
      %v3213 = vlaneseq
      %v3214 = vshrl.u32 %v3213, 7
      %3216 = vset.pattern.permute.xlu0 %v3214
      %3217 = vperm.xlu0 %3216, %v3212
      %v3218 = vpop.permute.xlu0 %3217
      %v3219 = vmul.f32 %v3201, %v3211
      %v3220 = vmul.f32 %v3203, %v3218
      %v3221 = vsub.f32 1.0, %v3211
      %v3222 = vsub.f32 1.0, %v3218
      %v3223 = vmul.f32 %v3021, %v3221
      %v3224 = vmul.f32 %v3023, %v3222
      %v3225 = vadd.f32 %v3219, %v3223
      %v3226 = vadd.f32 %v3220, %v3224
      %v3227 = vmul.f32 %v3011, %v3211
      %v3228 = vmul.f32 %v3013, %v3218
      %v3229 = vmul.f32 %v3191, %v3221
      %v3230 = vmul.f32 %v3193, %v3222
      %v3231 = vadd.f32 %v3227, %v3229
      %v3232 = vadd.f32 %v3228, %v3230
      %3235 = vst [vmem:[#allocation1] ss:$4 sm:$0xff] %v3225
      %v3236 = vld.sshfl [vmem:[#allocation1] sm:$0xff pattern:$0x73625140]
      %s3237 = scalar_lea.vmem [#allocation1], 32
      %3238 = vst [vmem:[%s3237] ss:$4 sm:$0xff] %v3226
      %v3239 = vld.sshfl [vmem:[#allocation1 + $0x20] sm:$0xff pattern:$0x73625140]
      %3240 = vrot.lane.b32.xlu0 %v3236, 48
      %v3241 = vpop.permute.xlu0 %3240
      %3242 = vrot.lane.b32.xlu0 %v3239, 48
      %v3243 = vpop.permute.xlu0 %3242
      %v3246 = vmul.f32 %v2622, %v3241
      %v3247 = vmul.f32 %v2629, %v3243
      %v3248 = vsel %vm916, %v3246, 0.0
      %v3249 = vrot.slane %v3248, 4
      %v3250 = vadd.f32 %v3248, %v3249
      %v3251 = vrot.slane %v3250, 2
      %v3252 = vadd.f32 %v3250, %v3251
      %v3253 = vrot.slane %v3252, 1
      %v3254 = vadd.f32 %v3252, %v3253
      %v3255 = vsel %vm916, %v3247, 0.0
      %v3256 = vrot.slane %v3255, 4
      %v3257 = vadd.f32 %v3255, %v3256
      %v3258 = vrot.slane %v3257, 2
      %v3259 = vadd.f32 %v3257, %v3258
      %v3260 = vrot.slane %v3259, 1
      %v3261 = vadd.f32 %v3259, %v3260
      %v3264 = vsel %vm723, %v3261, %v3254
      %3265 = vrot.lane.b32.xlu0 %v3264, 16
      %v3266 = vpop.permute.xlu0 %3265
      %3268 = vrot.lane.b32.xlu0 %v2766, 16
      %v3269 = vpop.permute.xlu0 %3268
      %3272 = vrot.lane.b32.xlu0 %v2609, 32
      %v3273 = vpop.permute.xlu0 %3272
      %v3275 = vsel %vm730, %v2611, %v3266
      %v3276 = vsel %vm731, %v3275, %v3269
      %v3277 = vsel %vm733, %v3276, %v3273
      %v3279 = vsel %vm738, %v3277, 0
      %3281 = vmatpush.msra.mxu0 0.0
      %3282 = vmatpush.msra.mxu0 0.0
      %3283 = vmatpush.msra.mxu0 0.0
      %3284 = vmatpush.msra.mxu0 0.0
      %3285 = vmatpush.msra.mxu0 0.0
      %3286 = vmatpush.msra.mxu0 0.0
      %3287 = vmatpush.msra.mxu0 0.0
      %3288 = vmatpush.msra.mxu0 0.0
      %3289 = vmatpush.msra.mxu0 %v684
      %3290 = vmatpush.msra.mxu0 %v683
      %3291 = vmatpush.msra.mxu0 %v682
      %3292 = vmatpush.msra.mxu0 %v681
      %3293 = vmatpush.msra.mxu0 %v680
      %3294 = vmatpush.msra.mxu0 %v679
      %3295 = vmatpush.msra.mxu0 %v678
      %3296 = vmatpush.msra.mxu0 %v677
      %3297 = vmatmul.f32.gmra.mxu0 %v3279
      %v3298 = vpop.f32.mrf.mxu0
      %v3299 = vadd.f32 %v1130, %v3298
      %3300 = vdwg.mxu0
      %v3301 = vxor.u32 %v3299, 2147483648
      %v3302 = vmul.f32 %v3301, 1.442695
      %v3303 = vpow.pop %v3302
      %v3304 = vadd.f32 %v3303, 1.0
      %v3305 = vrcp.pop %v3304
      %v3306 = vmul.f32 %v3304, %v3305
      %v3307 = vsub.f32 1.0, %v3306
      %v3308 = vmul.f32 %v3305, %v3307
      %v3309 = vadd.f32 %v3305, %v3308
      %vm3310 = vweird.f32 %v3304
      %vm3311 = vweird.f32 %v3305
      %vm3312 = vmor %vm3310, %vm3311
      %v3313 = vsel %vm3312, %v3305, %v3309
      %v3314 = vand.u32 2147483647, %v3304
      %vm3315 = vcmp.eq.f32.partialorder %v3314, 8.507059e+37
      %v3316 = vand.u32 %v3304, 2147483648
      %v3317 = vor.u32 1.1754944e-38, %v3316
      %v3318 = vsel %vm3315, %v3317, %v3313
      %v3319 = vmul.f32 1.0, %v3318
      %3321 = vrot.lane.b32.xlu0 %v3299, 80
      %v3322 = vpop.permute.xlu0 %3321
      %v3324 = vmul.f32 %v3319, %v3322
      %3326 = vrot.lane.b32.xlu0 %v3324, 32
      %v3327 = vpop.permute.xlu0 %3326
      %v3329 = vadd.f32 %v3299, %v3327
      %v3330 = vtanh.pop %v3329
      %v3331 = vsub.f32 1.0, %v3319
      %3333 = vrot.lane.b32.xlu0 %v3330, 112
      %v3334 = vpop.permute.xlu0 %3333
      %v3336 = vmul.f32 %v3331, %v3334
      %v3337 = vmul.f32 %v3319, %v2609
      %v3338 = vadd.f32 %v3336, %v3337
      %s3339 = scalar_lea.vmem %s587, 8
      %v3340 = vld [vmem:[%s3339] sm:$0x3]
      %s3341 = scalar_lea.vmem %s592, 8
      %v3342 = vld [vmem:[%s3341] sm:$0x3]
      %s3343 = scalar_lea.vmem %s597, 8
      %v3344 = vld [vmem:[%s3343] sm:$0x3]
      %v3345 = vperm.slane %v3344, 0
      %v3346 = vlaneseq
      %v3347 = vshrl.u32 %v3346, 7
      %3349 = vset.pattern.permute.xlu0 %v3347
      %3350 = vperm.xlu0 %3349, %v3345
      %v3351 = vpop.permute.xlu0 %3350
      %v3352 = vperm.slane %v3344, 1
      %v3353 = vlaneseq
      %v3354 = vshrl.u32 %v3353, 7
      %3356 = vset.pattern.permute.xlu0 %v3354
      %3357 = vperm.xlu0 %3356, %v3352
      %v3358 = vpop.permute.xlu0 %3357
      %3359 = vst [vmem:[#allocation1] ss:$4 sm:$0xff] %v3225
      %v3360 = vld.sshfl [vmem:[#allocation1] sm:$0xff pattern:$0x73625140]
      %s3361 = scalar_lea.vmem [#allocation1], 32
      %3362 = vst [vmem:[%s3361] ss:$4 sm:$0xff] %v3226
      %v3363 = vld.sshfl [vmem:[#allocation1 + $0x20] sm:$0xff pattern:$0x73625140]
      %3364 = vrot.lane.b32.xlu0 %v3360, 48
      %v3365 = vpop.permute.xlu0 %3364
      %3366 = vrot.lane.b32.xlu0 %v3363, 48
      %v3367 = vpop.permute.xlu0 %3366
      %v3370 = vmul.f32 %v3351, %v3365
      %v3371 = vmul.f32 %v3358, %v3367
      %v3372 = vsel %vm916, %v3370, 0.0
      %v3373 = vrot.slane %v3372, 4
      %v3374 = vadd.f32 %v3372, %v3373
      %v3375 = vrot.slane %v3374, 2
      %v3376 = vadd.f32 %v3374, %v3375
      %v3377 = vrot.slane %v3376, 1
      %v3378 = vadd.f32 %v3376, %v3377
      %v3379 = vsel %vm916, %v3371, 0.0
      %v3380 = vrot.slane %v3379, 4
      %v3381 = vadd.f32 %v3379, %v3380
      %v3382 = vrot.slane %v3381, 2
      %v3383 = vadd.f32 %v3381, %v3382
      %v3384 = vrot.slane %v3383, 1
      %v3385 = vadd.f32 %v3383, %v3384
      %3388 = vst [vmem:[#allocation1] ss:$4 sm:$0xff] %v3231
      %v3389 = vld.sshfl [vmem:[#allocation1] sm:$0xff pattern:$0x73625140]
      %s3390 = scalar_lea.vmem [#allocation1], 32
      %3391 = vst [vmem:[%s3390] ss:$4 sm:$0xff] %v3232
      %v3392 = vld.sshfl [vmem:[#allocation1 + $0x20] sm:$0xff pattern:$0x73625140]
      %3393 = vrot.lane.b32.xlu0 %v3389, 112
      %v3394 = vpop.permute.xlu0 %3393
      %3395 = vrot.lane.b32.xlu0 %v3392, 112
      %v3396 = vpop.permute.xlu0 %3395
      %v3399 = vmul.f32 %v3351, %v3394
      %v3400 = vmul.f32 %v3358, %v3396
      %v3401 = vsel %vm916, %v3399, 0.0
      %v3402 = vrot.slane %v3401, 4
      %v3403 = vadd.f32 %v3401, %v3402
      %v3404 = vrot.slane %v3403, 2
      %v3405 = vadd.f32 %v3403, %v3404
      %v3406 = vrot.slane %v3405, 1
      %v3407 = vadd.f32 %v3405, %v3406
      %v3408 = vsel %vm916, %v3400, 0.0
      %v3409 = vrot.slane %v3408, 4
      %v3410 = vadd.f32 %v3408, %v3409
      %v3411 = vrot.slane %v3410, 2
      %v3412 = vadd.f32 %v3410, %v3411
      %v3413 = vrot.slane %v3412, 1
      %v3414 = vadd.f32 %v3412, %v3413
      %v3417 = vsel %vm723, %v3385, %v3378
      %v3421 = vsel %vm723, %v3414, %v3407
      %3422 = vrot.lane.b32.xlu0 %v3421, 16
      %v3423 = vpop.permute.xlu0 %3422
      %3426 = vrot.lane.b32.xlu0 %v3340, 32
      %v3427 = vpop.permute.xlu0 %3426
      %3429 = vrot.lane.b32.xlu0 %v2766, 32
      %v3430 = vpop.permute.xlu0 %3429
      %v3432 = vsel %vm730, %v3417, %v3423
      %v3433 = vsel %vm731, %v3432, %v3427
      %v3434 = vsel %vm733, %v3433, %v3430
      %v3436 = vsel %vm738, %v3434, 0
      %3438 = vmatpush.msra.mxu0 0.0
      %3439 = vmatpush.msra.mxu0 0.0
      %3440 = vmatpush.msra.mxu0 0.0
      %3441 = vmatpush.msra.mxu0 0.0
      %3442 = vmatpush.msra.mxu0 0.0
      %3443 = vmatpush.msra.mxu0 0.0
      %3444 = vmatpush.msra.mxu0 0.0
      %3445 = vmatpush.msra.mxu0 0.0
      %3446 = vmatpush.msra.mxu0 %v649
      %3447 = vmatpush.msra.mxu0 %v648
      %3448 = vmatpush.msra.mxu0 %v647
      %3449 = vmatpush.msra.mxu0 %v646
      %3450 = vmatpush.msra.mxu0 %v645
      %3451 = vmatpush.msra.mxu0 %v644
      %3452 = vmatpush.msra.mxu0 %v643
      %3453 = vmatpush.msra.mxu0 %v642
      %3454 = vmatmul.f32.gmra.mxu0 %v3436
      %v3455 = vpop.f32.mrf.mxu0
      %v3456 = vadd.f32 %v736, %v3455
      %3457 = vdwg.mxu0
      %v3458 = vxor.u32 %v3456, 2147483648
      %v3459 = vmul.f32 %v3458, 1.442695
      %v3460 = vpow.pop %v3459
      %v3461 = vadd.f32 %v3460, 1.0
      %v3462 = vrcp.pop %v3461
      %v3463 = vmul.f32 %v3461, %v3462
      %v3464 = vsub.f32 1.0, %v3463
      %v3465 = vmul.f32 %v3462, %v3464
      %v3466 = vadd.f32 %v3462, %v3465
      %vm3467 = vweird.f32 %v3461
      %vm3468 = vweird.f32 %v3462
      %vm3469 = vmor %vm3467, %vm3468
      %v3470 = vsel %vm3469, %v3462, %v3466
      %v3471 = vand.u32 2147483647, %v3461
      %vm3472 = vcmp.eq.f32.partialorder %v3471, 8.507059e+37
      %v3473 = vand.u32 %v3461, 2147483648
      %v3474 = vor.u32 1.1754944e-38, %v3473
      %v3475 = vsel %vm3472, %v3474, %v3470
      %v3476 = vmul.f32 1.0, %v3475
      %3478 = vrot.lane.b32.xlu0 %v3456, 80
      %v3479 = vpop.permute.xlu0 %3478
      %v3481 = vmul.f32 %v3476, %v3479
      %3483 = vrot.lane.b32.xlu0 %v3481, 32
      %v3484 = vpop.permute.xlu0 %3483
      %v3486 = vadd.f32 %v3456, %v3484
      %v3487 = vtanh.pop %v3486
      %v3488 = vsub.f32 1.0, %v3476
      %3490 = vrot.lane.b32.xlu0 %v3487, 112
      %v3491 = vpop.permute.xlu0 %3490
      %v3493 = vmul.f32 %v3488, %v3491
      %v3494 = vmul.f32 %v3476, %v2766
      %v3495 = vadd.f32 %v3493, %v3494
      %vm3498 = vcmask 1042432
      %v3499 = vsel %vm3498, %v2769, %v2897
      %v3500 = vsel %vm3498, %v2770, %v2898
      %v3501 = vmul.f32 %v3499, %v2039
      %v3502 = vmul.f32 %v3500, %v2039
      %3505 = vrot.lane.b32.xlu0 %v3501, 112
      %v3506 = vpop.permute.xlu0 %3505
      %3507 = vrot.lane.b32.xlu0 %v3502, 112
      %v3508 = vpop.permute.xlu0 %3507
      %vm3511 = vcmask 125952
      %v3512 = vsel %vm3511, %v3506, 0.0
      %3513 = vadd.xlane.f32.xlu0 %v3512
      %v3514 = vpop.xlane.xlu0 %3513
      %v3515 = vsel %vm3511, %v3508, 0.0
      %3516 = vadd.xlane.f32.xlu0 %v3515
      %v3517 = vpop.xlane.xlu0 %3516
      %v3520 = vperm.slane %v3514, %v2060
      %v3521 = vperm.slane %v3517, %v2060
      %v3522 = vsel %vm723, %v3521, %v3520
      %vm3524 = vcmask 25600
      %v3525 = vsel %vm3524, %v3522, -inf
      %3526 = vmax.xlane.f32.xlu0 %v3525
      %v3527 = vpop.xlane.xlu0 %3526
      %v3529 = vperm.slane %v3527, 0
      %v3530 = vperm.slane %v3527, 1
      %v3533 = vsub.f32 %v3514, %v3529
      %v3534 = vsub.f32 %v3517, %v3530
      %v3535 = vmul.f32 %v3533, 1.442695
      %v3536 = vpow.pop %v3535
      %v3537 = vmul.f32 %v3534, 1.442695
      %v3538 = vpow.pop %v3537
      %3541 = vset.pattern.permute.xlu0 0
      %3542 = vperm.xlu0 %3541, %v3536
      %v3543 = vpop.permute.xlu0 %3542
      %3544 = vset.pattern.permute.xlu0 0
      %3545 = vperm.xlu0 %3544, %v3538
      %v3546 = vpop.permute.xlu0 %3545
      %v3547 = vperm.slane %v3543, %v2060
      %v3548 = vperm.slane %v3546, %v2060
      %v3549 = vsel %vm723, %v3548, %v3547
      %v3551 = vsel %vm3524, %v3549, 0.0
      %3552 = vadd.xlane.f32.xlu0 %v3551
      %v3553 = vpop.xlane.xlu0 %3552
      %v3555 = vperm.slane %v3553, 0
      %v3556 = vperm.slane %v3553, 1
      %v3559 = vrcp.pop %v3555
      %v3560 = vmul.f32 %v3555, %v3559
      %v3561 = vsub.f32 1.0, %v3560
      %v3562 = vmul.f32 %v3559, %v3561
      %v3563 = vadd.f32 %v3559, %v3562
      %vm3564 = vweird.f32 %v3555
      %vm3565 = vweird.f32 %v3559
      %vm3566 = vmor %vm3564, %vm3565
      %v3567 = vsel %vm3566, %v3559, %v3563
      %v3568 = vand.u32 2147483647, %v3555
      %vm3569 = vcmp.eq.f32.partialorder %v3568, 8.507059e+37
      %v3570 = vand.u32 %v3555, 2147483648
      %v3571 = vor.u32 1.1754944e-38, %v3570
      %v3572 = vsel %vm3569, %v3571, %v3567
      %v3573 = vmul.f32 %v3536, %v3572
      %v3574 = vrcp.pop %v3556
      %v3575 = vmul.f32 %v3556, %v3574
      %v3576 = vsub.f32 1.0, %v3575
      %v3577 = vmul.f32 %v3574, %v3576
      %v3578 = vadd.f32 %v3574, %v3577
      %vm3579 = vweird.f32 %v3556
      %vm3580 = vweird.f32 %v3574
      %vm3581 = vmor %vm3579, %vm3580
      %v3582 = vsel %vm3581, %v3574, %v3578
      %v3583 = vand.u32 2147483647, %v3556
      %vm3584 = vcmp.eq.f32.partialorder %v3583, 8.507059e+37
      %v3585 = vand.u32 %v3556, 2147483648
      %v3586 = vor.u32 1.1754944e-38, %v3585
      %v3587 = vsel %vm3584, %v3586, %v3582
      %v3588 = vmul.f32 %v3538, %v3587
      %3590 = vset.pattern.permute.xlu0 0
      %3591 = vperm.xlu0 %3590, %v3573
      %v3592 = vpop.permute.xlu0 %3591
      %3595 = vset.pattern.permute.xlu0 0
      %3596 = vperm.xlu0 %3595, %v3588
      %v3597 = vpop.permute.xlu0 %3596
      %v3599 = vmul.f32 %v3592, %v3499
      %v3600 = vmul.f32 %v3597, %v3500
      %vm3601 = vcmask 257152
      %v3602 = vsel %vm3601, %v3599, 0.0
      %v3603 = vrot.slane %v3602, 4
      %v3604 = vadd.f32 %v3602, %v3603
      %v3605 = vrot.slane %v3604, 2
      %v3606 = vadd.f32 %v3604, %v3605
      %v3607 = vrot.slane %v3606, 1
      %v3608 = vadd.f32 %v3606, %v3607
      %v3609 = vsel %vm3601, %v3600, 0.0
      %v3610 = vrot.slane %v3609, 4
      %v3611 = vadd.f32 %v3609, %v3610
      %v3612 = vrot.slane %v3611, 2
      %v3613 = vadd.f32 %v3611, %v3612
      %v3614 = vrot.slane %v3613, 1
      %v3615 = vadd.f32 %v3613, %v3614
      %v3616 = vperm.slane %v3592, %v2060
      %v3617 = vperm.slane %v3597, %v2060
      %v3618 = vsel %vm723, %v3617, %v3616
      %vm3620 = vcmask 31744
      %v3621 = vsel %vm3620, %v3618, 0.0
      %v3622 = vrot.slane %v3340, 1
      %v3623 = vperm.slane %v3340, 0
      %v3624 = vperm.slane %v3622, 0
      %v3626 = vrot.slane %v3495, 1
      %v3627 = vperm.slane %v3495, 0
      %v3628 = vperm.slane %v3626, 0
      %3631 = vst [vmem:[#allocation1] ss:$4 sm:$0xff] %v3608
      %s3632 = scalar_lea.vmem [#allocation1], 1
      %3633 = vst [vmem:[%s3632] ss:$4 sm:$0xff] %v3615
      %v3634 = vld.sshfl [vmem:[#allocation1] sm:$0xff pattern:$0x73625140]
      %3635 = vrot.lane.b32.xlu0 %v3634, 112
      %v3636 = vpop.permute.xlu0 %3635
      %3638 = vst [vmem:[#allocation1] ss:$4 sm:$0xff] %v3623
      %s3639 = scalar_lea.vmem [#allocation1], 1
      %3640 = vst [vmem:[%s3639] ss:$4 sm:$0xff] %v3624
      %v3641 = vld.sshfl [vmem:[#allocation1] sm:$0xff pattern:$0x73625140]
      %3642 = vrot.lane.b32.xlu0 %v3641, 16
      %v3643 = vpop.permute.xlu0 %3642
      %3645 = vst [vmem:[#allocation1] ss:$4 sm:$0xff] %v3231
      %s3646 = scalar_lea.vmem [#allocation1], 1
      %3647 = vst [vmem:[%s3646] ss:$4 sm:$0xff] %v3232
      %v3648 = vld.sshfl [vmem:[#allocation1] sm:$0xff pattern:$0x73625140]
      %3649 = vrot.lane.b32.xlu0 %v3648, 16
      %v3650 = vpop.permute.xlu0 %3649
      %3652 = vst [vmem:[#allocation1] ss:$4 sm:$0xff] %v3623
      %s3653 = scalar_lea.vmem [#allocation1], 1
      %3654 = vst [vmem:[%s3653] ss:$4 sm:$0xff] %v3624
      %v3655 = vld.sshfl [vmem:[#allocation1] sm:$0xff pattern:$0x73625140]
      %3656 = vrot.lane.b32.xlu0 %v3655, 48
      %v3657 = vpop.permute.xlu0 %3656
      %3659 = vst [vmem:[#allocation1] ss:$4 sm:$0xff] %v3627
      %s3660 = scalar_lea.vmem [#allocation1], 1
      %3661 = vst [vmem:[%s3660] ss:$4 sm:$0xff] %v3628
      %v3662 = vld.sshfl [vmem:[#allocation1] sm:$0xff pattern:$0x73625140]
      %3663 = vrot.lane.b32.xlu0 %v3662, 48
      %v3664 = vpop.permute.xlu0 %3663
      %3666 = vst [vmem:[#allocation1] ss:$4 sm:$0xff] %v3225
      %s3667 = scalar_lea.vmem [#allocation1], 1
      %3668 = vst [vmem:[%s3667] ss:$4 sm:$0xff] %v3226
      %v3669 = vld.sshfl [vmem:[#allocation1] sm:$0xff pattern:$0x73625140]
      %v3671 = vsel %vm730, %v3636, %v3643
      %v3672 = vsel %vm731, %v3671, %v3650
      %v3673 = vsel %vm733, %v3672, %v3657
      %v3674 = vsel %vm738, %v3673, %v3664
      %v3675 = vsel %vm833, %v3674, %v3669
      %v3677 = vsel %vm838, %v3675, 0
      %3679 = vmatpush.msra.mxu0 0.0
      %3680 = vmatpush.msra.mxu0 0.0
      %3681 = vmatpush.msra.mxu0 0.0
      %3682 = vmatpush.msra.mxu0 0.0
      %3683 = vmatpush.msra.mxu0 %v662
      %3684 = vmatpush.msra.mxu0 %v661
      %3685 = vmatpush.msra.mxu0 %v660
      %3686 = vmatpush.msra.mxu0 %v659
      %3687 = vmatpush.msra.mxu0 %v658
      %3688 = vmatpush.msra.mxu0 %v657
      %3689 = vmatpush.msra.mxu0 %v656
      %3690 = vmatpush.msra.mxu0 %v655
      %3691 = vmatpush.msra.mxu0 %v654
      %3692 = vmatpush.msra.mxu0 %v653
      %3693 = vmatpush.msra.mxu0 %v652
      %3694 = vmatpush.msra.mxu0 %v651
      %3695 = vmatmul.f32.gmra.mxu0 %v3677
      %v3696 = vpop.f32.mrf.mxu0
      %v3697 = vadd.f32 %v836, %v3696
      %3698 = vdwg.mxu0
      %v3699 = vxor.u32 %v3697, 2147483648
      %v3700 = vmul.f32 %v3699, 1.442695
      %v3701 = vpow.pop %v3700
      %v3702 = vadd.f32 %v3701, 1.0
      %v3703 = vrcp.pop %v3702
      %v3704 = vmul.f32 %v3702, %v3703
      %v3705 = vsub.f32 1.0, %v3704
      %v3706 = vmul.f32 %v3703, %v3705
      %v3707 = vadd.f32 %v3703, %v3706
      %vm3708 = vweird.f32 %v3702
      %vm3709 = vweird.f32 %v3703
      %vm3710 = vmor %vm3708, %vm3709
      %v3711 = vsel %vm3710, %v3703, %v3707
      %v3712 = vand.u32 2147483647, %v3702
      %vm3713 = vcmp.eq.f32.partialorder %v3712, 8.507059e+37
      %v3714 = vand.u32 %v3702, 2147483648
      %v3715 = vor.u32 1.1754944e-38, %v3714
      %v3716 = vsel %vm3713, %v3715, %v3711
      %v3717 = vmul.f32 1.0, %v3716
      %3719 = vrot.lane.b32.xlu0 %v3697, 80
      %v3720 = vpop.permute.xlu0 %3719
      %v3722 = vmul.f32 %v3717, %v3720
      %3724 = vrot.lane.b32.xlu0 %v3722, 32
      %v3725 = vpop.permute.xlu0 %3724
      %v3727 = vadd.f32 %v3697, %v3725
      %v3728 = vtanh.pop %v3727
      %v3729 = vsub.f32 1.0, %v3717
      %3731 = vrot.lane.b32.xlu0 %v3728, 112
      %v3732 = vpop.permute.xlu0 %3731
      %v3734 = vmul.f32 %v3729, %v3732
      %3735 = vst [vmem:[#allocation1] ss:$4 sm:$0xff] %v3231
      %s3736 = scalar_lea.vmem [#allocation1], 1
      %3737 = vst [vmem:[%s3736] ss:$4 sm:$0xff] %v3232
      %v3738 = vld.sshfl [vmem:[#allocation1] sm:$0xff pattern:$0x73625140]
      %v3740 = vmul.f32 %v3717, %v3738
      %v3741 = vadd.f32 %v3734, %v3740
      %v3743 = vrot.slane %v3741, 2
      %3745 = vst [vmem:[#allocation1] ss:$4 sm:$0xff] %v3225
      %s3746 = scalar_lea.vmem [#allocation1], 1
      %3747 = vst [vmem:[%s3746] ss:$4 sm:$0xff] %v3226
      %v3748 = vld.sshfl [vmem:[#allocation1] sm:$0xff pattern:$0x73625140]
      %v3750 = vmul.f32 %v3717, %v3748
      %v3751 = vadd.f32 %v3734, %v3750
      %v3753 = vrot.slane %v3751, 2
      %3755 = vst [vmem:[#allocation1] ss:$4 sm:$0xff] %v3741
      %v3756 = vld.sshfl [vmem:[#allocation1] sm:$0xff pattern:$0x73625140]
      %s3757 = scalar_lea.vmem [#allocation1], 32
      %3758 = vst [vmem:[%s3757] ss:$4 sm:$0xff] %v3743
      %v3759 = vld.sshfl [vmem:[#allocation1 + $0x20] sm:$0xff pattern:$0x73625140]
      %3760 = vrot.lane.b32.xlu0 %v3756, 112
      %v3761 = vpop.permute.xlu0 %3760
      %3762 = vrot.lane.b32.xlu0 %v3759, 112
      %v3763 = vpop.permute.xlu0 %3762
      %v3766 = vmul.f32 %v3351, %v3761
      %v3767 = vmul.f32 %v3358, %v3763
      %v3768 = vsel %vm916, %v3766, 0.0
      %v3769 = vrot.slane %v3768, 4
      %v3770 = vadd.f32 %v3768, %v3769
      %v3771 = vrot.slane %v3770, 2
      %v3772 = vadd.f32 %v3770, %v3771
      %v3773 = vrot.slane %v3772, 1
      %v3774 = vadd.f32 %v3772, %v3773
      %v3775 = vsel %vm916, %v3767, 0.0
      %v3776 = vrot.slane %v3775, 4
      %v3777 = vadd.f32 %v3775, %v3776
      %v3778 = vrot.slane %v3777, 2
      %v3779 = vadd.f32 %v3777, %v3778
      %v3780 = vrot.slane %v3779, 1
      %v3781 = vadd.f32 %v3779, %v3780
      %3782 = vst [vmem:[#allocation1] ss:$4 sm:$0xff] %v3751
      %v3783 = vld.sshfl [vmem:[#allocation1] sm:$0xff pattern:$0x73625140]
      %s3784 = scalar_lea.vmem [#allocation1], 32
      %3785 = vst [vmem:[%s3784] ss:$4 sm:$0xff] %v3753
      %v3786 = vld.sshfl [vmem:[#allocation1 + $0x20] sm:$0xff pattern:$0x73625140]
      %3787 = vrot.lane.b32.xlu0 %v3783, 48
      %v3788 = vpop.permute.xlu0 %3787
      %3789 = vrot.lane.b32.xlu0 %v3786, 48
      %v3790 = vpop.permute.xlu0 %3789
      %v3793 = vmul.f32 %v3351, %v3788
      %v3794 = vmul.f32 %v3358, %v3790
      %v3795 = vsel %vm916, %v3793, 0.0
      %v3796 = vrot.slane %v3795, 4
      %v3797 = vadd.f32 %v3795, %v3796
      %v3798 = vrot.slane %v3797, 2
      %v3799 = vadd.f32 %v3797, %v3798
      %v3800 = vrot.slane %v3799, 1
      %v3801 = vadd.f32 %v3799, %v3800
      %v3802 = vsel %vm916, %v3794, 0.0
      %v3803 = vrot.slane %v3802, 4
      %v3804 = vadd.f32 %v3802, %v3803
      %v3805 = vrot.slane %v3804, 2
      %v3806 = vadd.f32 %v3804, %v3805
      %v3807 = vrot.slane %v3806, 1
      %v3808 = vadd.f32 %v3806, %v3807
      %3811 = vst [vmem:[#allocation1] ss:$4 sm:$0xff] %v3774
      %s3812 = scalar_lea.vmem [#allocation1], 1
      %3813 = vst [vmem:[%s3812] ss:$4 sm:$0xff] %v3781
      %v3814 = vld.sshfl [vmem:[#allocation1] sm:$0xff pattern:$0x73625140]
      %3816 = vst [vmem:[#allocation1] ss:$4 sm:$0xff] %v3623
      %s3817 = scalar_lea.vmem [#allocation1], 1
      %3818 = vst [vmem:[%s3817] ss:$4 sm:$0xff] %v3624
      %v3819 = vld.sshfl [vmem:[#allocation1] sm:$0xff pattern:$0x73625140]
      %3820 = vrot.lane.b32.xlu0 %v3819, 16
      %v3821 = vpop.permute.xlu0 %3820
      %3823 = vst [vmem:[#allocation1] ss:$4 sm:$0xff] %v3231
      %s3824 = scalar_lea.vmem [#allocation1], 1
      %3825 = vst [vmem:[%s3824] ss:$4 sm:$0xff] %v3232
      %v3826 = vld.sshfl [vmem:[#allocation1] sm:$0xff pattern:$0x73625140]
      %3827 = vrot.lane.b32.xlu0 %v3826, 16
      %v3828 = vpop.permute.xlu0 %3827
      %3830 = vst [vmem:[#allocation1] ss:$4 sm:$0xff] %v3623
      %s3831 = scalar_lea.vmem [#allocation1], 1
      %3832 = vst [vmem:[%s3831] ss:$4 sm:$0xff] %v3624
      %v3833 = vld.sshfl [vmem:[#allocation1] sm:$0xff pattern:$0x73625140]
      %3834 = vrot.lane.b32.xlu0 %v3833, 48
      %v3835 = vpop.permute.xlu0 %3834
      %3839 = vst [vmem:[#allocation1] ss:$4 sm:$0xff] %v3801
      %s3840 = scalar_lea.vmem [#allocation1], 1
      %3841 = vst [vmem:[%s3840] ss:$4 sm:$0xff] %v3808
      %v3842 = vld.sshfl [vmem:[#allocation1] sm:$0xff pattern:$0x73625140]
      %3843 = vrot.lane.b32.xlu0 %v3842, 64
      %v3844 = vpop.permute.xlu0 %3843
      %3846 = vst [vmem:[#allocation1] ss:$4 sm:$0xff] %v3225
      %s3847 = scalar_lea.vmem [#allocation1], 1
      %3848 = vst [vmem:[%s3847] ss:$4 sm:$0xff] %v3226
      %v3849 = vld.sshfl [vmem:[#allocation1] sm:$0xff pattern:$0x73625140]
      %v3851 = vsel %vm730, %v3814, %v3821
      %v3852 = vsel %vm731, %v3851, %v3828
      %v3853 = vsel %vm733, %v3852, %v3835
      %v3854 = vsel %vm738, %v3853, %v3844
      %v3855 = vsel %vm833, %v3854, %v3849
      %v3857 = vsel %vm838, %v3855, 0
      %3859 = vmatpush.msra.mxu0 0.0
      %3860 = vmatpush.msra.mxu0 0.0
      %3861 = vmatpush.msra.mxu0 0.0
      %3862 = vmatpush.msra.mxu0 0.0
      %3863 = vmatpush.msra.mxu0 %v675
      %3864 = vmatpush.msra.mxu0 %v674
      %3865 = vmatpush.msra.mxu0 %v673
      %3866 = vmatpush.msra.mxu0 %v672
      %3867 = vmatpush.msra.mxu0 %v671
      %3868 = vmatpush.msra.mxu0 %v670
      %3869 = vmatpush.msra.mxu0 %v669
      %3870 = vmatpush.msra.mxu0 %v668
      %3871 = vmatpush.msra.mxu0 %v667
      %3872 = vmatpush.msra.mxu0 %v666
      %3873 = vmatpush.msra.mxu0 %v665
      %3874 = vmatpush.msra.mxu0 %v664
      %3875 = vmatmul.f32.gmra.mxu0 %v3857
      %v3876 = vpop.f32.mrf.mxu0
      %v3877 = vadd.f32 %v994, %v3876
      %3878 = vdwg.mxu0
      %v3879 = vxor.u32 %v3877, 2147483648
      %v3880 = vmul.f32 %v3879, 1.442695
      %v3881 = vpow.pop %v3880
      %v3882 = vadd.f32 %v3881, 1.0
      %v3883 = vrcp.pop %v3882
      %v3884 = vmul.f32 %v3882, %v3883
      %v3885 = vsub.f32 1.0, %v3884
      %v3886 = vmul.f32 %v3883, %v3885
      %v3887 = vadd.f32 %v3883, %v3886
      %vm3888 = vweird.f32 %v3882
      %vm3889 = vweird.f32 %v3883
      %vm3890 = vmor %vm3888, %vm3889
      %v3891 = vsel %vm3890, %v3883, %v3887
      %v3892 = vand.u32 2147483647, %v3882
      %vm3893 = vcmp.eq.f32.partialorder %v3892, 8.507059e+37
      %v3894 = vand.u32 %v3882, 2147483648
      %v3895 = vor.u32 1.1754944e-38, %v3894
      %v3896 = vsel %vm3893, %v3895, %v3891
      %v3897 = vmul.f32 1.0, %v3896
      %3899 = vrot.lane.b32.xlu0 %v3877, 80
      %v3900 = vpop.permute.xlu0 %3899
      %v3902 = vmul.f32 %v3897, %v3900
      %3904 = vrot.lane.b32.xlu0 %v3902, 32
      %v3905 = vpop.permute.xlu0 %3904
      %v3907 = vadd.f32 %v3877, %v3905
      %v3908 = vtanh.pop %v3907
      %v3909 = vsub.f32 1.0, %v3897
      %3911 = vrot.lane.b32.xlu0 %v3908, 112
      %v3912 = vpop.permute.xlu0 %3911
      %v3914 = vmul.f32 %v3909, %v3912
      %3915 = vst [vmem:[#allocation1] ss:$4 sm:$0xff] %v3231
      %s3916 = scalar_lea.vmem [#allocation1], 1
      %3917 = vst [vmem:[%s3916] ss:$4 sm:$0xff] %v3232
      %v3918 = vld.sshfl [vmem:[#allocation1] sm:$0xff pattern:$0x73625140]
      %v3920 = vmul.f32 %v3897, %v3918
      %v3921 = vadd.f32 %v3914, %v3920
      %v3923 = vrot.slane %v3921, 2
      %3925 = vst [vmem:[#allocation1] ss:$4 sm:$0xff] %v3225
      %s3926 = scalar_lea.vmem [#allocation1], 1
      %3927 = vst [vmem:[%s3926] ss:$4 sm:$0xff] %v3226
      %v3928 = vld.sshfl [vmem:[#allocation1] sm:$0xff pattern:$0x73625140]
      %v3930 = vmul.f32 %v3897, %v3928
      %v3931 = vadd.f32 %v3914, %v3930
      %v3933 = vrot.slane %v3931, 2
      %v3935 = vperm.slane %v3342, 0
      %v3936 = vlaneseq
      %v3937 = vshrl.u32 %v3936, 7
      %3939 = vset.pattern.permute.xlu0 %v3937
      %3940 = vperm.xlu0 %3939, %v3935
      %v3941 = vpop.permute.xlu0 %3940
      %v3942 = vperm.slane %v3342, 1
      %v3943 = vlaneseq
      %v3944 = vshrl.u32 %v3943, 7
      %3946 = vset.pattern.permute.xlu0 %v3944
      %3947 = vperm.xlu0 %3946, %v3942
      %v3948 = vpop.permute.xlu0 %3947
      %v3949 = vmul.f32 %v3931, %v3941
      %v3950 = vmul.f32 %v3933, %v3948
      %v3951 = vsub.f32 1.0, %v3941
      %v3952 = vsub.f32 1.0, %v3948
      %v3953 = vmul.f32 %v3751, %v3951
      %v3954 = vmul.f32 %v3753, %v3952
      %v3955 = vadd.f32 %v3949, %v3953
      %v3956 = vadd.f32 %v3950, %v3954
      %v3957 = vmul.f32 %v3741, %v3941
      %v3958 = vmul.f32 %v3743, %v3948
      %v3959 = vmul.f32 %v3921, %v3951
      %v3960 = vmul.f32 %v3923, %v3952
      %v3961 = vadd.f32 %v3957, %v3959
      %v3962 = vadd.f32 %v3958, %v3960
      %3965 = vst [vmem:[#allocation1] ss:$4 sm:$0xff] %v3955
      %v3966 = vld.sshfl [vmem:[#allocation1] sm:$0xff pattern:$0x73625140]
      %s3967 = scalar_lea.vmem [#allocation1], 32
      %3968 = vst [vmem:[%s3967] ss:$4 sm:$0xff] %v3956
      %v3969 = vld.sshfl [vmem:[#allocation1 + $0x20] sm:$0xff pattern:$0x73625140]
      %3970 = vrot.lane.b32.xlu0 %v3966, 48
      %v3971 = vpop.permute.xlu0 %3970
      %3972 = vrot.lane.b32.xlu0 %v3969, 48
      %v3973 = vpop.permute.xlu0 %3972
      %v3976 = vmul.f32 %v3351, %v3971
      %v3977 = vmul.f32 %v3358, %v3973
      %v3978 = vsel %vm916, %v3976, 0.0
      %v3979 = vrot.slane %v3978, 4
      %v3980 = vadd.f32 %v3978, %v3979
      %v3981 = vrot.slane %v3980, 2
      %v3982 = vadd.f32 %v3980, %v3981
      %v3983 = vrot.slane %v3982, 1
      %v3984 = vadd.f32 %v3982, %v3983
      %v3985 = vsel %vm916, %v3977, 0.0
      %v3986 = vrot.slane %v3985, 4
      %v3987 = vadd.f32 %v3985, %v3986
      %v3988 = vrot.slane %v3987, 2
      %v3989 = vadd.f32 %v3987, %v3988
      %v3990 = vrot.slane %v3989, 1
      %v3991 = vadd.f32 %v3989, %v3990
      %v3994 = vsel %vm723, %v3991, %v3984
      %3995 = vrot.lane.b32.xlu0 %v3994, 16
      %v3996 = vpop.permute.xlu0 %3995
      %3998 = vrot.lane.b32.xlu0 %v3495, 16
      %v3999 = vpop.permute.xlu0 %3998
      %4002 = vrot.lane.b32.xlu0 %v3338, 32
      %v4003 = vpop.permute.xlu0 %4002
      %v4005 = vsel %vm730, %v3340, %v3996
      %v4006 = vsel %vm731, %v4005, %v3999
      %v4007 = vsel %vm733, %v4006, %v4003
      %v4009 = vsel %vm738, %v4007, 0
      %4011 = vmatpush.msra.mxu0 0.0
      %4012 = vmatpush.msra.mxu0 0.0
      %4013 = vmatpush.msra.mxu0 0.0
      %4014 = vmatpush.msra.mxu0 0.0
      %4015 = vmatpush.msra.mxu0 0.0
      %4016 = vmatpush.msra.mxu0 0.0
      %4017 = vmatpush.msra.mxu0 0.0
      %4018 = vmatpush.msra.mxu0 0.0
      %4019 = vmatpush.msra.mxu0 %v684
      %4020 = vmatpush.msra.mxu0 %v683
      %4021 = vmatpush.msra.mxu0 %v682
      %4022 = vmatpush.msra.mxu0 %v681
      %4023 = vmatpush.msra.mxu0 %v680
      %4024 = vmatpush.msra.mxu0 %v679
      %4025 = vmatpush.msra.mxu0 %v678
      %4026 = vmatpush.msra.mxu0 %v677
      %4027 = vmatmul.f32.gmra.mxu0 %v4009
      %v4028 = vpop.f32.mrf.mxu0
      %v4029 = vadd.f32 %v1130, %v4028
      %4030 = vdwg.mxu0
      %v4031 = vxor.u32 %v4029, 2147483648
      %v4032 = vmul.f32 %v4031, 1.442695
      %v4033 = vpow.pop %v4032
      %v4034 = vadd.f32 %v4033, 1.0
      %v4035 = vrcp.pop %v4034
      %v4036 = vmul.f32 %v4034, %v4035
      %v4037 = vsub.f32 1.0, %v4036
      %v4038 = vmul.f32 %v4035, %v4037
      %v4039 = vadd.f32 %v4035, %v4038
      %vm4040 = vweird.f32 %v4034
      %vm4041 = vweird.f32 %v4035
      %vm4042 = vmor %vm4040, %vm4041
      %v4043 = vsel %vm4042, %v4035, %v4039
      %v4044 = vand.u32 2147483647, %v4034
      %vm4045 = vcmp.eq.f32.partialorder %v4044, 8.507059e+37
      %v4046 = vand.u32 %v4034, 2147483648
      %v4047 = vor.u32 1.1754944e-38, %v4046
      %v4048 = vsel %vm4045, %v4047, %v4043
      %v4049 = vmul.f32 1.0, %v4048
      %4051 = vrot.lane.b32.xlu0 %v4029, 80
      %v4052 = vpop.permute.xlu0 %4051
      %v4054 = vmul.f32 %v4049, %v4052
      %4056 = vrot.lane.b32.xlu0 %v4054, 32
      %v4057 = vpop.permute.xlu0 %4056
      %v4059 = vadd.f32 %v4029, %v4057
      %v4060 = vtanh.pop %v4059
      %v4061 = vsub.f32 1.0, %v4049
      %4063 = vrot.lane.b32.xlu0 %v4060, 112
      %v4064 = vpop.permute.xlu0 %4063
      %v4066 = vmul.f32 %v4061, %v4064
      %v4067 = vmul.f32 %v4049, %v3338
      %v4068 = vadd.f32 %v4066, %v4067
      %s4069 = scalar_lea.vmem %s587, 10
      %v4070 = vld [vmem:[%s4069] sm:$0x3]
      %s4071 = scalar_lea.vmem %s592, 10
      %v4072 = vld [vmem:[%s4071] sm:$0x3]
      %s4073 = scalar_lea.vmem %s597, 10
      %v4074 = vld [vmem:[%s4073] sm:$0x3]
      %v4075 = vperm.slane %v4074, 0
      %v4076 = vlaneseq
      %v4077 = vshrl.u32 %v4076, 7
      %4079 = vset.pattern.permute.xlu0 %v4077
      %4080 = vperm.xlu0 %4079, %v4075
      %v4081 = vpop.permute.xlu0 %4080
      %v4082 = vperm.slane %v4074, 1
      %v4083 = vlaneseq
      %v4084 = vshrl.u32 %v4083, 7
      %4086 = vset.pattern.permute.xlu0 %v4084
      %4087 = vperm.xlu0 %4086, %v4082
      %v4088 = vpop.permute.xlu0 %4087
      %4089 = vst [vmem:[#allocation1] ss:$4 sm:$0xff] %v3955
      %v4090 = vld.sshfl [vmem:[#allocation1] sm:$0xff pattern:$0x73625140]
      %s4091 = scalar_lea.vmem [#allocation1], 32
      %4092 = vst [vmem:[%s4091] ss:$4 sm:$0xff] %v3956
      %v4093 = vld.sshfl [vmem:[#allocation1 + $0x20] sm:$0xff pattern:$0x73625140]
      %4094 = vrot.lane.b32.xlu0 %v4090, 48
      %v4095 = vpop.permute.xlu0 %4094
      %4096 = vrot.lane.b32.xlu0 %v4093, 48
      %v4097 = vpop.permute.xlu0 %4096
      %v4100 = vmul.f32 %v4081, %v4095
      %v4101 = vmul.f32 %v4088, %v4097
      %v4102 = vsel %vm916, %v4100, 0.0
      %v4103 = vrot.slane %v4102, 4
      %v4104 = vadd.f32 %v4102, %v4103
      %v4105 = vrot.slane %v4104, 2
      %v4106 = vadd.f32 %v4104, %v4105
      %v4107 = vrot.slane %v4106, 1
      %v4108 = vadd.f32 %v4106, %v4107
      %v4109 = vsel %vm916, %v4101, 0.0
      %v4110 = vrot.slane %v4109, 4
      %v4111 = vadd.f32 %v4109, %v4110
      %v4112 = vrot.slane %v4111, 2
      %v4113 = vadd.f32 %v4111, %v4112
      %v4114 = vrot.slane %v4113, 1
      %v4115 = vadd.f32 %v4113, %v4114
      %4118 = vst [vmem:[#allocation1] ss:$4 sm:$0xff] %v3961
      %v4119 = vld.sshfl [vmem:[#allocation1] sm:$0xff pattern:$0x73625140]
      %s4120 = scalar_lea.vmem [#allocation1], 32
      %4121 = vst [vmem:[%s4120] ss:$4 sm:$0xff] %v3962
      %v4122 = vld.sshfl [vmem:[#allocation1 + $0x20] sm:$0xff pattern:$0x73625140]
      %4123 = vrot.lane.b32.xlu0 %v4119, 112
      %v4124 = vpop.permute.xlu0 %4123
      %4125 = vrot.lane.b32.xlu0 %v4122, 112
      %v4126 = vpop.permute.xlu0 %4125
      %v4129 = vmul.f32 %v4081, %v4124
      %v4130 = vmul.f32 %v4088, %v4126
      %v4131 = vsel %vm916, %v4129, 0.0
      %v4132 = vrot.slane %v4131, 4
      %v4133 = vadd.f32 %v4131, %v4132
      %v4134 = vrot.slane %v4133, 2
      %v4135 = vadd.f32 %v4133, %v4134
      %v4136 = vrot.slane %v4135, 1
      %v4137 = vadd.f32 %v4135, %v4136
      %v4138 = vsel %vm916, %v4130, 0.0
      %v4139 = vrot.slane %v4138, 4
      %v4140 = vadd.f32 %v4138, %v4139
      %v4141 = vrot.slane %v4140, 2
      %v4142 = vadd.f32 %v4140, %v4141
      %v4143 = vrot.slane %v4142, 1
      %v4144 = vadd.f32 %v4142, %v4143
      %v4147 = vsel %vm723, %v4115, %v4108
      %v4151 = vsel %vm723, %v4144, %v4137
      %4152 = vrot.lane.b32.xlu0 %v4151, 16
      %v4153 = vpop.permute.xlu0 %4152
      %4156 = vrot.lane.b32.xlu0 %v4070, 32
      %v4157 = vpop.permute.xlu0 %4156
      %4159 = vrot.lane.b32.xlu0 %v3495, 32
      %v4160 = vpop.permute.xlu0 %4159
      %v4162 = vsel %vm730, %v4147, %v4153
      %v4163 = vsel %vm731, %v4162, %v4157
      %v4164 = vsel %vm733, %v4163, %v4160
      %v4166 = vsel %vm738, %v4164, 0
      %4168 = vmatpush.msra.mxu0 0.0
      %4169 = vmatpush.msra.mxu0 0.0
      %4170 = vmatpush.msra.mxu0 0.0
      %4171 = vmatpush.msra.mxu0 0.0
      %4172 = vmatpush.msra.mxu0 0.0
      %4173 = vmatpush.msra.mxu0 0.0
      %4174 = vmatpush.msra.mxu0 0.0
      %4175 = vmatpush.msra.mxu0 0.0
      %4176 = vmatpush.msra.mxu0 %v649
      %4177 = vmatpush.msra.mxu0 %v648
      %4178 = vmatpush.msra.mxu0 %v647
      %4179 = vmatpush.msra.mxu0 %v646
      %4180 = vmatpush.msra.mxu0 %v645
      %4181 = vmatpush.msra.mxu0 %v644
      %4182 = vmatpush.msra.mxu0 %v643
      %4183 = vmatpush.msra.mxu0 %v642
      %4184 = vmatmul.f32.gmra.mxu0 %v4166
      %v4185 = vpop.f32.mrf.mxu0
      %v4186 = vadd.f32 %v736, %v4185
      %4187 = vdwg.mxu0
      %v4188 = vxor.u32 %v4186, 2147483648
      %v4189 = vmul.f32 %v4188, 1.442695
      %v4190 = vpow.pop %v4189
      %v4191 = vadd.f32 %v4190, 1.0
      %v4192 = vrcp.pop %v4191
      %v4193 = vmul.f32 %v4191, %v4192
      %v4194 = vsub.f32 1.0, %v4193
      %v4195 = vmul.f32 %v4192, %v4194
      %v4196 = vadd.f32 %v4192, %v4195
      %vm4197 = vweird.f32 %v4191
      %vm4198 = vweird.f32 %v4192
      %vm4199 = vmor %vm4197, %vm4198
      %v4200 = vsel %vm4199, %v4192, %v4196
      %v4201 = vand.u32 2147483647, %v4191
      %vm4202 = vcmp.eq.f32.partialorder %v4201, 8.507059e+37
      %v4203 = vand.u32 %v4191, 2147483648
      %v4204 = vor.u32 1.1754944e-38, %v4203
      %v4205 = vsel %vm4202, %v4204, %v4200
      %v4206 = vmul.f32 1.0, %v4205
      %4208 = vrot.lane.b32.xlu0 %v4186, 80
      %v4209 = vpop.permute.xlu0 %4208
      %v4211 = vmul.f32 %v4206, %v4209
      %4213 = vrot.lane.b32.xlu0 %v4211, 32
      %v4214 = vpop.permute.xlu0 %4213
      %v4216 = vadd.f32 %v4186, %v4214
      %v4217 = vtanh.pop %v4216
      %v4218 = vsub.f32 1.0, %v4206
      %4220 = vrot.lane.b32.xlu0 %v4217, 112
      %v4221 = vpop.permute.xlu0 %4220
      %v4223 = vmul.f32 %v4218, %v4221
      %v4224 = vmul.f32 %v4206, %v3495
      %v4225 = vadd.f32 %v4223, %v4224
      %vm4228 = vcmask 1043456
      %v4229 = vsel %vm4228, %v3499, %v3627
      %v4230 = vsel %vm4228, %v3500, %v3628
      %v4231 = vmul.f32 %v4229, %v2039
      %v4232 = vmul.f32 %v4230, %v2039
      %4235 = vrot.lane.b32.xlu0 %v4231, 112
      %v4236 = vpop.permute.xlu0 %4235
      %4237 = vrot.lane.b32.xlu0 %v4232, 112
      %v4238 = vpop.permute.xlu0 %4237
      %vm4241 = vcmask 126976
      %v4242 = vsel %vm4241, %v4236, 0.0
      %4243 = vadd.xlane.f32.xlu0 %v4242
      %v4244 = vpop.xlane.xlu0 %4243
      %v4245 = vsel %vm4241, %v4238, 0.0
      %4246 = vadd.xlane.f32.xlu0 %v4245
      %v4247 = vpop.xlane.xlu0 %4246
      %v4250 = vperm.slane %v4244, %v2060
      %v4251 = vperm.slane %v4247, %v2060
      %v4252 = vsel %vm723, %v4251, %v4250
      %vm4254 = vcmask 33792
      %v4255 = vsel %vm4254, %v4252, -inf
      %4256 = vmax.xlane.f32.xlu0 %v4255
      %v4257 = vpop.xlane.xlu0 %4256
      %v4259 = vperm.slane %v4257, 0
      %v4260 = vperm.slane %v4257, 1
      %v4263 = vsub.f32 %v4244, %v4259
      %v4264 = vsub.f32 %v4247, %v4260
      %v4265 = vmul.f32 %v4263, 1.442695
      %v4266 = vpow.pop %v4265
      %v4267 = vmul.f32 %v4264, 1.442695
      %v4268 = vpow.pop %v4267
      %4271 = vset.pattern.permute.xlu0 0
      %4272 = vperm.xlu0 %4271, %v4266
      %v4273 = vpop.permute.xlu0 %4272
      %4274 = vset.pattern.permute.xlu0 0
      %4275 = vperm.xlu0 %4274, %v4268
      %v4276 = vpop.permute.xlu0 %4275
      %v4277 = vperm.slane %v4273, %v2060
      %v4278 = vperm.slane %v4276, %v2060
      %v4279 = vsel %vm723, %v4278, %v4277
      %v4281 = vsel %vm4254, %v4279, 0.0
      %4282 = vadd.xlane.f32.xlu0 %v4281
      %v4283 = vpop.xlane.xlu0 %4282
      %v4285 = vperm.slane %v4283, 0
      %v4286 = vperm.slane %v4283, 1
      %v4289 = vrcp.pop %v4285
      %v4290 = vmul.f32 %v4285, %v4289
      %v4291 = vsub.f32 1.0, %v4290
      %v4292 = vmul.f32 %v4289, %v4291
      %v4293 = vadd.f32 %v4289, %v4292
      %vm4294 = vweird.f32 %v4285
      %vm4295 = vweird.f32 %v4289
      %vm4296 = vmor %vm4294, %vm4295
      %v4297 = vsel %vm4296, %v4289, %v4293
      %v4298 = vand.u32 2147483647, %v4285
      %vm4299 = vcmp.eq.f32.partialorder %v4298, 8.507059e+37
      %v4300 = vand.u32 %v4285, 2147483648
      %v4301 = vor.u32 1.1754944e-38, %v4300
      %v4302 = vsel %vm4299, %v4301, %v4297
      %v4303 = vmul.f32 %v4266, %v4302
      %v4304 = vrcp.pop %v4286
      %v4305 = vmul.f32 %v4286, %v4304
      %v4306 = vsub.f32 1.0, %v4305
      %v4307 = vmul.f32 %v4304, %v4306
      %v4308 = vadd.f32 %v4304, %v4307
      %vm4309 = vweird.f32 %v4286
      %vm4310 = vweird.f32 %v4304
      %vm4311 = vmor %vm4309, %vm4310
      %v4312 = vsel %vm4311, %v4304, %v4308
      %v4313 = vand.u32 2147483647, %v4286
      %vm4314 = vcmp.eq.f32.partialorder %v4313, 8.507059e+37
      %v4315 = vand.u32 %v4286, 2147483648
      %v4316 = vor.u32 1.1754944e-38, %v4315
      %v4317 = vsel %vm4314, %v4316, %v4312
      %v4318 = vmul.f32 %v4268, %v4317
      %4320 = vset.pattern.permute.xlu0 0
      %4321 = vperm.xlu0 %4320, %v4303
      %v4322 = vpop.permute.xlu0 %4321
      %4325 = vset.pattern.permute.xlu0 0
      %4326 = vperm.xlu0 %4325, %v4318
      %v4327 = vpop.permute.xlu0 %4326
      %v4329 = vmul.f32 %v4322, %v4229
      %v4330 = vmul.f32 %v4327, %v4230
      %vm4331 = vcmask 258176
      %v4332 = vsel %vm4331, %v4329, 0.0
      %v4333 = vrot.slane %v4332, 4
      %v4334 = vadd.f32 %v4332, %v4333
      %v4335 = vrot.slane %v4334, 2
      %v4336 = vadd.f32 %v4334, %v4335
      %v4337 = vrot.slane %v4336, 1
      %v4338 = vadd.f32 %v4336, %v4337
      %v4339 = vsel %vm4331, %v4330, 0.0
      %v4340 = vrot.slane %v4339, 4
      %v4341 = vadd.f32 %v4339, %v4340
      %v4342 = vrot.slane %v4341, 2
      %v4343 = vadd.f32 %v4341, %v4342
      %v4344 = vrot.slane %v4343, 1
      %v4345 = vadd.f32 %v4343, %v4344
      %v4346 = vperm.slane %v4322, %v2060
      %v4347 = vperm.slane %v4327, %v2060
      %v4348 = vsel %vm723, %v4347, %v4346
      %vm4350 = vcmask 39936
      %v4351 = vsel %vm4350, %v4348, 0.0
      %v4352 = vrot.slane %v4070, 1
      %v4353 = vperm.slane %v4070, 0
      %v4354 = vperm.slane %v4352, 0
      %v4356 = vrot.slane %v4225, 1
      %v4357 = vperm.slane %v4225, 0
      %v4358 = vperm.slane %v4356, 0
      %4361 = vst [vmem:[#allocation1] ss:$4 sm:$0xff] %v4338
      %s4362 = scalar_lea.vmem [#allocation1], 1
      %4363 = vst [vmem:[%s4362] ss:$4 sm:$0xff] %v4345
      %v4364 = vld.sshfl [vmem:[#allocation1] sm:$0xff pattern:$0x73625140]
      %4365 = vrot.lane.b32.xlu0 %v4364, 112
      %v4366 = vpop.permute.xlu0 %4365
      %4368 = vst [vmem:[#allocation1] ss:$4 sm:$0xff] %v4353
      %s4369 = scalar_lea.vmem [#allocation1], 1
      %4370 = vst [vmem:[%s4369] ss:$4 sm:$0xff] %v4354
      %v4371 = vld.sshfl [vmem:[#allocation1] sm:$0xff pattern:$0x73625140]
      %4372 = vrot.lane.b32.xlu0 %v4371, 16
      %v4373 = vpop.permute.xlu0 %4372
      %4375 = vst [vmem:[#allocation1] ss:$4 sm:$0xff] %v3961
      %s4376 = scalar_lea.vmem [#allocation1], 1
      %4377 = vst [vmem:[%s4376] ss:$4 sm:$0xff] %v3962
      %v4378 = vld.sshfl [vmem:[#allocation1] sm:$0xff pattern:$0x73625140]
      %4379 = vrot.lane.b32.xlu0 %v4378, 16
      %v4380 = vpop.permute.xlu0 %4379
      %4382 = vst [vmem:[#allocation1] ss:$4 sm:$0xff] %v4353
      %s4383 = scalar_lea.vmem [#allocation1], 1
      %4384 = vst [vmem:[%s4383] ss:$4 sm:$0xff] %v4354
      %v4385 = vld.sshfl [vmem:[#allocation1] sm:$0xff pattern:$0x73625140]
      %4386 = vrot.lane.b32.xlu0 %v4385, 48
      %v4387 = vpop.permute.xlu0 %4386
      %4389 = vst [vmem:[#allocation1] ss:$4 sm:$0xff] %v4357
      %s4390 = scalar_lea.vmem [#allocation1], 1
      %4391 = vst [vmem:[%s4390] ss:$4 sm:$0xff] %v4358
      %v4392 = vld.sshfl [vmem:[#allocation1] sm:$0xff pattern:$0x73625140]
      %4393 = vrot.lane.b32.xlu0 %v4392, 48
      %v4394 = vpop.permute.xlu0 %4393
      %4396 = vst [vmem:[#allocation1] ss:$4 sm:$0xff] %v3955
      %s4397 = scalar_lea.vmem [#allocation1], 1
      %4398 = vst [vmem:[%s4397] ss:$4 sm:$0xff] %v3956
      %v4399 = vld.sshfl [vmem:[#allocation1] sm:$0xff pattern:$0x73625140]
      %v4401 = vsel %vm730, %v4366, %v4373
      %v4402 = vsel %vm731, %v4401, %v4380
      %v4403 = vsel %vm733, %v4402, %v4387
      %v4404 = vsel %vm738, %v4403, %v4394
      %v4405 = vsel %vm833, %v4404, %v4399
      %v4407 = vsel %vm838, %v4405, 0
      %4409 = vmatpush.msra.mxu0 0.0
      %4410 = vmatpush.msra.mxu0 0.0
      %4411 = vmatpush.msra.mxu0 0.0
      %4412 = vmatpush.msra.mxu0 0.0
      %4413 = vmatpush.msra.mxu0 %v662
      %4414 = vmatpush.msra.mxu0 %v661
      %4415 = vmatpush.msra.mxu0 %v660
      %4416 = vmatpush.msra.mxu0 %v659
      %4417 = vmatpush.msra.mxu0 %v658
      %4418 = vmatpush.msra.mxu0 %v657
      %4419 = vmatpush.msra.mxu0 %v656
      %4420 = vmatpush.msra.mxu0 %v655
      %4421 = vmatpush.msra.mxu0 %v654
      %4422 = vmatpush.msra.mxu0 %v653
      %4423 = vmatpush.msra.mxu0 %v652
      %4424 = vmatpush.msra.mxu0 %v651
      %4425 = vmatmul.f32.gmra.mxu0 %v4407
      %v4426 = vpop.f32.mrf.mxu0
      %v4427 = vadd.f32 %v836, %v4426
      %4428 = vdwg.mxu0
      %v4429 = vxor.u32 %v4427, 2147483648
      %v4430 = vmul.f32 %v4429, 1.442695
      %v4431 = vpow.pop %v4430
      %v4432 = vadd.f32 %v4431, 1.0
      %v4433 = vrcp.pop %v4432
      %v4434 = vmul.f32 %v4432, %v4433
      %v4435 = vsub.f32 1.0, %v4434
      %v4436 = vmul.f32 %v4433, %v4435
      %v4437 = vadd.f32 %v4433, %v4436
      %vm4438 = vweird.f32 %v4432
      %vm4439 = vweird.f32 %v4433
      %vm4440 = vmor %vm4438, %vm4439
      %v4441 = vsel %vm4440, %v4433, %v4437
      %v4442 = vand.u32 2147483647, %v4432
      %vm4443 = vcmp.eq.f32.partialorder %v4442, 8.507059e+37
      %v4444 = vand.u32 %v4432, 2147483648
      %v4445 = vor.u32 1.1754944e-38, %v4444
      %v4446 = vsel %vm4443, %v4445, %v4441
      %v4447 = vmul.f32 1.0, %v4446
      %4449 = vrot.lane.b32.xlu0 %v4427, 80
      %v4450 = vpop.permute.xlu0 %4449
      %v4452 = vmul.f32 %v4447, %v4450
      %4454 = vrot.lane.b32.xlu0 %v4452, 32
      %v4455 = vpop.permute.xlu0 %4454
      %v4457 = vadd.f32 %v4427, %v4455
      %v4458 = vtanh.pop %v4457
      %v4459 = vsub.f32 1.0, %v4447
      %4461 = vrot.lane.b32.xlu0 %v4458, 112
      %v4462 = vpop.permute.xlu0 %4461
      %v4464 = vmul.f32 %v4459, %v4462
      %4465 = vst [vmem:[#allocation1] ss:$4 sm:$0xff] %v3961
      %s4466 = scalar_lea.vmem [#allocation1], 1
      %4467 = vst [vmem:[%s4466] ss:$4 sm:$0xff] %v3962
      %v4468 = vld.sshfl [vmem:[#allocation1] sm:$0xff pattern:$0x73625140]
      %v4470 = vmul.f32 %v4447, %v4468
      %v4471 = vadd.f32 %v4464, %v4470
      %v4473 = vrot.slane %v4471, 2
      %4475 = vst [vmem:[#allocation1] ss:$4 sm:$0xff] %v3955
      %s4476 = scalar_lea.vmem [#allocation1], 1
      %4477 = vst [vmem:[%s4476] ss:$4 sm:$0xff] %v3956
      %v4478 = vld.sshfl [vmem:[#allocation1] sm:$0xff pattern:$0x73625140]
      %v4480 = vmul.f32 %v4447, %v4478
      %v4481 = vadd.f32 %v4464, %v4480
      %v4483 = vrot.slane %v4481, 2
      %4485 = vst [vmem:[#allocation1] ss:$4 sm:$0xff] %v4471
      %v4486 = vld.sshfl [vmem:[#allocation1] sm:$0xff pattern:$0x73625140]
      %s4487 = scalar_lea.vmem [#allocation1], 32
      %4488 = vst [vmem:[%s4487] ss:$4 sm:$0xff] %v4473
      %v4489 = vld.sshfl [vmem:[#allocation1 + $0x20] sm:$0xff pattern:$0x73625140]
      %4490 = vrot.lane.b32.xlu0 %v4486, 112
      %v4491 = vpop.permute.xlu0 %4490
      %4492 = vrot.lane.b32.xlu0 %v4489, 112
      %v4493 = vpop.permute.xlu0 %4492
      %v4496 = vmul.f32 %v4081, %v4491
      %v4497 = vmul.f32 %v4088, %v4493
      %v4498 = vsel %vm916, %v4496, 0.0
      %v4499 = vrot.slane %v4498, 4
      %v4500 = vadd.f32 %v4498, %v4499
      %v4501 = vrot.slane %v4500, 2
      %v4502 = vadd.f32 %v4500, %v4501
      %v4503 = vrot.slane %v4502, 1
      %v4504 = vadd.f32 %v4502, %v4503
      %v4505 = vsel %vm916, %v4497, 0.0
      %v4506 = vrot.slane %v4505, 4
      %v4507 = vadd.f32 %v4505, %v4506
      %v4508 = vrot.slane %v4507, 2
      %v4509 = vadd.f32 %v4507, %v4508
      %v4510 = vrot.slane %v4509, 1
      %v4511 = vadd.f32 %v4509, %v4510
      %4512 = vst [vmem:[#allocation1] ss:$4 sm:$0xff] %v4481
      %v4513 = vld.sshfl [vmem:[#allocation1] sm:$0xff pattern:$0x73625140]
      %s4514 = scalar_lea.vmem [#allocation1], 32
      %4515 = vst [vmem:[%s4514] ss:$4 sm:$0xff] %v4483
      %v4516 = vld.sshfl [vmem:[#allocation1 + $0x20] sm:$0xff pattern:$0x73625140]
      %4517 = vrot.lane.b32.xlu0 %v4513, 48
      %v4518 = vpop.permute.xlu0 %4517
      %4519 = vrot.lane.b32.xlu0 %v4516, 48
      %v4520 = vpop.permute.xlu0 %4519
      %v4523 = vmul.f32 %v4081, %v4518
      %v4524 = vmul.f32 %v4088, %v4520
      %v4525 = vsel %vm916, %v4523, 0.0
      %v4526 = vrot.slane %v4525, 4
      %v4527 = vadd.f32 %v4525, %v4526
      %v4528 = vrot.slane %v4527, 2
      %v4529 = vadd.f32 %v4527, %v4528
      %v4530 = vrot.slane %v4529, 1
      %v4531 = vadd.f32 %v4529, %v4530
      %v4532 = vsel %vm916, %v4524, 0.0
      %v4533 = vrot.slane %v4532, 4
      %v4534 = vadd.f32 %v4532, %v4533
      %v4535 = vrot.slane %v4534, 2
      %v4536 = vadd.f32 %v4534, %v4535
      %v4537 = vrot.slane %v4536, 1
      %v4538 = vadd.f32 %v4536, %v4537
      %4541 = vst [vmem:[#allocation1] ss:$4 sm:$0xff] %v4504
      %s4542 = scalar_lea.vmem [#allocation1], 1
      %4543 = vst [vmem:[%s4542] ss:$4 sm:$0xff] %v4511
      %v4544 = vld.sshfl [vmem:[#allocation1] sm:$0xff pattern:$0x73625140]
      %4546 = vst [vmem:[#allocation1] ss:$4 sm:$0xff] %v4353
      %s4547 = scalar_lea.vmem [#allocation1], 1
      %4548 = vst [vmem:[%s4547] ss:$4 sm:$0xff] %v4354
      %v4549 = vld.sshfl [vmem:[#allocation1] sm:$0xff pattern:$0x73625140]
      %4550 = vrot.lane.b32.xlu0 %v4549, 16
      %v4551 = vpop.permute.xlu0 %4550
      %4553 = vst [vmem:[#allocation1] ss:$4 sm:$0xff] %v3961
      %s4554 = scalar_lea.vmem [#allocation1], 1
      %4555 = vst [vmem:[%s4554] ss:$4 sm:$0xff] %v3962
      %v4556 = vld.sshfl [vmem:[#allocation1] sm:$0xff pattern:$0x73625140]
      %4557 = vrot.lane.b32.xlu0 %v4556, 16
      %v4558 = vpop.permute.xlu0 %4557
      %4560 = vst [vmem:[#allocation1] ss:$4 sm:$0xff] %v4353
      %s4561 = scalar_lea.vmem [#allocation1], 1
      %4562 = vst [vmem:[%s4561] ss:$4 sm:$0xff] %v4354
      %v4563 = vld.sshfl [vmem:[#allocation1] sm:$0xff pattern:$0x73625140]
      %4564 = vrot.lane.b32.xlu0 %v4563, 48
      %v4565 = vpop.permute.xlu0 %4564
      %4569 = vst [vmem:[#allocation1] ss:$4 sm:$0xff] %v4531
      %s4570 = scalar_lea.vmem [#allocation1], 1
      %4571 = vst [vmem:[%s4570] ss:$4 sm:$0xff] %v4538
      %v4572 = vld.sshfl [vmem:[#allocation1] sm:$0xff pattern:$0x73625140]
      %4573 = vrot.lane.b32.xlu0 %v4572, 64
      %v4574 = vpop.permute.xlu0 %4573
      %4576 = vst [vmem:[#allocation1] ss:$4 sm:$0xff] %v3955
      %s4577 = scalar_lea.vmem [#allocation1], 1
      %4578 = vst [vmem:[%s4577] ss:$4 sm:$0xff] %v3956
      %v4579 = vld.sshfl [vmem:[#allocation1] sm:$0xff pattern:$0x73625140]
      %v4581 = vsel %vm730, %v4544, %v4551
      %v4582 = vsel %vm731, %v4581, %v4558
      %v4583 = vsel %vm733, %v4582, %v4565
      %v4584 = vsel %vm738, %v4583, %v4574
      %v4585 = vsel %vm833, %v4584, %v4579
      %v4587 = vsel %vm838, %v4585, 0
      %4589 = vmatpush.msra.mxu0 0.0
      %4590 = vmatpush.msra.mxu0 0.0
      %4591 = vmatpush.msra.mxu0 0.0
      %4592 = vmatpush.msra.mxu0 0.0
      %4593 = vmatpush.msra.mxu0 %v675
      %4594 = vmatpush.msra.mxu0 %v674
      %4595 = vmatpush.msra.mxu0 %v673
      %4596 = vmatpush.msra.mxu0 %v672
      %4597 = vmatpush.msra.mxu0 %v671
      %4598 = vmatpush.msra.mxu0 %v670
      %4599 = vmatpush.msra.mxu0 %v669
      %4600 = vmatpush.msra.mxu0 %v668
      %4601 = vmatpush.msra.mxu0 %v667
      %4602 = vmatpush.msra.mxu0 %v666
      %4603 = vmatpush.msra.mxu0 %v665
      %4604 = vmatpush.msra.mxu0 %v664
      %4605 = vmatmul.f32.gmra.mxu0 %v4587
      %v4606 = vpop.f32.mrf.mxu0
      %v4607 = vadd.f32 %v994, %v4606
      %4608 = vdwg.mxu0
      %v4609 = vxor.u32 %v4607, 2147483648
      %v4610 = vmul.f32 %v4609, 1.442695
      %v4611 = vpow.pop %v4610
      %v4612 = vadd.f32 %v4611, 1.0
      %v4613 = vrcp.pop %v4612
      %v4614 = vmul.f32 %v4612, %v4613
      %v4615 = vsub.f32 1.0, %v4614
      %v4616 = vmul.f32 %v4613, %v4615
      %v4617 = vadd.f32 %v4613, %v4616
      %vm4618 = vweird.f32 %v4612
      %vm4619 = vweird.f32 %v4613
      %vm4620 = vmor %vm4618, %vm4619
      %v4621 = vsel %vm4620, %v4613, %v4617
      %v4622 = vand.u32 2147483647, %v4612
      %vm4623 = vcmp.eq.f32.partialorder %v4622, 8.507059e+37
      %v4624 = vand.u32 %v4612, 2147483648
      %v4625 = vor.u32 1.1754944e-38, %v4624
      %v4626 = vsel %vm4623, %v4625, %v4621
      %v4627 = vmul.f32 1.0, %v4626
      %4629 = vrot.lane.b32.xlu0 %v4607, 80
      %v4630 = vpop.permute.xlu0 %4629
      %v4632 = vmul.f32 %v4627, %v4630
      %4634 = vrot.lane.b32.xlu0 %v4632, 32
      %v4635 = vpop.permute.xlu0 %4634
      %v4637 = vadd.f32 %v4607, %v4635
      %v4638 = vtanh.pop %v4637
      %v4639 = vsub.f32 1.0, %v4627
      %4641 = vrot.lane.b32.xlu0 %v4638, 112
      %v4642 = vpop.permute.xlu0 %4641
      %v4644 = vmul.f32 %v4639, %v4642
      %4645 = vst [vmem:[#allocation1] ss:$4 sm:$0xff] %v3961
      %s4646 = scalar_lea.vmem [#allocation1], 1
      %4647 = vst [vmem:[%s4646] ss:$4 sm:$0xff] %v3962
      %v4648 = vld.sshfl [vmem:[#allocation1] sm:$0xff pattern:$0x73625140]
      %v4650 = vmul.f32 %v4627, %v4648
      %v4651 = vadd.f32 %v4644, %v4650
      %v4653 = vrot.slane %v4651, 2
      %4655 = vst [vmem:[#allocation1] ss:$4 sm:$0xff] %v3955
      %s4656 = scalar_lea.vmem [#allocation1], 1
      %4657 = vst [vmem:[%s4656] ss:$4 sm:$0xff] %v3956
      %v4658 = vld.sshfl [vmem:[#allocation1] sm:$0xff pattern:$0x73625140]
      %v4660 = vmul.f32 %v4627, %v4658
      %v4661 = vadd.f32 %v4644, %v4660
      %v4663 = vrot.slane %v4661, 2
      %v4665 = vperm.slane %v4072, 0
      %v4666 = vlaneseq
      %v4667 = vshrl.u32 %v4666, 7
      %4669 = vset.pattern.permute.xlu0 %v4667
      %4670 = vperm.xlu0 %4669, %v4665
      %v4671 = vpop.permute.xlu0 %4670
      %v4672 = vperm.slane %v4072, 1
      %v4673 = vlaneseq
      %v4674 = vshrl.u32 %v4673, 7
      %4676 = vset.pattern.permute.xlu0 %v4674
      %4677 = vperm.xlu0 %4676, %v4672
      %v4678 = vpop.permute.xlu0 %4677
      %v4679 = vmul.f32 %v4661, %v4671
      %v4680 = vmul.f32 %v4663, %v4678
      %v4681 = vsub.f32 1.0, %v4671
      %v4682 = vsub.f32 1.0, %v4678
      %v4683 = vmul.f32 %v4481, %v4681
      %v4684 = vmul.f32 %v4483, %v4682
      %v4685 = vadd.f32 %v4679, %v4683
      %v4686 = vadd.f32 %v4680, %v4684
      %v4687 = vmul.f32 %v4471, %v4671
      %v4688 = vmul.f32 %v4473, %v4678
      %v4689 = vmul.f32 %v4651, %v4681
      %v4690 = vmul.f32 %v4653, %v4682
      %v4691 = vadd.f32 %v4687, %v4689
      %v4692 = vadd.f32 %v4688, %v4690
      %4695 = vst [vmem:[#allocation1] ss:$4 sm:$0xff] %v4685
      %v4696 = vld.sshfl [vmem:[#allocation1] sm:$0xff pattern:$0x73625140]
      %s4697 = scalar_lea.vmem [#allocation1], 32
      %4698 = vst [vmem:[%s4697] ss:$4 sm:$0xff] %v4686
      %v4699 = vld.sshfl [vmem:[#allocation1 + $0x20] sm:$0xff pattern:$0x73625140]
      %4700 = vrot.lane.b32.xlu0 %v4696, 48
      %v4701 = vpop.permute.xlu0 %4700
      %4702 = vrot.lane.b32.xlu0 %v4699, 48
      %v4703 = vpop.permute.xlu0 %4702
      %v4706 = vmul.f32 %v4081, %v4701
      %v4707 = vmul.f32 %v4088, %v4703
      %v4708 = vsel %vm916, %v4706, 0.0
      %v4709 = vrot.slane %v4708, 4
      %v4710 = vadd.f32 %v4708, %v4709
      %v4711 = vrot.slane %v4710, 2
      %v4712 = vadd.f32 %v4710, %v4711
      %v4713 = vrot.slane %v4712, 1
      %v4714 = vadd.f32 %v4712, %v4713
      %v4715 = vsel %vm916, %v4707, 0.0
      %v4716 = vrot.slane %v4715, 4
      %v4717 = vadd.f32 %v4715, %v4716
      %v4718 = vrot.slane %v4717, 2
      %v4719 = vadd.f32 %v4717, %v4718
      %v4720 = vrot.slane %v4719, 1
      %v4721 = vadd.f32 %v4719, %v4720
      %v4724 = vsel %vm723, %v4721, %v4714
      %4725 = vrot.lane.b32.xlu0 %v4724, 16
      %v4726 = vpop.permute.xlu0 %4725
      %4728 = vrot.lane.b32.xlu0 %v4225, 16
      %v4729 = vpop.permute.xlu0 %4728
      %4732 = vrot.lane.b32.xlu0 %v4068, 32
      %v4733 = vpop.permute.xlu0 %4732
      %v4735 = vsel %vm730, %v4070, %v4726
      %v4736 = vsel %vm731, %v4735, %v4729
      %v4737 = vsel %vm733, %v4736, %v4733
      %v4739 = vsel %vm738, %v4737, 0
      %4741 = vmatpush.msra.mxu0 0.0
      %4742 = vmatpush.msra.mxu0 0.0
      %4743 = vmatpush.msra.mxu0 0.0
      %4744 = vmatpush.msra.mxu0 0.0
      %4745 = vmatpush.msra.mxu0 0.0
      %4746 = vmatpush.msra.mxu0 0.0
      %4747 = vmatpush.msra.mxu0 0.0
      %4748 = vmatpush.msra.mxu0 0.0
      %4749 = vmatpush.msra.mxu0 %v684
      %4750 = vmatpush.msra.mxu0 %v683
      %4751 = vmatpush.msra.mxu0 %v682
      %4752 = vmatpush.msra.mxu0 %v681
      %4753 = vmatpush.msra.mxu0 %v680
      %4754 = vmatpush.msra.mxu0 %v679
      %4755 = vmatpush.msra.mxu0 %v678
      %4756 = vmatpush.msra.mxu0 %v677
      %4757 = vmatmul.f32.gmra.mxu0 %v4739
      %v4758 = vpop.f32.mrf.mxu0
      %v4759 = vadd.f32 %v1130, %v4758
      %4760 = vdwg.mxu0
      %v4761 = vxor.u32 %v4759, 2147483648
      %v4762 = vmul.f32 %v4761, 1.442695
      %v4763 = vpow.pop %v4762
      %v4764 = vadd.f32 %v4763, 1.0
      %v4765 = vrcp.pop %v4764
      %v4766 = vmul.f32 %v4764, %v4765
      %v4767 = vsub.f32 1.0, %v4766
      %v4768 = vmul.f32 %v4765, %v4767
      %v4769 = vadd.f32 %v4765, %v4768
      %vm4770 = vweird.f32 %v4764
      %vm4771 = vweird.f32 %v4765
      %vm4772 = vmor %vm4770, %vm4771
      %v4773 = vsel %vm4772, %v4765, %v4769
      %v4774 = vand.u32 2147483647, %v4764
      %vm4775 = vcmp.eq.f32.partialorder %v4774, 8.507059e+37
      %v4776 = vand.u32 %v4764, 2147483648
      %v4777 = vor.u32 1.1754944e-38, %v4776
      %v4778 = vsel %vm4775, %v4777, %v4773
      %v4779 = vmul.f32 1.0, %v4778
      %4781 = vrot.lane.b32.xlu0 %v4759, 80
      %v4782 = vpop.permute.xlu0 %4781
      %v4784 = vmul.f32 %v4779, %v4782
      %4786 = vrot.lane.b32.xlu0 %v4784, 32
      %v4787 = vpop.permute.xlu0 %4786
      %v4789 = vadd.f32 %v4759, %v4787
      %v4790 = vtanh.pop %v4789
      %v4791 = vsub.f32 1.0, %v4779
      %4793 = vrot.lane.b32.xlu0 %v4790, 112
      %v4794 = vpop.permute.xlu0 %4793
      %v4796 = vmul.f32 %v4791, %v4794
      %v4797 = vmul.f32 %v4779, %v4068
      %v4798 = vadd.f32 %v4796, %v4797
      %s4799 = scalar_lea.vmem %s587, 12
      %v4800 = vld [vmem:[%s4799] sm:$0x3]
      %s4801 = scalar_lea.vmem %s592, 12
      %v4802 = vld [vmem:[%s4801] sm:$0x3]
      %s4803 = scalar_lea.vmem %s597, 12
      %v4804 = vld [vmem:[%s4803] sm:$0x3]
      %v4805 = vperm.slane %v4804, 0
      %v4806 = vlaneseq
      %v4807 = vshrl.u32 %v4806, 7
      %4809 = vset.pattern.permute.xlu0 %v4807
      %4810 = vperm.xlu0 %4809, %v4805
      %v4811 = vpop.permute.xlu0 %4810
      %v4812 = vperm.slane %v4804, 1
      %v4813 = vlaneseq
      %v4814 = vshrl.u32 %v4813, 7
      %4816 = vset.pattern.permute.xlu0 %v4814
      %4817 = vperm.xlu0 %4816, %v4812
      %v4818 = vpop.permute.xlu0 %4817
      %4819 = vst [vmem:[#allocation1] ss:$4 sm:$0xff] %v4685
      %v4820 = vld.sshfl [vmem:[#allocation1] sm:$0xff pattern:$0x73625140]
      %s4821 = scalar_lea.vmem [#allocation1], 32
      %4822 = vst [vmem:[%s4821] ss:$4 sm:$0xff] %v4686
      %v4823 = vld.sshfl [vmem:[#allocation1 + $0x20] sm:$0xff pattern:$0x73625140]
      %4824 = vrot.lane.b32.xlu0 %v4820, 48
      %v4825 = vpop.permute.xlu0 %4824
      %4826 = vrot.lane.b32.xlu0 %v4823, 48
      %v4827 = vpop.permute.xlu0 %4826
      %v4830 = vmul.f32 %v4811, %v4825
      %v4831 = vmul.f32 %v4818, %v4827
      %v4832 = vsel %vm916, %v4830, 0.0
      %v4833 = vrot.slane %v4832, 4
      %v4834 = vadd.f32 %v4832, %v4833
      %v4835 = vrot.slane %v4834, 2
      %v4836 = vadd.f32 %v4834, %v4835
      %v4837 = vrot.slane %v4836, 1
      %v4838 = vadd.f32 %v4836, %v4837
      %v4839 = vsel %vm916, %v4831, 0.0
      %v4840 = vrot.slane %v4839, 4
      %v4841 = vadd.f32 %v4839, %v4840
      %v4842 = vrot.slane %v4841, 2
      %v4843 = vadd.f32 %v4841, %v4842
      %v4844 = vrot.slane %v4843, 1
      %v4845 = vadd.f32 %v4843, %v4844
      %4848 = vst [vmem:[#allocation1] ss:$4 sm:$0xff] %v4691
      %v4849 = vld.sshfl [vmem:[#allocation1] sm:$0xff pattern:$0x73625140]
      %s4850 = scalar_lea.vmem [#allocation1], 32
      %4851 = vst [vmem:[%s4850] ss:$4 sm:$0xff] %v4692
      %v4852 = vld.sshfl [vmem:[#allocation1 + $0x20] sm:$0xff pattern:$0x73625140]
      %4853 = vrot.lane.b32.xlu0 %v4849, 112
      %v4854 = vpop.permute.xlu0 %4853
      %4855 = vrot.lane.b32.xlu0 %v4852, 112
      %v4856 = vpop.permute.xlu0 %4855
      %v4859 = vmul.f32 %v4811, %v4854
      %v4860 = vmul.f32 %v4818, %v4856
      %v4861 = vsel %vm916, %v4859, 0.0
      %v4862 = vrot.slane %v4861, 4
      %v4863 = vadd.f32 %v4861, %v4862
      %v4864 = vrot.slane %v4863, 2
      %v4865 = vadd.f32 %v4863, %v4864
      %v4866 = vrot.slane %v4865, 1
      %v4867 = vadd.f32 %v4865, %v4866
      %v4868 = vsel %vm916, %v4860, 0.0
      %v4869 = vrot.slane %v4868, 4
      %v4870 = vadd.f32 %v4868, %v4869
      %v4871 = vrot.slane %v4870, 2
      %v4872 = vadd.f32 %v4870, %v4871
      %v4873 = vrot.slane %v4872, 1
      %v4874 = vadd.f32 %v4872, %v4873
      %v4877 = vsel %vm723, %v4845, %v4838
      %v4881 = vsel %vm723, %v4874, %v4867
      %4882 = vrot.lane.b32.xlu0 %v4881, 16
      %v4883 = vpop.permute.xlu0 %4882
      %4886 = vrot.lane.b32.xlu0 %v4800, 32
      %v4887 = vpop.permute.xlu0 %4886
      %4889 = vrot.lane.b32.xlu0 %v4225, 32
      %v4890 = vpop.permute.xlu0 %4889
      %v4892 = vsel %vm730, %v4877, %v4883
      %v4893 = vsel %vm731, %v4892, %v4887
      %v4894 = vsel %vm733, %v4893, %v4890
      %v4896 = vsel %vm738, %v4894, 0
      %4898 = vmatpush.msra.mxu0 0.0
      %4899 = vmatpush.msra.mxu0 0.0
      %4900 = vmatpush.msra.mxu0 0.0
      %4901 = vmatpush.msra.mxu0 0.0
      %4902 = vmatpush.msra.mxu0 0.0
      %4903 = vmatpush.msra.mxu0 0.0
      %4904 = vmatpush.msra.mxu0 0.0
      %4905 = vmatpush.msra.mxu0 0.0
      %4906 = vmatpush.msra.mxu0 %v649
      %4907 = vmatpush.msra.mxu0 %v648
      %4908 = vmatpush.msra.mxu0 %v647
      %4909 = vmatpush.msra.mxu0 %v646
      %4910 = vmatpush.msra.mxu0 %v645
      %4911 = vmatpush.msra.mxu0 %v644
      %4912 = vmatpush.msra.mxu0 %v643
      %4913 = vmatpush.msra.mxu0 %v642
      %4914 = vmatmul.f32.gmra.mxu0 %v4896
      %v4915 = vpop.f32.mrf.mxu0
      %v4916 = vadd.f32 %v736, %v4915
      %4917 = vdwg.mxu0
      %v4918 = vxor.u32 %v4916, 2147483648
      %v4919 = vmul.f32 %v4918, 1.442695
      %v4920 = vpow.pop %v4919
      %v4921 = vadd.f32 %v4920, 1.0
      %v4922 = vrcp.pop %v4921
      %v4923 = vmul.f32 %v4921, %v4922
      %v4924 = vsub.f32 1.0, %v4923
      %v4925 = vmul.f32 %v4922, %v4924
      %v4926 = vadd.f32 %v4922, %v4925
      %vm4927 = vweird.f32 %v4921
      %vm4928 = vweird.f32 %v4922
      %vm4929 = vmor %vm4927, %vm4928
      %v4930 = vsel %vm4929, %v4922, %v4926
      %v4931 = vand.u32 2147483647, %v4921
      %vm4932 = vcmp.eq.f32.partialorder %v4931, 8.507059e+37
      %v4933 = vand.u32 %v4921, 2147483648
      %v4934 = vor.u32 1.1754944e-38, %v4933
      %v4935 = vsel %vm4932, %v4934, %v4930
      %v4936 = vmul.f32 1.0, %v4935
      %4938 = vrot.lane.b32.xlu0 %v4916, 80
      %v4939 = vpop.permute.xlu0 %4938
      %v4941 = vmul.f32 %v4936, %v4939
      %4943 = vrot.lane.b32.xlu0 %v4941, 32
      %v4944 = vpop.permute.xlu0 %4943
      %v4946 = vadd.f32 %v4916, %v4944
      %v4947 = vtanh.pop %v4946
      %v4948 = vsub.f32 1.0, %v4936
      %4950 = vrot.lane.b32.xlu0 %v4947, 112
      %v4951 = vpop.permute.xlu0 %4950
      %v4953 = vmul.f32 %v4948, %v4951
      %v4954 = vmul.f32 %v4936, %v4225
      %v4955 = vadd.f32 %v4953, %v4954
      %vm4958 = vcmask 1044480
      %v4959 = vsel %vm4958, %v4229, %v4357
      %v4960 = vsel %vm4958, %v4230, %v4358
      %v4961 = vmul.f32 %v4959, %v2039
      %v4962 = vmul.f32 %v4960, %v2039
      %4965 = vrot.lane.b32.xlu0 %v4961, 112
      %v4966 = vpop.permute.xlu0 %4965
      %4967 = vrot.lane.b32.xlu0 %v4962, 112
      %v4968 = vpop.permute.xlu0 %4967
      %vm4971 = vcmask 128000
      %v4972 = vsel %vm4971, %v4966, 0.0
      %4973 = vadd.xlane.f32.xlu0 %v4972
      %v4974 = vpop.xlane.xlu0 %4973
      %v4975 = vsel %vm4971, %v4968, 0.0
      %4976 = vadd.xlane.f32.xlu0 %v4975
      %v4977 = vpop.xlane.xlu0 %4976
      %v4980 = vperm.slane %v4974, %v2060
      %v4981 = vperm.slane %v4977, %v2060
      %v4982 = vsel %vm723, %v4981, %v4980
      %vm4984 = vcmask 41984
      %v4985 = vsel %vm4984, %v4982, -inf
      %4986 = vmax.xlane.f32.xlu0 %v4985
      %v4987 = vpop.xlane.xlu0 %4986
      %v4989 = vperm.slane %v4987, 0
      %v4990 = vperm.slane %v4987, 1
      %v4993 = vsub.f32 %v4974, %v4989
      %v4994 = vsub.f32 %v4977, %v4990
      %v4995 = vmul.f32 %v4993, 1.442695
      %v4996 = vpow.pop %v4995
      %v4997 = vmul.f32 %v4994, 1.442695
      %v4998 = vpow.pop %v4997
      %5001 = vset.pattern.permute.xlu0 0
      %5002 = vperm.xlu0 %5001, %v4996
      %v5003 = vpop.permute.xlu0 %5002
      %5004 = vset.pattern.permute.xlu0 0
      %5005 = vperm.xlu0 %5004, %v4998
      %v5006 = vpop.permute.xlu0 %5005
      %v5007 = vperm.slane %v5003, %v2060
      %v5008 = vperm.slane %v5006, %v2060
      %v5009 = vsel %vm723, %v5008, %v5007
      %v5011 = vsel %vm4984, %v5009, 0.0
      %5012 = vadd.xlane.f32.xlu0 %v5011
      %v5013 = vpop.xlane.xlu0 %5012
      %v5015 = vperm.slane %v5013, 0
      %v5016 = vperm.slane %v5013, 1
      %v5019 = vrcp.pop %v5015
      %v5020 = vmul.f32 %v5015, %v5019
      %v5021 = vsub.f32 1.0, %v5020
      %v5022 = vmul.f32 %v5019, %v5021
      %v5023 = vadd.f32 %v5019, %v5022
      %vm5024 = vweird.f32 %v5015
      %vm5025 = vweird.f32 %v5019
      %vm5026 = vmor %vm5024, %vm5025
      %v5027 = vsel %vm5026, %v5019, %v5023
      %v5028 = vand.u32 2147483647, %v5015
      %vm5029 = vcmp.eq.f32.partialorder %v5028, 8.507059e+37
      %v5030 = vand.u32 %v5015, 2147483648
      %v5031 = vor.u32 1.1754944e-38, %v5030
      %v5032 = vsel %vm5029, %v5031, %v5027
      %v5033 = vmul.f32 %v4996, %v5032
      %v5034 = vrcp.pop %v5016
      %v5035 = vmul.f32 %v5016, %v5034
      %v5036 = vsub.f32 1.0, %v5035
      %v5037 = vmul.f32 %v5034, %v5036
      %v5038 = vadd.f32 %v5034, %v5037
      %vm5039 = vweird.f32 %v5016
      %vm5040 = vweird.f32 %v5034
      %vm5041 = vmor %vm5039, %vm5040
      %v5042 = vsel %vm5041, %v5034, %v5038
      %v5043 = vand.u32 2147483647, %v5016
      %vm5044 = vcmp.eq.f32.partialorder %v5043, 8.507059e+37
      %v5045 = vand.u32 %v5016, 2147483648
      %v5046 = vor.u32 1.1754944e-38, %v5045
      %v5047 = vsel %vm5044, %v5046, %v5042
      %v5048 = vmul.f32 %v4998, %v5047
      %5050 = vset.pattern.permute.xlu0 0
      %5051 = vperm.xlu0 %5050, %v5033
      %v5052 = vpop.permute.xlu0 %5051
      %5055 = vset.pattern.permute.xlu0 0
      %5056 = vperm.xlu0 %5055, %v5048
      %v5057 = vpop.permute.xlu0 %5056
      %v5059 = vmul.f32 %v5052, %v4959
      %v5060 = vmul.f32 %v5057, %v4960
      %vm5061 = vcmask 259200
      %v5062 = vsel %vm5061, %v5059, 0.0
      %v5063 = vrot.slane %v5062, 4
      %v5064 = vadd.f32 %v5062, %v5063
      %v5065 = vrot.slane %v5064, 2
      %v5066 = vadd.f32 %v5064, %v5065
      %v5067 = vrot.slane %v5066, 1
      %v5068 = vadd.f32 %v5066, %v5067
      %v5069 = vsel %vm5061, %v5060, 0.0
      %v5070 = vrot.slane %v5069, 4
      %v5071 = vadd.f32 %v5069, %v5070
      %v5072 = vrot.slane %v5071, 2
      %v5073 = vadd.f32 %v5071, %v5072
      %v5074 = vrot.slane %v5073, 1
      %v5075 = vadd.f32 %v5073, %v5074
      %v5076 = vperm.slane %v5052, %v2060
      %v5077 = vperm.slane %v5057, %v2060
      %v5078 = vsel %vm723, %v5077, %v5076
      %vm5080 = vcmask 48128
      %v5081 = vsel %vm5080, %v5078, 0.0
      %v5082 = vrot.slane %v4800, 1
      %v5083 = vperm.slane %v4800, 0
      %v5084 = vperm.slane %v5082, 0
      %v5086 = vrot.slane %v4955, 1
      %v5087 = vperm.slane %v4955, 0
      %v5088 = vperm.slane %v5086, 0
      %5091 = vst [vmem:[#allocation1] ss:$4 sm:$0xff] %v5068
      %s5092 = scalar_lea.vmem [#allocation1], 1
      %5093 = vst [vmem:[%s5092] ss:$4 sm:$0xff] %v5075
      %v5094 = vld.sshfl [vmem:[#allocation1] sm:$0xff pattern:$0x73625140]
      %5095 = vrot.lane.b32.xlu0 %v5094, 112
      %v5096 = vpop.permute.xlu0 %5095
      %5098 = vst [vmem:[#allocation1] ss:$4 sm:$0xff] %v5083
      %s5099 = scalar_lea.vmem [#allocation1], 1
      %5100 = vst [vmem:[%s5099] ss:$4 sm:$0xff] %v5084
      %v5101 = vld.sshfl [vmem:[#allocation1] sm:$0xff pattern:$0x73625140]
      %5102 = vrot.lane.b32.xlu0 %v5101, 16
      %v5103 = vpop.permute.xlu0 %5102
      %5105 = vst [vmem:[#allocation1] ss:$4 sm:$0xff] %v4691
      %s5106 = scalar_lea.vmem [#allocation1], 1
      %5107 = vst [vmem:[%s5106] ss:$4 sm:$0xff] %v4692
      %v5108 = vld.sshfl [vmem:[#allocation1] sm:$0xff pattern:$0x73625140]
      %5109 = vrot.lane.b32.xlu0 %v5108, 16
      %v5110 = vpop.permute.xlu0 %5109
      %5112 = vst [vmem:[#allocation1] ss:$4 sm:$0xff] %v5083
      %s5113 = scalar_lea.vmem [#allocation1], 1
      %5114 = vst [vmem:[%s5113] ss:$4 sm:$0xff] %v5084
      %v5115 = vld.sshfl [vmem:[#allocation1] sm:$0xff pattern:$0x73625140]
      %5116 = vrot.lane.b32.xlu0 %v5115, 48
      %v5117 = vpop.permute.xlu0 %5116
      %5119 = vst [vmem:[#allocation1] ss:$4 sm:$0xff] %v5087
      %s5120 = scalar_lea.vmem [#allocation1], 1
      %5121 = vst [vmem:[%s5120] ss:$4 sm:$0xff] %v5088
      %v5122 = vld.sshfl [vmem:[#allocation1] sm:$0xff pattern:$0x73625140]
      %5123 = vrot.lane.b32.xlu0 %v5122, 48
      %v5124 = vpop.permute.xlu0 %5123
      %5126 = vst [vmem:[#allocation1] ss:$4 sm:$0xff] %v4685
      %s5127 = scalar_lea.vmem [#allocation1], 1
      %5128 = vst [vmem:[%s5127] ss:$4 sm:$0xff] %v4686
      %v5129 = vld.sshfl [vmem:[#allocation1] sm:$0xff pattern:$0x73625140]
      %v5131 = vsel %vm730, %v5096, %v5103
      %v5132 = vsel %vm731, %v5131, %v5110
      %v5133 = vsel %vm733, %v5132, %v5117
      %v5134 = vsel %vm738, %v5133, %v5124
      %v5135 = vsel %vm833, %v5134, %v5129
      %v5137 = vsel %vm838, %v5135, 0
      %5139 = vmatpush.msra.mxu0 0.0
      %5140 = vmatpush.msra.mxu0 0.0
      %5141 = vmatpush.msra.mxu0 0.0
      %5142 = vmatpush.msra.mxu0 0.0
      %5143 = vmatpush.msra.mxu0 %v662
      %5144 = vmatpush.msra.mxu0 %v661
      %5145 = vmatpush.msra.mxu0 %v660
      %5146 = vmatpush.msra.mxu0 %v659
      %5147 = vmatpush.msra.mxu0 %v658
      %5148 = vmatpush.msra.mxu0 %v657
      %5149 = vmatpush.msra.mxu0 %v656
      %5150 = vmatpush.msra.mxu0 %v655
      %5151 = vmatpush.msra.mxu0 %v654
      %5152 = vmatpush.msra.mxu0 %v653
      %5153 = vmatpush.msra.mxu0 %v652
      %5154 = vmatpush.msra.mxu0 %v651
      %5155 = vmatmul.f32.gmra.mxu0 %v5137
      %v5156 = vpop.f32.mrf.mxu0
      %v5157 = vadd.f32 %v836, %v5156
      %5158 = vdwg.mxu0
      %v5159 = vxor.u32 %v5157, 2147483648
      %v5160 = vmul.f32 %v5159, 1.442695
      %v5161 = vpow.pop %v5160
      %v5162 = vadd.f32 %v5161, 1.0
      %v5163 = vrcp.pop %v5162
      %v5164 = vmul.f32 %v5162, %v5163
      %v5165 = vsub.f32 1.0, %v5164
      %v5166 = vmul.f32 %v5163, %v5165
      %v5167 = vadd.f32 %v5163, %v5166
      %vm5168 = vweird.f32 %v5162
      %vm5169 = vweird.f32 %v5163
      %vm5170 = vmor %vm5168, %vm5169
      %v5171 = vsel %vm5170, %v5163, %v5167
      %v5172 = vand.u32 2147483647, %v5162
      %vm5173 = vcmp.eq.f32.partialorder %v5172, 8.507059e+37
      %v5174 = vand.u32 %v5162, 2147483648
      %v5175 = vor.u32 1.1754944e-38, %v5174
      %v5176 = vsel %vm5173, %v5175, %v5171
      %v5177 = vmul.f32 1.0, %v5176
      %5179 = vrot.lane.b32.xlu0 %v5157, 80
      %v5180 = vpop.permute.xlu0 %5179
      %v5182 = vmul.f32 %v5177, %v5180
      %5184 = vrot.lane.b32.xlu0 %v5182, 32
      %v5185 = vpop.permute.xlu0 %5184
      %v5187 = vadd.f32 %v5157, %v5185
      %v5188 = vtanh.pop %v5187
      %v5189 = vsub.f32 1.0, %v5177
      %5191 = vrot.lane.b32.xlu0 %v5188, 112
      %v5192 = vpop.permute.xlu0 %5191
      %v5194 = vmul.f32 %v5189, %v5192
      %5195 = vst [vmem:[#allocation1] ss:$4 sm:$0xff] %v4691
      %s5196 = scalar_lea.vmem [#allocation1], 1
      %5197 = vst [vmem:[%s5196] ss:$4 sm:$0xff] %v4692
      %v5198 = vld.sshfl [vmem:[#allocation1] sm:$0xff pattern:$0x73625140]
      %v5200 = vmul.f32 %v5177, %v5198
      %v5201 = vadd.f32 %v5194, %v5200
      %v5203 = vrot.slane %v5201, 2
      %5205 = vst [vmem:[#allocation1] ss:$4 sm:$0xff] %v4685
      %s5206 = scalar_lea.vmem [#allocation1], 1
      %5207 = vst [vmem:[%s5206] ss:$4 sm:$0xff] %v4686
      %v5208 = vld.sshfl [vmem:[#allocation1] sm:$0xff pattern:$0x73625140]
      %v5210 = vmul.f32 %v5177, %v5208
      %v5211 = vadd.f32 %v5194, %v5210
      %v5213 = vrot.slane %v5211, 2
      %5215 = vst [vmem:[#allocation1] ss:$4 sm:$0xff] %v5201
      %v5216 = vld.sshfl [vmem:[#allocation1] sm:$0xff pattern:$0x73625140]
      %s5217 = scalar_lea.vmem [#allocation1], 32
      %5218 = vst [vmem:[%s5217] ss:$4 sm:$0xff] %v5203
      %v5219 = vld.sshfl [vmem:[#allocation1 + $0x20] sm:$0xff pattern:$0x73625140]
      %5220 = vrot.lane.b32.xlu0 %v5216, 112
      %v5221 = vpop.permute.xlu0 %5220
      %5222 = vrot.lane.b32.xlu0 %v5219, 112
      %v5223 = vpop.permute.xlu0 %5222
      %v5226 = vmul.f32 %v4811, %v5221
      %v5227 = vmul.f32 %v4818, %v5223
      %v5228 = vsel %vm916, %v5226, 0.0
      %v5229 = vrot.slane %v5228, 4
      %v5230 = vadd.f32 %v5228, %v5229
      %v5231 = vrot.slane %v5230, 2
      %v5232 = vadd.f32 %v5230, %v5231
      %v5233 = vrot.slane %v5232, 1
      %v5234 = vadd.f32 %v5232, %v5233
      %v5235 = vsel %vm916, %v5227, 0.0
      %v5236 = vrot.slane %v5235, 4
      %v5237 = vadd.f32 %v5235, %v5236
      %v5238 = vrot.slane %v5237, 2
      %v5239 = vadd.f32 %v5237, %v5238
      %v5240 = vrot.slane %v5239, 1
      %v5241 = vadd.f32 %v5239, %v5240
      %5242 = vst [vmem:[#allocation1] ss:$4 sm:$0xff] %v5211
      %v5243 = vld.sshfl [vmem:[#allocation1] sm:$0xff pattern:$0x73625140]
      %s5244 = scalar_lea.vmem [#allocation1], 32
      %5245 = vst [vmem:[%s5244] ss:$4 sm:$0xff] %v5213
      %v5246 = vld.sshfl [vmem:[#allocation1 + $0x20] sm:$0xff pattern:$0x73625140]
      %5247 = vrot.lane.b32.xlu0 %v5243, 48
      %v5248 = vpop.permute.xlu0 %5247
      %5249 = vrot.lane.b32.xlu0 %v5246, 48
      %v5250 = vpop.permute.xlu0 %5249
      %v5253 = vmul.f32 %v4811, %v5248
      %v5254 = vmul.f32 %v4818, %v5250
      %v5255 = vsel %vm916, %v5253, 0.0
      %v5256 = vrot.slane %v5255, 4
      %v5257 = vadd.f32 %v5255, %v5256
      %v5258 = vrot.slane %v5257, 2
      %v5259 = vadd.f32 %v5257, %v5258
      %v5260 = vrot.slane %v5259, 1
      %v5261 = vadd.f32 %v5259, %v5260
      %v5262 = vsel %vm916, %v5254, 0.0
      %v5263 = vrot.slane %v5262, 4
      %v5264 = vadd.f32 %v5262, %v5263
      %v5265 = vrot.slane %v5264, 2
      %v5266 = vadd.f32 %v5264, %v5265
      %v5267 = vrot.slane %v5266, 1
      %v5268 = vadd.f32 %v5266, %v5267
      %5271 = vst [vmem:[#allocation1] ss:$4 sm:$0xff] %v5234
      %s5272 = scalar_lea.vmem [#allocation1], 1
      %5273 = vst [vmem:[%s5272] ss:$4 sm:$0xff] %v5241
      %v5274 = vld.sshfl [vmem:[#allocation1] sm:$0xff pattern:$0x73625140]
      %5276 = vst [vmem:[#allocation1] ss:$4 sm:$0xff] %v5083
      %s5277 = scalar_lea.vmem [#allocation1], 1
      %5278 = vst [vmem:[%s5277] ss:$4 sm:$0xff] %v5084
      %v5279 = vld.sshfl [vmem:[#allocation1] sm:$0xff pattern:$0x73625140]
      %5280 = vrot.lane.b32.xlu0 %v5279, 16
      %v5281 = vpop.permute.xlu0 %5280
      %5283 = vst [vmem:[#allocation1] ss:$4 sm:$0xff] %v4691
      %s5284 = scalar_lea.vmem [#allocation1], 1
      %5285 = vst [vmem:[%s5284] ss:$4 sm:$0xff] %v4692
      %v5286 = vld.sshfl [vmem:[#allocation1] sm:$0xff pattern:$0x73625140]
      %5287 = vrot.lane.b32.xlu0 %v5286, 16
      %v5288 = vpop.permute.xlu0 %5287
      %5290 = vst [vmem:[#allocation1] ss:$4 sm:$0xff] %v5083
      %s5291 = scalar_lea.vmem [#allocation1], 1
      %5292 = vst [vmem:[%s5291] ss:$4 sm:$0xff] %v5084
      %v5293 = vld.sshfl [vmem:[#allocation1] sm:$0xff pattern:$0x73625140]
      %5294 = vrot.lane.b32.xlu0 %v5293, 48
      %v5295 = vpop.permute.xlu0 %5294
      %5299 = vst [vmem:[#allocation1] ss:$4 sm:$0xff] %v5261
      %s5300 = scalar_lea.vmem [#allocation1], 1
      %5301 = vst [vmem:[%s5300] ss:$4 sm:$0xff] %v5268
      %v5302 = vld.sshfl [vmem:[#allocation1] sm:$0xff pattern:$0x73625140]
      %5303 = vrot.lane.b32.xlu0 %v5302, 64
      %v5304 = vpop.permute.xlu0 %5303
      %5306 = vst [vmem:[#allocation1] ss:$4 sm:$0xff] %v4685
      %s5307 = scalar_lea.vmem [#allocation1], 1
      %5308 = vst [vmem:[%s5307] ss:$4 sm:$0xff] %v4686
      %v5309 = vld.sshfl [vmem:[#allocation1] sm:$0xff pattern:$0x73625140]
      %v5311 = vsel %vm730, %v5274, %v5281
      %v5312 = vsel %vm731, %v5311, %v5288
      %v5313 = vsel %vm733, %v5312, %v5295
      %v5314 = vsel %vm738, %v5313, %v5304
      %v5315 = vsel %vm833, %v5314, %v5309
      %v5317 = vsel %vm838, %v5315, 0
      %5319 = vmatpush.msra.mxu0 0.0
      %5320 = vmatpush.msra.mxu0 0.0
      %5321 = vmatpush.msra.mxu0 0.0
      %5322 = vmatpush.msra.mxu0 0.0
      %5323 = vmatpush.msra.mxu0 %v675
      %5324 = vmatpush.msra.mxu0 %v674
      %5325 = vmatpush.msra.mxu0 %v673
      %5326 = vmatpush.msra.mxu0 %v672
      %5327 = vmatpush.msra.mxu0 %v671
      %5328 = vmatpush.msra.mxu0 %v670
      %5329 = vmatpush.msra.mxu0 %v669
      %5330 = vmatpush.msra.mxu0 %v668
      %5331 = vmatpush.msra.mxu0 %v667
      %5332 = vmatpush.msra.mxu0 %v666
      %5333 = vmatpush.msra.mxu0 %v665
      %5334 = vmatpush.msra.mxu0 %v664
      %5335 = vmatmul.f32.gmra.mxu0 %v5317
      %v5336 = vpop.f32.mrf.mxu0
      %v5337 = vadd.f32 %v994, %v5336
      %5338 = vdwg.mxu0
      %v5339 = vxor.u32 %v5337, 2147483648
      %v5340 = vmul.f32 %v5339, 1.442695
      %v5341 = vpow.pop %v5340
      %v5342 = vadd.f32 %v5341, 1.0
      %v5343 = vrcp.pop %v5342
      %v5344 = vmul.f32 %v5342, %v5343
      %v5345 = vsub.f32 1.0, %v5344
      %v5346 = vmul.f32 %v5343, %v5345
      %v5347 = vadd.f32 %v5343, %v5346
      %vm5348 = vweird.f32 %v5342
      %vm5349 = vweird.f32 %v5343
      %vm5350 = vmor %vm5348, %vm5349
      %v5351 = vsel %vm5350, %v5343, %v5347
      %v5352 = vand.u32 2147483647, %v5342
      %vm5353 = vcmp.eq.f32.partialorder %v5352, 8.507059e+37
      %v5354 = vand.u32 %v5342, 2147483648
      %v5355 = vor.u32 1.1754944e-38, %v5354
      %v5356 = vsel %vm5353, %v5355, %v5351
      %v5357 = vmul.f32 1.0, %v5356
      %5359 = vrot.lane.b32.xlu0 %v5337, 80
      %v5360 = vpop.permute.xlu0 %5359
      %v5362 = vmul.f32 %v5357, %v5360
      %5364 = vrot.lane.b32.xlu0 %v5362, 32
      %v5365 = vpop.permute.xlu0 %5364
      %v5367 = vadd.f32 %v5337, %v5365
      %v5368 = vtanh.pop %v5367
      %v5369 = vsub.f32 1.0, %v5357
      %5371 = vrot.lane.b32.xlu0 %v5368, 112
      %v5372 = vpop.permute.xlu0 %5371
      %v5374 = vmul.f32 %v5369, %v5372
      %5375 = vst [vmem:[#allocation1] ss:$4 sm:$0xff] %v4691
      %s5376 = scalar_lea.vmem [#allocation1], 1
      %5377 = vst [vmem:[%s5376] ss:$4 sm:$0xff] %v4692
      %v5378 = vld.sshfl [vmem:[#allocation1] sm:$0xff pattern:$0x73625140]
      %v5380 = vmul.f32 %v5357, %v5378
      %v5381 = vadd.f32 %v5374, %v5380
      %v5383 = vrot.slane %v5381, 2
      %5385 = vst [vmem:[#allocation1] ss:$4 sm:$0xff] %v4685
      %s5386 = scalar_lea.vmem [#allocation1], 1
      %5387 = vst [vmem:[%s5386] ss:$4 sm:$0xff] %v4686
      %v5388 = vld.sshfl [vmem:[#allocation1] sm:$0xff pattern:$0x73625140]
      %v5390 = vmul.f32 %v5357, %v5388
      %v5391 = vadd.f32 %v5374, %v5390
      %v5393 = vrot.slane %v5391, 2
      %v5395 = vperm.slane %v4802, 0
      %v5396 = vlaneseq
      %v5397 = vshrl.u32 %v5396, 7
      %5399 = vset.pattern.permute.xlu0 %v5397
      %5400 = vperm.xlu0 %5399, %v5395
      %v5401 = vpop.permute.xlu0 %5400
      %v5402 = vperm.slane %v4802, 1
      %v5403 = vlaneseq
      %v5404 = vshrl.u32 %v5403, 7
      %5406 = vset.pattern.permute.xlu0 %v5404
      %5407 = vperm.xlu0 %5406, %v5402
      %v5408 = vpop.permute.xlu0 %5407
      %v5409 = vmul.f32 %v5391, %v5401
      %v5410 = vmul.f32 %v5393, %v5408
      %v5411 = vsub.f32 1.0, %v5401
      %v5412 = vsub.f32 1.0, %v5408
      %v5413 = vmul.f32 %v5211, %v5411
      %v5414 = vmul.f32 %v5213, %v5412
      %v5415 = vadd.f32 %v5409, %v5413
      %v5416 = vadd.f32 %v5410, %v5414
      %v5417 = vmul.f32 %v5201, %v5401
      %v5418 = vmul.f32 %v5203, %v5408
      %v5419 = vmul.f32 %v5381, %v5411
      %v5420 = vmul.f32 %v5383, %v5412
      %v5421 = vadd.f32 %v5417, %v5419
      %v5422 = vadd.f32 %v5418, %v5420
      %5425 = vst [vmem:[#allocation1] ss:$4 sm:$0xff] %v5415
      %v5426 = vld.sshfl [vmem:[#allocation1] sm:$0xff pattern:$0x73625140]
      %s5427 = scalar_lea.vmem [#allocation1], 32
      %5428 = vst [vmem:[%s5427] ss:$4 sm:$0xff] %v5416
      %v5429 = vld.sshfl [vmem:[#allocation1 + $0x20] sm:$0xff pattern:$0x73625140]
      %5430 = vrot.lane.b32.xlu0 %v5426, 48
      %v5431 = vpop.permute.xlu0 %5430
      %5432 = vrot.lane.b32.xlu0 %v5429, 48
      %v5433 = vpop.permute.xlu0 %5432
      %v5436 = vmul.f32 %v4811, %v5431
      %v5437 = vmul.f32 %v4818, %v5433
      %v5438 = vsel %vm916, %v5436, 0.0
      %v5439 = vrot.slane %v5438, 4
      %v5440 = vadd.f32 %v5438, %v5439
      %v5441 = vrot.slane %v5440, 2
      %v5442 = vadd.f32 %v5440, %v5441
      %v5443 = vrot.slane %v5442, 1
      %v5444 = vadd.f32 %v5442, %v5443
      %v5445 = vsel %vm916, %v5437, 0.0
      %v5446 = vrot.slane %v5445, 4
      %v5447 = vadd.f32 %v5445, %v5446
      %v5448 = vrot.slane %v5447, 2
      %v5449 = vadd.f32 %v5447, %v5448
      %v5450 = vrot.slane %v5449, 1
      %v5451 = vadd.f32 %v5449, %v5450
      %v5454 = vsel %vm723, %v5451, %v5444
      %5455 = vrot.lane.b32.xlu0 %v5454, 16
      %v5456 = vpop.permute.xlu0 %5455
      %5458 = vrot.lane.b32.xlu0 %v4955, 16
      %v5459 = vpop.permute.xlu0 %5458
      %5462 = vrot.lane.b32.xlu0 %v4798, 32
      %v5463 = vpop.permute.xlu0 %5462
      %v5465 = vsel %vm730, %v4800, %v5456
      %v5466 = vsel %vm731, %v5465, %v5459
      %v5467 = vsel %vm733, %v5466, %v5463
      %v5469 = vsel %vm738, %v5467, 0
      %5471 = vmatpush.msra.mxu0 0.0
      %5472 = vmatpush.msra.mxu0 0.0
      %5473 = vmatpush.msra.mxu0 0.0
      %5474 = vmatpush.msra.mxu0 0.0
      %5475 = vmatpush.msra.mxu0 0.0
      %5476 = vmatpush.msra.mxu0 0.0
      %5477 = vmatpush.msra.mxu0 0.0
      %5478 = vmatpush.msra.mxu0 0.0
      %5479 = vmatpush.msra.mxu0 %v684
      %5480 = vmatpush.msra.mxu0 %v683
      %5481 = vmatpush.msra.mxu0 %v682
      %5482 = vmatpush.msra.mxu0 %v681
      %5483 = vmatpush.msra.mxu0 %v680
      %5484 = vmatpush.msra.mxu0 %v679
      %5485 = vmatpush.msra.mxu0 %v678
      %5486 = vmatpush.msra.mxu0 %v677
      %5487 = vmatmul.f32.gmra.mxu0 %v5469
      %v5488 = vpop.f32.mrf.mxu0
      %v5489 = vadd.f32 %v1130, %v5488
      %5490 = vdwg.mxu0
      %v5491 = vxor.u32 %v5489, 2147483648
      %v5492 = vmul.f32 %v5491, 1.442695
      %v5493 = vpow.pop %v5492
      %v5494 = vadd.f32 %v5493, 1.0
      %v5495 = vrcp.pop %v5494
      %v5496 = vmul.f32 %v5494, %v5495
      %v5497 = vsub.f32 1.0, %v5496
      %v5498 = vmul.f32 %v5495, %v5497
      %v5499 = vadd.f32 %v5495, %v5498
      %vm5500 = vweird.f32 %v5494
      %vm5501 = vweird.f32 %v5495
      %vm5502 = vmor %vm5500, %vm5501
      %v5503 = vsel %vm5502, %v5495, %v5499
      %v5504 = vand.u32 2147483647, %v5494
      %vm5505 = vcmp.eq.f32.partialorder %v5504, 8.507059e+37
      %v5506 = vand.u32 %v5494, 2147483648
      %v5507 = vor.u32 1.1754944e-38, %v5506
      %v5508 = vsel %vm5505, %v5507, %v5503
      %v5509 = vmul.f32 1.0, %v5508
      %5511 = vrot.lane.b32.xlu0 %v5489, 80
      %v5512 = vpop.permute.xlu0 %5511
      %v5514 = vmul.f32 %v5509, %v5512
      %5516 = vrot.lane.b32.xlu0 %v5514, 32
      %v5517 = vpop.permute.xlu0 %5516
      %v5519 = vadd.f32 %v5489, %v5517
      %v5520 = vtanh.pop %v5519
      %v5521 = vsub.f32 1.0, %v5509
      %5523 = vrot.lane.b32.xlu0 %v5520, 112
      %v5524 = vpop.permute.xlu0 %5523
      %v5526 = vmul.f32 %v5521, %v5524
      %v5527 = vmul.f32 %v5509, %v4798
      %v5528 = vadd.f32 %v5526, %v5527
      %s5529 = scalar_lea.vmem %s587, 14
      %v5530 = vld [vmem:[%s5529] sm:$0x3]
      %s5531 = scalar_lea.vmem %s592, 14
      %v5532 = vld [vmem:[%s5531] sm:$0x3]
      %s5533 = scalar_lea.vmem %s597, 14
      %v5534 = vld [vmem:[%s5533] sm:$0x3]
      %v5535 = vperm.slane %v5534, 0
      %v5536 = vlaneseq
      %v5537 = vshrl.u32 %v5536, 7
      %5539 = vset.pattern.permute.xlu0 %v5537
      %5540 = vperm.xlu0 %5539, %v5535
      %v5541 = vpop.permute.xlu0 %5540
      %v5542 = vperm.slane %v5534, 1
      %v5543 = vlaneseq
      %v5544 = vshrl.u32 %v5543, 7
      %5546 = vset.pattern.permute.xlu0 %v5544
      %5547 = vperm.xlu0 %5546, %v5542
      %v5548 = vpop.permute.xlu0 %5547
      %5549 = vst [vmem:[#allocation1] ss:$4 sm:$0xff] %v5415
      %v5550 = vld.sshfl [vmem:[#allocation1] sm:$0xff pattern:$0x73625140]
      %s5551 = scalar_lea.vmem [#allocation1], 32
      %5552 = vst [vmem:[%s5551] ss:$4 sm:$0xff] %v5416
      %v5553 = vld.sshfl [vmem:[#allocation1 + $0x20] sm:$0xff pattern:$0x73625140]
      %5554 = vrot.lane.b32.xlu0 %v5550, 48
      %v5555 = vpop.permute.xlu0 %5554
      %5556 = vrot.lane.b32.xlu0 %v5553, 48
      %v5557 = vpop.permute.xlu0 %5556
      %v5560 = vmul.f32 %v5541, %v5555
      %v5561 = vmul.f32 %v5548, %v5557
      %v5562 = vsel %vm916, %v5560, 0.0
      %v5563 = vrot.slane %v5562, 4
      %v5564 = vadd.f32 %v5562, %v5563
      %v5565 = vrot.slane %v5564, 2
      %v5566 = vadd.f32 %v5564, %v5565
      %v5567 = vrot.slane %v5566, 1
      %v5568 = vadd.f32 %v5566, %v5567
      %v5569 = vsel %vm916, %v5561, 0.0
      %v5570 = vrot.slane %v5569, 4
      %v5571 = vadd.f32 %v5569, %v5570
      %v5572 = vrot.slane %v5571, 2
      %v5573 = vadd.f32 %v5571, %v5572
      %v5574 = vrot.slane %v5573, 1
      %v5575 = vadd.f32 %v5573, %v5574
      %5578 = vst [vmem:[#allocation1] ss:$4 sm:$0xff] %v5421
      %v5579 = vld.sshfl [vmem:[#allocation1] sm:$0xff pattern:$0x73625140]
      %s5580 = scalar_lea.vmem [#allocation1], 32
      %5581 = vst [vmem:[%s5580] ss:$4 sm:$0xff] %v5422
      %v5582 = vld.sshfl [vmem:[#allocation1 + $0x20] sm:$0xff pattern:$0x73625140]
      %5583 = vrot.lane.b32.xlu0 %v5579, 112
      %v5584 = vpop.permute.xlu0 %5583
      %5585 = vrot.lane.b32.xlu0 %v5582, 112
      %v5586 = vpop.permute.xlu0 %5585
      %v5589 = vmul.f32 %v5541, %v5584
      %v5590 = vmul.f32 %v5548, %v5586
      %v5591 = vsel %vm916, %v5589, 0.0
      %v5592 = vrot.slane %v5591, 4
      %v5593 = vadd.f32 %v5591, %v5592
      %v5594 = vrot.slane %v5593, 2
      %v5595 = vadd.f32 %v5593, %v5594
      %v5596 = vrot.slane %v5595, 1
      %v5597 = vadd.f32 %v5595, %v5596
      %v5598 = vsel %vm916, %v5590, 0.0
      %v5599 = vrot.slane %v5598, 4
      %v5600 = vadd.f32 %v5598, %v5599
      %v5601 = vrot.slane %v5600, 2
      %v5602 = vadd.f32 %v5600, %v5601
      %v5603 = vrot.slane %v5602, 1
      %v5604 = vadd.f32 %v5602, %v5603
      %v5607 = vsel %vm723, %v5575, %v5568
      %v5611 = vsel %vm723, %v5604, %v5597
      %5612 = vrot.lane.b32.xlu0 %v5611, 16
      %v5613 = vpop.permute.xlu0 %5612
      %5616 = vrot.lane.b32.xlu0 %v5530, 32
      %v5617 = vpop.permute.xlu0 %5616
      %5619 = vrot.lane.b32.xlu0 %v4955, 32
      %v5620 = vpop.permute.xlu0 %5619
      %v5622 = vsel %vm730, %v5607, %v5613
      %v5623 = vsel %vm731, %v5622, %v5617
      %v5624 = vsel %vm733, %v5623, %v5620
      %v5626 = vsel %vm738, %v5624, 0
      %5628 = vmatpush.msra.mxu0 0.0
      %5629 = vmatpush.msra.mxu0 0.0
      %5630 = vmatpush.msra.mxu0 0.0
      %5631 = vmatpush.msra.mxu0 0.0
      %5632 = vmatpush.msra.mxu0 0.0
      %5633 = vmatpush.msra.mxu0 0.0
      %5634 = vmatpush.msra.mxu0 0.0
      %5635 = vmatpush.msra.mxu0 0.0
      %5636 = vmatpush.msra.mxu0 %v649
      %5637 = vmatpush.msra.mxu0 %v648
      %5638 = vmatpush.msra.mxu0 %v647
      %5639 = vmatpush.msra.mxu0 %v646
      %5640 = vmatpush.msra.mxu0 %v645
      %5641 = vmatpush.msra.mxu0 %v644
      %5642 = vmatpush.msra.mxu0 %v643
      %5643 = vmatpush.msra.mxu0 %v642
      %5644 = vmatmul.f32.gmra.mxu0 %v5626
      %v5645 = vpop.f32.mrf.mxu0
      %v5646 = vadd.f32 %v736, %v5645
      %5647 = vdwg.mxu0
      %v5648 = vxor.u32 %v5646, 2147483648
      %v5649 = vmul.f32 %v5648, 1.442695
      %v5650 = vpow.pop %v5649
      %v5651 = vadd.f32 %v5650, 1.0
      %v5652 = vrcp.pop %v5651
      %v5653 = vmul.f32 %v5651, %v5652
      %v5654 = vsub.f32 1.0, %v5653
      %v5655 = vmul.f32 %v5652, %v5654
      %v5656 = vadd.f32 %v5652, %v5655
      %vm5657 = vweird.f32 %v5651
      %vm5658 = vweird.f32 %v5652
      %vm5659 = vmor %vm5657, %vm5658
      %v5660 = vsel %vm5659, %v5652, %v5656
      %v5661 = vand.u32 2147483647, %v5651
      %vm5662 = vcmp.eq.f32.partialorder %v5661, 8.507059e+37
      %v5663 = vand.u32 %v5651, 2147483648
      %v5664 = vor.u32 1.1754944e-38, %v5663
      %v5665 = vsel %vm5662, %v5664, %v5660
      %v5666 = vmul.f32 1.0, %v5665
      %5668 = vrot.lane.b32.xlu0 %v5646, 80
      %v5669 = vpop.permute.xlu0 %5668
      %v5671 = vmul.f32 %v5666, %v5669
      %5673 = vrot.lane.b32.xlu0 %v5671, 32
      %v5674 = vpop.permute.xlu0 %5673
      %v5676 = vadd.f32 %v5646, %v5674
      %v5677 = vtanh.pop %v5676
      %v5678 = vsub.f32 1.0, %v5666
      %5680 = vrot.lane.b32.xlu0 %v5677, 112
      %v5681 = vpop.permute.xlu0 %5680
      %v5683 = vmul.f32 %v5678, %v5681
      %v5684 = vmul.f32 %v5666, %v4955
      %v5685 = vadd.f32 %v5683, %v5684
      %vm5688 = vcmask 1045504
      %v5689 = vsel %vm5688, %v4959, %v5087
      %v5690 = vsel %vm5688, %v4960, %v5088
      %v5691 = vmul.f32 %v5689, %v2039
      %v5692 = vmul.f32 %v5690, %v2039
      %5695 = vrot.lane.b32.xlu0 %v5691, 112
      %v5696 = vpop.permute.xlu0 %5695
      %5697 = vrot.lane.b32.xlu0 %v5692, 112
      %v5698 = vpop.permute.xlu0 %5697
      %vm5701 = vcmask 129024
      %v5702 = vsel %vm5701, %v5696, 0.0
      %5703 = vadd.xlane.f32.xlu0 %v5702
      %v5704 = vpop.xlane.xlu0 %5703
      %v5705 = vsel %vm5701, %v5698, 0.0
      %5706 = vadd.xlane.f32.xlu0 %v5705
      %v5707 = vpop.xlane.xlu0 %5706
      %v5710 = vperm.slane %v5704, %v2060
      %v5711 = vperm.slane %v5707, %v2060
      %v5712 = vsel %vm723, %v5711, %v5710
      %vm5714 = vcmask 50176
      %v5715 = vsel %vm5714, %v5712, -inf
      %5716 = vmax.xlane.f32.xlu0 %v5715
      %v5717 = vpop.xlane.xlu0 %5716
      %v5719 = vperm.slane %v5717, 0
      %v5720 = vperm.slane %v5717, 1
      %v5723 = vsub.f32 %v5704, %v5719
      %v5724 = vsub.f32 %v5707, %v5720
      %v5725 = vmul.f32 %v5723, 1.442695
      %v5726 = vpow.pop %v5725
      %v5727 = vmul.f32 %v5724, 1.442695
      %v5728 = vpow.pop %v5727
      %5731 = vset.pattern.permute.xlu0 0
      %5732 = vperm.xlu0 %5731, %v5726
      %v5733 = vpop.permute.xlu0 %5732
      %5734 = vset.pattern.permute.xlu0 0
      %5735 = vperm.xlu0 %5734, %v5728
      %v5736 = vpop.permute.xlu0 %5735
      %v5737 = vperm.slane %v5733, %v2060
      %v5738 = vperm.slane %v5736, %v2060
      %v5739 = vsel %vm723, %v5738, %v5737
      %v5741 = vsel %vm5714, %v5739, 0.0
      %5742 = vadd.xlane.f32.xlu0 %v5741
      %v5743 = vpop.xlane.xlu0 %5742
      %v5745 = vperm.slane %v5743, 0
      %v5746 = vperm.slane %v5743, 1
      %v5749 = vrcp.pop %v5745
      %v5750 = vmul.f32 %v5745, %v5749
      %v5751 = vsub.f32 1.0, %v5750
      %v5752 = vmul.f32 %v5749, %v5751
      %v5753 = vadd.f32 %v5749, %v5752
      %vm5754 = vweird.f32 %v5745
      %vm5755 = vweird.f32 %v5749
      %vm5756 = vmor %vm5754, %vm5755
      %v5757 = vsel %vm5756, %v5749, %v5753
      %v5758 = vand.u32 2147483647, %v5745
      %vm5759 = vcmp.eq.f32.partialorder %v5758, 8.507059e+37
      %v5760 = vand.u32 %v5745, 2147483648
      %v5761 = vor.u32 1.1754944e-38, %v5760
      %v5762 = vsel %vm5759, %v5761, %v5757
      %v5763 = vmul.f32 %v5726, %v5762
      %v5764 = vrcp.pop %v5746
      %v5765 = vmul.f32 %v5746, %v5764
      %v5766 = vsub.f32 1.0, %v5765
      %v5767 = vmul.f32 %v5764, %v5766
      %v5768 = vadd.f32 %v5764, %v5767
      %vm5769 = vweird.f32 %v5746
      %vm5770 = vweird.f32 %v5764
      %vm5771 = vmor %vm5769, %vm5770
      %v5772 = vsel %vm5771, %v5764, %v5768
      %v5773 = vand.u32 2147483647, %v5746
      %vm5774 = vcmp.eq.f32.partialorder %v5773, 8.507059e+37
      %v5775 = vand.u32 %v5746, 2147483648
      %v5776 = vor.u32 1.1754944e-38, %v5775
      %v5777 = vsel %vm5774, %v5776, %v5772
      %v5778 = vmul.f32 %v5728, %v5777
      %5780 = vset.pattern.permute.xlu0 0
      %5781 = vperm.xlu0 %5780, %v5763
      %v5782 = vpop.permute.xlu0 %5781
      %5785 = vset.pattern.permute.xlu0 0
      %5786 = vperm.xlu0 %5785, %v5778
      %v5787 = vpop.permute.xlu0 %5786
      %v5789 = vmul.f32 %v5782, %v5689
      %v5790 = vmul.f32 %v5787, %v5690
      %vm5791 = vcmask 260224
      %v5792 = vsel %vm5791, %v5789, 0.0
      %v5793 = vrot.slane %v5792, 4
      %v5794 = vadd.f32 %v5792, %v5793
      %v5795 = vrot.slane %v5794, 2
      %v5796 = vadd.f32 %v5794, %v5795
      %v5797 = vrot.slane %v5796, 1
      %v5798 = vadd.f32 %v5796, %v5797
      %v5799 = vsel %vm5791, %v5790, 0.0
      %v5800 = vrot.slane %v5799, 4
      %v5801 = vadd.f32 %v5799, %v5800
      %v5802 = vrot.slane %v5801, 2
      %v5803 = vadd.f32 %v5801, %v5802
      %v5804 = vrot.slane %v5803, 1
      %v5805 = vadd.f32 %v5803, %v5804
      %v5806 = vperm.slane %v5782, %v2060
      %v5807 = vperm.slane %v5787, %v2060
      %v5808 = vsel %vm723, %v5807, %v5806
      %vm5810 = vcmask 56320
      %v5811 = vsel %vm5810, %v5808, 0.0
      %v5812 = vrot.slane %v5530, 1
      %v5813 = vperm.slane %v5530, 0
      %v5814 = vperm.slane %v5812, 0
      %v5816 = vrot.slane %v5685, 1
      %v5817 = vperm.slane %v5685, 0
      %v5818 = vperm.slane %v5816, 0
      %5821 = vst [vmem:[#allocation1] ss:$4 sm:$0xff] %v5798
      %s5822 = scalar_lea.vmem [#allocation1], 1
      %5823 = vst [vmem:[%s5822] ss:$4 sm:$0xff] %v5805
      %v5824 = vld.sshfl [vmem:[#allocation1] sm:$0xff pattern:$0x73625140]
      %5825 = vrot.lane.b32.xlu0 %v5824, 112
      %v5826 = vpop.permute.xlu0 %5825
      %5828 = vst [vmem:[#allocation1] ss:$4 sm:$0xff] %v5813
      %s5829 = scalar_lea.vmem [#allocation1], 1
      %5830 = vst [vmem:[%s5829] ss:$4 sm:$0xff] %v5814
      %v5831 = vld.sshfl [vmem:[#allocation1] sm:$0xff pattern:$0x73625140]
      %5832 = vrot.lane.b32.xlu0 %v5831, 16
      %v5833 = vpop.permute.xlu0 %5832
      %5835 = vst [vmem:[#allocation1] ss:$4 sm:$0xff] %v5421
      %s5836 = scalar_lea.vmem [#allocation1], 1
      %5837 = vst [vmem:[%s5836] ss:$4 sm:$0xff] %v5422
      %v5838 = vld.sshfl [vmem:[#allocation1] sm:$0xff pattern:$0x73625140]
      %5839 = vrot.lane.b32.xlu0 %v5838, 16
      %v5840 = vpop.permute.xlu0 %5839
      %5842 = vst [vmem:[#allocation1] ss:$4 sm:$0xff] %v5813
      %s5843 = scalar_lea.vmem [#allocation1], 1
      %5844 = vst [vmem:[%s5843] ss:$4 sm:$0xff] %v5814
      %v5845 = vld.sshfl [vmem:[#allocation1] sm:$0xff pattern:$0x73625140]
      %5846 = vrot.lane.b32.xlu0 %v5845, 48
      %v5847 = vpop.permute.xlu0 %5846
      %5849 = vst [vmem:[#allocation1] ss:$4 sm:$0xff] %v5817
      %s5850 = scalar_lea.vmem [#allocation1], 1
      %5851 = vst [vmem:[%s5850] ss:$4 sm:$0xff] %v5818
      %v5852 = vld.sshfl [vmem:[#allocation1] sm:$0xff pattern:$0x73625140]
      %5853 = vrot.lane.b32.xlu0 %v5852, 48
      %v5854 = vpop.permute.xlu0 %5853
      %5856 = vst [vmem:[#allocation1] ss:$4 sm:$0xff] %v5415
      %s5857 = scalar_lea.vmem [#allocation1], 1
      %5858 = vst [vmem:[%s5857] ss:$4 sm:$0xff] %v5416
      %v5859 = vld.sshfl [vmem:[#allocation1] sm:$0xff pattern:$0x73625140]
      %v5861 = vsel %vm730, %v5826, %v5833
      %v5862 = vsel %vm731, %v5861, %v5840
      %v5863 = vsel %vm733, %v5862, %v5847
      %v5864 = vsel %vm738, %v5863, %v5854
      %v5865 = vsel %vm833, %v5864, %v5859
      %v5867 = vsel %vm838, %v5865, 0
      %5869 = vmatpush.msra.mxu0 0.0
      %5870 = vmatpush.msra.mxu0 0.0
      %5871 = vmatpush.msra.mxu0 0.0
      %5872 = vmatpush.msra.mxu0 0.0
      %5873 = vmatpush.msra.mxu0 %v662
      %5874 = vmatpush.msra.mxu0 %v661
      %5875 = vmatpush.msra.mxu0 %v660
      %5876 = vmatpush.msra.mxu0 %v659
      %5877 = vmatpush.msra.mxu0 %v658
      %5878 = vmatpush.msra.mxu0 %v657
      %5879 = vmatpush.msra.mxu0 %v656
      %5880 = vmatpush.msra.mxu0 %v655
      %5881 = vmatpush.msra.mxu0 %v654
      %5882 = vmatpush.msra.mxu0 %v653
      %5883 = vmatpush.msra.mxu0 %v652
      %5884 = vmatpush.msra.mxu0 %v651
      %5885 = vmatmul.f32.gmra.mxu0 %v5867
      %v5886 = vpop.f32.mrf.mxu0
      %v5887 = vadd.f32 %v836, %v5886
      %5888 = vdwg.mxu0
      %v5889 = vxor.u32 %v5887, 2147483648
      %v5890 = vmul.f32 %v5889, 1.442695
      %v5891 = vpow.pop %v5890
      %v5892 = vadd.f32 %v5891, 1.0
      %v5893 = vrcp.pop %v5892
      %v5894 = vmul.f32 %v5892, %v5893
      %v5895 = vsub.f32 1.0, %v5894
      %v5896 = vmul.f32 %v5893, %v5895
      %v5897 = vadd.f32 %v5893, %v5896
      %vm5898 = vweird.f32 %v5892
      %vm5899 = vweird.f32 %v5893
      %vm5900 = vmor %vm5898, %vm5899
      %v5901 = vsel %vm5900, %v5893, %v5897
      %v5902 = vand.u32 2147483647, %v5892
      %vm5903 = vcmp.eq.f32.partialorder %v5902, 8.507059e+37
      %v5904 = vand.u32 %v5892, 2147483648
      %v5905 = vor.u32 1.1754944e-38, %v5904
      %v5906 = vsel %vm5903, %v5905, %v5901
      %v5907 = vmul.f32 1.0, %v5906
      %5909 = vrot.lane.b32.xlu0 %v5887, 80
      %v5910 = vpop.permute.xlu0 %5909
      %v5912 = vmul.f32 %v5907, %v5910
      %5914 = vrot.lane.b32.xlu0 %v5912, 32
      %v5915 = vpop.permute.xlu0 %5914
      %v5917 = vadd.f32 %v5887, %v5915
      %v5918 = vtanh.pop %v5917
      %v5919 = vsub.f32 1.0, %v5907
      %5921 = vrot.lane.b32.xlu0 %v5918, 112
      %v5922 = vpop.permute.xlu0 %5921
      %v5924 = vmul.f32 %v5919, %v5922
      %5925 = vst [vmem:[#allocation1] ss:$4 sm:$0xff] %v5421
      %s5926 = scalar_lea.vmem [#allocation1], 1
      %5927 = vst [vmem:[%s5926] ss:$4 sm:$0xff] %v5422
      %v5928 = vld.sshfl [vmem:[#allocation1] sm:$0xff pattern:$0x73625140]
      %v5930 = vmul.f32 %v5907, %v5928
      %v5931 = vadd.f32 %v5924, %v5930
      %v5933 = vrot.slane %v5931, 2
      %5934 = vst [vmem:[#allocation1] ss:$4 sm:$0xff] %v5415
      %s5935 = scalar_lea.vmem [#allocation1], 1
      %5936 = vst [vmem:[%s5935] ss:$4 sm:$0xff] %v5416
      %v5937 = vld.sshfl [vmem:[#allocation1] sm:$0xff pattern:$0x73625140]
      %v5939 = vmul.f32 %v5907, %v5937
      %v5940 = vadd.f32 %v5924, %v5939
      %v5942 = vrot.slane %v5940, 2
      %5944 = vst [vmem:[#allocation1] ss:$4 sm:$0xff] %v5931
      %v5945 = vld.sshfl [vmem:[#allocation1] sm:$0xff pattern:$0x73625140]
      %s5946 = scalar_lea.vmem [#allocation1], 32
      %5947 = vst [vmem:[%s5946] ss:$4 sm:$0xff] %v5933
      %v5948 = vld.sshfl [vmem:[#allocation1 + $0x20] sm:$0xff pattern:$0x73625140]
      %5949 = vrot.lane.b32.xlu0 %v5945, 112
      %v5950 = vpop.permute.xlu0 %5949
      %5951 = vrot.lane.b32.xlu0 %v5948, 112
      %v5952 = vpop.permute.xlu0 %5951
      %v5955 = vmul.f32 %v5541, %v5950
      %v5956 = vmul.f32 %v5548, %v5952
      %v5957 = vsel %vm916, %v5955, 0.0
      %v5958 = vrot.slane %v5957, 4
      %v5959 = vadd.f32 %v5957, %v5958
      %v5960 = vrot.slane %v5959, 2
      %v5961 = vadd.f32 %v5959, %v5960
      %v5962 = vrot.slane %v5961, 1
      %v5963 = vadd.f32 %v5961, %v5962
      %v5964 = vsel %vm916, %v5956, 0.0
      %v5965 = vrot.slane %v5964, 4
      %v5966 = vadd.f32 %v5964, %v5965
      %v5967 = vrot.slane %v5966, 2
      %v5968 = vadd.f32 %v5966, %v5967
      %v5969 = vrot.slane %v5968, 1
      %v5970 = vadd.f32 %v5968, %v5969
      %5971 = vst [vmem:[#allocation1] ss:$4 sm:$0xff] %v5940
      %v5972 = vld.sshfl [vmem:[#allocation1] sm:$0xff pattern:$0x73625140]
      %s5973 = scalar_lea.vmem [#allocation1], 32
      %5974 = vst [vmem:[%s5973] ss:$4 sm:$0xff] %v5942
      %v5975 = vld.sshfl [vmem:[#allocation1 + $0x20] sm:$0xff pattern:$0x73625140]
      %5976 = vrot.lane.b32.xlu0 %v5972, 48
      %v5977 = vpop.permute.xlu0 %5976
      %5978 = vrot.lane.b32.xlu0 %v5975, 48
      %v5979 = vpop.permute.xlu0 %5978
      %v5982 = vmul.f32 %v5541, %v5977
      %v5983 = vmul.f32 %v5548, %v5979
      %v5984 = vsel %vm916, %v5982, 0.0
      %v5985 = vrot.slane %v5984, 4
      %v5986 = vadd.f32 %v5984, %v5985
      %v5987 = vrot.slane %v5986, 2
      %v5988 = vadd.f32 %v5986, %v5987
      %v5989 = vrot.slane %v5988, 1
      %v5990 = vadd.f32 %v5988, %v5989
      %v5991 = vsel %vm916, %v5983, 0.0
      %v5992 = vrot.slane %v5991, 4
      %v5993 = vadd.f32 %v5991, %v5992
      %v5994 = vrot.slane %v5993, 2
      %v5995 = vadd.f32 %v5993, %v5994
      %v5996 = vrot.slane %v5995, 1
      %v5997 = vadd.f32 %v5995, %v5996
      %6000 = vst [vmem:[#allocation1] ss:$4 sm:$0xff] %v5963
      %s6001 = scalar_lea.vmem [#allocation1], 1
      %6002 = vst [vmem:[%s6001] ss:$4 sm:$0xff] %v5970
      %v6003 = vld.sshfl [vmem:[#allocation1] sm:$0xff pattern:$0x73625140]
      %6005 = vst [vmem:[#allocation1] ss:$4 sm:$0xff] %v5813
      %s6006 = scalar_lea.vmem [#allocation1], 1
      %6007 = vst [vmem:[%s6006] ss:$4 sm:$0xff] %v5814
      %v6008 = vld.sshfl [vmem:[#allocation1] sm:$0xff pattern:$0x73625140]
      %6009 = vrot.lane.b32.xlu0 %v6008, 16
      %v6010 = vpop.permute.xlu0 %6009
      %6012 = vst [vmem:[#allocation1] ss:$4 sm:$0xff] %v5421
      %s6013 = scalar_lea.vmem [#allocation1], 1
      %6014 = vst [vmem:[%s6013] ss:$4 sm:$0xff] %v5422
      %v6015 = vld.sshfl [vmem:[#allocation1] sm:$0xff pattern:$0x73625140]
      %6016 = vrot.lane.b32.xlu0 %v6015, 16
      %v6017 = vpop.permute.xlu0 %6016
      %6019 = vst [vmem:[#allocation1] ss:$4 sm:$0xff] %v5813
      %s6020 = scalar_lea.vmem [#allocation1], 1
      %6021 = vst [vmem:[%s6020] ss:$4 sm:$0xff] %v5814
      %v6022 = vld.sshfl [vmem:[#allocation1] sm:$0xff pattern:$0x73625140]
      %6023 = vrot.lane.b32.xlu0 %v6022, 48
      %v6024 = vpop.permute.xlu0 %6023
      %6028 = vst [vmem:[#allocation1] ss:$4 sm:$0xff] %v5990
      %s6029 = scalar_lea.vmem [#allocation1], 1
      %6030 = vst [vmem:[%s6029] ss:$4 sm:$0xff] %v5997
      %v6031 = vld.sshfl [vmem:[#allocation1] sm:$0xff pattern:$0x73625140]
      %6032 = vrot.lane.b32.xlu0 %v6031, 64
      %v6033 = vpop.permute.xlu0 %6032
      %6035 = vst [vmem:[#allocation1] ss:$4 sm:$0xff] %v5415
      %s6036 = scalar_lea.vmem [#allocation1], 1
      %6037 = vst [vmem:[%s6036] ss:$4 sm:$0xff] %v5416
      %v6038 = vld.sshfl [vmem:[#allocation1] sm:$0xff pattern:$0x73625140]
      %v6040 = vsel %vm730, %v6003, %v6010
      %v6041 = vsel %vm731, %v6040, %v6017
      %v6042 = vsel %vm733, %v6041, %v6024
      %v6043 = vsel %vm738, %v6042, %v6033
      %v6044 = vsel %vm833, %v6043, %v6038
      %v6046 = vsel %vm838, %v6044, 0
      %6048 = vmatpush.msra.mxu0 0.0
      %6049 = vmatpush.msra.mxu0 0.0
      %6050 = vmatpush.msra.mxu0 0.0
      %6051 = vmatpush.msra.mxu0 0.0
      %6052 = vmatpush.msra.mxu0 %v675
      %6053 = vmatpush.msra.mxu0 %v674
      %6054 = vmatpush.msra.mxu0 %v673
      %6055 = vmatpush.msra.mxu0 %v672
      %6056 = vmatpush.msra.mxu0 %v671
      %6057 = vmatpush.msra.mxu0 %v670
      %6058 = vmatpush.msra.mxu0 %v669
      %6059 = vmatpush.msra.mxu0 %v668
      %6060 = vmatpush.msra.mxu0 %v667
      %6061 = vmatpush.msra.mxu0 %v666
      %6062 = vmatpush.msra.mxu0 %v665
      %6063 = vmatpush.msra.mxu0 %v664
      %6064 = vmatmul.f32.gmra.mxu0 %v6046
      %v6065 = vpop.f32.mrf.mxu0
      %v6066 = vadd.f32 %v994, %v6065
      %6067 = vdwg.mxu0
      %v6068 = vxor.u32 %v6066, 2147483648
      %v6069 = vmul.f32 %v6068, 1.442695
      %v6070 = vpow.pop %v6069
      %v6071 = vadd.f32 %v6070, 1.0
      %v6072 = vrcp.pop %v6071
      %v6073 = vmul.f32 %v6071, %v6072
      %v6074 = vsub.f32 1.0, %v6073
      %v6075 = vmul.f32 %v6072, %v6074
      %v6076 = vadd.f32 %v6072, %v6075
      %vm6077 = vweird.f32 %v6071
      %vm6078 = vweird.f32 %v6072
      %vm6079 = vmor %vm6077, %vm6078
      %v6080 = vsel %vm6079, %v6072, %v6076
      %v6081 = vand.u32 2147483647, %v6071
      %vm6082 = vcmp.eq.f32.partialorder %v6081, 8.507059e+37
      %v6083 = vand.u32 %v6071, 2147483648
      %v6084 = vor.u32 1.1754944e-38, %v6083
      %v6085 = vsel %vm6082, %v6084, %v6080
      %v6086 = vmul.f32 1.0, %v6085
      %6088 = vrot.lane.b32.xlu0 %v6066, 80
      %v6089 = vpop.permute.xlu0 %6088
      %v6091 = vmul.f32 %v6086, %v6089
      %6093 = vrot.lane.b32.xlu0 %v6091, 32
      %v6094 = vpop.permute.xlu0 %6093
      %v6096 = vadd.f32 %v6066, %v6094
      %v6097 = vtanh.pop %v6096
      %v6098 = vsub.f32 1.0, %v6086
      %6100 = vrot.lane.b32.xlu0 %v6097, 112
      %v6101 = vpop.permute.xlu0 %6100
      %v6103 = vmul.f32 %v6098, %v6101
      %6104 = vst [vmem:[#allocation1] ss:$4 sm:$0xff] %v5415
      %s6105 = scalar_lea.vmem [#allocation1], 1
      %6106 = vst [vmem:[%s6105] ss:$4 sm:$0xff] %v5416
      %v6107 = vld.sshfl [vmem:[#allocation1] sm:$0xff pattern:$0x73625140]
      %v6109 = vmul.f32 %v6086, %v6107
      %v6110 = vadd.f32 %v6103, %v6109
      %v6112 = vrot.slane %v6110, 2
      %v6114 = vperm.slane %v5532, 0
      %v6115 = vlaneseq
      %v6116 = vshrl.u32 %v6115, 7
      %6118 = vset.pattern.permute.xlu0 %v6116
      %6119 = vperm.xlu0 %6118, %v6114
      %v6120 = vpop.permute.xlu0 %6119
      %v6121 = vperm.slane %v5532, 1
      %v6122 = vlaneseq
      %v6123 = vshrl.u32 %v6122, 7
      %6125 = vset.pattern.permute.xlu0 %v6123
      %6126 = vperm.xlu0 %6125, %v6121
      %v6127 = vpop.permute.xlu0 %6126
      %v6128 = vmul.f32 %v6110, %v6120
      %v6129 = vmul.f32 %v6112, %v6127
      %v6130 = vsub.f32 1.0, %v6120
      %v6131 = vsub.f32 1.0, %v6127
      %v6132 = vmul.f32 %v5940, %v6130
      %v6133 = vmul.f32 %v5942, %v6131
      %v6134 = vadd.f32 %v6128, %v6132
      %v6135 = vadd.f32 %v6129, %v6133
      %6138 = vst [vmem:[#allocation1] ss:$4 sm:$0xff] %v6134
      %v6139 = vld.sshfl [vmem:[#allocation1] sm:$0xff pattern:$0x73625140]
      %s6140 = scalar_lea.vmem [#allocation1], 32
      %6141 = vst [vmem:[%s6140] ss:$4 sm:$0xff] %v6135
      %v6142 = vld.sshfl [vmem:[#allocation1 + $0x20] sm:$0xff pattern:$0x73625140]
      %6143 = vrot.lane.b32.xlu0 %v6139, 48
      %v6144 = vpop.permute.xlu0 %6143
      %6145 = vrot.lane.b32.xlu0 %v6142, 48
      %v6146 = vpop.permute.xlu0 %6145
      %v6149 = vmul.f32 %v5541, %v6144
      %v6150 = vmul.f32 %v5548, %v6146
      %v6151 = vsel %vm916, %v6149, 0.0
      %v6152 = vrot.slane %v6151, 4
      %v6153 = vadd.f32 %v6151, %v6152
      %v6154 = vrot.slane %v6153, 2
      %v6155 = vadd.f32 %v6153, %v6154
      %v6156 = vrot.slane %v6155, 1
      %v6157 = vadd.f32 %v6155, %v6156
      %v6158 = vsel %vm916, %v6150, 0.0
      %v6159 = vrot.slane %v6158, 4
      %v6160 = vadd.f32 %v6158, %v6159
      %v6161 = vrot.slane %v6160, 2
      %v6162 = vadd.f32 %v6160, %v6161
      %v6163 = vrot.slane %v6162, 1
      %v6164 = vadd.f32 %v6162, %v6163
      %v6167 = vsel %vm723, %v6164, %v6157
      %6168 = vrot.lane.b32.xlu0 %v6167, 16
      %v6169 = vpop.permute.xlu0 %6168
      %6171 = vrot.lane.b32.xlu0 %v5685, 16
      %v6172 = vpop.permute.xlu0 %6171
      %6175 = vrot.lane.b32.xlu0 %v5528, 32
      %v6176 = vpop.permute.xlu0 %6175
      %v6178 = vsel %vm730, %v5530, %v6169
      %v6179 = vsel %vm731, %v6178, %v6172
      %v6180 = vsel %vm733, %v6179, %v6176
      %v6182 = vsel %vm738, %v6180, 0
      %6184 = vmatpush.msra.mxu0 0.0
      %6185 = vmatpush.msra.mxu0 0.0
      %6186 = vmatpush.msra.mxu0 0.0
      %6187 = vmatpush.msra.mxu0 0.0
      %6188 = vmatpush.msra.mxu0 0.0
      %6189 = vmatpush.msra.mxu0 0.0
      %6190 = vmatpush.msra.mxu0 0.0
      %6191 = vmatpush.msra.mxu0 0.0
      %6192 = vmatpush.msra.mxu0 %v684
      %6193 = vmatpush.msra.mxu0 %v683
      %6194 = vmatpush.msra.mxu0 %v682
      %6195 = vmatpush.msra.mxu0 %v681
      %6196 = vmatpush.msra.mxu0 %v680
      %6197 = vmatpush.msra.mxu0 %v679
      %6198 = vmatpush.msra.mxu0 %v678
      %6199 = vmatpush.msra.mxu0 %v677
      %6200 = vmatmul.f32.gmra.mxu0 %v6182
      %v6201 = vpop.f32.mrf.mxu0
      %v6202 = vadd.f32 %v1130, %v6201
      %6203 = vdwg.mxu0
      %v6204 = vxor.u32 %v6202, 2147483648
      %v6205 = vmul.f32 %v6204, 1.442695
      %v6206 = vpow.pop %v6205
      %v6207 = vadd.f32 %v6206, 1.0
      %v6208 = vrcp.pop %v6207
      %v6209 = vmul.f32 %v6207, %v6208
      %v6210 = vsub.f32 1.0, %v6209
      %v6211 = vmul.f32 %v6208, %v6210
      %v6212 = vadd.f32 %v6208, %v6211
      %vm6213 = vweird.f32 %v6207
      %vm6214 = vweird.f32 %v6208
      %vm6215 = vmor %vm6213, %vm6214
      %v6216 = vsel %vm6215, %v6208, %v6212
      %v6217 = vand.u32 2147483647, %v6207
      %vm6218 = vcmp.eq.f32.partialorder %v6217, 8.507059e+37
      %v6219 = vand.u32 %v6207, 2147483648
      %v6220 = vor.u32 1.1754944e-38, %v6219
      %v6221 = vsel %vm6218, %v6220, %v6216
      %v6222 = vmul.f32 1.0, %v6221
      %6224 = vrot.lane.b32.xlu0 %v6202, 80
      %v6225 = vpop.permute.xlu0 %6224
      %v6227 = vmul.f32 %v6222, %v6225
      %6229 = vrot.lane.b32.xlu0 %v6227, 32
      %v6230 = vpop.permute.xlu0 %6229
      %v6232 = vadd.f32 %v6202, %v6230
      %v6233 = vtanh.pop %v6232
      %v6234 = vsub.f32 1.0, %v6222
      %6236 = vrot.lane.b32.xlu0 %v6233, 112
      %v6237 = vpop.permute.xlu0 %6236
      %v6239 = vmul.f32 %v6234, %v6237
      %v6240 = vmul.f32 %v6222, %v5528
      %v6241 = vadd.f32 %v6239, %v6240
      %6242 = vrot.lane.b32.xlu0 %v1192, 112
      %v6243 = vpop.permute.xlu0 %6242
      %6245 = vrot.lane.b32.xlu0 %v2609, 16
      %v6246 = vpop.permute.xlu0 %6245
      %6248 = vrot.lane.b32.xlu0 %v4068, 48
      %v6249 = vpop.permute.xlu0 %6248
      %6251 = vrot.lane.b32.xlu0 %v4798, 64
      %v6252 = vpop.permute.xlu0 %6251
      %6254 = vrot.lane.b32.xlu0 %v5528, 80
      %v6255 = vpop.permute.xlu0 %6254
      %6258 = vrot.lane.b32.xlu0 %v6241, 96
      %v6259 = vpop.permute.xlu0 %6258
      %v6261 = vsel %vm730, %v6243, %v1874
      %v6262 = vsel %vm731, %v6261, %v6246
      %v6263 = vsel %vm733, %v6262, %v4003
      %v6264 = vsel %vm738, %v6263, %v6249
      %v6265 = vsel %vm833, %v6264, %v6252
      %v6266 = vsel %vm838, %v6265, %v6255
      %vm6267 = vcmask 916480
      %v6268 = vsel %vm6267, %v6266, %v6259
      %6269 = vst [vmem:[%s636] sm:$0x3] %v6268
      %vm6270 = vcmask 58368
      %6271 = vst.msk [vmem:[%s641] sm:$0x3] %vm6270, 0.0
      %6272 = vst.msk [vmem:[%s641 + $0x2] sm:$0x3] %vm6270, %v1427
      %6273 = vst.msk [vmem:[%s641 + $0x4] sm:$0x3] %vm6270, %v2162
      %6274 = vst.msk [vmem:[%s641 + $0x6] sm:$0x3] %vm6270, %v2891
      %6275 = vst.msk [vmem:[%s641 + $0x8] sm:$0x3] %vm6270, %v3621
      %6276 = vst.msk [vmem:[%s641 + $0xa] sm:$0x3] %vm6270, %v4351
      %6277 = vst.msk [vmem:[%s641 + $0xc] sm:$0x3] %vm6270, %v5081
      %6278 = vst.msk [vmem:[%s641 + $0xe] sm:$0x3] %vm6270, %v5811
      %p6279 = scmp.lt.s32.totalorder %s25, 1
      %s6280 = scalar_select %p6279, %s25, 1
      %s6281 = smul.addr %s6280, 2
      %s6282 = scalar_lea.vmem %s12, %s6281
      %p6283 = scmp.lt.s32.totalorder %s25, 1
      %s6284 = scalar_select %p6283, %s25, 1
      %s6285 = smul.addr %s6284, 8
      %s6286 = smul.addr %s6285, 2
      %s6287 = scalar_lea.vmem %s13, %s6286
      // Predicated region
      $region69: #{emotion_net.2} parent=67 // pred_check
        %p6288 = pneg %p355
      $region70: #{emotion_net.2} parent=67 // pred_check_branch
        %6290 = sbr.rel (%p6288) target = $region72
      $region71: #{emotion_net.2} parent=67 // pred_region
        _
      $region72: #{emotion_net.2} parent=67 // pred_fallthru
        _
      // Predicated region
      $region73: #{emotion_net.2} parent=67 // pred_check
        %p6291 = pneg %p381
      $region74: #{emotion_net.2} parent=67 // pred_check_branch
        %6293 = sbr.rel (%p6291) target = $region76
      $region75: #{emotion_net.2} parent=67 // pred_region
        _
      $region76: #{emotion_net.2} parent=67 // pred_fallthru
        _
    $region68: #{emotion_net.2} parent=5 // pred_fallthru
      _
    %p6294 = scmp.le.s32.totalorder 2, %s20
    // Predicated region
    $region77: #{emotion_net.2} parent=5 // pred_check
      %p6295 = pneg %p6294
    $region78: #{emotion_net.2} parent=5 // pred_check_branch
      %6297 = sbr.rel (%p6295) target = $region80
    $region79: #{emotion_net.2} parent=5 // pred_region
      %s6298 = ssub.s32 %s20, 2
      // Predicated region
      $region81: #{emotion_net.2} parent=79 // pred_check
        %p6299 = pneg %p361
      $region82: #{emotion_net.2} parent=79 // pred_check_branch
        %6301 = sbr.rel (%p6299) target = $region84
      $region83: #{emotion_net.2} parent=79 // pred_region
        %p6302 = scmp.lt.s32.totalorder %s26, 1
        %s6303 = scalar_select %p6302, %s26, 1
        %s6304 = smul.addr %s6303, 2
        %s6305 = scalar_lea.vmem %s12, %s6304
      $region84: #{emotion_net.2} parent=79 // pred_fallthru
        _
      // Predicated region
      $region85: #{emotion_net.2} parent=79 // pred_check
        %p6306 = pneg %p387
      $region86: #{emotion_net.2} parent=79 // pred_check_branch
        %6308 = sbr.rel (%p6306) target = $region88
      $region87: #{emotion_net.2} parent=79 // pred_region
        %p6309 = scmp.lt.s32.totalorder %s26, 1
        %s6310 = scalar_select %p6309, %s26, 1
        %s6311 = smul.addr %s6310, 8
        %s6312 = smul.addr %s6311, 2
        %s6313 = scalar_lea.vmem %s13, %s6312
      $region88: #{emotion_net.2} parent=79 // pred_fallthru
        _
    $region80: #{emotion_net.2} parent=5 // pred_fallthru
      _
  $region6: #{emotion_net.2} parent=0 // loop_footer
    %s24 = sadd.s32 1, %s20
  $region7: #{emotion_net.2} parent=0 // loop_footer_branch
    %19 = sbr.rel target = $region3
  $region8: #{emotion_net.2} parent=0 // loop_exit
    _

</llo_original>
